<compile_context>
chip_gen: v6e
topology: v6e:2x2x1
jax: 0.10.0
libtpu: 0.0.40
codegen_flags: <defaults>
</compile_context>

<pallas_src>
import jax
import jax.numpy as jnp
import numpy as np
from jax.experimental import pallas as pl
from jax.experimental.pallas import tpu as pltpu

SQRT2 = 2.0 ** 0.5
INV_SQRT2 = 1.0 / SQRT2
EPS = 1e-5


def _lrelu_sqrt2(y):
    return jnp.where(y >= 0, y, 0.2 * y) * SQRT2


def fused_resblock_kernel(e00_ref, e01_ref, e10_ref, e11_ref,
                          w1_ref, g1_ref, be1_ref,
                          w2_ref, g2_ref, be2_ref, wsk_ref,
                          out_ref,
                          p00_ref, p01_ref, p10_ref, p11_ref):
    """Fused ResBlockBN forward.

    e_{r}{c}  : parity planes of the zero-padded input, e_rc = x_pad[:, r::2, c::2, :],
                shape (N, Ho+1, Wo+1, Cin).
    p_{r}{c}  : VMEM scratch planes holding pad(a1)[:, r::2, c::2, :] so that every
                stride-2 conv2 tap is a static slice.
    """
    N, Hp, Wp, Cin = e00_ref.shape          # Hp = Ho + 1, Wp = Wo + 1
    Ho, Wo = Hp - 1, Wp - 1
    Cout = out_ref.shape[3]
    rows = N * Ho * Wo

    e = ((e00_ref, e01_ref), (e10_ref, e11_ref))

    # ---- conv1 (3x3, stride 1, pad 1), computed per output parity (a, b) ----
    # acc1[(a, b)][n*Ho*Wo + ...] == conv1(x)[n, 2i + a, 2j + b, :]   (pre-BN)
    # NOTE: conv bias omitted on purpose (cancelled by the BN mean subtraction).
    acc1 = {}
    s1 = jnp.zeros((1, Cin), jnp.float32)
    s2 = jnp.zeros((1, Cin), jnp.float32)
    for a in (0, 1):
        for b in (0, 1):
            acc = jnp.zeros((rows, Cin), jnp.float32)
            for dy in range(3):
                for dx in range(3):
                    ty, tx = a + dy, b + dx
                    er = e[ty % 2][tx % 2]
                    oy, ox = ty // 2, tx // 2
                    patch = er[:, oy:oy + Ho, ox:ox + Wo, :].reshape(rows, Cin)
                    acc = acc + jnp.dot(patch, w1_ref[dy, dx, :, :],
                                        preferred_element_type=jnp.float32)
            acc1[(a, b)] = acc
            s1 = s1 + jnp.sum(acc, axis=0, keepdims=True)
            s2 = s2 + jnp.sum(acc * acc, axis=0, keepdims=True)

    # ---- BN1 (global over N,H,W; one-pass sum/sumsq) + leaky_relu * sqrt2 ---
    cnt1 = 4.0 * rows
    mean1 = s1 / cnt1
    var1 = s2 / cnt1 - mean1 * mean1
    scale1 = jax.lax.rsqrt(var1 + EPS) * g1_ref[...]
    shift1 = be1_ref[...] - mean1 * scale1

    def bn1_act(acc):
        return _lrelu_sqrt2(acc * scale1 + shift1).reshape(N, Ho, Wo, Cin)

    # ---- assemble zero-padded parity planes of the activation in VMEM ------
    # p_rc[n, i, j, :] == pad(a1)[n, 2i + r, 2j + c, :]
    #   p00[1:, 1:] = a1[1::2, 1::2]   p01[1:, :Wo] = a1[1::2, 0::2]
    #   p10[:Ho, 1:] = a1[0::2, 1::2]  p11[:Ho, :Wo] = a1[0::2, 0::2]
    for p_ref in (p00_ref, p01_ref, p10_ref, p11_ref):
        p_ref[...] = jnp.zeros_like(p_ref)
    p00_ref[:, 1:, 1:, :] = bn1_act(acc1[(1, 1)])
    p01_ref[:, 1:, :Wo, :] = bn1_act(acc1[(1, 0)])
    p10_ref[:, :Ho, 1:, :] = bn1_act(acc1[(0, 1)])
    p11_ref[:, :Ho, :Wo, :] = bn1_act(acc1[(0, 0)])

    # ---- conv2 (3x3, stride 2, pad 1): tap (dy, dx) is a static slice -------
    p = ((p00_ref, p01_ref), (p10_ref, p11_ref))
    acc2 = jnp.zeros((rows, Cout), jnp.float32)
    for dy in range(3):
        for dx in range(3):
            pr = p[dy % 2][dx % 2]
            oy, ox = dy // 2, dx // 2
            patch = pr[:, oy:oy + Ho, ox:ox + Wo, :].reshape(rows, Cin)
            acc2 = acc2 + jnp.dot(patch, w2_ref[dy, dx, :, :],
                                  preferred_element_type=jnp.float32)

    # ---- BN2 (one-pass stats) + leaky_relu * sqrt2 --------------------------
    mean2 = jnp.sum(acc2, axis=0, keepdims=True) / rows
    var2 = jnp.sum(acc2 * acc2, axis=0, keepdims=True) / rows - mean2 * mean2
    scale2 = jax.lax.rsqrt(var2 + EPS) * g2_ref[...]
    shift2 = be2_ref[...] - mean2 * scale2
    y2 = _lrelu_sqrt2(acc2 * scale2 + shift2)

    # ---- skip: 1x1 conv, stride 2, no bias.  x[::2, ::2] == e11[:, :Ho, :Wo] -
    xs = e11_ref[:, :Ho, :Wo, :].reshape(rows, Cin)
    skip = jnp.dot(xs, wsk_ref[...], preferred_element_type=jnp.float32)

    out_ref[...] = ((y2 + skip) * INV_SQRT2).reshape(N, Ho, Wo, Cout)


def res_block_bn(x_nchw, params):
    """ResBlockBN forward.  x_nchw: (N, Cin, H, W) -> (N, Cout, H//2, W//2)."""
    x = jnp.transpose(x_nchw, (0, 2, 3, 1)).astype(jnp.float32)  # NHWC
    N, H, W, Cin = x.shape
    assert H % 2 == 0 and W % 2 == 0, "even spatial dims assumed"
    Cout = params["w_skip"].shape[1]
    Ho, Wo = H // 2, W // 2

    # Zero-pad once and parity-split the *input* (input-sized, done once by
    # XLA); the conv1 activation itself never leaves VMEM.
    x_pad = jnp.pad(x, ((0, 0), (1, 1), (1, 1), (0, 0)))
    e00 = x_pad[:, 0::2, 0::2, :]
    e01 = x_pad[:, 0::2, 1::2, :]
    e10 = x_pad[:, 1::2, 0::2, :]
    e11 = x_pad[:, 1::2, 1::2, :]

    vmem = pl.BlockSpec(memory_space=pltpu.MemorySpace.VMEM)
    scratch_shapes = [pltpu.VMEM((N, Ho + 1, Wo + 1, Cin), jnp.float32)
                      for _ in range(4)]

    # Advisory cost + explicit scoped-VMEM limit (default is below physical).
    flops = (2 * N * H * W * 9 * Cin * Cin
             + 2 * N * Ho * Wo * (9 * Cin + Cin) * Cout)
    in_bytes = (4 * e00.size + params["w1"].size + params["w2"].size
                + params["w_skip"].size + 4 * (Cin + Cout)) * 4
    out_bytes = N * Ho * Wo * Cout * 4
    scratch_bytes = 4 * N * (Ho + 1) * (Wo + 1) * Cin * 4
    vmem_limit = int(min(56 * 2**20,
                         max(32 * 2**20, 8 * (in_bytes + out_bytes + scratch_bytes))))

    out_nhwc = pl.pallas_call(
        fused_resblock_kernel,
        out_shape=jax.ShapeDtypeStruct((N, Ho, Wo, Cout), jnp.float32),
        in_specs=[vmem] * 11,
        out_specs=vmem,
        scratch_shapes=scratch_shapes,
        compiler_params=pltpu.CompilerParams(vmem_limit_bytes=vmem_limit),
        cost_estimate=pl.CostEstimate(flops=flops,
                                      transcendentals=2 * (Cin + Cout),
                                      bytes_accessed=in_bytes + out_bytes),
    )(e00, e01, e10, e11,
      params["w1"], params["g1"], params["beta1"],
      params["w2"], params["g2"], params["beta2"], params["w_skip"])

    return jnp.transpose(out_nhwc, (0, 3, 1, 2))  # back to NCHW


def torch_style_reference(x_nchw, params):
    """Pure-JAX reference (lax convolutions) mirroring the PyTorch forward,
    including the conv biases (which BN cancels)."""
    dn = ("NHWC", "HWIO", "NHWC")
    x = jnp.transpose(x_nchw, (0, 2, 3, 1)).astype(jnp.float32)

    def bn(y, g, b):
        m = jnp.mean(y, axis=(0, 1, 2), keepdims=True)
        v = jnp.mean((y - m) ** 2, axis=(0, 1, 2), keepdims=True)
        return ((y - m) * jax.lax.rsqrt(v + EPS) * g.reshape(1, 1, 1, -1)
                + b.reshape(1, 1, 1, -1))

    def act(y):
        return jnp.where(y >= 0, y, 0.2 * y) * SQRT2

    y = jax.lax.conv_general_dilated(x, params["w1"], (1, 1), ((1, 1), (1, 1)),
                                     dimension_numbers=dn)
    y = act(bn(y + params["b1"].reshape(1, 1, 1, -1), params["g1"], params["beta1"]))
    y = jax.lax.conv_general_dilated(y, params["w2"], (2, 2), ((1, 1), (1, 1)),
                                     dimension_numbers=dn)
    y = act(bn(y + params["b2"].reshape(1, 1, 1, -1), params["g2"], params["beta2"]))
    cin, cout = params["w_skip"].shape
    s = jax.lax.conv_general_dilated(x, params["w_skip"].reshape(1, 1, cin, cout),
                                     (2, 2), ((0, 0), (0, 0)), dimension_numbers=dn)
    return jnp.transpose((y + s) / SQRT2, (0, 3, 1, 2))


if __name__ == "__main__":
    key = jax.random.PRNGKey(0)
    N, Cin, Cout, H, W = 2, 4, 8, 16, 16
    ks = jax.random.split(key, 10)
    # Deterministic synthetic parameters (shapes from ResBlockBN.__init__):
    #   conv1: Cin->Cin 3x3 (+bias), bn1: Cin, conv2: Cin->Cout 3x3 (+bias),
    #   bn2: Cout, skip: Cin->Cout 1x1 (no bias).  Conv weights stored HWIO.
    params = {
        "w1": 0.1 * jax.random.normal(ks[0], (3, 3, Cin, Cin), jnp.float32),
        "b1": 0.05 * jax.random.normal(ks[1], (1, Cin), jnp.float32),
        "g1": 1.0 + 0.1 * jax.random.normal(ks[2], (1, Cin), jnp.float32),
        "beta1": 0.1 * jax.random.normal(ks[3], (1, Cin), jnp.float32),
        "w2": 0.1 * jax.random.normal(ks[4], (3, 3, Cin, Cout), jnp.float32),
        "b2": 0.05 * jax.random.normal(ks[5], (1, Cout), jnp.float32),
        "g2": 1.0 + 0.1 * jax.random.normal(ks[6], (1, Cout), jnp.float32),
        "beta2": 0.1 * jax.random.normal(ks[7], (1, Cout), jnp.float32),
        "w_skip": 0.1 * jax.random.normal(ks[8], (Cin, Cout), jnp.float32),
    }
    x = jax.random.normal(ks[9], (N, Cin, H, W), jnp.float32)

    out = jax.block_until_ready(jax.jit(res_block_bn)(x, params))
    ref = jax.block_until_ready(jax.jit(torch_style_reference)(x, params))

    assert out.shape == (N, Cout, H // 2, W // 2), out.shape
    np.testing.assert_allclose(np.asarray(out), np.asarray(ref),
                               rtol=2e-4, atol=2e-4)
    print("KERNEL_OK")
</pallas_src>

<mosaic_0001>
module attributes {stable_mosaic.version = 11 : i64} {
  func.func @fused_resblock_kernel(%arg0: memref<2x9x9x4xf32, #tpu.memory_space<vmem>>, %arg1: memref<2x9x9x4xf32, #tpu.memory_space<vmem>>, %arg2: memref<2x9x9x4xf32, #tpu.memory_space<vmem>>, %arg3: memref<2x9x9x4xf32, #tpu.memory_space<vmem>>, %arg4: memref<3x3x4x4xf32, #tpu.memory_space<vmem>>, %arg5: memref<1x4xf32, #tpu.memory_space<vmem>>, %arg6: memref<1x4xf32, #tpu.memory_space<vmem>>, %arg7: memref<3x3x4x8xf32, #tpu.memory_space<vmem>>, %arg8: memref<1x8xf32, #tpu.memory_space<vmem>>, %arg9: memref<1x8xf32, #tpu.memory_space<vmem>>, %arg10: memref<4x8xf32, #tpu.memory_space<vmem>>, %arg11: memref<2x8x8x8xf32, #tpu.memory_space<vmem>>, %arg12: memref<2x9x9x4xf32, #tpu.memory_space<vmem>>, %arg13: memref<2x9x9x4xf32, #tpu.memory_space<vmem>>, %arg14: memref<2x9x9x4xf32, #tpu.memory_space<vmem>>, %arg15: memref<2x9x9x4xf32, #tpu.memory_space<vmem>>) attributes {dimension_semantics = [], scalar_prefetch = 0 : i64, scratch_operands = 4 : i64, tpu.core_type = #tpu.core_type<tc>} {
    %cst = arith.constant 0.000000e+00 : f32
    %0 = vector.broadcast %cst : f32 to vector<1x4xf32>
    %cst_0 = arith.constant 0.000000e+00 : f32
    %1 = vector.broadcast %cst_0 : f32 to vector<1x4xf32>
    %cst_1 = arith.constant 0.000000e+00 : f32
    %2 = vector.broadcast %cst_1 : f32 to vector<128x4xf32>
    %c0 = arith.constant 0 : index
    %c0_2 = arith.constant 0 : index
    %c0_3 = arith.constant 0 : index
    %c0_4 = arith.constant 0 : index
    %3 = vector.load %arg0[%c0, %c0_2, %c0_3, %c0_4] : memref<2x9x9x4xf32, #tpu.memory_space<vmem>>, vector<2x8x8x4xf32>
    %4 = vector.shape_cast %3 : vector<2x8x8x4xf32> to vector<128x4xf32>
    %c0_5 = arith.constant 0 : index
    %c0_6 = arith.constant 0 : index
    %c0_7 = arith.constant 0 : index
    %c0_8 = arith.constant 0 : index
    %5 = vector.load %arg4[%c0_5, %c0_6, %c0_7, %c0_8] : memref<3x3x4x4xf32, #tpu.memory_space<vmem>>, vector<1x1x4x4xf32>
    %6 = vector.shape_cast %5 : vector<1x1x4x4xf32> to vector<4x4xf32>
    %cst_9 = arith.constant dense<0.000000e+00> : vector<128x4xf32>
    %7 = tpu.matmul %4, %6, %cst_9 {dimension_numbers = #tpu.dot_dimension_numbers<[1], [0], [0], [1], [0, 0, 1, 1], [], []>} : vector<128x4xf32>, vector<4x4xf32>, vector<128x4xf32> -> vector<128x4xf32>
    %8 = arith.addf %2, %7 : vector<128x4xf32>
    %c0_10 = arith.constant 0 : index
    %c0_11 = arith.constant 0 : index
    %c0_12 = arith.constant 0 : index
    %c0_13 = arith.constant 0 : index
    %9 = vector.load %arg1[%c0_10, %c0_11, %c0_12, %c0_13] : memref<2x9x9x4xf32, #tpu.memory_space<vmem>>, vector<2x8x8x4xf32>
    %10 = vector.shape_cast %9 : vector<2x8x8x4xf32> to vector<128x4xf32>
    %c0_14 = arith.constant 0 : index
    %c1 = arith.constant 1 : index
    %c0_15 = arith.constant 0 : index
    %c0_16 = arith.constant 0 : index
    %11 = vector.load %arg4[%c0_14, %c1, %c0_15, %c0_16] : memref<3x3x4x4xf32, #tpu.memory_space<vmem>>, vector<1x1x4x4xf32>
    %12 = vector.shape_cast %11 : vector<1x1x4x4xf32> to vector<4x4xf32>
    %cst_17 = arith.constant dense<0.000000e+00> : vector<128x4xf32>
    %13 = tpu.matmul %10, %12, %cst_17 {dimension_numbers = #tpu.dot_dimension_numbers<[1], [0], [0], [1], [0, 0, 1, 1], [], []>} : vector<128x4xf32>, vector<4x4xf32>, vector<128x4xf32> -> vector<128x4xf32>
    %14 = arith.addf %8, %13 : vector<128x4xf32>
    %c0_18 = arith.constant 0 : index
    %c0_19 = arith.constant 0 : index
    %c1_20 = arith.constant 1 : index
    %c0_21 = arith.constant 0 : index
    %15 = vector.load %arg0[%c0_18, %c0_19, %c1_20, %c0_21] : memref<2x9x9x4xf32, #tpu.memory_space<vmem>>, vector<2x8x8x4xf32>
    %16 = vector.shape_cast %15 : vector<2x8x8x4xf32> to vector<128x4xf32>
    %c0_22 = arith.constant 0 : index
    %c2 = arith.constant 2 : index
    %c0_23 = arith.constant 0 : index
    %c0_24 = arith.constant 0 : index
    %17 = vector.load %arg4[%c0_22, %c2, %c0_23, %c0_24] : memref<3x3x4x4xf32, #tpu.memory_space<vmem>>, vector<1x1x4x4xf32>
    %18 = vector.shape_cast %17 : vector<1x1x4x4xf32> to vector<4x4xf32>
    %cst_25 = arith.constant dense<0.000000e+00> : vector<128x4xf32>
    %19 = tpu.matmul %16, %18, %cst_25 {dimension_numbers = #tpu.dot_dimension_numbers<[1], [0], [0], [1], [0, 0, 1, 1], [], []>} : vector<128x4xf32>, vector<4x4xf32>, vector<128x4xf32> -> vector<128x4xf32>
    %20 = arith.addf %14, %19 : vector<128x4xf32>
    %c0_26 = arith.constant 0 : index
    %c0_27 = arith.constant 0 : index
    %c0_28 = arith.constant 0 : index
    %c0_29 = arith.constant 0 : index
    %21 = vector.load %arg2[%c0_26, %c0_27, %c0_28, %c0_29] : memref<2x9x9x4xf32, #tpu.memory_space<vmem>>, vector<2x8x8x4xf32>
    %22 = vector.shape_cast %21 : vector<2x8x8x4xf32> to vector<128x4xf32>
    %c1_30 = arith.constant 1 : index
    %c0_31 = arith.constant 0 : index
    %c0_32 = arith.constant 0 : index
    %c0_33 = arith.constant 0 : index
    %23 = vector.load %arg4[%c1_30, %c0_31, %c0_32, %c0_33] : memref<3x3x4x4xf32, #tpu.memory_space<vmem>>, vector<1x1x4x4xf32>
    %24 = vector.shape_cast %23 : vector<1x1x4x4xf32> to vector<4x4xf32>
    %cst_34 = arith.constant dense<0.000000e+00> : vector<128x4xf32>
    %25 = tpu.matmul %22, %24, %cst_34 {dimension_numbers = #tpu.dot_dimension_numbers<[1], [0], [0], [1], [0, 0, 1, 1], [], []>} : vector<128x4xf32>, vector<4x4xf32>, vector<128x4xf32> -> vector<128x4xf32>
    %26 = arith.addf %20, %25 : vector<128x4xf32>
    %c0_35 = arith.constant 0 : index
    %c0_36 = arith.constant 0 : index
    %c0_37 = arith.constant 0 : index
    %c0_38 = arith.constant 0 : index
    %27 = vector.load %arg3[%c0_35, %c0_36, %c0_37, %c0_38] : memref<2x9x9x4xf32, #tpu.memory_space<vmem>>, vector<2x8x8x4xf32>
    %28 = vector.shape_cast %27 : vector<2x8x8x4xf32> to vector<128x4xf32>
    %c1_39 = arith.constant 1 : index
    %c1_40 = arith.constant 1 : index
    %c0_41 = arith.constant 0 : index
    %c0_42 = arith.constant 0 : index
    %29 = vector.load %arg4[%c1_39, %c1_40, %c0_41, %c0_42] : memref<3x3x4x4xf32, #tpu.memory_space<vmem>>, vector<1x1x4x4xf32>
    %30 = vector.shape_cast %29 : vector<1x1x4x4xf32> to vector<4x4xf32>
    %cst_43 = arith.constant dense<0.000000e+00> : vector<128x4xf32>
    %31 = tpu.matmul %28, %30, %cst_43 {dimension_numbers = #tpu.dot_dimension_numbers<[1], [0], [0], [1], [0, 0, 1, 1], [], []>} : vector<128x4xf32>, vector<4x4xf32>, vector<128x4xf32> -> vector<128x4xf32>
    %32 = arith.addf %26, %31 : vector<128x4xf32>
    %c0_44 = arith.constant 0 : index
    %c0_45 = arith.constant 0 : index
    %c1_46 = arith.constant 1 : index
    %c0_47 = arith.constant 0 : index
    %33 = vector.load %arg2[%c0_44, %c0_45, %c1_46, %c0_47] : memref<2x9x9x4xf32, #tpu.memory_space<vmem>>, vector<2x8x8x4xf32>
    %34 = vector.shape_cast %33 : vector<2x8x8x4xf32> to vector<128x4xf32>
    %c1_48 = arith.constant 1 : index
    %c2_49 = arith.constant 2 : index
    %c0_50 = arith.constant 0 : index
    %c0_51 = arith.constant 0 : index
    %35 = vector.load %arg4[%c1_48, %c2_49, %c0_50, %c0_51] : memref<3x3x4x4xf32, #tpu.memory_space<vmem>>, vector<1x1x4x4xf32>
    %36 = vector.shape_cast %35 : vector<1x1x4x4xf32> to vector<4x4xf32>
    %cst_52 = arith.constant dense<0.000000e+00> : vector<128x4xf32>
    %37 = tpu.matmul %34, %36, %cst_52 {dimension_numbers = #tpu.dot_dimension_numbers<[1], [0], [0], [1], [0, 0, 1, 1], [], []>} : vector<128x4xf32>, vector<4x4xf32>, vector<128x4xf32> -> vector<128x4xf32>
    %38 = arith.addf %32, %37 : vector<128x4xf32>
    %c0_53 = arith.constant 0 : index
    %c1_54 = arith.constant 1 : index
    %c0_55 = arith.constant 0 : index
    %c0_56 = arith.constant 0 : index
    %39 = vector.load %arg0[%c0_53, %c1_54, %c0_55, %c0_56] : memref<2x9x9x4xf32, #tpu.memory_space<vmem>>, vector<2x8x8x4xf32>
    %40 = vector.shape_cast %39 : vector<2x8x8x4xf32> to vector<128x4xf32>
    %c2_57 = arith.constant 2 : index
    %c0_58 = arith.constant 0 : index
    %c0_59 = arith.constant 0 : index
    %c0_60 = arith.constant 0 : index
    %41 = vector.load %arg4[%c2_57, %c0_58, %c0_59, %c0_60] : memref<3x3x4x4xf32, #tpu.memory_space<vmem>>, vector<1x1x4x4xf32>
    %42 = vector.shape_cast %41 : vector<1x1x4x4xf32> to vector<4x4xf32>
    %cst_61 = arith.constant dense<0.000000e+00> : vector<128x4xf32>
    %43 = tpu.matmul %40, %42, %cst_61 {dimension_numbers = #tpu.dot_dimension_numbers<[1], [0], [0], [1], [0, 0, 1, 1], [], []>} : vector<128x4xf32>, vector<4x4xf32>, vector<128x4xf32> -> vector<128x4xf32>
    %44 = arith.addf %38, %43 : vector<128x4xf32>
    %c0_62 = arith.constant 0 : index
    %c1_63 = arith.constant 1 : index
    %c0_64 = arith.constant 0 : index
    %c0_65 = arith.constant 0 : index
    %45 = vector.load %arg1[%c0_62, %c1_63, %c0_64, %c0_65] : memref<2x9x9x4xf32, #tpu.memory_space<vmem>>, vector<2x8x8x4xf32>
    %46 = vector.shape_cast %45 : vector<2x8x8x4xf32> to vector<128x4xf32>
    %c2_66 = arith.constant 2 : index
    %c1_67 = arith.constant 1 : index
    %c0_68 = arith.constant 0 : index
    %c0_69 = arith.constant 0 : index
    %47 = vector.load %arg4[%c2_66, %c1_67, %c0_68, %c0_69] : memref<3x3x4x4xf32, #tpu.memory_space<vmem>>, vector<1x1x4x4xf32>
    %48 = vector.shape_cast %47 : vector<1x1x4x4xf32> to vector<4x4xf32>
    %cst_70 = arith.constant dense<0.000000e+00> : vector<128x4xf32>
    %49 = tpu.matmul %46, %48, %cst_70 {dimension_numbers = #tpu.dot_dimension_numbers<[1], [0], [0], [1], [0, 0, 1, 1], [], []>} : vector<128x4xf32>, vector<4x4xf32>, vector<128x4xf32> -> vector<128x4xf32>
    %50 = arith.addf %44, %49 : vector<128x4xf32>
    %c0_71 = arith.constant 0 : index
    %c1_72 = arith.constant 1 : index
    %c1_73 = arith.constant 1 : index
    %c0_74 = arith.constant 0 : index
    %51 = vector.load %arg0[%c0_71, %c1_72, %c1_73, %c0_74] : memref<2x9x9x4xf32, #tpu.memory_space<vmem>>, vector<2x8x8x4xf32>
    %52 = vector.shape_cast %51 : vector<2x8x8x4xf32> to vector<128x4xf32>
    %c2_75 = arith.constant 2 : index
    %c2_76 = arith.constant 2 : index
    %c0_77 = arith.constant 0 : index
    %c0_78 = arith.constant 0 : index
    %53 = vector.load %arg4[%c2_75, %c2_76, %c0_77, %c0_78] : memref<3x3x4x4xf32, #tpu.memory_space<vmem>>, vector<1x1x4x4xf32>
    %54 = vector.shape_cast %53 : vector<1x1x4x4xf32> to vector<4x4xf32>
    %cst_79 = arith.constant dense<0.000000e+00> : vector<128x4xf32>
    %55 = tpu.matmul %52, %54, %cst_79 {dimension_numbers = #tpu.dot_dimension_numbers<[1], [0], [0], [1], [0, 0, 1, 1], [], []>} : vector<128x4xf32>, vector<4x4xf32>, vector<128x4xf32> -> vector<128x4xf32>
    %56 = arith.addf %50, %55 : vector<128x4xf32>
    %cst_80 = arith.constant dense<0.000000e+00> : vector<4xf32>
    %57 = vector.multi_reduction <add>, %56, %cst_80 [0] : vector<128x4xf32> to vector<4xf32>
    %58 = vector.shape_cast %57 : vector<4xf32> to vector<1x4xf32>
    %59 = arith.addf %0, %58 : vector<1x4xf32>
    %60 = arith.mulf %56, %56 : vector<128x4xf32>
    %cst_81 = arith.constant dense<0.000000e+00> : vector<4xf32>
    %61 = vector.multi_reduction <add>, %60, %cst_81 [0] : vector<128x4xf32> to vector<4xf32>
    %62 = vector.shape_cast %61 : vector<4xf32> to vector<1x4xf32>
    %63 = arith.addf %1, %62 : vector<1x4xf32>
    %cst_82 = arith.constant 0.000000e+00 : f32
    %64 = vector.broadcast %cst_82 : f32 to vector<128x4xf32>
    %c0_83 = arith.constant 0 : index
    %c0_84 = arith.constant 0 : index
    %c0_85 = arith.constant 0 : index
    %c0_86 = arith.constant 0 : index
    %65 = vector.load %arg1[%c0_83, %c0_84, %c0_85, %c0_86] : memref<2x9x9x4xf32, #tpu.memory_space<vmem>>, vector<2x8x8x4xf32>
    %66 = vector.shape_cast %65 : vector<2x8x8x4xf32> to vector<128x4xf32>
    %c0_87 = arith.constant 0 : index
    %c0_88 = arith.constant 0 : index
    %c0_89 = arith.constant 0 : index
    %c0_90 = arith.constant 0 : index
    %67 = vector.load %arg4[%c0_87, %c0_88, %c0_89, %c0_90] : memref<3x3x4x4xf32, #tpu.memory_space<vmem>>, vector<1x1x4x4xf32>
    %68 = vector.shape_cast %67 : vector<1x1x4x4xf32> to vector<4x4xf32>
    %cst_91 = arith.constant dense<0.000000e+00> : vector<128x4xf32>
    %69 = tpu.matmul %66, %68, %cst_91 {dimension_numbers = #tpu.dot_dimension_numbers<[1], [0], [0], [1], [0, 0, 1, 1], [], []>} : vector<128x4xf32>, vector<4x4xf32>, vector<128x4xf32> -> vector<128x4xf32>
    %70 = arith.addf %64, %69 : vector<128x4xf32>
    %c0_92 = arith.constant 0 : index
    %c0_93 = arith.constant 0 : index
    %c1_94 = arith.constant 1 : index
    %c0_95 = arith.constant 0 : index
    %71 = vector.load %arg0[%c0_92, %c0_93, %c1_94, %c0_95] : memref<2x9x9x4xf32, #tpu.memory_space<vmem>>, vector<2x8x8x4xf32>
    %72 = vector.shape_cast %71 : vector<2x8x8x4xf32> to vector<128x4xf32>
    %c0_96 = arith.constant 0 : index
    %c1_97 = arith.constant 1 : index
    %c0_98 = arith.constant 0 : index
    %c0_99 = arith.constant 0 : index
    %73 = vector.load %arg4[%c0_96, %c1_97, %c0_98, %c0_99] : memref<3x3x4x4xf32, #tpu.memory_space<vmem>>, vector<1x1x4x4xf32>
    %74 = vector.shape_cast %73 : vector<1x1x4x4xf32> to vector<4x4xf32>
    %cst_100 = arith.constant dense<0.000000e+00> : vector<128x4xf32>
    %75 = tpu.matmul %72, %74, %cst_100 {dimension_numbers = #tpu.dot_dimension_numbers<[1], [0], [0], [1], [0, 0, 1, 1], [], []>} : vector<128x4xf32>, vector<4x4xf32>, vector<128x4xf32> -> vector<128x4xf32>
    %76 = arith.addf %70, %75 : vector<128x4xf32>
    %c0_101 = arith.constant 0 : index
    %c0_102 = arith.constant 0 : index
    %c1_103 = arith.constant 1 : index
    %c0_104 = arith.constant 0 : index
    %77 = vector.load %arg1[%c0_101, %c0_102, %c1_103, %c0_104] : memref<2x9x9x4xf32, #tpu.memory_space<vmem>>, vector<2x8x8x4xf32>
    %78 = vector.shape_cast %77 : vector<2x8x8x4xf32> to vector<128x4xf32>
    %c0_105 = arith.constant 0 : index
    %c2_106 = arith.constant 2 : index
    %c0_107 = arith.constant 0 : index
    %c0_108 = arith.constant 0 : index
    %79 = vector.load %arg4[%c0_105, %c2_106, %c0_107, %c0_108] : memref<3x3x4x4xf32, #tpu.memory_space<vmem>>, vector<1x1x4x4xf32>
    %80 = vector.shape_cast %79 : vector<1x1x4x4xf32> to vector<4x4xf32>
    %cst_109 = arith.constant dense<0.000000e+00> : vector<128x4xf32>
    %81 = tpu.matmul %78, %80, %cst_109 {dimension_numbers = #tpu.dot_dimension_numbers<[1], [0], [0], [1], [0, 0, 1, 1], [], []>} : vector<128x4xf32>, vector<4x4xf32>, vector<128x4xf32> -> vector<128x4xf32>
    %82 = arith.addf %76, %81 : vector<128x4xf32>
    %c0_110 = arith.constant 0 : index
    %c0_111 = arith.constant 0 : index
    %c0_112 = arith.constant 0 : index
    %c0_113 = arith.constant 0 : index
    %83 = vector.load %arg3[%c0_110, %c0_111, %c0_112, %c0_113] : memref<2x9x9x4xf32, #tpu.memory_space<vmem>>, vector<2x8x8x4xf32>
    %84 = vector.shape_cast %83 : vector<2x8x8x4xf32> to vector<128x4xf32>
    %c1_114 = arith.constant 1 : index
    %c0_115 = arith.constant 0 : index
    %c0_116 = arith.constant 0 : index
    %c0_117 = arith.constant 0 : index
    %85 = vector.load %arg4[%c1_114, %c0_115, %c0_116, %c0_117] : memref<3x3x4x4xf32, #tpu.memory_space<vmem>>, vector<1x1x4x4xf32>
    %86 = vector.shape_cast %85 : vector<1x1x4x4xf32> to vector<4x4xf32>
    %cst_118 = arith.constant dense<0.000000e+00> : vector<128x4xf32>
    %87 = tpu.matmul %84, %86, %cst_118 {dimension_numbers = #tpu.dot_dimension_numbers<[1], [0], [0], [1], [0, 0, 1, 1], [], []>} : vector<128x4xf32>, vector<4x4xf32>, vector<128x4xf32> -> vector<128x4xf32>
    %88 = arith.addf %82, %87 : vector<128x4xf32>
    %c0_119 = arith.constant 0 : index
    %c0_120 = arith.constant 0 : index
    %c1_121 = arith.constant 1 : index
    %c0_122 = arith.constant 0 : index
    %89 = vector.load %arg2[%c0_119, %c0_120, %c1_121, %c0_122] : memref<2x9x9x4xf32, #tpu.memory_space<vmem>>, vector<2x8x8x4xf32>
    %90 = vector.shape_cast %89 : vector<2x8x8x4xf32> to vector<128x4xf32>
    %c1_123 = arith.constant 1 : index
    %c1_124 = arith.constant 1 : index
    %c0_125 = arith.constant 0 : index
    %c0_126 = arith.constant 0 : index
    %91 = vector.load %arg4[%c1_123, %c1_124, %c0_125, %c0_126] : memref<3x3x4x4xf32, #tpu.memory_space<vmem>>, vector<1x1x4x4xf32>
    %92 = vector.shape_cast %91 : vector<1x1x4x4xf32> to vector<4x4xf32>
    %cst_127 = arith.constant dense<0.000000e+00> : vector<128x4xf32>
    %93 = tpu.matmul %90, %92, %cst_127 {dimension_numbers = #tpu.dot_dimension_numbers<[1], [0], [0], [1], [0, 0, 1, 1], [], []>} : vector<128x4xf32>, vector<4x4xf32>, vector<128x4xf32> -> vector<128x4xf32>
    %94 = arith.addf %88, %93 : vector<128x4xf32>
    %c0_128 = arith.constant 0 : index
    %c0_129 = arith.constant 0 : index
    %c1_130 = arith.constant 1 : index
    %c0_131 = arith.constant 0 : index
    %95 = vector.load %arg3[%c0_128, %c0_129, %c1_130, %c0_131] : memref<2x9x9x4xf32, #tpu.memory_space<vmem>>, vector<2x8x8x4xf32>
    %96 = vector.shape_cast %95 : vector<2x8x8x4xf32> to vector<128x4xf32>
    %c1_132 = arith.constant 1 : index
    %c2_133 = arith.constant 2 : index
    %c0_134 = arith.constant 0 : index
    %c0_135 = arith.constant 0 : index
    %97 = vector.load %arg4[%c1_132, %c2_133, %c0_134, %c0_135] : memref<3x3x4x4xf32, #tpu.memory_space<vmem>>, vector<1x1x4x4xf32>
    %98 = vector.shape_cast %97 : vector<1x1x4x4xf32> to vector<4x4xf32>
    %cst_136 = arith.constant dense<0.000000e+00> : vector<128x4xf32>
    %99 = tpu.matmul %96, %98, %cst_136 {dimension_numbers = #tpu.dot_dimension_numbers<[1], [0], [0], [1], [0, 0, 1, 1], [], []>} : vector<128x4xf32>, vector<4x4xf32>, vector<128x4xf32> -> vector<128x4xf32>
    %100 = arith.addf %94, %99 : vector<128x4xf32>
    %c0_137 = arith.constant 0 : index
    %c1_138 = arith.constant 1 : index
    %c0_139 = arith.constant 0 : index
    %c0_140 = arith.constant 0 : index
    %101 = vector.load %arg1[%c0_137, %c1_138, %c0_139, %c0_140] : memref<2x9x9x4xf32, #tpu.memory_space<vmem>>, vector<2x8x8x4xf32>
    %102 = vector.shape_cast %101 : vector<2x8x8x4xf32> to vector<128x4xf32>
    %c2_141 = arith.constant 2 : index
    %c0_142 = arith.constant 0 : index
    %c0_143 = arith.constant 0 : index
    %c0_144 = arith.constant 0 : index
    %103 = vector.load %arg4[%c2_141, %c0_142, %c0_143, %c0_144] : memref<3x3x4x4xf32, #tpu.memory_space<vmem>>, vector<1x1x4x4xf32>
    %104 = vector.shape_cast %103 : vector<1x1x4x4xf32> to vector<4x4xf32>
    %cst_145 = arith.constant dense<0.000000e+00> : vector<128x4xf32>
    %105 = tpu.matmul %102, %104, %cst_145 {dimension_numbers = #tpu.dot_dimension_numbers<[1], [0], [0], [1], [0, 0, 1, 1], [], []>} : vector<128x4xf32>, vector<4x4xf32>, vector<128x4xf32> -> vector<128x4xf32>
    %106 = arith.addf %100, %105 : vector<128x4xf32>
    %c0_146 = arith.constant 0 : index
    %c1_147 = arith.constant 1 : index
    %c1_148 = arith.constant 1 : index
    %c0_149 = arith.constant 0 : index
    %107 = vector.load %arg0[%c0_146, %c1_147, %c1_148, %c0_149] : memref<2x9x9x4xf32, #tpu.memory_space<vmem>>, vector<2x8x8x4xf32>
    %108 = vector.shape_cast %107 : vector<2x8x8x4xf32> to vector<128x4xf32>
    %c2_150 = arith.constant 2 : index
    %c1_151 = arith.constant 1 : index
    %c0_152 = arith.constant 0 : index
    %c0_153 = arith.constant 0 : index
    %109 = vector.load %arg4[%c2_150, %c1_151, %c0_152, %c0_153] : memref<3x3x4x4xf32, #tpu.memory_space<vmem>>, vector<1x1x4x4xf32>
    %110 = vector.shape_cast %109 : vector<1x1x4x4xf32> to vector<4x4xf32>
    %cst_154 = arith.constant dense<0.000000e+00> : vector<128x4xf32>
    %111 = tpu.matmul %108, %110, %cst_154 {dimension_numbers = #tpu.dot_dimension_numbers<[1], [0], [0], [1], [0, 0, 1, 1], [], []>} : vector<128x4xf32>, vector<4x4xf32>, vector<128x4xf32> -> vector<128x4xf32>
    %112 = arith.addf %106, %111 : vector<128x4xf32>
    %c0_155 = arith.constant 0 : index
    %c1_156 = arith.constant 1 : index
    %c1_157 = arith.constant 1 : index
    %c0_158 = arith.constant 0 : index
    %113 = vector.load %arg1[%c0_155, %c1_156, %c1_157, %c0_158] : memref<2x9x9x4xf32, #tpu.memory_space<vmem>>, vector<2x8x8x4xf32>
    %114 = vector.shape_cast %113 : vector<2x8x8x4xf32> to vector<128x4xf32>
    %c2_159 = arith.constant 2 : index
    %c2_160 = arith.constant 2 : index
    %c0_161 = arith.constant 0 : index
    %c0_162 = arith.constant 0 : index
    %115 = vector.load %arg4[%c2_159, %c2_160, %c0_161, %c0_162] : memref<3x3x4x4xf32, #tpu.memory_space<vmem>>, vector<1x1x4x4xf32>
    %116 = vector.shape_cast %115 : vector<1x1x4x4xf32> to vector<4x4xf32>
    %cst_163 = arith.constant dense<0.000000e+00> : vector<128x4xf32>
    %117 = tpu.matmul %114, %116, %cst_163 {dimension_numbers = #tpu.dot_dimension_numbers<[1], [0], [0], [1], [0, 0, 1, 1], [], []>} : vector<128x4xf32>, vector<4x4xf32>, vector<128x4xf32> -> vector<128x4xf32>
    %118 = arith.addf %112, %117 : vector<128x4xf32>
    %cst_164 = arith.constant dense<0.000000e+00> : vector<4xf32>
    %119 = vector.multi_reduction <add>, %118, %cst_164 [0] : vector<128x4xf32> to vector<4xf32>
    %120 = vector.shape_cast %119 : vector<4xf32> to vector<1x4xf32>
    %121 = arith.addf %59, %120 : vector<1x4xf32>
    %122 = arith.mulf %118, %118 : vector<128x4xf32>
    %cst_165 = arith.constant dense<0.000000e+00> : vector<4xf32>
    %123 = vector.multi_reduction <add>, %122, %cst_165 [0] : vector<128x4xf32> to vector<4xf32>
    %124 = vector.shape_cast %123 : vector<4xf32> to vector<1x4xf32>
    %125 = arith.addf %63, %124 : vector<1x4xf32>
    %cst_166 = arith.constant 0.000000e+00 : f32
    %126 = vector.broadcast %cst_166 : f32 to vector<128x4xf32>
    %c0_167 = arith.constant 0 : index
    %c0_168 = arith.constant 0 : index
    %c0_169 = arith.constant 0 : index
    %c0_170 = arith.constant 0 : index
    %127 = vector.load %arg2[%c0_167, %c0_168, %c0_169, %c0_170] : memref<2x9x9x4xf32, #tpu.memory_space<vmem>>, vector<2x8x8x4xf32>
    %128 = vector.shape_cast %127 : vector<2x8x8x4xf32> to vector<128x4xf32>
    %c0_171 = arith.constant 0 : index
    %c0_172 = arith.constant 0 : index
    %c0_173 = arith.constant 0 : index
    %c0_174 = arith.constant 0 : index
    %129 = vector.load %arg4[%c0_171, %c0_172, %c0_173, %c0_174] : memref<3x3x4x4xf32, #tpu.memory_space<vmem>>, vector<1x1x4x4xf32>
    %130 = vector.shape_cast %129 : vector<1x1x4x4xf32> to vector<4x4xf32>
    %cst_175 = arith.constant dense<0.000000e+00> : vector<128x4xf32>
    %131 = tpu.matmul %128, %130, %cst_175 {dimension_numbers = #tpu.dot_dimension_numbers<[1], [0], [0], [1], [0, 0, 1, 1], [], []>} : vector<128x4xf32>, vector<4x4xf32>, vector<128x4xf32> -> vector<128x4xf32>
    %132 = arith.addf %126, %131 : vector<128x4xf32>
    %c0_176 = arith.constant 0 : index
    %c0_177 = arith.constant 0 : index
    %c0_178 = arith.constant 0 : index
    %c0_179 = arith.constant 0 : index
    %133 = vector.load %arg3[%c0_176, %c0_177, %c0_178, %c0_179] : memref<2x9x9x4xf32, #tpu.memory_space<vmem>>, vector<2x8x8x4xf32>
    %134 = vector.shape_cast %133 : vector<2x8x8x4xf32> to vector<128x4xf32>
    %c0_180 = arith.constant 0 : index
    %c1_181 = arith.constant 1 : index
    %c0_182 = arith.constant 0 : index
    %c0_183 = arith.constant 0 : index
    %135 = vector.load %arg4[%c0_180, %c1_181, %c0_182, %c0_183] : memref<3x3x4x4xf32, #tpu.memory_space<vmem>>, vector<1x1x4x4xf32>
    %136 = vector.shape_cast %135 : vector<1x1x4x4xf32> to vector<4x4xf32>
    %cst_184 = arith.constant dense<0.000000e+00> : vector<128x4xf32>
    %137 = tpu.matmul %134, %136, %cst_184 {dimension_numbers = #tpu.dot_dimension_numbers<[1], [0], [0], [1], [0, 0, 1, 1], [], []>} : vector<128x4xf32>, vector<4x4xf32>, vector<128x4xf32> -> vector<128x4xf32>
    %138 = arith.addf %132, %137 : vector<128x4xf32>
    %c0_185 = arith.constant 0 : index
    %c0_186 = arith.constant 0 : index
    %c1_187 = arith.constant 1 : index
    %c0_188 = arith.constant 0 : index
    %139 = vector.load %arg2[%c0_185, %c0_186, %c1_187, %c0_188] : memref<2x9x9x4xf32, #tpu.memory_space<vmem>>, vector<2x8x8x4xf32>
    %140 = vector.shape_cast %139 : vector<2x8x8x4xf32> to vector<128x4xf32>
    %c0_189 = arith.constant 0 : index
    %c2_190 = arith.constant 2 : index
    %c0_191 = arith.constant 0 : index
    %c0_192 = arith.constant 0 : index
    %141 = vector.load %arg4[%c0_189, %c2_190, %c0_191, %c0_192] : memref<3x3x4x4xf32, #tpu.memory_space<vmem>>, vector<1x1x4x4xf32>
    %142 = vector.shape_cast %141 : vector<1x1x4x4xf32> to vector<4x4xf32>
    %cst_193 = arith.constant dense<0.000000e+00> : vector<128x4xf32>
    %143 = tpu.matmul %140, %142, %cst_193 {dimension_numbers = #tpu.dot_dimension_numbers<[1], [0], [0], [1], [0, 0, 1, 1], [], []>} : vector<128x4xf32>, vector<4x4xf32>, vector<128x4xf32> -> vector<128x4xf32>
    %144 = arith.addf %138, %143 : vector<128x4xf32>
    %c0_194 = arith.constant 0 : index
    %c1_195 = arith.constant 1 : index
    %c0_196 = arith.constant 0 : index
    %c0_197 = arith.constant 0 : index
    %145 = vector.load %arg0[%c0_194, %c1_195, %c0_196, %c0_197] : memref<2x9x9x4xf32, #tpu.memory_space<vmem>>, vector<2x8x8x4xf32>
    %146 = vector.shape_cast %145 : vector<2x8x8x4xf32> to vector<128x4xf32>
    %c1_198 = arith.constant 1 : index
    %c0_199 = arith.constant 0 : index
    %c0_200 = arith.constant 0 : index
    %c0_201 = arith.constant 0 : index
    %147 = vector.load %arg4[%c1_198, %c0_199, %c0_200, %c0_201] : memref<3x3x4x4xf32, #tpu.memory_space<vmem>>, vector<1x1x4x4xf32>
    %148 = vector.shape_cast %147 : vector<1x1x4x4xf32> to vector<4x4xf32>
    %cst_202 = arith.constant dense<0.000000e+00> : vector<128x4xf32>
    %149 = tpu.matmul %146, %148, %cst_202 {dimension_numbers = #tpu.dot_dimension_numbers<[1], [0], [0], [1], [0, 0, 1, 1], [], []>} : vector<128x4xf32>, vector<4x4xf32>, vector<128x4xf32> -> vector<128x4xf32>
    %150 = arith.addf %144, %149 : vector<128x4xf32>
    %c0_203 = arith.constant 0 : index
    %c1_204 = arith.constant 1 : index
    %c0_205 = arith.constant 0 : index
    %c0_206 = arith.constant 0 : index
    %151 = vector.load %arg1[%c0_203, %c1_204, %c0_205, %c0_206] : memref<2x9x9x4xf32, #tpu.memory_space<vmem>>, vector<2x8x8x4xf32>
    %152 = vector.shape_cast %151 : vector<2x8x8x4xf32> to vector<128x4xf32>
    %c1_207 = arith.constant 1 : index
    %c1_208 = arith.constant 1 : index
    %c0_209 = arith.constant 0 : index
    %c0_210 = arith.constant 0 : index
    %153 = vector.load %arg4[%c1_207, %c1_208, %c0_209, %c0_210] : memref<3x3x4x4xf32, #tpu.memory_space<vmem>>, vector<1x1x4x4xf32>
    %154 = vector.shape_cast %153 : vector<1x1x4x4xf32> to vector<4x4xf32>
    %cst_211 = arith.constant dense<0.000000e+00> : vector<128x4xf32>
    %155 = tpu.matmul %152, %154, %cst_211 {dimension_numbers = #tpu.dot_dimension_numbers<[1], [0], [0], [1], [0, 0, 1, 1], [], []>} : vector<128x4xf32>, vector<4x4xf32>, vector<128x4xf32> -> vector<128x4xf32>
    %156 = arith.addf %150, %155 : vector<128x4xf32>
    %c0_212 = arith.constant 0 : index
    %c1_213 = arith.constant 1 : index
    %c1_214 = arith.constant 1 : index
    %c0_215 = arith.constant 0 : index
    %157 = vector.load %arg0[%c0_212, %c1_213, %c1_214, %c0_215] : memref<2x9x9x4xf32, #tpu.memory_space<vmem>>, vector<2x8x8x4xf32>
    %158 = vector.shape_cast %157 : vector<2x8x8x4xf32> to vector<128x4xf32>
    %c1_216 = arith.constant 1 : index
    %c2_217 = arith.constant 2 : index
    %c0_218 = arith.constant 0 : index
    %c0_219 = arith.constant 0 : index
    %159 = vector.load %arg4[%c1_216, %c2_217, %c0_218, %c0_219] : memref<3x3x4x4xf32, #tpu.memory_space<vmem>>, vector<1x1x4x4xf32>
    %160 = vector.shape_cast %159 : vector<1x1x4x4xf32> to vector<4x4xf32>
    %cst_220 = arith.constant dense<0.000000e+00> : vector<128x4xf32>
    %161 = tpu.matmul %158, %160, %cst_220 {dimension_numbers = #tpu.dot_dimension_numbers<[1], [0], [0], [1], [0, 0, 1, 1], [], []>} : vector<128x4xf32>, vector<4x4xf32>, vector<128x4xf32> -> vector<128x4xf32>
    %162 = arith.addf %156, %161 : vector<128x4xf32>
    %c0_221 = arith.constant 0 : index
    %c1_222 = arith.constant 1 : index
    %c0_223 = arith.constant 0 : index
    %c0_224 = arith.constant 0 : index
    %163 = vector.load %arg2[%c0_221, %c1_222, %c0_223, %c0_224] : memref<2x9x9x4xf32, #tpu.memory_space<vmem>>, vector<2x8x8x4xf32>
    %164 = vector.shape_cast %163 : vector<2x8x8x4xf32> to vector<128x4xf32>
    %c2_225 = arith.constant 2 : index
    %c0_226 = arith.constant 0 : index
    %c0_227 = arith.constant 0 : index
    %c0_228 = arith.constant 0 : index
    %165 = vector.load %arg4[%c2_225, %c0_226, %c0_227, %c0_228] : memref<3x3x4x4xf32, #tpu.memory_space<vmem>>, vector<1x1x4x4xf32>
    %166 = vector.shape_cast %165 : vector<1x1x4x4xf32> to vector<4x4xf32>
    %cst_229 = arith.constant dense<0.000000e+00> : vector<128x4xf32>
    %167 = tpu.matmul %164, %166, %cst_229 {dimension_numbers = #tpu.dot_dimension_numbers<[1], [0], [0], [1], [0, 0, 1, 1], [], []>} : vector<128x4xf32>, vector<4x4xf32>, vector<128x4xf32> -> vector<128x4xf32>
    %168 = arith.addf %162, %167 : vector<128x4xf32>
    %c0_230 = arith.constant 0 : index
    %c1_231 = arith.constant 1 : index
    %c0_232 = arith.constant 0 : index
    %c0_233 = arith.constant 0 : index
    %169 = vector.load %arg3[%c0_230, %c1_231, %c0_232, %c0_233] : memref<2x9x9x4xf32, #tpu.memory_space<vmem>>, vector<2x8x8x4xf32>
    %170 = vector.shape_cast %169 : vector<2x8x8x4xf32> to vector<128x4xf32>
    %c2_234 = arith.constant 2 : index
    %c1_235 = arith.constant 1 : index
    %c0_236 = arith.constant 0 : index
    %c0_237 = arith.constant 0 : index
    %171 = vector.load %arg4[%c2_234, %c1_235, %c0_236, %c0_237] : memref<3x3x4x4xf32, #tpu.memory_space<vmem>>, vector<1x1x4x4xf32>
    %172 = vector.shape_cast %171 : vector<1x1x4x4xf32> to vector<4x4xf32>
    %cst_238 = arith.constant dense<0.000000e+00> : vector<128x4xf32>
    %173 = tpu.matmul %170, %172, %cst_238 {dimension_numbers = #tpu.dot_dimension_numbers<[1], [0], [0], [1], [0, 0, 1, 1], [], []>} : vector<128x4xf32>, vector<4x4xf32>, vector<128x4xf32> -> vector<128x4xf32>
    %174 = arith.addf %168, %173 : vector<128x4xf32>
    %c0_239 = arith.constant 0 : index
    %c1_240 = arith.constant 1 : index
    %c1_241 = arith.constant 1 : index
    %c0_242 = arith.constant 0 : index
    %175 = vector.load %arg2[%c0_239, %c1_240, %c1_241, %c0_242] : memref<2x9x9x4xf32, #tpu.memory_space<vmem>>, vector<2x8x8x4xf32>
    %176 = vector.shape_cast %175 : vector<2x8x8x4xf32> to vector<128x4xf32>
    %c2_243 = arith.constant 2 : index
    %c2_244 = arith.constant 2 : index
    %c0_245 = arith.constant 0 : index
    %c0_246 = arith.constant 0 : index
    %177 = vector.load %arg4[%c2_243, %c2_244, %c0_245, %c0_246] : memref<3x3x4x4xf32, #tpu.memory_space<vmem>>, vector<1x1x4x4xf32>
    %178 = vector.shape_cast %177 : vector<1x1x4x4xf32> to vector<4x4xf32>
    %cst_247 = arith.constant dense<0.000000e+00> : vector<128x4xf32>
    %179 = tpu.matmul %176, %178, %cst_247 {dimension_numbers = #tpu.dot_dimension_numbers<[1], [0], [0], [1], [0, 0, 1, 1], [], []>} : vector<128x4xf32>, vector<4x4xf32>, vector<128x4xf32> -> vector<128x4xf32>
    %180 = arith.addf %174, %179 : vector<128x4xf32>
    %cst_248 = arith.constant dense<0.000000e+00> : vector<4xf32>
    %181 = vector.multi_reduction <add>, %180, %cst_248 [0] : vector<128x4xf32> to vector<4xf32>
    %182 = vector.shape_cast %181 : vector<4xf32> to vector<1x4xf32>
    %183 = arith.addf %121, %182 : vector<1x4xf32>
    %184 = arith.mulf %180, %180 : vector<128x4xf32>
    %cst_249 = arith.constant dense<0.000000e+00> : vector<4xf32>
    %185 = vector.multi_reduction <add>, %184, %cst_249 [0] : vector<128x4xf32> to vector<4xf32>
    %186 = vector.shape_cast %185 : vector<4xf32> to vector<1x4xf32>
    %187 = arith.addf %125, %186 : vector<1x4xf32>
    %cst_250 = arith.constant 0.000000e+00 : f32
    %188 = vector.broadcast %cst_250 : f32 to vector<128x4xf32>
    %c0_251 = arith.constant 0 : index
    %c0_252 = arith.constant 0 : index
    %c0_253 = arith.constant 0 : index
    %c0_254 = arith.constant 0 : index
    %189 = vector.load %arg3[%c0_251, %c0_252, %c0_253, %c0_254] : memref<2x9x9x4xf32, #tpu.memory_space<vmem>>, vector<2x8x8x4xf32>
    %190 = vector.shape_cast %189 : vector<2x8x8x4xf32> to vector<128x4xf32>
    %c0_255 = arith.constant 0 : index
    %c0_256 = arith.constant 0 : index
    %c0_257 = arith.constant 0 : index
    %c0_258 = arith.constant 0 : index
    %191 = vector.load %arg4[%c0_255, %c0_256, %c0_257, %c0_258] : memref<3x3x4x4xf32, #tpu.memory_space<vmem>>, vector<1x1x4x4xf32>
    %192 = vector.shape_cast %191 : vector<1x1x4x4xf32> to vector<4x4xf32>
    %cst_259 = arith.constant dense<0.000000e+00> : vector<128x4xf32>
    %193 = tpu.matmul %190, %192, %cst_259 {dimension_numbers = #tpu.dot_dimension_numbers<[1], [0], [0], [1], [0, 0, 1, 1], [], []>} : vector<128x4xf32>, vector<4x4xf32>, vector<128x4xf32> -> vector<128x4xf32>
    %194 = arith.addf %188, %193 : vector<128x4xf32>
    %c0_260 = arith.constant 0 : index
    %c0_261 = arith.constant 0 : index
    %c1_262 = arith.constant 1 : index
    %c0_263 = arith.constant 0 : index
    %195 = vector.load %arg2[%c0_260, %c0_261, %c1_262, %c0_263] : memref<2x9x9x4xf32, #tpu.memory_space<vmem>>, vector<2x8x8x4xf32>
    %196 = vector.shape_cast %195 : vector<2x8x8x4xf32> to vector<128x4xf32>
    %c0_264 = arith.constant 0 : index
    %c1_265 = arith.constant 1 : index
    %c0_266 = arith.constant 0 : index
    %c0_267 = arith.constant 0 : index
    %197 = vector.load %arg4[%c0_264, %c1_265, %c0_266, %c0_267] : memref<3x3x4x4xf32, #tpu.memory_space<vmem>>, vector<1x1x4x4xf32>
    %198 = vector.shape_cast %197 : vector<1x1x4x4xf32> to vector<4x4xf32>
    %cst_268 = arith.constant dense<0.000000e+00> : vector<128x4xf32>
    %199 = tpu.matmul %196, %198, %cst_268 {dimension_numbers = #tpu.dot_dimension_numbers<[1], [0], [0], [1], [0, 0, 1, 1], [], []>} : vector<128x4xf32>, vector<4x4xf32>, vector<128x4xf32> -> vector<128x4xf32>
    %200 = arith.addf %194, %199 : vector<128x4xf32>
    %c0_269 = arith.constant 0 : index
    %c0_270 = arith.constant 0 : index
    %c1_271 = arith.constant 1 : index
    %c0_272 = arith.constant 0 : index
    %201 = vector.load %arg3[%c0_269, %c0_270, %c1_271, %c0_272] : memref<2x9x9x4xf32, #tpu.memory_space<vmem>>, vector<2x8x8x4xf32>
    %202 = vector.shape_cast %201 : vector<2x8x8x4xf32> to vector<128x4xf32>
    %c0_273 = arith.constant 0 : index
    %c2_274 = arith.constant 2 : index
    %c0_275 = arith.constant 0 : index
    %c0_276 = arith.constant 0 : index
    %203 = vector.load %arg4[%c0_273, %c2_274, %c0_275, %c0_276] : memref<3x3x4x4xf32, #tpu.memory_space<vmem>>, vector<1x1x4x4xf32>
    %204 = vector.shape_cast %203 : vector<1x1x4x4xf32> to vector<4x4xf32>
    %cst_277 = arith.constant dense<0.000000e+00> : vector<128x4xf32>
    %205 = tpu.matmul %202, %204, %cst_277 {dimension_numbers = #tpu.dot_dimension_numbers<[1], [0], [0], [1], [0, 0, 1, 1], [], []>} : vector<128x4xf32>, vector<4x4xf32>, vector<128x4xf32> -> vector<128x4xf32>
    %206 = arith.addf %200, %205 : vector<128x4xf32>
    %c0_278 = arith.constant 0 : index
    %c1_279 = arith.constant 1 : index
    %c0_280 = arith.constant 0 : index
    %c0_281 = arith.constant 0 : index
    %207 = vector.load %arg1[%c0_278, %c1_279, %c0_280, %c0_281] : memref<2x9x9x4xf32, #tpu.memory_space<vmem>>, vector<2x8x8x4xf32>
    %208 = vector.shape_cast %207 : vector<2x8x8x4xf32> to vector<128x4xf32>
    %c1_282 = arith.constant 1 : index
    %c0_283 = arith.constant 0 : index
    %c0_284 = arith.constant 0 : index
    %c0_285 = arith.constant 0 : index
    %209 = vector.load %arg4[%c1_282, %c0_283, %c0_284, %c0_285] : memref<3x3x4x4xf32, #tpu.memory_space<vmem>>, vector<1x1x4x4xf32>
    %210 = vector.shape_cast %209 : vector<1x1x4x4xf32> to vector<4x4xf32>
    %cst_286 = arith.constant dense<0.000000e+00> : vector<128x4xf32>
    %211 = tpu.matmul %208, %210, %cst_286 {dimension_numbers = #tpu.dot_dimension_numbers<[1], [0], [0], [1], [0, 0, 1, 1], [], []>} : vector<128x4xf32>, vector<4x4xf32>, vector<128x4xf32> -> vector<128x4xf32>
    %212 = arith.addf %206, %211 : vector<128x4xf32>
    %c0_287 = arith.constant 0 : index
    %c1_288 = arith.constant 1 : index
    %c1_289 = arith.constant 1 : index
    %c0_290 = arith.constant 0 : index
    %213 = vector.load %arg0[%c0_287, %c1_288, %c1_289, %c0_290] : memref<2x9x9x4xf32, #tpu.memory_space<vmem>>, vector<2x8x8x4xf32>
    %214 = vector.shape_cast %213 : vector<2x8x8x4xf32> to vector<128x4xf32>
    %c1_291 = arith.constant 1 : index
    %c1_292 = arith.constant 1 : index
    %c0_293 = arith.constant 0 : index
    %c0_294 = arith.constant 0 : index
    %215 = vector.load %arg4[%c1_291, %c1_292, %c0_293, %c0_294] : memref<3x3x4x4xf32, #tpu.memory_space<vmem>>, vector<1x1x4x4xf32>
    %216 = vector.shape_cast %215 : vector<1x1x4x4xf32> to vector<4x4xf32>
    %cst_295 = arith.constant dense<0.000000e+00> : vector<128x4xf32>
    %217 = tpu.matmul %214, %216, %cst_295 {dimension_numbers = #tpu.dot_dimension_numbers<[1], [0], [0], [1], [0, 0, 1, 1], [], []>} : vector<128x4xf32>, vector<4x4xf32>, vector<128x4xf32> -> vector<128x4xf32>
    %218 = arith.addf %212, %217 : vector<128x4xf32>
    %c0_296 = arith.constant 0 : index
    %c1_297 = arith.constant 1 : index
    %c1_298 = arith.constant 1 : index
    %c0_299 = arith.constant 0 : index
    %219 = vector.load %arg1[%c0_296, %c1_297, %c1_298, %c0_299] : memref<2x9x9x4xf32, #tpu.memory_space<vmem>>, vector<2x8x8x4xf32>
    %220 = vector.shape_cast %219 : vector<2x8x8x4xf32> to vector<128x4xf32>
    %c1_300 = arith.constant 1 : index
    %c2_301 = arith.constant 2 : index
    %c0_302 = arith.constant 0 : index
    %c0_303 = arith.constant 0 : index
    %221 = vector.load %arg4[%c1_300, %c2_301, %c0_302, %c0_303] : memref<3x3x4x4xf32, #tpu.memory_space<vmem>>, vector<1x1x4x4xf32>
    %222 = vector.shape_cast %221 : vector<1x1x4x4xf32> to vector<4x4xf32>
    %cst_304 = arith.constant dense<0.000000e+00> : vector<128x4xf32>
    %223 = tpu.matmul %220, %222, %cst_304 {dimension_numbers = #tpu.dot_dimension_numbers<[1], [0], [0], [1], [0, 0, 1, 1], [], []>} : vector<128x4xf32>, vector<4x4xf32>, vector<128x4xf32> -> vector<128x4xf32>
    %224 = arith.addf %218, %223 : vector<128x4xf32>
    %c0_305 = arith.constant 0 : index
    %c1_306 = arith.constant 1 : index
    %c0_307 = arith.constant 0 : index
    %c0_308 = arith.constant 0 : index
    %225 = vector.load %arg3[%c0_305, %c1_306, %c0_307, %c0_308] : memref<2x9x9x4xf32, #tpu.memory_space<vmem>>, vector<2x8x8x4xf32>
    %226 = vector.shape_cast %225 : vector<2x8x8x4xf32> to vector<128x4xf32>
    %c2_309 = arith.constant 2 : index
    %c0_310 = arith.constant 0 : index
    %c0_311 = arith.constant 0 : index
    %c0_312 = arith.constant 0 : index
    %227 = vector.load %arg4[%c2_309, %c0_310, %c0_311, %c0_312] : memref<3x3x4x4xf32, #tpu.memory_space<vmem>>, vector<1x1x4x4xf32>
    %228 = vector.shape_cast %227 : vector<1x1x4x4xf32> to vector<4x4xf32>
    %cst_313 = arith.constant dense<0.000000e+00> : vector<128x4xf32>
    %229 = tpu.matmul %226, %228, %cst_313 {dimension_numbers = #tpu.dot_dimension_numbers<[1], [0], [0], [1], [0, 0, 1, 1], [], []>} : vector<128x4xf32>, vector<4x4xf32>, vector<128x4xf32> -> vector<128x4xf32>
    %230 = arith.addf %224, %229 : vector<128x4xf32>
    %c0_314 = arith.constant 0 : index
    %c1_315 = arith.constant 1 : index
    %c1_316 = arith.constant 1 : index
    %c0_317 = arith.constant 0 : index
    %231 = vector.load %arg2[%c0_314, %c1_315, %c1_316, %c0_317] : memref<2x9x9x4xf32, #tpu.memory_space<vmem>>, vector<2x8x8x4xf32>
    %232 = vector.shape_cast %231 : vector<2x8x8x4xf32> to vector<128x4xf32>
    %c2_318 = arith.constant 2 : index
    %c1_319 = arith.constant 1 : index
    %c0_320 = arith.constant 0 : index
    %c0_321 = arith.constant 0 : index
    %233 = vector.load %arg4[%c2_318, %c1_319, %c0_320, %c0_321] : memref<3x3x4x4xf32, #tpu.memory_space<vmem>>, vector<1x1x4x4xf32>
    %234 = vector.shape_cast %233 : vector<1x1x4x4xf32> to vector<4x4xf32>
    %cst_322 = arith.constant dense<0.000000e+00> : vector<128x4xf32>
    %235 = tpu.matmul %232, %234, %cst_322 {dimension_numbers = #tpu.dot_dimension_numbers<[1], [0], [0], [1], [0, 0, 1, 1], [], []>} : vector<128x4xf32>, vector<4x4xf32>, vector<128x4xf32> -> vector<128x4xf32>
    %236 = arith.addf %230, %235 : vector<128x4xf32>
    %c0_323 = arith.constant 0 : index
    %c1_324 = arith.constant 1 : index
    %c1_325 = arith.constant 1 : index
    %c0_326 = arith.constant 0 : index
    %237 = vector.load %arg3[%c0_323, %c1_324, %c1_325, %c0_326] : memref<2x9x9x4xf32, #tpu.memory_space<vmem>>, vector<2x8x8x4xf32>
    %238 = vector.shape_cast %237 : vector<2x8x8x4xf32> to vector<128x4xf32>
    %c2_327 = arith.constant 2 : index
    %c2_328 = arith.constant 2 : index
    %c0_329 = arith.constant 0 : index
    %c0_330 = arith.constant 0 : index
    %239 = vector.load %arg4[%c2_327, %c2_328, %c0_329, %c0_330] : memref<3x3x4x4xf32, #tpu.memory_space<vmem>>, vector<1x1x4x4xf32>
    %240 = vector.shape_cast %239 : vector<1x1x4x4xf32> to vector<4x4xf32>
    %cst_331 = arith.constant dense<0.000000e+00> : vector<128x4xf32>
    %241 = tpu.matmul %238, %240, %cst_331 {dimension_numbers = #tpu.dot_dimension_numbers<[1], [0], [0], [1], [0, 0, 1, 1], [], []>} : vector<128x4xf32>, vector<4x4xf32>, vector<128x4xf32> -> vector<128x4xf32>
    %242 = arith.addf %236, %241 : vector<128x4xf32>
    %cst_332 = arith.constant dense<0.000000e+00> : vector<4xf32>
    %243 = vector.multi_reduction <add>, %242, %cst_332 [0] : vector<128x4xf32> to vector<4xf32>
    %244 = vector.shape_cast %243 : vector<4xf32> to vector<1x4xf32>
    %245 = arith.addf %183, %244 : vector<1x4xf32>
    %246 = arith.mulf %242, %242 : vector<128x4xf32>
    %cst_333 = arith.constant dense<0.000000e+00> : vector<4xf32>
    %247 = vector.multi_reduction <add>, %246, %cst_333 [0] : vector<128x4xf32> to vector<4xf32>
    %248 = vector.shape_cast %247 : vector<4xf32> to vector<1x4xf32>
    %249 = arith.addf %187, %248 : vector<1x4xf32>
    %cst_334 = arith.constant 5.120000e+02 : f32
    %250 = vector.broadcast %cst_334 : f32 to vector<1x4xf32>
    %251 = arith.divf %245, %250 : vector<1x4xf32>
    %cst_335 = arith.constant 5.120000e+02 : f32
    %252 = vector.broadcast %cst_335 : f32 to vector<1x4xf32>
    %253 = arith.divf %249, %252 : vector<1x4xf32>
    %254 = arith.mulf %251, %251 : vector<1x4xf32>
    %255 = arith.subf %253, %254 : vector<1x4xf32>
    %cst_336 = arith.constant 9.99999974E-6 : f32
    %256 = vector.broadcast %cst_336 : f32 to vector<1x4xf32>
    %257 = arith.addf %255, %256 : vector<1x4xf32>
    %258 = math.rsqrt %257 : vector<1x4xf32>
    %c0_337 = arith.constant 0 : index
    %c0_338 = arith.constant 0 : index
    %259 = vector.load %arg5[%c0_337, %c0_338] : memref<1x4xf32, #tpu.memory_space<vmem>>, vector<1x4xf32>
    %260 = arith.mulf %258, %259 : vector<1x4xf32>
    %c0_339 = arith.constant 0 : index
    %c0_340 = arith.constant 0 : index
    %261 = vector.load %arg6[%c0_339, %c0_340] : memref<1x4xf32, #tpu.memory_space<vmem>>, vector<1x4xf32>
    %262 = arith.mulf %251, %260 : vector<1x4xf32>
    %263 = arith.subf %261, %262 : vector<1x4xf32>
    %cst_341 = arith.constant 0.000000e+00 : f32
    %264 = vector.broadcast %cst_341 : f32 to vector<2x9x9x4xf32>
    %c0_342 = arith.constant 0 : index
    %c0_343 = arith.constant 0 : index
    %c0_344 = arith.constant 0 : index
    %c0_345 = arith.constant 0 : index
    %265 = vector.load %arg12[%c0_342, %c0_343, %c0_344, %c0_345] : memref<2x9x9x4xf32, #tpu.memory_space<vmem>>, vector<2x9x9x4xf32>
    tpu.vector_store %arg12[%c0_342, %c0_343, %c0_344, %c0_345], %264 {strides = array<i32>} : memref<2x9x9x4xf32, #tpu.memory_space<vmem>>, vector<2x9x9x4xf32>,
    %cst_346 = arith.constant 0.000000e+00 : f32
    %266 = vector.broadcast %cst_346 : f32 to vector<2x9x9x4xf32>
    %c0_347 = arith.constant 0 : index
    %c0_348 = arith.constant 0 : index
    %c0_349 = arith.constant 0 : index
    %c0_350 = arith.constant 0 : index
    %267 = vector.load %arg13[%c0_347, %c0_348, %c0_349, %c0_350] : memref<2x9x9x4xf32, #tpu.memory_space<vmem>>, vector<2x9x9x4xf32>
    tpu.vector_store %arg13[%c0_347, %c0_348, %c0_349, %c0_350], %266 {strides = array<i32>} : memref<2x9x9x4xf32, #tpu.memory_space<vmem>>, vector<2x9x9x4xf32>,
    %cst_351 = arith.constant 0.000000e+00 : f32
    %268 = vector.broadcast %cst_351 : f32 to vector<2x9x9x4xf32>
    %c0_352 = arith.constant 0 : index
    %c0_353 = arith.constant 0 : index
    %c0_354 = arith.constant 0 : index
    %c0_355 = arith.constant 0 : index
    %269 = vector.load %arg14[%c0_352, %c0_353, %c0_354, %c0_355] : memref<2x9x9x4xf32, #tpu.memory_space<vmem>>, vector<2x9x9x4xf32>
    tpu.vector_store %arg14[%c0_352, %c0_353, %c0_354, %c0_355], %268 {strides = array<i32>} : memref<2x9x9x4xf32, #tpu.memory_space<vmem>>, vector<2x9x9x4xf32>,
    %cst_356 = arith.constant 0.000000e+00 : f32
    %270 = vector.broadcast %cst_356 : f32 to vector<2x9x9x4xf32>
    %c0_357 = arith.constant 0 : index
    %c0_358 = arith.constant 0 : index
    %c0_359 = arith.constant 0 : index
    %c0_360 = arith.constant 0 : index
    %271 = vector.load %arg15[%c0_357, %c0_358, %c0_359, %c0_360] : memref<2x9x9x4xf32, #tpu.memory_space<vmem>>, vector<2x9x9x4xf32>
    tpu.vector_store %arg15[%c0_357, %c0_358, %c0_359, %c0_360], %270 {strides = array<i32>} : memref<2x9x9x4xf32, #tpu.memory_space<vmem>>, vector<2x9x9x4xf32>,
    %272 = vector.broadcast %260 : vector<1x4xf32> to vector<128x4xf32>
    %273 = arith.mulf %242, %272 : vector<128x4xf32>
    %274 = vector.broadcast %263 : vector<1x4xf32> to vector<128x4xf32>
    %275 = arith.addf %273, %274 : vector<128x4xf32>
    %cst_361 = arith.constant 0.000000e+00 : f32
    %276 = vector.broadcast %cst_361 : f32 to vector<128x4xf32>
    %277 = arith.cmpf oge, %275, %276 : vector<128x4xf32>
    %cst_362 = arith.constant 2.000000e-01 : f32
    %278 = vector.broadcast %cst_362 : f32 to vector<128x4xf32>
    %279 = arith.mulf %278, %275 : vector<128x4xf32>
    %280 = arith.select %277, %275, %279 : vector<128x4xi1>, vector<128x4xf32>
    %cst_363 = arith.constant 1.41421354 : f32
    %281 = vector.broadcast %cst_363 : f32 to vector<128x4xf32>
    %282 = arith.mulf %280, %281 : vector<128x4xf32>
    %283 = vector.shape_cast %282 : vector<128x4xf32> to vector<2x8x8x4xf32>
    %c0_364 = arith.constant 0 : index
    %c1_365 = arith.constant 1 : index
    %c1_366 = arith.constant 1 : index
    %c0_367 = arith.constant 0 : index
    %284 = vector.load %arg12[%c0_364, %c1_365, %c1_366, %c0_367] : memref<2x9x9x4xf32, #tpu.memory_space<vmem>>, vector<2x8x8x4xf32>
    tpu.vector_store %arg12[%c0_364, %c1_365, %c1_366, %c0_367], %283 {strides = array<i32>} : memref<2x9x9x4xf32, #tpu.memory_space<vmem>>, vector<2x8x8x4xf32>,
    %285 = vector.broadcast %260 : vector<1x4xf32> to vector<128x4xf32>
    %286 = arith.mulf %180, %285 : vector<128x4xf32>
    %287 = vector.broadcast %263 : vector<1x4xf32> to vector<128x4xf32>
    %288 = arith.addf %286, %287 : vector<128x4xf32>
    %cst_368 = arith.constant 0.000000e+00 : f32
    %289 = vector.broadcast %cst_368 : f32 to vector<128x4xf32>
    %290 = arith.cmpf oge, %288, %289 : vector<128x4xf32>
    %cst_369 = arith.constant 2.000000e-01 : f32
    %291 = vector.broadcast %cst_369 : f32 to vector<128x4xf32>
    %292 = arith.mulf %291, %288 : vector<128x4xf32>
    %293 = arith.select %290, %288, %292 : vector<128x4xi1>, vector<128x4xf32>
    %cst_370 = arith.constant 1.41421354 : f32
    %294 = vector.broadcast %cst_370 : f32 to vector<128x4xf32>
    %295 = arith.mulf %293, %294 : vector<128x4xf32>
    %296 = vector.shape_cast %295 : vector<128x4xf32> to vector<2x8x8x4xf32>
    %c0_371 = arith.constant 0 : index
    %c1_372 = arith.constant 1 : index
    %c0_373 = arith.constant 0 : index
    %c0_374 = arith.constant 0 : index
    %297 = vector.load %arg13[%c0_371, %c1_372, %c0_373, %c0_374] : memref<2x9x9x4xf32, #tpu.memory_space<vmem>>, vector<2x8x8x4xf32>
    tpu.vector_store %arg13[%c0_371, %c1_372, %c0_373, %c0_374], %296 {strides = array<i32>} : memref<2x9x9x4xf32, #tpu.memory_space<vmem>>, vector<2x8x8x4xf32>,
    %298 = vector.broadcast %260 : vector<1x4xf32> to vector<128x4xf32>
    %299 = arith.mulf %118, %298 : vector<128x4xf32>
    %300 = vector.broadcast %263 : vector<1x4xf32> to vector<128x4xf32>
    %301 = arith.addf %299, %300 : vector<128x4xf32>
    %cst_375 = arith.constant 0.000000e+00 : f32
    %302 = vector.broadcast %cst_375 : f32 to vector<128x4xf32>
    %303 = arith.cmpf oge, %301, %302 : vector<128x4xf32>
    %cst_376 = arith.constant 2.000000e-01 : f32
    %304 = vector.broadcast %cst_376 : f32 to vector<128x4xf32>
    %305 = arith.mulf %304, %301 : vector<128x4xf32>
    %306 = arith.select %303, %301, %305 : vector<128x4xi1>, vector<128x4xf32>
    %cst_377 = arith.constant 1.41421354 : f32
    %307 = vector.broadcast %cst_377 : f32 to vector<128x4xf32>
    %308 = arith.mulf %306, %307 : vector<128x4xf32>
    %309 = vector.shape_cast %308 : vector<128x4xf32> to vector<2x8x8x4xf32>
    %c0_378 = arith.constant 0 : index
    %c0_379 = arith.constant 0 : index
    %c1_380 = arith.constant 1 : index
    %c0_381 = arith.constant 0 : index
    %310 = vector.load %arg14[%c0_378, %c0_379, %c1_380, %c0_381] : memref<2x9x9x4xf32, #tpu.memory_space<vmem>>, vector<2x8x8x4xf32>
    tpu.vector_store %arg14[%c0_378, %c0_379, %c1_380, %c0_381], %309 {strides = array<i32>} : memref<2x9x9x4xf32, #tpu.memory_space<vmem>>, vector<2x8x8x4xf32>,
    %311 = vector.broadcast %260 : vector<1x4xf32> to vector<128x4xf32>
    %312 = arith.mulf %56, %311 : vector<128x4xf32>
    %313 = vector.broadcast %263 : vector<1x4xf32> to vector<128x4xf32>
    %314 = arith.addf %312, %313 : vector<128x4xf32>
    %cst_382 = arith.constant 0.000000e+00 : f32
    %315 = vector.broadcast %cst_382 : f32 to vector<128x4xf32>
    %316 = arith.cmpf oge, %314, %315 : vector<128x4xf32>
    %cst_383 = arith.constant 2.000000e-01 : f32
    %317 = vector.broadcast %cst_383 : f32 to vector<128x4xf32>
    %318 = arith.mulf %317, %314 : vector<128x4xf32>
    %319 = arith.select %316, %314, %318 : vector<128x4xi1>, vector<128x4xf32>
    %cst_384 = arith.constant 1.41421354 : f32
    %320 = vector.broadcast %cst_384 : f32 to vector<128x4xf32>
    %321 = arith.mulf %319, %320 : vector<128x4xf32>
    %322 = vector.shape_cast %321 : vector<128x4xf32> to vector<2x8x8x4xf32>
    %c0_385 = arith.constant 0 : index
    %c0_386 = arith.constant 0 : index
    %c0_387 = arith.constant 0 : index
    %c0_388 = arith.constant 0 : index
    %323 = vector.load %arg15[%c0_385, %c0_386, %c0_387, %c0_388] : memref<2x9x9x4xf32, #tpu.memory_space<vmem>>, vector<2x8x8x4xf32>
    tpu.vector_store %arg15[%c0_385, %c0_386, %c0_387, %c0_388], %322 {strides = array<i32>} : memref<2x9x9x4xf32, #tpu.memory_space<vmem>>, vector<2x8x8x4xf32>,
    %cst_389 = arith.constant 0.000000e+00 : f32
    %324 = vector.broadcast %cst_389 : f32 to vector<128x8xf32>
    %c0_390 = arith.constant 0 : index
    %c0_391 = arith.constant 0 : index
    %c0_392 = arith.constant 0 : index
    %c0_393 = arith.constant 0 : index
    %325 = vector.load %arg12[%c0_390, %c0_391, %c0_392, %c0_393] : memref<2x9x9x4xf32, #tpu.memory_space<vmem>>, vector<2x8x8x4xf32>
    %326 = vector.shape_cast %325 : vector<2x8x8x4xf32> to vector<128x4xf32>
    %c0_394 = arith.constant 0 : index
    %c0_395 = arith.constant 0 : index
    %c0_396 = arith.constant 0 : index
    %c0_397 = arith.constant 0 : index
    %327 = vector.load %arg7[%c0_394, %c0_395, %c0_396, %c0_397] : memref<3x3x4x8xf32, #tpu.memory_space<vmem>>, vector<1x1x4x8xf32>
    %328 = vector.shape_cast %327 : vector<1x1x4x8xf32> to vector<4x8xf32>
    %cst_398 = arith.constant dense<0.000000e+00> : vector<128x8xf32>
    %329 = tpu.matmul %326, %328, %cst_398 {dimension_numbers = #tpu.dot_dimension_numbers<[1], [0], [0], [1], [0, 0, 1, 1], [], []>} : vector<128x4xf32>, vector<4x8xf32>, vector<128x8xf32> -> vector<128x8xf32>
    %330 = arith.addf %324, %329 : vector<128x8xf32>
    %c0_399 = arith.constant 0 : index
    %c0_400 = arith.constant 0 : index
    %c0_401 = arith.constant 0 : index
    %c0_402 = arith.constant 0 : index
    %331 = vector.load %arg13[%c0_399, %c0_400, %c0_401, %c0_402] : memref<2x9x9x4xf32, #tpu.memory_space<vmem>>, vector<2x8x8x4xf32>
    %332 = vector.shape_cast %331 : vector<2x8x8x4xf32> to vector<128x4xf32>
    %c0_403 = arith.constant 0 : index
    %c1_404 = arith.constant 1 : index
    %c0_405 = arith.constant 0 : index
    %c0_406 = arith.constant 0 : index
    %333 = vector.load %arg7[%c0_403, %c1_404, %c0_405, %c0_406] : memref<3x3x4x8xf32, #tpu.memory_space<vmem>>, vector<1x1x4x8xf32>
    %334 = vector.shape_cast %333 : vector<1x1x4x8xf32> to vector<4x8xf32>
    %cst_407 = arith.constant dense<0.000000e+00> : vector<128x8xf32>
    %335 = tpu.matmul %332, %334, %cst_407 {dimension_numbers = #tpu.dot_dimension_numbers<[1], [0], [0], [1], [0, 0, 1, 1], [], []>} : vector<128x4xf32>, vector<4x8xf32>, vector<128x8xf32> -> vector<128x8xf32>
    %336 = arith.addf %330, %335 : vector<128x8xf32>
    %c0_408 = arith.constant 0 : index
    %c0_409 = arith.constant 0 : index
    %c1_410 = arith.constant 1 : index
    %c0_411 = arith.constant 0 : index
    %337 = vector.load %arg12[%c0_408, %c0_409, %c1_410, %c0_411] : memref<2x9x9x4xf32, #tpu.memory_space<vmem>>, vector<2x8x8x4xf32>
    %338 = vector.shape_cast %337 : vector<2x8x8x4xf32> to vector<128x4xf32>
    %c0_412 = arith.constant 0 : index
    %c2_413 = arith.constant 2 : index
    %c0_414 = arith.constant 0 : index
    %c0_415 = arith.constant 0 : index
    %339 = vector.load %arg7[%c0_412, %c2_413, %c0_414, %c0_415] : memref<3x3x4x8xf32, #tpu.memory_space<vmem>>, vector<1x1x4x8xf32>
    %340 = vector.shape_cast %339 : vector<1x1x4x8xf32> to vector<4x8xf32>
    %cst_416 = arith.constant dense<0.000000e+00> : vector<128x8xf32>
    %341 = tpu.matmul %338, %340, %cst_416 {dimension_numbers = #tpu.dot_dimension_numbers<[1], [0], [0], [1], [0, 0, 1, 1], [], []>} : vector<128x4xf32>, vector<4x8xf32>, vector<128x8xf32> -> vector<128x8xf32>
    %342 = arith.addf %336, %341 : vector<128x8xf32>
    %c0_417 = arith.constant 0 : index
    %c0_418 = arith.constant 0 : index
    %c0_419 = arith.constant 0 : index
    %c0_420 = arith.constant 0 : index
    %343 = vector.load %arg14[%c0_417, %c0_418, %c0_419, %c0_420] : memref<2x9x9x4xf32, #tpu.memory_space<vmem>>, vector<2x8x8x4xf32>
    %344 = vector.shape_cast %343 : vector<2x8x8x4xf32> to vector<128x4xf32>
    %c1_421 = arith.constant 1 : index
    %c0_422 = arith.constant 0 : index
    %c0_423 = arith.constant 0 : index
    %c0_424 = arith.constant 0 : index
    %345 = vector.load %arg7[%c1_421, %c0_422, %c0_423, %c0_424] : memref<3x3x4x8xf32, #tpu.memory_space<vmem>>, vector<1x1x4x8xf32>
    %346 = vector.shape_cast %345 : vector<1x1x4x8xf32> to vector<4x8xf32>
    %cst_425 = arith.constant dense<0.000000e+00> : vector<128x8xf32>
    %347 = tpu.matmul %344, %346, %cst_425 {dimension_numbers = #tpu.dot_dimension_numbers<[1], [0], [0], [1], [0, 0, 1, 1], [], []>} : vector<128x4xf32>, vector<4x8xf32>, vector<128x8xf32> -> vector<128x8xf32>
    %348 = arith.addf %342, %347 : vector<128x8xf32>
    %c0_426 = arith.constant 0 : index
    %c0_427 = arith.constant 0 : index
    %c0_428 = arith.constant 0 : index
    %c0_429 = arith.constant 0 : index
    %349 = vector.load %arg15[%c0_426, %c0_427, %c0_428, %c0_429] : memref<2x9x9x4xf32, #tpu.memory_space<vmem>>, vector<2x8x8x4xf32>
    %350 = vector.shape_cast %349 : vector<2x8x8x4xf32> to vector<128x4xf32>
    %c1_430 = arith.constant 1 : index
    %c1_431 = arith.constant 1 : index
    %c0_432 = arith.constant 0 : index
    %c0_433 = arith.constant 0 : index
    %351 = vector.load %arg7[%c1_430, %c1_431, %c0_432, %c0_433] : memref<3x3x4x8xf32, #tpu.memory_space<vmem>>, vector<1x1x4x8xf32>
    %352 = vector.shape_cast %351 : vector<1x1x4x8xf32> to vector<4x8xf32>
    %cst_434 = arith.constant dense<0.000000e+00> : vector<128x8xf32>
    %353 = tpu.matmul %350, %352, %cst_434 {dimension_numbers = #tpu.dot_dimension_numbers<[1], [0], [0], [1], [0, 0, 1, 1], [], []>} : vector<128x4xf32>, vector<4x8xf32>, vector<128x8xf32> -> vector<128x8xf32>
    %354 = arith.addf %348, %353 : vector<128x8xf32>
    %c0_435 = arith.constant 0 : index
    %c0_436 = arith.constant 0 : index
    %c1_437 = arith.constant 1 : index
    %c0_438 = arith.constant 0 : index
    %355 = vector.load %arg14[%c0_435, %c0_436, %c1_437, %c0_438] : memref<2x9x9x4xf32, #tpu.memory_space<vmem>>, vector<2x8x8x4xf32>
    %356 = vector.shape_cast %355 : vector<2x8x8x4xf32> to vector<128x4xf32>
    %c1_439 = arith.constant 1 : index
    %c2_440 = arith.constant 2 : index
    %c0_441 = arith.constant 0 : index
    %c0_442 = arith.constant 0 : index
    %357 = vector.load %arg7[%c1_439, %c2_440, %c0_441, %c0_442] : memref<3x3x4x8xf32, #tpu.memory_space<vmem>>, vector<1x1x4x8xf32>
    %358 = vector.shape_cast %357 : vector<1x1x4x8xf32> to vector<4x8xf32>
    %cst_443 = arith.constant dense<0.000000e+00> : vector<128x8xf32>
    %359 = tpu.matmul %356, %358, %cst_443 {dimension_numbers = #tpu.dot_dimension_numbers<[1], [0], [0], [1], [0, 0, 1, 1], [], []>} : vector<128x4xf32>, vector<4x8xf32>, vector<128x8xf32> -> vector<128x8xf32>
    %360 = arith.addf %354, %359 : vector<128x8xf32>
    %c0_444 = arith.constant 0 : index
    %c1_445 = arith.constant 1 : index
    %c0_446 = arith.constant 0 : index
    %c0_447 = arith.constant 0 : index
    %361 = vector.load %arg12[%c0_444, %c1_445, %c0_446, %c0_447] : memref<2x9x9x4xf32, #tpu.memory_space<vmem>>, vector<2x8x8x4xf32>
    %362 = vector.shape_cast %361 : vector<2x8x8x4xf32> to vector<128x4xf32>
    %c2_448 = arith.constant 2 : index
    %c0_449 = arith.constant 0 : index
    %c0_450 = arith.constant 0 : index
    %c0_451 = arith.constant 0 : index
    %363 = vector.load %arg7[%c2_448, %c0_449, %c0_450, %c0_451] : memref<3x3x4x8xf32, #tpu.memory_space<vmem>>, vector<1x1x4x8xf32>
    %364 = vector.shape_cast %363 : vector<1x1x4x8xf32> to vector<4x8xf32>
    %cst_452 = arith.constant dense<0.000000e+00> : vector<128x8xf32>
    %365 = tpu.matmul %362, %364, %cst_452 {dimension_numbers = #tpu.dot_dimension_numbers<[1], [0], [0], [1], [0, 0, 1, 1], [], []>} : vector<128x4xf32>, vector<4x8xf32>, vector<128x8xf32> -> vector<128x8xf32>
    %366 = arith.addf %360, %365 : vector<128x8xf32>
    %c0_453 = arith.constant 0 : index
    %c1_454 = arith.constant 1 : index
    %c0_455 = arith.constant 0 : index
    %c0_456 = arith.constant 0 : index
    %367 = vector.load %arg13[%c0_453, %c1_454, %c0_455, %c0_456] : memref<2x9x9x4xf32, #tpu.memory_space<vmem>>, vector<2x8x8x4xf32>
    %368 = vector.shape_cast %367 : vector<2x8x8x4xf32> to vector<128x4xf32>
    %c2_457 = arith.constant 2 : index
    %c1_458 = arith.constant 1 : index
    %c0_459 = arith.constant 0 : index
    %c0_460 = arith.constant 0 : index
    %369 = vector.load %arg7[%c2_457, %c1_458, %c0_459, %c0_460] : memref<3x3x4x8xf32, #tpu.memory_space<vmem>>, vector<1x1x4x8xf32>
    %370 = vector.shape_cast %369 : vector<1x1x4x8xf32> to vector<4x8xf32>
    %cst_461 = arith.constant dense<0.000000e+00> : vector<128x8xf32>
    %371 = tpu.matmul %368, %370, %cst_461 {dimension_numbers = #tpu.dot_dimension_numbers<[1], [0], [0], [1], [0, 0, 1, 1], [], []>} : vector<128x4xf32>, vector<4x8xf32>, vector<128x8xf32> -> vector<128x8xf32>
    %372 = arith.addf %366, %371 : vector<128x8xf32>
    %c0_462 = arith.constant 0 : index
    %c1_463 = arith.constant 1 : index
    %c1_464 = arith.constant 1 : index
    %c0_465 = arith.constant 0 : index
    %373 = vector.load %arg12[%c0_462, %c1_463, %c1_464, %c0_465] : memref<2x9x9x4xf32, #tpu.memory_space<vmem>>, vector<2x8x8x4xf32>
    %374 = vector.shape_cast %373 : vector<2x8x8x4xf32> to vector<128x4xf32>
    %c2_466 = arith.constant 2 : index
    %c2_467 = arith.constant 2 : index
    %c0_468 = arith.constant 0 : index
    %c0_469 = arith.constant 0 : index
    %375 = vector.load %arg7[%c2_466, %c2_467, %c0_468, %c0_469] : memref<3x3x4x8xf32, #tpu.memory_space<vmem>>, vector<1x1x4x8xf32>
    %376 = vector.shape_cast %375 : vector<1x1x4x8xf32> to vector<4x8xf32>
    %cst_470 = arith.constant dense<0.000000e+00> : vector<128x8xf32>
    %377 = tpu.matmul %374, %376, %cst_470 {dimension_numbers = #tpu.dot_dimension_numbers<[1], [0], [0], [1], [0, 0, 1, 1], [], []>} : vector<128x4xf32>, vector<4x8xf32>, vector<128x8xf32> -> vector<128x8xf32>
    %378 = arith.addf %372, %377 : vector<128x8xf32>
    %cst_471 = arith.constant dense<0.000000e+00> : vector<8xf32>
    %379 = vector.multi_reduction <add>, %378, %cst_471 [0] : vector<128x8xf32> to vector<8xf32>
    %380 = vector.shape_cast %379 : vector<8xf32> to vector<1x8xf32>
    %cst_472 = arith.constant 1.280000e+02 : f32
    %381 = vector.broadcast %cst_472 : f32 to vector<1x8xf32>
    %382 = arith.divf %380, %381 : vector<1x8xf32>
    %383 = arith.mulf %378, %378 : vector<128x8xf32>
    %cst_473 = arith.constant dense<0.000000e+00> : vector<8xf32>
    %384 = vector.multi_reduction <add>, %383, %cst_473 [0] : vector<128x8xf32> to vector<8xf32>
    %385 = vector.shape_cast %384 : vector<8xf32> to vector<1x8xf32>
    %cst_474 = arith.constant 1.280000e+02 : f32
    %386 = vector.broadcast %cst_474 : f32 to vector<1x8xf32>
    %387 = arith.divf %385, %386 : vector<1x8xf32>
    %388 = arith.mulf %382, %382 : vector<1x8xf32>
    %389 = arith.subf %387, %388 : vector<1x8xf32>
    %cst_475 = arith.constant 9.99999974E-6 : f32
    %390 = vector.broadcast %cst_475 : f32 to vector<1x8xf32>
    %391 = arith.addf %389, %390 : vector<1x8xf32>
    %392 = math.rsqrt %391 : vector<1x8xf32>
    %c0_476 = arith.constant 0 : index
    %c0_477 = arith.constant 0 : index
    %393 = vector.load %arg8[%c0_476, %c0_477] : memref<1x8xf32, #tpu.memory_space<vmem>>, vector<1x8xf32>
    %394 = arith.mulf %392, %393 : vector<1x8xf32>
    %c0_478 = arith.constant 0 : index
    %c0_479 = arith.constant 0 : index
    %395 = vector.load %arg9[%c0_478, %c0_479] : memref<1x8xf32, #tpu.memory_space<vmem>>, vector<1x8xf32>
    %396 = arith.mulf %382, %394 : vector<1x8xf32>
    %397 = arith.subf %395, %396 : vector<1x8xf32>
    %398 = vector.broadcast %394 : vector<1x8xf32> to vector<128x8xf32>
    %399 = arith.mulf %378, %398 : vector<128x8xf32>
    %400 = vector.broadcast %397 : vector<1x8xf32> to vector<128x8xf32>
    %401 = arith.addf %399, %400 : vector<128x8xf32>
    %cst_480 = arith.constant 0.000000e+00 : f32
    %402 = vector.broadcast %cst_480 : f32 to vector<128x8xf32>
    %403 = arith.cmpf oge, %401, %402 : vector<128x8xf32>
    %cst_481 = arith.constant 2.000000e-01 : f32
    %404 = vector.broadcast %cst_481 : f32 to vector<128x8xf32>
    %405 = arith.mulf %404, %401 : vector<128x8xf32>
    %406 = arith.select %403, %401, %405 : vector<128x8xi1>, vector<128x8xf32>
    %cst_482 = arith.constant 1.41421354 : f32
    %407 = vector.broadcast %cst_482 : f32 to vector<128x8xf32>
    %408 = arith.mulf %406, %407 : vector<128x8xf32>
    %c0_483 = arith.constant 0 : index
    %c0_484 = arith.constant 0 : index
    %c0_485 = arith.constant 0 : index
    %c0_486 = arith.constant 0 : index
    %409 = vector.load %arg3[%c0_483, %c0_484, %c0_485, %c0_486] : memref<2x9x9x4xf32, #tpu.memory_space<vmem>>, vector<2x8x8x4xf32>
    %410 = vector.shape_cast %409 : vector<2x8x8x4xf32> to vector<128x4xf32>
    %c0_487 = arith.constant 0 : index
    %c0_488 = arith.constant 0 : index
    %411 = vector.load %arg10[%c0_487, %c0_488] : memref<4x8xf32, #tpu.memory_space<vmem>>, vector<4x8xf32>
    %cst_489 = arith.constant dense<0.000000e+00> : vector<128x8xf32>
    %412 = tpu.matmul %410, %411, %cst_489 {dimension_numbers = #tpu.dot_dimension_numbers<[1], [0], [0], [1], [0, 0, 1, 1], [], []>} : vector<128x4xf32>, vector<4x8xf32>, vector<128x8xf32> -> vector<128x8xf32>
    %413 = arith.addf %408, %412 : vector<128x8xf32>
    %cst_490 = arith.constant 0.707106769 : f32
    %414 = vector.broadcast %cst_490 : f32 to vector<128x8xf32>
    %415 = arith.mulf %413, %414 : vector<128x8xf32>
    %416 = vector.shape_cast %415 : vector<128x8xf32> to vector<2x8x8x8xf32>
    %c0_491 = arith.constant 0 : index
    %c0_492 = arith.constant 0 : index
    %c0_493 = arith.constant 0 : index
    %c0_494 = arith.constant 0 : index
    %417 = vector.load %arg11[%c0_491, %c0_492, %c0_493, %c0_494] : memref<2x8x8x8xf32, #tpu.memory_space<vmem>>, vector<2x8x8x8xf32>
    tpu.vector_store %arg11[%c0_491, %c0_492, %c0_493, %c0_494], %416 {strides = array<i32>} : memref<2x8x8x8xf32, #tpu.memory_space<vmem>>, vector<2x8x8x8xf32>,
    return
  }
}

</mosaic_0001>

<llo_original>
// kernel: res_block_bn.1
$region0: #{res_block_bn.1}
  #allocation0 [shape = 'u32[]', space=smem, size = 0x4, offset = 0x4, fixed_abs, tag = 'smem constant byte address 0x4 - core index']
  #allocation1 [shape = 'u32[144,128]{1,0:T(1,128)}', space=vmem, size = 0x12000, scoped, tag = 'internal scratch']
  #allocation2 [shape = 'f32[2,9,9,4]{3,2,1,0:T(8,128)}', space=vmem, size = 0x24000, scoped, tag = 'scratch operand']
  #allocation3 [shape = 'f32[2,9,9,4]{3,2,1,0:T(8,128)}', space=vmem, size = 0x24000, scoped, tag = 'scratch operand']
  #allocation4 [shape = 'f32[2,9,9,4]{3,2,1,0:T(8,128)}', space=vmem, size = 0x24000, scoped, tag = 'scratch operand']
  #allocation5 [shape = 'f32[2,9,9,4]{3,2,1,0:T(8,128)}', space=vmem, size = 0x24000, scoped, tag = 'scratch operand']
  %s0 = inlined_call_operand.vmem [shape: f32[2,9,9,4], index: 0, kind: input, shape index: {}]
  %s1 = inlined_call_operand.vmem [shape: f32[2,9,9,4], index: 1, kind: input, shape index: {}]
  %s2 = inlined_call_operand.vmem [shape: f32[2,9,9,4], index: 2, kind: input, shape index: {}]
  %s3 = inlined_call_operand.vmem [shape: f32[2,9,9,4], index: 3, kind: input, shape index: {}]
  %s4 = inlined_call_operand.vmem [shape: f32[3,3,4,4], index: 4, kind: input, shape index: {}]
  %s5 = inlined_call_operand.vmem [shape: f32[1,4], index: 5, kind: input, shape index: {}]
  %s6 = inlined_call_operand.vmem [shape: f32[1,4], index: 6, kind: input, shape index: {}]
  %s7 = inlined_call_operand.vmem [shape: f32[3,3,4,8], index: 7, kind: input, shape index: {}]
  %s8 = inlined_call_operand.vmem [shape: f32[1,8], index: 8, kind: input, shape index: {}]
  %s9 = inlined_call_operand.vmem [shape: f32[1,8], index: 9, kind: input, shape index: {}]
  %s10 = inlined_call_operand.vmem [shape: f32[4,8], index: 10, kind: input, shape index: {}]
  %s11 = inlined_call_operand.vmem [shape: f32[2,8,8,8], index: 11, kind: output, shape index: {}]
  %s12 = sld [smem:[#allocation0]]
  $region54: #{res_block_bn.1} parent=0
    _
  %s14 = ssub.s32 1, %s12
  %s15 = scalar_select 0, %s14, %s12
  // Predicated region
  $region2: #{res_block_bn.1} parent=0 // pred_check
    _
  $region3: #{res_block_bn.1} parent=0 // pred_check_branch
    %17 = sbr.rel (0) target = $region5
  $region4: #{res_block_bn.1} parent=0 // pred_region
    _
  $region5: #{res_block_bn.1} parent=0 // pred_fallthru
    _
  // Predicated region
  $region6: #{res_block_bn.1} parent=0 // pred_check
    _
  $region7: #{res_block_bn.1} parent=0 // pred_check_branch
    %19 = sbr.rel (0) target = $region9
  $region8: #{res_block_bn.1} parent=0 // pred_region
    _
  $region9: #{res_block_bn.1} parent=0 // pred_fallthru
    _
  // Predicated region
  $region10: #{res_block_bn.1} parent=0 // pred_check
    _
  $region11: #{res_block_bn.1} parent=0 // pred_check_branch
    %21 = sbr.rel (0) target = $region13
  $region12: #{res_block_bn.1} parent=0 // pred_region
    _
  $region13: #{res_block_bn.1} parent=0 // pred_fallthru
    _
  // Predicated region
  $region14: #{res_block_bn.1} parent=0 // pred_check
    _
  $region15: #{res_block_bn.1} parent=0 // pred_check_branch
    %23 = sbr.rel (0) target = $region17
  $region16: #{res_block_bn.1} parent=0 // pred_region
    _
  $region17: #{res_block_bn.1} parent=0 // pred_fallthru
    _
  // Predicated region
  $region18: #{res_block_bn.1} parent=0 // pred_check
    _
  $region19: #{res_block_bn.1} parent=0 // pred_check_branch
    %25 = sbr.rel (0) target = $region21
  $region20: #{res_block_bn.1} parent=0 // pred_region
    _
  $region21: #{res_block_bn.1} parent=0 // pred_fallthru
    _
  // Predicated region
  $region22: #{res_block_bn.1} parent=0 // pred_check
    _
  $region23: #{res_block_bn.1} parent=0 // pred_check_branch
    %27 = sbr.rel (0) target = $region25
  $region24: #{res_block_bn.1} parent=0 // pred_region
    _
  $region25: #{res_block_bn.1} parent=0 // pred_fallthru
    _
  // Predicated region
  $region26: #{res_block_bn.1} parent=0 // pred_check
    _
  $region27: #{res_block_bn.1} parent=0 // pred_check_branch
    %29 = sbr.rel (0) target = $region29
  $region28: #{res_block_bn.1} parent=0 // pred_region
    _
  $region29: #{res_block_bn.1} parent=0 // pred_fallthru
    _
  // Predicated region
  $region30: #{res_block_bn.1} parent=0 // pred_check
    _
  $region31: #{res_block_bn.1} parent=0 // pred_check_branch
    %31 = sbr.rel (0) target = $region33
  $region32: #{res_block_bn.1} parent=0 // pred_region
    _
  $region33: #{res_block_bn.1} parent=0 // pred_fallthru
    _
  // Predicated region
  $region34: #{res_block_bn.1} parent=0 // pred_check
    _
  $region35: #{res_block_bn.1} parent=0 // pred_check_branch
    %33 = sbr.rel (0) target = $region37
  $region36: #{res_block_bn.1} parent=0 // pred_region
    _
  $region37: #{res_block_bn.1} parent=0 // pred_fallthru
    _
  // Predicated region
  $region38: #{res_block_bn.1} parent=0 // pred_check
    _
  $region39: #{res_block_bn.1} parent=0 // pred_check_branch
    %35 = sbr.rel (0) target = $region41
  $region40: #{res_block_bn.1} parent=0 // pred_region
    _
  $region41: #{res_block_bn.1} parent=0 // pred_fallthru
    _
  // Predicated region
  $region42: #{res_block_bn.1} parent=0 // pred_check
    _
  $region43: #{res_block_bn.1} parent=0 // pred_check_branch
    %37 = sbr.rel (0) target = $region45
  $region44: #{res_block_bn.1} parent=0 // pred_region
    _
  $region45: #{res_block_bn.1} parent=0 // pred_fallthru
    _
  %v38 = vld [vmem:[%s0] sm:$0xff]
  %v39 = vld [vmem:[%s0 + $0x10] sm:$0xff]
  %v40 = vld [vmem:[%s0 + $0x20] sm:$0xff]
  %v41 = vld [vmem:[%s0 + $0x30] sm:$0xff]
  %v42 = vld [vmem:[%s0 + $0x40] sm:$0xff]
  %v43 = vld [vmem:[%s0 + $0x50] sm:$0xff]
  %v44 = vld [vmem:[%s0 + $0x60] sm:$0xff]
  %v45 = vld [vmem:[%s0 + $0x70] sm:$0xff]
  %v46 = vld [vmem:[%s0 + $0x90] sm:$0xff]
  %v47 = vld [vmem:[%s0 + $0xa0] sm:$0xff]
  %v48 = vld [vmem:[%s0 + $0xb0] sm:$0xff]
  %v49 = vld [vmem:[%s0 + $0xc0] sm:$0xff]
  %v50 = vld [vmem:[%s0 + $0xd0] sm:$0xff]
  %v51 = vld [vmem:[%s0 + $0xe0] sm:$0xff]
  %v52 = vld [vmem:[%s0 + $0xf0] sm:$0xff]
  %v53 = vld [vmem:[%s0 + $0x100] sm:$0xff]
  %v54 = vld [vmem:[%s4] sm:$0xf]
  %v55 = vld [vmem:[%s1] sm:$0xff]
  %v56 = vld [vmem:[%s1 + $0x10] sm:$0xff]
  %v57 = vld [vmem:[%s1 + $0x20] sm:$0xff]
  %v58 = vld [vmem:[%s1 + $0x30] sm:$0xff]
  %v59 = vld [vmem:[%s1 + $0x40] sm:$0xff]
  %v60 = vld [vmem:[%s1 + $0x50] sm:$0xff]
  %v61 = vld [vmem:[%s1 + $0x60] sm:$0xff]
  %v62 = vld [vmem:[%s1 + $0x70] sm:$0xff]
  %v63 = vld [vmem:[%s1 + $0x90] sm:$0xff]
  %v64 = vld [vmem:[%s1 + $0xa0] sm:$0xff]
  %v65 = vld [vmem:[%s1 + $0xb0] sm:$0xff]
  %v66 = vld [vmem:[%s1 + $0xc0] sm:$0xff]
  %v67 = vld [vmem:[%s1 + $0xd0] sm:$0xff]
  %v68 = vld [vmem:[%s1 + $0xe0] sm:$0xff]
  %v69 = vld [vmem:[%s1 + $0xf0] sm:$0xff]
  %v70 = vld [vmem:[%s1 + $0x100] sm:$0xff]
  %s71 = scalar_lea.vmem %s4, 4
  %v72 = vld [vmem:[%s71] sm:$0xf]
  %vm73 = vcmask 31744
  %v75 = vsel %vm73, %v55, 0
  %v78 = vsel %vm73, %v56, 0
  %v81 = vsel %vm73, %v57, 0
  %v84 = vsel %vm73, %v58, 0
  %v87 = vsel %vm73, %v59, 0
  %v90 = vsel %vm73, %v60, 0
  %v93 = vsel %vm73, %v61, 0
  %v96 = vsel %vm73, %v62, 0
  %v99 = vsel %vm73, %v63, 0
  %v102 = vsel %vm73, %v64, 0
  %v105 = vsel %vm73, %v65, 0
  %v108 = vsel %vm73, %v66, 0
  %v111 = vsel %vm73, %v67, 0
  %v114 = vsel %vm73, %v68, 0
  %v117 = vsel %vm73, %v69, 0
  %v120 = vsel %vm73, %v70, 0
  %vm122 = vcmask 1043456
  %v124 = vsel %vm122, %v72, 0
  %126 = vmatprep.subr.mxu0 0.0
  %127 = vmatpush1.msra.mxu0 0.0
  %128 = vmatprep.subr.mxu0 0.0
  %129 = vmatpush1.msra.mxu0 0.0
  %130 = vmatprep.subr.mxu0 0.0
  %131 = vmatpush1.msra.mxu0 0.0
  %132 = vmatprep.subr.mxu0 0.0
  %133 = vmatpush1.msra.mxu0 0.0
  %134 = vmatprep.subr.mxu0 0.0
  %135 = vmatpush1.msra.mxu0 0.0
  %136 = vmatprep.subr.mxu0 0.0
  %137 = vmatpush1.msra.mxu0 0.0
  %138 = vmatprep.subr.mxu0 0.0
  %139 = vmatpush1.msra.mxu0 0.0
  %140 = vmatprep.subr.mxu0 0.0
  %141 = vmatpush1.msra.mxu0 0.0
  %142 = vmatprep.subr.mxu0 0.0
  %143 = vmatpush1.msra.mxu0 0.0
  %144 = vmatprep.subr.mxu0 0.0
  %145 = vmatpush1.msra.mxu0 0.0
  %146 = vmatprep.subr.mxu0 0.0
  %147 = vmatpush1.msra.mxu0 0.0
  %148 = vmatprep.subr.mxu0 0.0
  %149 = vmatpush1.msra.mxu0 0.0
  %150 = vmatprep.subr.mxu0 0.0
  %151 = vmatpush1.msra.mxu0 0.0
  %152 = vmatprep.subr.mxu0 0.0
  %153 = vmatpush1.msra.mxu0 0.0
  %154 = vmatprep.subr.mxu0 0.0
  %155 = vmatpush1.msra.mxu0 0.0
  %156 = vmatprep.subr.mxu0 0.0
  %157 = vmatpush1.msra.mxu0 %v124
  %158 = vmatprep.subr.mxu0 0.0
  %159 = vmatpush2.msra.mxu0 0.0
  %160 = vmatprep.subr.mxu0 0.0
  %161 = vmatpush2.msra.mxu0 0.0
  %162 = vmatprep.subr.mxu0 0.0
  %163 = vmatpush2.msra.mxu0 0.0
  %164 = vmatprep.subr.mxu0 0.0
  %165 = vmatpush2.msra.mxu0 0.0
  %166 = vmatprep.subr.mxu0 0.0
  %167 = vmatpush2.msra.mxu0 0.0
  %168 = vmatprep.subr.mxu0 0.0
  %169 = vmatpush2.msra.mxu0 0.0
  %170 = vmatprep.subr.mxu0 0.0
  %171 = vmatpush2.msra.mxu0 0.0
  %172 = vmatprep.subr.mxu0 0.0
  %173 = vmatpush2.msra.mxu0 0.0
  %174 = vmatprep.subr.mxu0 0.0
  %175 = vmatpush2.msra.mxu0 0.0
  %176 = vmatprep.subr.mxu0 0.0
  %177 = vmatpush2.msra.mxu0 0.0
  %178 = vmatprep.subr.mxu0 0.0
  %179 = vmatpush2.msra.mxu0 0.0
  %180 = vmatprep.subr.mxu0 0.0
  %181 = vmatpush2.msra.mxu0 0.0
  %182 = vmatprep.subr.mxu0 0.0
  %183 = vmatpush2.msra.mxu0 0.0
  %184 = vmatprep.subr.mxu0 0.0
  %185 = vmatpush2.msra.mxu0 0.0
  %186 = vmatprep.subr.mxu0 0.0
  %187 = vmatpush2.msra.mxu0 0.0
  %188 = vmatprep.subr.mxu0 0.0
  %189 = vmatpush2.msra.mxu0 0.0
  %190 = vmatprep.mubr.f32.mxu0 0.0
  %191 = vmatmul.mubr.f32.gmra.mxu0 %v75
  %v192 = vpop.f32.mrf.mxu0
  %v193 = vadd.f32 0.0, %v192
  %v194 = vpop.f32.mrf.mxu0
  %195 = vmatprep.mubr.f32.mxu0 0.0
  %196 = vmatmul.mubr.f32.gmra.mxu0 %v78
  %v197 = vpop.f32.mrf.mxu0
  %v198 = vadd.f32 0.0, %v197
  %v199 = vpop.f32.mrf.mxu0
  %200 = vmatprep.mubr.f32.mxu0 0.0
  %201 = vmatmul.mubr.f32.gmra.mxu0 %v81
  %v202 = vpop.f32.mrf.mxu0
  %v203 = vadd.f32 0.0, %v202
  %v204 = vpop.f32.mrf.mxu0
  %205 = vmatprep.mubr.f32.mxu0 0.0
  %206 = vmatmul.mubr.f32.gmra.mxu0 %v84
  %v207 = vpop.f32.mrf.mxu0
  %v208 = vadd.f32 0.0, %v207
  %v209 = vpop.f32.mrf.mxu0
  %210 = vmatprep.mubr.f32.mxu0 0.0
  %211 = vmatmul.mubr.f32.gmra.mxu0 %v87
  %v212 = vpop.f32.mrf.mxu0
  %v213 = vadd.f32 0.0, %v212
  %v214 = vpop.f32.mrf.mxu0
  %215 = vmatprep.mubr.f32.mxu0 0.0
  %216 = vmatmul.mubr.f32.gmra.mxu0 %v90
  %v217 = vpop.f32.mrf.mxu0
  %v218 = vadd.f32 0.0, %v217
  %v219 = vpop.f32.mrf.mxu0
  %220 = vmatprep.mubr.f32.mxu0 0.0
  %221 = vmatmul.mubr.f32.gmra.mxu0 %v93
  %v222 = vpop.f32.mrf.mxu0
  %v223 = vadd.f32 0.0, %v222
  %v224 = vpop.f32.mrf.mxu0
  %225 = vmatprep.mubr.f32.mxu0 0.0
  %226 = vmatmul.mubr.f32.gmra.mxu0 %v96
  %v227 = vpop.f32.mrf.mxu0
  %v228 = vadd.f32 0.0, %v227
  %v229 = vpop.f32.mrf.mxu0
  %230 = vmatprep.mubr.f32.mxu0 0.0
  %231 = vmatmul.mubr.f32.gmra.mxu0 %v99
  %v232 = vpop.f32.mrf.mxu0
  %v233 = vadd.f32 0.0, %v232
  %v234 = vpop.f32.mrf.mxu0
  %235 = vmatprep.mubr.f32.mxu0 0.0
  %236 = vmatmul.mubr.f32.gmra.mxu0 %v102
  %v237 = vpop.f32.mrf.mxu0
  %v238 = vadd.f32 0.0, %v237
  %v239 = vpop.f32.mrf.mxu0
  %240 = vmatprep.mubr.f32.mxu0 0.0
  %241 = vmatmul.mubr.f32.gmra.mxu0 %v105
  %v242 = vpop.f32.mrf.mxu0
  %v243 = vadd.f32 0.0, %v242
  %v244 = vpop.f32.mrf.mxu0
  %245 = vmatprep.mubr.f32.mxu0 0.0
  %246 = vmatmul.mubr.f32.gmra.mxu0 %v108
  %v247 = vpop.f32.mrf.mxu0
  %v248 = vadd.f32 0.0, %v247
  %v249 = vpop.f32.mrf.mxu0
  %250 = vmatprep.mubr.f32.mxu0 0.0
  %251 = vmatmul.mubr.f32.gmra.mxu0 %v111
  %v252 = vpop.f32.mrf.mxu0
  %v253 = vadd.f32 0.0, %v252
  %v254 = vpop.f32.mrf.mxu0
  %255 = vmatprep.mubr.f32.mxu0 0.0
  %256 = vmatmul.mubr.f32.gmra.mxu0 %v114
  %v257 = vpop.f32.mrf.mxu0
  %v258 = vadd.f32 0.0, %v257
  %v259 = vpop.f32.mrf.mxu0
  %260 = vmatprep.mubr.f32.mxu0 0.0
  %261 = vmatmul.mubr.f32.gmra.mxu0 %v117
  %v262 = vpop.f32.mrf.mxu0
  %v263 = vadd.f32 0.0, %v262
  %v264 = vpop.f32.mrf.mxu0
  %265 = vmatprep.mubr.f32.mxu0 0.0
  %266 = vmatmul.mubr.f32.gmra.mxu0 %v120
  %v267 = vpop.f32.mrf.mxu0
  %v268 = vadd.f32 0.0, %v267
  %v269 = vpop.f32.mrf.mxu0
  %270 = vdwg.mxu0
  %v272 = vsel %vm73, %v38, 0
  %v275 = vsel %vm73, %v39, 0
  %v278 = vsel %vm73, %v40, 0
  %v281 = vsel %vm73, %v41, 0
  %v284 = vsel %vm73, %v42, 0
  %v287 = vsel %vm73, %v43, 0
  %v290 = vsel %vm73, %v44, 0
  %v293 = vsel %vm73, %v45, 0
  %v296 = vsel %vm73, %v46, 0
  %v299 = vsel %vm73, %v47, 0
  %v302 = vsel %vm73, %v48, 0
  %v305 = vsel %vm73, %v49, 0
  %v308 = vsel %vm73, %v50, 0
  %v311 = vsel %vm73, %v51, 0
  %v314 = vsel %vm73, %v52, 0
  %v317 = vsel %vm73, %v53, 0
  %v320 = vsel %vm122, %v54, 0
  %322 = vmatprep.subr.mxu0 0.0
  %323 = vmatpush1.msra.mxu0 0.0
  %324 = vmatprep.subr.mxu0 0.0
  %325 = vmatpush1.msra.mxu0 0.0
  %326 = vmatprep.subr.mxu0 0.0
  %327 = vmatpush1.msra.mxu0 0.0
  %328 = vmatprep.subr.mxu0 0.0
  %329 = vmatpush1.msra.mxu0 0.0
  %330 = vmatprep.subr.mxu0 0.0
  %331 = vmatpush1.msra.mxu0 0.0
  %332 = vmatprep.subr.mxu0 0.0
  %333 = vmatpush1.msra.mxu0 0.0
  %334 = vmatprep.subr.mxu0 0.0
  %335 = vmatpush1.msra.mxu0 0.0
  %336 = vmatprep.subr.mxu0 0.0
  %337 = vmatpush1.msra.mxu0 0.0
  %338 = vmatprep.subr.mxu0 0.0
  %339 = vmatpush1.msra.mxu0 0.0
  %340 = vmatprep.subr.mxu0 0.0
  %341 = vmatpush1.msra.mxu0 0.0
  %342 = vmatprep.subr.mxu0 0.0
  %343 = vmatpush1.msra.mxu0 0.0
  %344 = vmatprep.subr.mxu0 0.0
  %345 = vmatpush1.msra.mxu0 0.0
  %346 = vmatprep.subr.mxu0 0.0
  %347 = vmatpush1.msra.mxu0 0.0
  %348 = vmatprep.subr.mxu0 0.0
  %349 = vmatpush1.msra.mxu0 0.0
  %350 = vmatprep.subr.mxu0 0.0
  %351 = vmatpush1.msra.mxu0 0.0
  %352 = vmatprep.subr.mxu0 0.0
  %353 = vmatpush1.msra.mxu0 %v320
  %354 = vmatprep.subr.mxu0 0.0
  %355 = vmatpush2.msra.mxu0 0.0
  %356 = vmatprep.subr.mxu0 0.0
  %357 = vmatpush2.msra.mxu0 0.0
  %358 = vmatprep.subr.mxu0 0.0
  %359 = vmatpush2.msra.mxu0 0.0
  %360 = vmatprep.subr.mxu0 0.0
  %361 = vmatpush2.msra.mxu0 0.0
  %362 = vmatprep.subr.mxu0 0.0
  %363 = vmatpush2.msra.mxu0 0.0
  %364 = vmatprep.subr.mxu0 0.0
  %365 = vmatpush2.msra.mxu0 0.0
  %366 = vmatprep.subr.mxu0 0.0
  %367 = vmatpush2.msra.mxu0 0.0
  %368 = vmatprep.subr.mxu0 0.0
  %369 = vmatpush2.msra.mxu0 0.0
  %370 = vmatprep.subr.mxu0 0.0
  %371 = vmatpush2.msra.mxu0 0.0
  %372 = vmatprep.subr.mxu0 0.0
  %373 = vmatpush2.msra.mxu0 0.0
  %374 = vmatprep.subr.mxu0 0.0
  %375 = vmatpush2.msra.mxu0 0.0
  %376 = vmatprep.subr.mxu0 0.0
  %377 = vmatpush2.msra.mxu0 0.0
  %378 = vmatprep.subr.mxu0 0.0
  %379 = vmatpush2.msra.mxu0 0.0
  %380 = vmatprep.subr.mxu0 0.0
  %381 = vmatpush2.msra.mxu0 0.0
  %382 = vmatprep.subr.mxu0 0.0
  %383 = vmatpush2.msra.mxu0 0.0
  %384 = vmatprep.subr.mxu0 0.0
  %385 = vmatpush2.msra.mxu0 0.0
  %386 = vmatprep.mubr.f32.mxu0 0.0
  %387 = vmatmul.mubr.f32.gmra.mxu0 %v272
  %v388 = vpop.f32.mrf.mxu0
  %v389 = vadd.f32 %v193, %v388
  %v390 = vpop.f32.mrf.mxu0
  %391 = vmatprep.mubr.f32.mxu0 0.0
  %392 = vmatmul.mubr.f32.gmra.mxu0 %v275
  %v393 = vpop.f32.mrf.mxu0
  %v394 = vadd.f32 %v198, %v393
  %v395 = vpop.f32.mrf.mxu0
  %396 = vmatprep.mubr.f32.mxu0 0.0
  %397 = vmatmul.mubr.f32.gmra.mxu0 %v278
  %v398 = vpop.f32.mrf.mxu0
  %v399 = vadd.f32 %v203, %v398
  %v400 = vpop.f32.mrf.mxu0
  %401 = vmatprep.mubr.f32.mxu0 0.0
  %402 = vmatmul.mubr.f32.gmra.mxu0 %v281
  %v403 = vpop.f32.mrf.mxu0
  %v404 = vadd.f32 %v208, %v403
  %v405 = vpop.f32.mrf.mxu0
  %406 = vmatprep.mubr.f32.mxu0 0.0
  %407 = vmatmul.mubr.f32.gmra.mxu0 %v284
  %v408 = vpop.f32.mrf.mxu0
  %v409 = vadd.f32 %v213, %v408
  %v410 = vpop.f32.mrf.mxu0
  %411 = vmatprep.mubr.f32.mxu0 0.0
  %412 = vmatmul.mubr.f32.gmra.mxu0 %v287
  %v413 = vpop.f32.mrf.mxu0
  %v414 = vadd.f32 %v218, %v413
  %v415 = vpop.f32.mrf.mxu0
  %416 = vmatprep.mubr.f32.mxu0 0.0
  %417 = vmatmul.mubr.f32.gmra.mxu0 %v290
  %v418 = vpop.f32.mrf.mxu0
  %v419 = vadd.f32 %v223, %v418
  %v420 = vpop.f32.mrf.mxu0
  %421 = vmatprep.mubr.f32.mxu0 0.0
  %422 = vmatmul.mubr.f32.gmra.mxu0 %v293
  %v423 = vpop.f32.mrf.mxu0
  %v424 = vadd.f32 %v228, %v423
  %v425 = vpop.f32.mrf.mxu0
  %426 = vmatprep.mubr.f32.mxu0 0.0
  %427 = vmatmul.mubr.f32.gmra.mxu0 %v296
  %v428 = vpop.f32.mrf.mxu0
  %v429 = vadd.f32 %v233, %v428
  %v430 = vpop.f32.mrf.mxu0
  %431 = vmatprep.mubr.f32.mxu0 0.0
  %432 = vmatmul.mubr.f32.gmra.mxu0 %v299
  %v433 = vpop.f32.mrf.mxu0
  %v434 = vadd.f32 %v238, %v433
  %v435 = vpop.f32.mrf.mxu0
  %436 = vmatprep.mubr.f32.mxu0 0.0
  %437 = vmatmul.mubr.f32.gmra.mxu0 %v302
  %v438 = vpop.f32.mrf.mxu0
  %v439 = vadd.f32 %v243, %v438
  %v440 = vpop.f32.mrf.mxu0
  %441 = vmatprep.mubr.f32.mxu0 0.0
  %442 = vmatmul.mubr.f32.gmra.mxu0 %v305
  %v443 = vpop.f32.mrf.mxu0
  %v444 = vadd.f32 %v248, %v443
  %v445 = vpop.f32.mrf.mxu0
  %446 = vmatprep.mubr.f32.mxu0 0.0
  %447 = vmatmul.mubr.f32.gmra.mxu0 %v308
  %v448 = vpop.f32.mrf.mxu0
  %v449 = vadd.f32 %v253, %v448
  %v450 = vpop.f32.mrf.mxu0
  %451 = vmatprep.mubr.f32.mxu0 0.0
  %452 = vmatmul.mubr.f32.gmra.mxu0 %v311
  %v453 = vpop.f32.mrf.mxu0
  %v454 = vadd.f32 %v258, %v453
  %v455 = vpop.f32.mrf.mxu0
  %456 = vmatprep.mubr.f32.mxu0 0.0
  %457 = vmatmul.mubr.f32.gmra.mxu0 %v314
  %v458 = vpop.f32.mrf.mxu0
  %v459 = vadd.f32 %v263, %v458
  %v460 = vpop.f32.mrf.mxu0
  %461 = vmatprep.mubr.f32.mxu0 0.0
  %462 = vmatmul.mubr.f32.gmra.mxu0 %v317
  %v463 = vpop.f32.mrf.mxu0
  %v464 = vadd.f32 %v268, %v463
  %v465 = vpop.f32.mrf.mxu0
  %466 = vdwg.mxu0
  %v467 = vld [vmem:[%s0 + $0x1] sm:$0xff]
  %v468 = vld [vmem:[%s0 + $0x11] sm:$0xff]
  %v469 = vld [vmem:[%s0 + $0x21] sm:$0xff]
  %v470 = vld [vmem:[%s0 + $0x31] sm:$0xff]
  %v471 = vld [vmem:[%s0 + $0x41] sm:$0xff]
  %v472 = vld [vmem:[%s0 + $0x51] sm:$0xff]
  %v473 = vld [vmem:[%s0 + $0x61] sm:$0xff]
  %v474 = vld [vmem:[%s0 + $0x71] sm:$0xff]
  %v475 = vld [vmem:[%s0 + $0x91] sm:$0xff]
  %v476 = vld [vmem:[%s0 + $0xa1] sm:$0xff]
  %v477 = vld [vmem:[%s0 + $0xb1] sm:$0xff]
  %v478 = vld [vmem:[%s0 + $0xc1] sm:$0xff]
  %v479 = vld [vmem:[%s0 + $0xd1] sm:$0xff]
  %v480 = vld [vmem:[%s0 + $0xe1] sm:$0xff]
  %v481 = vld [vmem:[%s0 + $0xf1] sm:$0xff]
  %v482 = vld [vmem:[%s0 + $0x101] sm:$0xff]
  %s483 = scalar_lea.vmem %s4, 8
  %v484 = vld [vmem:[%s483] sm:$0xf]
  %v486 = vsel %vm73, %v467, 0
  %v489 = vsel %vm73, %v468, 0
  %v492 = vsel %vm73, %v469, 0
  %v495 = vsel %vm73, %v470, 0
  %v498 = vsel %vm73, %v471, 0
  %v501 = vsel %vm73, %v472, 0
  %v504 = vsel %vm73, %v473, 0
  %v507 = vsel %vm73, %v474, 0
  %v510 = vsel %vm73, %v475, 0
  %v513 = vsel %vm73, %v476, 0
  %v516 = vsel %vm73, %v477, 0
  %v519 = vsel %vm73, %v478, 0
  %v522 = vsel %vm73, %v479, 0
  %v525 = vsel %vm73, %v480, 0
  %v528 = vsel %vm73, %v481, 0
  %v531 = vsel %vm73, %v482, 0
  %v534 = vsel %vm122, %v484, 0
  %536 = vmatprep.subr.mxu0 0.0
  %537 = vmatpush1.msra.mxu0 0.0
  %538 = vmatprep.subr.mxu0 0.0
  %539 = vmatpush1.msra.mxu0 0.0
  %540 = vmatprep.subr.mxu0 0.0
  %541 = vmatpush1.msra.mxu0 0.0
  %542 = vmatprep.subr.mxu0 0.0
  %543 = vmatpush1.msra.mxu0 0.0
  %544 = vmatprep.subr.mxu0 0.0
  %545 = vmatpush1.msra.mxu0 0.0
  %546 = vmatprep.subr.mxu0 0.0
  %547 = vmatpush1.msra.mxu0 0.0
  %548 = vmatprep.subr.mxu0 0.0
  %549 = vmatpush1.msra.mxu0 0.0
  %550 = vmatprep.subr.mxu0 0.0
  %551 = vmatpush1.msra.mxu0 0.0
  %552 = vmatprep.subr.mxu0 0.0
  %553 = vmatpush1.msra.mxu0 0.0
  %554 = vmatprep.subr.mxu0 0.0
  %555 = vmatpush1.msra.mxu0 0.0
  %556 = vmatprep.subr.mxu0 0.0
  %557 = vmatpush1.msra.mxu0 0.0
  %558 = vmatprep.subr.mxu0 0.0
  %559 = vmatpush1.msra.mxu0 0.0
  %560 = vmatprep.subr.mxu0 0.0
  %561 = vmatpush1.msra.mxu0 0.0
  %562 = vmatprep.subr.mxu0 0.0
  %563 = vmatpush1.msra.mxu0 0.0
  %564 = vmatprep.subr.mxu0 0.0
  %565 = vmatpush1.msra.mxu0 0.0
  %566 = vmatprep.subr.mxu0 0.0
  %567 = vmatpush1.msra.mxu0 %v534
  %568 = vmatprep.subr.mxu0 0.0
  %569 = vmatpush2.msra.mxu0 0.0
  %570 = vmatprep.subr.mxu0 0.0
  %571 = vmatpush2.msra.mxu0 0.0
  %572 = vmatprep.subr.mxu0 0.0
  %573 = vmatpush2.msra.mxu0 0.0
  %574 = vmatprep.subr.mxu0 0.0
  %575 = vmatpush2.msra.mxu0 0.0
  %576 = vmatprep.subr.mxu0 0.0
  %577 = vmatpush2.msra.mxu0 0.0
  %578 = vmatprep.subr.mxu0 0.0
  %579 = vmatpush2.msra.mxu0 0.0
  %580 = vmatprep.subr.mxu0 0.0
  %581 = vmatpush2.msra.mxu0 0.0
  %582 = vmatprep.subr.mxu0 0.0
  %583 = vmatpush2.msra.mxu0 0.0
  %584 = vmatprep.subr.mxu0 0.0
  %585 = vmatpush2.msra.mxu0 0.0
  %586 = vmatprep.subr.mxu0 0.0
  %587 = vmatpush2.msra.mxu0 0.0
  %588 = vmatprep.subr.mxu0 0.0
  %589 = vmatpush2.msra.mxu0 0.0
  %590 = vmatprep.subr.mxu0 0.0
  %591 = vmatpush2.msra.mxu0 0.0
  %592 = vmatprep.subr.mxu0 0.0
  %593 = vmatpush2.msra.mxu0 0.0
  %594 = vmatprep.subr.mxu0 0.0
  %595 = vmatpush2.msra.mxu0 0.0
  %596 = vmatprep.subr.mxu0 0.0
  %597 = vmatpush2.msra.mxu0 0.0
  %598 = vmatprep.subr.mxu0 0.0
  %599 = vmatpush2.msra.mxu0 0.0
  %600 = vmatprep.mubr.f32.mxu0 0.0
  %601 = vmatmul.mubr.f32.gmra.mxu0 %v486
  %v602 = vpop.f32.mrf.mxu0
  %v603 = vadd.f32 0.0, %v602
  %v604 = vpop.f32.mrf.mxu0
  %605 = vmatprep.mubr.f32.mxu0 0.0
  %606 = vmatmul.mubr.f32.gmra.mxu0 %v489
  %v607 = vpop.f32.mrf.mxu0
  %v608 = vadd.f32 0.0, %v607
  %v609 = vpop.f32.mrf.mxu0
  %610 = vmatprep.mubr.f32.mxu0 0.0
  %611 = vmatmul.mubr.f32.gmra.mxu0 %v492
  %v612 = vpop.f32.mrf.mxu0
  %v613 = vadd.f32 0.0, %v612
  %v614 = vpop.f32.mrf.mxu0
  %615 = vmatprep.mubr.f32.mxu0 0.0
  %616 = vmatmul.mubr.f32.gmra.mxu0 %v495
  %v617 = vpop.f32.mrf.mxu0
  %v618 = vadd.f32 0.0, %v617
  %v619 = vpop.f32.mrf.mxu0
  %620 = vmatprep.mubr.f32.mxu0 0.0
  %621 = vmatmul.mubr.f32.gmra.mxu0 %v498
  %v622 = vpop.f32.mrf.mxu0
  %v623 = vadd.f32 0.0, %v622
  %v624 = vpop.f32.mrf.mxu0
  %625 = vmatprep.mubr.f32.mxu0 0.0
  %626 = vmatmul.mubr.f32.gmra.mxu0 %v501
  %v627 = vpop.f32.mrf.mxu0
  %v628 = vadd.f32 0.0, %v627
  %v629 = vpop.f32.mrf.mxu0
  %630 = vmatprep.mubr.f32.mxu0 0.0
  %631 = vmatmul.mubr.f32.gmra.mxu0 %v504
  %v632 = vpop.f32.mrf.mxu0
  %v633 = vadd.f32 0.0, %v632
  %v634 = vpop.f32.mrf.mxu0
  %635 = vmatprep.mubr.f32.mxu0 0.0
  %636 = vmatmul.mubr.f32.gmra.mxu0 %v507
  %v637 = vpop.f32.mrf.mxu0
  %v638 = vadd.f32 0.0, %v637
  %v639 = vpop.f32.mrf.mxu0
  %640 = vmatprep.mubr.f32.mxu0 0.0
  %641 = vmatmul.mubr.f32.gmra.mxu0 %v510
  %v642 = vpop.f32.mrf.mxu0
  %v643 = vadd.f32 0.0, %v642
  %v644 = vpop.f32.mrf.mxu0
  %645 = vmatprep.mubr.f32.mxu0 0.0
  %646 = vmatmul.mubr.f32.gmra.mxu0 %v513
  %v647 = vpop.f32.mrf.mxu0
  %v648 = vadd.f32 0.0, %v647
  %v649 = vpop.f32.mrf.mxu0
  %650 = vmatprep.mubr.f32.mxu0 0.0
  %651 = vmatmul.mubr.f32.gmra.mxu0 %v516
  %v652 = vpop.f32.mrf.mxu0
  %v653 = vadd.f32 0.0, %v652
  %v654 = vpop.f32.mrf.mxu0
  %655 = vmatprep.mubr.f32.mxu0 0.0
  %656 = vmatmul.mubr.f32.gmra.mxu0 %v519
  %v657 = vpop.f32.mrf.mxu0
  %v658 = vadd.f32 0.0, %v657
  %v659 = vpop.f32.mrf.mxu0
  %660 = vmatprep.mubr.f32.mxu0 0.0
  %661 = vmatmul.mubr.f32.gmra.mxu0 %v522
  %v662 = vpop.f32.mrf.mxu0
  %v663 = vadd.f32 0.0, %v662
  %v664 = vpop.f32.mrf.mxu0
  %665 = vmatprep.mubr.f32.mxu0 0.0
  %666 = vmatmul.mubr.f32.gmra.mxu0 %v525
  %v667 = vpop.f32.mrf.mxu0
  %v668 = vadd.f32 0.0, %v667
  %v669 = vpop.f32.mrf.mxu0
  %670 = vmatprep.mubr.f32.mxu0 0.0
  %671 = vmatmul.mubr.f32.gmra.mxu0 %v528
  %v672 = vpop.f32.mrf.mxu0
  %v673 = vadd.f32 0.0, %v672
  %v674 = vpop.f32.mrf.mxu0
  %675 = vmatprep.mubr.f32.mxu0 0.0
  %676 = vmatmul.mubr.f32.gmra.mxu0 %v531
  %v677 = vpop.f32.mrf.mxu0
  %v678 = vadd.f32 0.0, %v677
  %v679 = vpop.f32.mrf.mxu0
  %680 = vdwg.mxu0
  %v681 = vadd.f32 %v389, %v603
  %v682 = vadd.f32 %v394, %v608
  %v683 = vadd.f32 %v399, %v613
  %v684 = vadd.f32 %v404, %v618
  %v685 = vadd.f32 %v409, %v623
  %v686 = vadd.f32 %v414, %v628
  %v687 = vadd.f32 %v419, %v633
  %v688 = vadd.f32 %v424, %v638
  %v689 = vadd.f32 %v429, %v643
  %v690 = vadd.f32 %v434, %v648
  %v691 = vadd.f32 %v439, %v653
  %v692 = vadd.f32 %v444, %v658
  %v693 = vadd.f32 %v449, %v663
  %v694 = vadd.f32 %v454, %v668
  %v695 = vadd.f32 %v459, %v673
  %v696 = vadd.f32 %v464, %v678
  %v697 = vld [vmem:[%s2] sm:$0xff]
  %v698 = vld [vmem:[%s2 + $0x10] sm:$0xff]
  %v699 = vld [vmem:[%s2 + $0x20] sm:$0xff]
  %v700 = vld [vmem:[%s2 + $0x30] sm:$0xff]
  %v701 = vld [vmem:[%s2 + $0x40] sm:$0xff]
  %v702 = vld [vmem:[%s2 + $0x50] sm:$0xff]
  %v703 = vld [vmem:[%s2 + $0x60] sm:$0xff]
  %v704 = vld [vmem:[%s2 + $0x70] sm:$0xff]
  %v705 = vld [vmem:[%s2 + $0x90] sm:$0xff]
  %v706 = vld [vmem:[%s2 + $0xa0] sm:$0xff]
  %v707 = vld [vmem:[%s2 + $0xb0] sm:$0xff]
  %v708 = vld [vmem:[%s2 + $0xc0] sm:$0xff]
  %v709 = vld [vmem:[%s2 + $0xd0] sm:$0xff]
  %v710 = vld [vmem:[%s2 + $0xe0] sm:$0xff]
  %v711 = vld [vmem:[%s2 + $0xf0] sm:$0xff]
  %v712 = vld [vmem:[%s2 + $0x100] sm:$0xff]
  %s713 = scalar_lea.vmem %s4, 12
  %v714 = vld [vmem:[%s713] sm:$0xf]
  %v716 = vsel %vm73, %v697, 0
  %v719 = vsel %vm73, %v698, 0
  %v722 = vsel %vm73, %v699, 0
  %v725 = vsel %vm73, %v700, 0
  %v728 = vsel %vm73, %v701, 0
  %v731 = vsel %vm73, %v702, 0
  %v734 = vsel %vm73, %v703, 0
  %v737 = vsel %vm73, %v704, 0
  %v740 = vsel %vm73, %v705, 0
  %v743 = vsel %vm73, %v706, 0
  %v746 = vsel %vm73, %v707, 0
  %v749 = vsel %vm73, %v708, 0
  %v752 = vsel %vm73, %v709, 0
  %v755 = vsel %vm73, %v710, 0
  %v758 = vsel %vm73, %v711, 0
  %v761 = vsel %vm73, %v712, 0
  %v764 = vsel %vm122, %v714, 0
  %766 = vmatprep.subr.mxu0 0.0
  %767 = vmatpush1.msra.mxu0 0.0
  %768 = vmatprep.subr.mxu0 0.0
  %769 = vmatpush1.msra.mxu0 0.0
  %770 = vmatprep.subr.mxu0 0.0
  %771 = vmatpush1.msra.mxu0 0.0
  %772 = vmatprep.subr.mxu0 0.0
  %773 = vmatpush1.msra.mxu0 0.0
  %774 = vmatprep.subr.mxu0 0.0
  %775 = vmatpush1.msra.mxu0 0.0
  %776 = vmatprep.subr.mxu0 0.0
  %777 = vmatpush1.msra.mxu0 0.0
  %778 = vmatprep.subr.mxu0 0.0
  %779 = vmatpush1.msra.mxu0 0.0
  %780 = vmatprep.subr.mxu0 0.0
  %781 = vmatpush1.msra.mxu0 0.0
  %782 = vmatprep.subr.mxu0 0.0
  %783 = vmatpush1.msra.mxu0 0.0
  %784 = vmatprep.subr.mxu0 0.0
  %785 = vmatpush1.msra.mxu0 0.0
  %786 = vmatprep.subr.mxu0 0.0
  %787 = vmatpush1.msra.mxu0 0.0
  %788 = vmatprep.subr.mxu0 0.0
  %789 = vmatpush1.msra.mxu0 0.0
  %790 = vmatprep.subr.mxu0 0.0
  %791 = vmatpush1.msra.mxu0 0.0
  %792 = vmatprep.subr.mxu0 0.0
  %793 = vmatpush1.msra.mxu0 0.0
  %794 = vmatprep.subr.mxu0 0.0
  %795 = vmatpush1.msra.mxu0 0.0
  %796 = vmatprep.subr.mxu0 0.0
  %797 = vmatpush1.msra.mxu0 %v764
  %798 = vmatprep.subr.mxu0 0.0
  %799 = vmatpush2.msra.mxu0 0.0
  %800 = vmatprep.subr.mxu0 0.0
  %801 = vmatpush2.msra.mxu0 0.0
  %802 = vmatprep.subr.mxu0 0.0
  %803 = vmatpush2.msra.mxu0 0.0
  %804 = vmatprep.subr.mxu0 0.0
  %805 = vmatpush2.msra.mxu0 0.0
  %806 = vmatprep.subr.mxu0 0.0
  %807 = vmatpush2.msra.mxu0 0.0
  %808 = vmatprep.subr.mxu0 0.0
  %809 = vmatpush2.msra.mxu0 0.0
  %810 = vmatprep.subr.mxu0 0.0
  %811 = vmatpush2.msra.mxu0 0.0
  %812 = vmatprep.subr.mxu0 0.0
  %813 = vmatpush2.msra.mxu0 0.0
  %814 = vmatprep.subr.mxu0 0.0
  %815 = vmatpush2.msra.mxu0 0.0
  %816 = vmatprep.subr.mxu0 0.0
  %817 = vmatpush2.msra.mxu0 0.0
  %818 = vmatprep.subr.mxu0 0.0
  %819 = vmatpush2.msra.mxu0 0.0
  %820 = vmatprep.subr.mxu0 0.0
  %821 = vmatpush2.msra.mxu0 0.0
  %822 = vmatprep.subr.mxu0 0.0
  %823 = vmatpush2.msra.mxu0 0.0
  %824 = vmatprep.subr.mxu0 0.0
  %825 = vmatpush2.msra.mxu0 0.0
  %826 = vmatprep.subr.mxu0 0.0
  %827 = vmatpush2.msra.mxu0 0.0
  %828 = vmatprep.subr.mxu0 0.0
  %829 = vmatpush2.msra.mxu0 0.0
  %830 = vmatprep.mubr.f32.mxu0 0.0
  %831 = vmatmul.mubr.f32.gmra.mxu0 %v716
  %v832 = vpop.f32.mrf.mxu0
  %v833 = vadd.f32 0.0, %v832
  %v834 = vpop.f32.mrf.mxu0
  %835 = vmatprep.mubr.f32.mxu0 0.0
  %836 = vmatmul.mubr.f32.gmra.mxu0 %v719
  %v837 = vpop.f32.mrf.mxu0
  %v838 = vadd.f32 0.0, %v837
  %v839 = vpop.f32.mrf.mxu0
  %840 = vmatprep.mubr.f32.mxu0 0.0
  %841 = vmatmul.mubr.f32.gmra.mxu0 %v722
  %v842 = vpop.f32.mrf.mxu0
  %v843 = vadd.f32 0.0, %v842
  %v844 = vpop.f32.mrf.mxu0
  %845 = vmatprep.mubr.f32.mxu0 0.0
  %846 = vmatmul.mubr.f32.gmra.mxu0 %v725
  %v847 = vpop.f32.mrf.mxu0
  %v848 = vadd.f32 0.0, %v847
  %v849 = vpop.f32.mrf.mxu0
  %850 = vmatprep.mubr.f32.mxu0 0.0
  %851 = vmatmul.mubr.f32.gmra.mxu0 %v728
  %v852 = vpop.f32.mrf.mxu0
  %v853 = vadd.f32 0.0, %v852
  %v854 = vpop.f32.mrf.mxu0
  %855 = vmatprep.mubr.f32.mxu0 0.0
  %856 = vmatmul.mubr.f32.gmra.mxu0 %v731
  %v857 = vpop.f32.mrf.mxu0
  %v858 = vadd.f32 0.0, %v857
  %v859 = vpop.f32.mrf.mxu0
  %860 = vmatprep.mubr.f32.mxu0 0.0
  %861 = vmatmul.mubr.f32.gmra.mxu0 %v734
  %v862 = vpop.f32.mrf.mxu0
  %v863 = vadd.f32 0.0, %v862
  %v864 = vpop.f32.mrf.mxu0
  %865 = vmatprep.mubr.f32.mxu0 0.0
  %866 = vmatmul.mubr.f32.gmra.mxu0 %v737
  %v867 = vpop.f32.mrf.mxu0
  %v868 = vadd.f32 0.0, %v867
  %v869 = vpop.f32.mrf.mxu0
  %870 = vmatprep.mubr.f32.mxu0 0.0
  %871 = vmatmul.mubr.f32.gmra.mxu0 %v740
  %v872 = vpop.f32.mrf.mxu0
  %v873 = vadd.f32 0.0, %v872
  %v874 = vpop.f32.mrf.mxu0
  %875 = vmatprep.mubr.f32.mxu0 0.0
  %876 = vmatmul.mubr.f32.gmra.mxu0 %v743
  %v877 = vpop.f32.mrf.mxu0
  %v878 = vadd.f32 0.0, %v877
  %v879 = vpop.f32.mrf.mxu0
  %880 = vmatprep.mubr.f32.mxu0 0.0
  %881 = vmatmul.mubr.f32.gmra.mxu0 %v746
  %v882 = vpop.f32.mrf.mxu0
  %v883 = vadd.f32 0.0, %v882
  %v884 = vpop.f32.mrf.mxu0
  %885 = vmatprep.mubr.f32.mxu0 0.0
  %886 = vmatmul.mubr.f32.gmra.mxu0 %v749
  %v887 = vpop.f32.mrf.mxu0
  %v888 = vadd.f32 0.0, %v887
  %v889 = vpop.f32.mrf.mxu0
  %890 = vmatprep.mubr.f32.mxu0 0.0
  %891 = vmatmul.mubr.f32.gmra.mxu0 %v752
  %v892 = vpop.f32.mrf.mxu0
  %v893 = vadd.f32 0.0, %v892
  %v894 = vpop.f32.mrf.mxu0
  %895 = vmatprep.mubr.f32.mxu0 0.0
  %896 = vmatmul.mubr.f32.gmra.mxu0 %v755
  %v897 = vpop.f32.mrf.mxu0
  %v898 = vadd.f32 0.0, %v897
  %v899 = vpop.f32.mrf.mxu0
  %900 = vmatprep.mubr.f32.mxu0 0.0
  %901 = vmatmul.mubr.f32.gmra.mxu0 %v758
  %v902 = vpop.f32.mrf.mxu0
  %v903 = vadd.f32 0.0, %v902
  %v904 = vpop.f32.mrf.mxu0
  %905 = vmatprep.mubr.f32.mxu0 0.0
  %906 = vmatmul.mubr.f32.gmra.mxu0 %v761
  %v907 = vpop.f32.mrf.mxu0
  %v908 = vadd.f32 0.0, %v907
  %v909 = vpop.f32.mrf.mxu0
  %910 = vdwg.mxu0
  %v911 = vadd.f32 %v681, %v833
  %v912 = vadd.f32 %v682, %v838
  %v913 = vadd.f32 %v683, %v843
  %v914 = vadd.f32 %v684, %v848
  %v915 = vadd.f32 %v685, %v853
  %v916 = vadd.f32 %v686, %v858
  %v917 = vadd.f32 %v687, %v863
  %v918 = vadd.f32 %v688, %v868
  %v919 = vadd.f32 %v689, %v873
  %v920 = vadd.f32 %v690, %v878
  %v921 = vadd.f32 %v691, %v883
  %v922 = vadd.f32 %v692, %v888
  %v923 = vadd.f32 %v693, %v893
  %v924 = vadd.f32 %v694, %v898
  %v925 = vadd.f32 %v695, %v903
  %v926 = vadd.f32 %v696, %v908
  %v927 = vld [vmem:[%s3] sm:$0xff]
  %v928 = vld [vmem:[%s3 + $0x10] sm:$0xff]
  %v929 = vld [vmem:[%s3 + $0x20] sm:$0xff]
  %v930 = vld [vmem:[%s3 + $0x30] sm:$0xff]
  %v931 = vld [vmem:[%s3 + $0x40] sm:$0xff]
  %v932 = vld [vmem:[%s3 + $0x50] sm:$0xff]
  %v933 = vld [vmem:[%s3 + $0x60] sm:$0xff]
  %v934 = vld [vmem:[%s3 + $0x70] sm:$0xff]
  %v935 = vld [vmem:[%s3 + $0x90] sm:$0xff]
  %v936 = vld [vmem:[%s3 + $0xa0] sm:$0xff]
  %v937 = vld [vmem:[%s3 + $0xb0] sm:$0xff]
  %v938 = vld [vmem:[%s3 + $0xc0] sm:$0xff]
  %v939 = vld [vmem:[%s3 + $0xd0] sm:$0xff]
  %v940 = vld [vmem:[%s3 + $0xe0] sm:$0xff]
  %v941 = vld [vmem:[%s3 + $0xf0] sm:$0xff]
  %v942 = vld [vmem:[%s3 + $0x100] sm:$0xff]
  %s943 = scalar_lea.vmem %s4, 16
  %v944 = vld [vmem:[%s943] sm:$0xf]
  %v946 = vsel %vm73, %v927, 0
  %v949 = vsel %vm73, %v928, 0
  %v952 = vsel %vm73, %v929, 0
  %v955 = vsel %vm73, %v930, 0
  %v958 = vsel %vm73, %v931, 0
  %v961 = vsel %vm73, %v932, 0
  %v964 = vsel %vm73, %v933, 0
  %v967 = vsel %vm73, %v934, 0
  %v970 = vsel %vm73, %v935, 0
  %v973 = vsel %vm73, %v936, 0
  %v976 = vsel %vm73, %v937, 0
  %v979 = vsel %vm73, %v938, 0
  %v982 = vsel %vm73, %v939, 0
  %v985 = vsel %vm73, %v940, 0
  %v988 = vsel %vm73, %v941, 0
  %v991 = vsel %vm73, %v942, 0
  %v994 = vsel %vm122, %v944, 0
  %996 = vmatprep.subr.mxu0 0.0
  %997 = vmatpush1.msra.mxu0 0.0
  %998 = vmatprep.subr.mxu0 0.0
  %999 = vmatpush1.msra.mxu0 0.0
  %1000 = vmatprep.subr.mxu0 0.0
  %1001 = vmatpush1.msra.mxu0 0.0
  %1002 = vmatprep.subr.mxu0 0.0
  %1003 = vmatpush1.msra.mxu0 0.0
  %1004 = vmatprep.subr.mxu0 0.0
  %1005 = vmatpush1.msra.mxu0 0.0
  %1006 = vmatprep.subr.mxu0 0.0
  %1007 = vmatpush1.msra.mxu0 0.0
  %1008 = vmatprep.subr.mxu0 0.0
  %1009 = vmatpush1.msra.mxu0 0.0
  %1010 = vmatprep.subr.mxu0 0.0
  %1011 = vmatpush1.msra.mxu0 0.0
  %1012 = vmatprep.subr.mxu0 0.0
  %1013 = vmatpush1.msra.mxu0 0.0
  %1014 = vmatprep.subr.mxu0 0.0
  %1015 = vmatpush1.msra.mxu0 0.0
  %1016 = vmatprep.subr.mxu0 0.0
  %1017 = vmatpush1.msra.mxu0 0.0
  %1018 = vmatprep.subr.mxu0 0.0
  %1019 = vmatpush1.msra.mxu0 0.0
  %1020 = vmatprep.subr.mxu0 0.0
  %1021 = vmatpush1.msra.mxu0 0.0
  %1022 = vmatprep.subr.mxu0 0.0
  %1023 = vmatpush1.msra.mxu0 0.0
  %1024 = vmatprep.subr.mxu0 0.0
  %1025 = vmatpush1.msra.mxu0 0.0
  %1026 = vmatprep.subr.mxu0 0.0
  %1027 = vmatpush1.msra.mxu0 %v994
  %1028 = vmatprep.subr.mxu0 0.0
  %1029 = vmatpush2.msra.mxu0 0.0
  %1030 = vmatprep.subr.mxu0 0.0
  %1031 = vmatpush2.msra.mxu0 0.0
  %1032 = vmatprep.subr.mxu0 0.0
  %1033 = vmatpush2.msra.mxu0 0.0
  %1034 = vmatprep.subr.mxu0 0.0
  %1035 = vmatpush2.msra.mxu0 0.0
  %1036 = vmatprep.subr.mxu0 0.0
  %1037 = vmatpush2.msra.mxu0 0.0
  %1038 = vmatprep.subr.mxu0 0.0
  %1039 = vmatpush2.msra.mxu0 0.0
  %1040 = vmatprep.subr.mxu0 0.0
  %1041 = vmatpush2.msra.mxu0 0.0
  %1042 = vmatprep.subr.mxu0 0.0
  %1043 = vmatpush2.msra.mxu0 0.0
  %1044 = vmatprep.subr.mxu0 0.0
  %1045 = vmatpush2.msra.mxu0 0.0
  %1046 = vmatprep.subr.mxu0 0.0
  %1047 = vmatpush2.msra.mxu0 0.0
  %1048 = vmatprep.subr.mxu0 0.0
  %1049 = vmatpush2.msra.mxu0 0.0
  %1050 = vmatprep.subr.mxu0 0.0
  %1051 = vmatpush2.msra.mxu0 0.0
  %1052 = vmatprep.subr.mxu0 0.0
  %1053 = vmatpush2.msra.mxu0 0.0
  %1054 = vmatprep.subr.mxu0 0.0
  %1055 = vmatpush2.msra.mxu0 0.0
  %1056 = vmatprep.subr.mxu0 0.0
  %1057 = vmatpush2.msra.mxu0 0.0
  %1058 = vmatprep.subr.mxu0 0.0
  %1059 = vmatpush2.msra.mxu0 0.0
  %1060 = vmatprep.mubr.f32.mxu0 0.0
  %1061 = vmatmul.mubr.f32.gmra.mxu0 %v946
  %v1062 = vpop.f32.mrf.mxu0
  %v1063 = vadd.f32 0.0, %v1062
  %v1064 = vpop.f32.mrf.mxu0
  %1065 = vmatprep.mubr.f32.mxu0 0.0
  %1066 = vmatmul.mubr.f32.gmra.mxu0 %v949
  %v1067 = vpop.f32.mrf.mxu0
  %v1068 = vadd.f32 0.0, %v1067
  %v1069 = vpop.f32.mrf.mxu0
  %1070 = vmatprep.mubr.f32.mxu0 0.0
  %1071 = vmatmul.mubr.f32.gmra.mxu0 %v952
  %v1072 = vpop.f32.mrf.mxu0
  %v1073 = vadd.f32 0.0, %v1072
  %v1074 = vpop.f32.mrf.mxu0
  %1075 = vmatprep.mubr.f32.mxu0 0.0
  %1076 = vmatmul.mubr.f32.gmra.mxu0 %v955
  %v1077 = vpop.f32.mrf.mxu0
  %v1078 = vadd.f32 0.0, %v1077
  %v1079 = vpop.f32.mrf.mxu0
  %1080 = vmatprep.mubr.f32.mxu0 0.0
  %1081 = vmatmul.mubr.f32.gmra.mxu0 %v958
  %v1082 = vpop.f32.mrf.mxu0
  %v1083 = vadd.f32 0.0, %v1082
  %v1084 = vpop.f32.mrf.mxu0
  %1085 = vmatprep.mubr.f32.mxu0 0.0
  %1086 = vmatmul.mubr.f32.gmra.mxu0 %v961
  %v1087 = vpop.f32.mrf.mxu0
  %v1088 = vadd.f32 0.0, %v1087
  %v1089 = vpop.f32.mrf.mxu0
  %1090 = vmatprep.mubr.f32.mxu0 0.0
  %1091 = vmatmul.mubr.f32.gmra.mxu0 %v964
  %v1092 = vpop.f32.mrf.mxu0
  %v1093 = vadd.f32 0.0, %v1092
  %v1094 = vpop.f32.mrf.mxu0
  %1095 = vmatprep.mubr.f32.mxu0 0.0
  %1096 = vmatmul.mubr.f32.gmra.mxu0 %v967
  %v1097 = vpop.f32.mrf.mxu0
  %v1098 = vadd.f32 0.0, %v1097
  %v1099 = vpop.f32.mrf.mxu0
  %1100 = vmatprep.mubr.f32.mxu0 0.0
  %1101 = vmatmul.mubr.f32.gmra.mxu0 %v970
  %v1102 = vpop.f32.mrf.mxu0
  %v1103 = vadd.f32 0.0, %v1102
  %v1104 = vpop.f32.mrf.mxu0
  %1105 = vmatprep.mubr.f32.mxu0 0.0
  %1106 = vmatmul.mubr.f32.gmra.mxu0 %v973
  %v1107 = vpop.f32.mrf.mxu0
  %v1108 = vadd.f32 0.0, %v1107
  %v1109 = vpop.f32.mrf.mxu0
  %1110 = vmatprep.mubr.f32.mxu0 0.0
  %1111 = vmatmul.mubr.f32.gmra.mxu0 %v976
  %v1112 = vpop.f32.mrf.mxu0
  %v1113 = vadd.f32 0.0, %v1112
  %v1114 = vpop.f32.mrf.mxu0
  %1115 = vmatprep.mubr.f32.mxu0 0.0
  %1116 = vmatmul.mubr.f32.gmra.mxu0 %v979
  %v1117 = vpop.f32.mrf.mxu0
  %v1118 = vadd.f32 0.0, %v1117
  %v1119 = vpop.f32.mrf.mxu0
  %1120 = vmatprep.mubr.f32.mxu0 0.0
  %1121 = vmatmul.mubr.f32.gmra.mxu0 %v982
  %v1122 = vpop.f32.mrf.mxu0
  %v1123 = vadd.f32 0.0, %v1122
  %v1124 = vpop.f32.mrf.mxu0
  %1125 = vmatprep.mubr.f32.mxu0 0.0
  %1126 = vmatmul.mubr.f32.gmra.mxu0 %v985
  %v1127 = vpop.f32.mrf.mxu0
  %v1128 = vadd.f32 0.0, %v1127
  %v1129 = vpop.f32.mrf.mxu0
  %1130 = vmatprep.mubr.f32.mxu0 0.0
  %1131 = vmatmul.mubr.f32.gmra.mxu0 %v988
  %v1132 = vpop.f32.mrf.mxu0
  %v1133 = vadd.f32 0.0, %v1132
  %v1134 = vpop.f32.mrf.mxu0
  %1135 = vmatprep.mubr.f32.mxu0 0.0
  %1136 = vmatmul.mubr.f32.gmra.mxu0 %v991
  %v1137 = vpop.f32.mrf.mxu0
  %v1138 = vadd.f32 0.0, %v1137
  %v1139 = vpop.f32.mrf.mxu0
  %1140 = vdwg.mxu0
  %v1141 = vadd.f32 %v911, %v1063
  %v1142 = vadd.f32 %v912, %v1068
  %v1143 = vadd.f32 %v913, %v1073
  %v1144 = vadd.f32 %v914, %v1078
  %v1145 = vadd.f32 %v915, %v1083
  %v1146 = vadd.f32 %v916, %v1088
  %v1147 = vadd.f32 %v917, %v1093
  %v1148 = vadd.f32 %v918, %v1098
  %v1149 = vadd.f32 %v919, %v1103
  %v1150 = vadd.f32 %v920, %v1108
  %v1151 = vadd.f32 %v921, %v1113
  %v1152 = vadd.f32 %v922, %v1118
  %v1153 = vadd.f32 %v923, %v1123
  %v1154 = vadd.f32 %v924, %v1128
  %v1155 = vadd.f32 %v925, %v1133
  %v1156 = vadd.f32 %v926, %v1138
  %v1157 = vld [vmem:[%s2 + $0x1] sm:$0xff]
  %v1158 = vld [vmem:[%s2 + $0x11] sm:$0xff]
  %v1159 = vld [vmem:[%s2 + $0x21] sm:$0xff]
  %v1160 = vld [vmem:[%s2 + $0x31] sm:$0xff]
  %v1161 = vld [vmem:[%s2 + $0x41] sm:$0xff]
  %v1162 = vld [vmem:[%s2 + $0x51] sm:$0xff]
  %v1163 = vld [vmem:[%s2 + $0x61] sm:$0xff]
  %v1164 = vld [vmem:[%s2 + $0x71] sm:$0xff]
  %v1165 = vld [vmem:[%s2 + $0x91] sm:$0xff]
  %v1166 = vld [vmem:[%s2 + $0xa1] sm:$0xff]
  %v1167 = vld [vmem:[%s2 + $0xb1] sm:$0xff]
  %v1168 = vld [vmem:[%s2 + $0xc1] sm:$0xff]
  %v1169 = vld [vmem:[%s2 + $0xd1] sm:$0xff]
  %v1170 = vld [vmem:[%s2 + $0xe1] sm:$0xff]
  %v1171 = vld [vmem:[%s2 + $0xf1] sm:$0xff]
  %v1172 = vld [vmem:[%s2 + $0x101] sm:$0xff]
  %s1173 = scalar_lea.vmem %s4, 20
  %v1174 = vld [vmem:[%s1173] sm:$0xf]
  %v1176 = vsel %vm73, %v1157, 0
  %v1179 = vsel %vm73, %v1158, 0
  %v1182 = vsel %vm73, %v1159, 0
  %v1185 = vsel %vm73, %v1160, 0
  %v1188 = vsel %vm73, %v1161, 0
  %v1191 = vsel %vm73, %v1162, 0
  %v1194 = vsel %vm73, %v1163, 0
  %v1197 = vsel %vm73, %v1164, 0
  %v1200 = vsel %vm73, %v1165, 0
  %v1203 = vsel %vm73, %v1166, 0
  %v1206 = vsel %vm73, %v1167, 0
  %v1209 = vsel %vm73, %v1168, 0
  %v1212 = vsel %vm73, %v1169, 0
  %v1215 = vsel %vm73, %v1170, 0
  %v1218 = vsel %vm73, %v1171, 0
  %v1221 = vsel %vm73, %v1172, 0
  %v1224 = vsel %vm122, %v1174, 0
  %1226 = vmatprep.subr.mxu0 0.0
  %1227 = vmatpush1.msra.mxu0 0.0
  %1228 = vmatprep.subr.mxu0 0.0
  %1229 = vmatpush1.msra.mxu0 0.0
  %1230 = vmatprep.subr.mxu0 0.0
  %1231 = vmatpush1.msra.mxu0 0.0
  %1232 = vmatprep.subr.mxu0 0.0
  %1233 = vmatpush1.msra.mxu0 0.0
  %1234 = vmatprep.subr.mxu0 0.0
  %1235 = vmatpush1.msra.mxu0 0.0
  %1236 = vmatprep.subr.mxu0 0.0
  %1237 = vmatpush1.msra.mxu0 0.0
  %1238 = vmatprep.subr.mxu0 0.0
  %1239 = vmatpush1.msra.mxu0 0.0
  %1240 = vmatprep.subr.mxu0 0.0
  %1241 = vmatpush1.msra.mxu0 0.0
  %1242 = vmatprep.subr.mxu0 0.0
  %1243 = vmatpush1.msra.mxu0 0.0
  %1244 = vmatprep.subr.mxu0 0.0
  %1245 = vmatpush1.msra.mxu0 0.0
  %1246 = vmatprep.subr.mxu0 0.0
  %1247 = vmatpush1.msra.mxu0 0.0
  %1248 = vmatprep.subr.mxu0 0.0
  %1249 = vmatpush1.msra.mxu0 0.0
  %1250 = vmatprep.subr.mxu0 0.0
  %1251 = vmatpush1.msra.mxu0 0.0
  %1252 = vmatprep.subr.mxu0 0.0
  %1253 = vmatpush1.msra.mxu0 0.0
  %1254 = vmatprep.subr.mxu0 0.0
  %1255 = vmatpush1.msra.mxu0 0.0
  %1256 = vmatprep.subr.mxu0 0.0
  %1257 = vmatpush1.msra.mxu0 %v1224
  %1258 = vmatprep.subr.mxu0 0.0
  %1259 = vmatpush2.msra.mxu0 0.0
  %1260 = vmatprep.subr.mxu0 0.0
  %1261 = vmatpush2.msra.mxu0 0.0
  %1262 = vmatprep.subr.mxu0 0.0
  %1263 = vmatpush2.msra.mxu0 0.0
  %1264 = vmatprep.subr.mxu0 0.0
  %1265 = vmatpush2.msra.mxu0 0.0
  %1266 = vmatprep.subr.mxu0 0.0
  %1267 = vmatpush2.msra.mxu0 0.0
  %1268 = vmatprep.subr.mxu0 0.0
  %1269 = vmatpush2.msra.mxu0 0.0
  %1270 = vmatprep.subr.mxu0 0.0
  %1271 = vmatpush2.msra.mxu0 0.0
  %1272 = vmatprep.subr.mxu0 0.0
  %1273 = vmatpush2.msra.mxu0 0.0
  %1274 = vmatprep.subr.mxu0 0.0
  %1275 = vmatpush2.msra.mxu0 0.0
  %1276 = vmatprep.subr.mxu0 0.0
  %1277 = vmatpush2.msra.mxu0 0.0
  %1278 = vmatprep.subr.mxu0 0.0
  %1279 = vmatpush2.msra.mxu0 0.0
  %1280 = vmatprep.subr.mxu0 0.0
  %1281 = vmatpush2.msra.mxu0 0.0
  %1282 = vmatprep.subr.mxu0 0.0
  %1283 = vmatpush2.msra.mxu0 0.0
  %1284 = vmatprep.subr.mxu0 0.0
  %1285 = vmatpush2.msra.mxu0 0.0
  %1286 = vmatprep.subr.mxu0 0.0
  %1287 = vmatpush2.msra.mxu0 0.0
  %1288 = vmatprep.subr.mxu0 0.0
  %1289 = vmatpush2.msra.mxu0 0.0
  %1290 = vmatprep.mubr.f32.mxu0 0.0
  %1291 = vmatmul.mubr.f32.gmra.mxu0 %v1176
  %v1292 = vpop.f32.mrf.mxu0
  %v1293 = vadd.f32 0.0, %v1292
  %v1294 = vpop.f32.mrf.mxu0
  %1295 = vmatprep.mubr.f32.mxu0 0.0
  %1296 = vmatmul.mubr.f32.gmra.mxu0 %v1179
  %v1297 = vpop.f32.mrf.mxu0
  %v1298 = vadd.f32 0.0, %v1297
  %v1299 = vpop.f32.mrf.mxu0
  %1300 = vmatprep.mubr.f32.mxu0 0.0
  %1301 = vmatmul.mubr.f32.gmra.mxu0 %v1182
  %v1302 = vpop.f32.mrf.mxu0
  %v1303 = vadd.f32 0.0, %v1302
  %v1304 = vpop.f32.mrf.mxu0
  %1305 = vmatprep.mubr.f32.mxu0 0.0
  %1306 = vmatmul.mubr.f32.gmra.mxu0 %v1185
  %v1307 = vpop.f32.mrf.mxu0
  %v1308 = vadd.f32 0.0, %v1307
  %v1309 = vpop.f32.mrf.mxu0
  %1310 = vmatprep.mubr.f32.mxu0 0.0
  %1311 = vmatmul.mubr.f32.gmra.mxu0 %v1188
  %v1312 = vpop.f32.mrf.mxu0
  %v1313 = vadd.f32 0.0, %v1312
  %v1314 = vpop.f32.mrf.mxu0
  %1315 = vmatprep.mubr.f32.mxu0 0.0
  %1316 = vmatmul.mubr.f32.gmra.mxu0 %v1191
  %v1317 = vpop.f32.mrf.mxu0
  %v1318 = vadd.f32 0.0, %v1317
  %v1319 = vpop.f32.mrf.mxu0
  %1320 = vmatprep.mubr.f32.mxu0 0.0
  %1321 = vmatmul.mubr.f32.gmra.mxu0 %v1194
  %v1322 = vpop.f32.mrf.mxu0
  %v1323 = vadd.f32 0.0, %v1322
  %v1324 = vpop.f32.mrf.mxu0
  %1325 = vmatprep.mubr.f32.mxu0 0.0
  %1326 = vmatmul.mubr.f32.gmra.mxu0 %v1197
  %v1327 = vpop.f32.mrf.mxu0
  %v1328 = vadd.f32 0.0, %v1327
  %v1329 = vpop.f32.mrf.mxu0
  %1330 = vmatprep.mubr.f32.mxu0 0.0
  %1331 = vmatmul.mubr.f32.gmra.mxu0 %v1200
  %v1332 = vpop.f32.mrf.mxu0
  %v1333 = vadd.f32 0.0, %v1332
  %v1334 = vpop.f32.mrf.mxu0
  %1335 = vmatprep.mubr.f32.mxu0 0.0
  %1336 = vmatmul.mubr.f32.gmra.mxu0 %v1203
  %v1337 = vpop.f32.mrf.mxu0
  %v1338 = vadd.f32 0.0, %v1337
  %v1339 = vpop.f32.mrf.mxu0
  %1340 = vmatprep.mubr.f32.mxu0 0.0
  %1341 = vmatmul.mubr.f32.gmra.mxu0 %v1206
  %v1342 = vpop.f32.mrf.mxu0
  %v1343 = vadd.f32 0.0, %v1342
  %v1344 = vpop.f32.mrf.mxu0
  %1345 = vmatprep.mubr.f32.mxu0 0.0
  %1346 = vmatmul.mubr.f32.gmra.mxu0 %v1209
  %v1347 = vpop.f32.mrf.mxu0
  %v1348 = vadd.f32 0.0, %v1347
  %v1349 = vpop.f32.mrf.mxu0
  %1350 = vmatprep.mubr.f32.mxu0 0.0
  %1351 = vmatmul.mubr.f32.gmra.mxu0 %v1212
  %v1352 = vpop.f32.mrf.mxu0
  %v1353 = vadd.f32 0.0, %v1352
  %v1354 = vpop.f32.mrf.mxu0
  %1355 = vmatprep.mubr.f32.mxu0 0.0
  %1356 = vmatmul.mubr.f32.gmra.mxu0 %v1215
  %v1357 = vpop.f32.mrf.mxu0
  %v1358 = vadd.f32 0.0, %v1357
  %v1359 = vpop.f32.mrf.mxu0
  %1360 = vmatprep.mubr.f32.mxu0 0.0
  %1361 = vmatmul.mubr.f32.gmra.mxu0 %v1218
  %v1362 = vpop.f32.mrf.mxu0
  %v1363 = vadd.f32 0.0, %v1362
  %v1364 = vpop.f32.mrf.mxu0
  %1365 = vmatprep.mubr.f32.mxu0 0.0
  %1366 = vmatmul.mubr.f32.gmra.mxu0 %v1221
  %v1367 = vpop.f32.mrf.mxu0
  %v1368 = vadd.f32 0.0, %v1367
  %v1369 = vpop.f32.mrf.mxu0
  %1370 = vdwg.mxu0
  %v1371 = vadd.f32 %v1141, %v1293
  %v1372 = vadd.f32 %v1142, %v1298
  %v1373 = vadd.f32 %v1143, %v1303
  %v1374 = vadd.f32 %v1144, %v1308
  %v1375 = vadd.f32 %v1145, %v1313
  %v1376 = vadd.f32 %v1146, %v1318
  %v1377 = vadd.f32 %v1147, %v1323
  %v1378 = vadd.f32 %v1148, %v1328
  %v1379 = vadd.f32 %v1149, %v1333
  %v1380 = vadd.f32 %v1150, %v1338
  %v1381 = vadd.f32 %v1151, %v1343
  %v1382 = vadd.f32 %v1152, %v1348
  %v1383 = vadd.f32 %v1153, %v1353
  %v1384 = vadd.f32 %v1154, %v1358
  %v1385 = vadd.f32 %v1155, %v1363
  %v1386 = vadd.f32 %v1156, %v1368
  %s1387 = scalar_lea.vmem %s0, 16
  %v1388 = vld [vmem:[%s1387] sm:$0xff]
  %v1389 = vld [vmem:[%s1387 + $0x10] sm:$0xff]
  %v1390 = vld [vmem:[%s1387 + $0x20] sm:$0xff]
  %v1391 = vld [vmem:[%s1387 + $0x30] sm:$0xff]
  %v1392 = vld [vmem:[%s1387 + $0x40] sm:$0xff]
  %v1393 = vld [vmem:[%s1387 + $0x50] sm:$0xff]
  %v1394 = vld [vmem:[%s1387 + $0x60] sm:$0xff]
  %v1395 = vld [vmem:[%s1387 + $0x70] sm:$0xff]
  %v1396 = vld [vmem:[%s1387 + $0x90] sm:$0xff]
  %v1397 = vld [vmem:[%s1387 + $0xa0] sm:$0xff]
  %v1398 = vld [vmem:[%s1387 + $0xb0] sm:$0xff]
  %v1399 = vld [vmem:[%s1387 + $0xc0] sm:$0xff]
  %v1400 = vld [vmem:[%s1387 + $0xd0] sm:$0xff]
  %v1401 = vld [vmem:[%s1387 + $0xe0] sm:$0xff]
  %v1402 = vld [vmem:[%s1387 + $0xf0] sm:$0xff]
  %v1403 = vld [vmem:[%s1387 + $0x100] sm:$0xff]
  %s1404 = scalar_lea.vmem %s4, 24
  %v1405 = vld [vmem:[%s1404] sm:$0xf]
  %v1407 = vsel %vm73, %v1388, 0
  %v1410 = vsel %vm73, %v1389, 0
  %v1413 = vsel %vm73, %v1390, 0
  %v1416 = vsel %vm73, %v1391, 0
  %v1419 = vsel %vm73, %v1392, 0
  %v1422 = vsel %vm73, %v1393, 0
  %v1425 = vsel %vm73, %v1394, 0
  %v1428 = vsel %vm73, %v1395, 0
  %v1431 = vsel %vm73, %v1396, 0
  %v1434 = vsel %vm73, %v1397, 0
  %v1437 = vsel %vm73, %v1398, 0
  %v1440 = vsel %vm73, %v1399, 0
  %v1443 = vsel %vm73, %v1400, 0
  %v1446 = vsel %vm73, %v1401, 0
  %v1449 = vsel %vm73, %v1402, 0
  %v1452 = vsel %vm73, %v1403, 0
  %v1455 = vsel %vm122, %v1405, 0
  %1457 = vmatprep.subr.mxu0 0.0
  %1458 = vmatpush1.msra.mxu0 0.0
  %1459 = vmatprep.subr.mxu0 0.0
  %1460 = vmatpush1.msra.mxu0 0.0
  %1461 = vmatprep.subr.mxu0 0.0
  %1462 = vmatpush1.msra.mxu0 0.0
  %1463 = vmatprep.subr.mxu0 0.0
  %1464 = vmatpush1.msra.mxu0 0.0
  %1465 = vmatprep.subr.mxu0 0.0
  %1466 = vmatpush1.msra.mxu0 0.0
  %1467 = vmatprep.subr.mxu0 0.0
  %1468 = vmatpush1.msra.mxu0 0.0
  %1469 = vmatprep.subr.mxu0 0.0
  %1470 = vmatpush1.msra.mxu0 0.0
  %1471 = vmatprep.subr.mxu0 0.0
  %1472 = vmatpush1.msra.mxu0 0.0
  %1473 = vmatprep.subr.mxu0 0.0
  %1474 = vmatpush1.msra.mxu0 0.0
  %1475 = vmatprep.subr.mxu0 0.0
  %1476 = vmatpush1.msra.mxu0 0.0
  %1477 = vmatprep.subr.mxu0 0.0
  %1478 = vmatpush1.msra.mxu0 0.0
  %1479 = vmatprep.subr.mxu0 0.0
  %1480 = vmatpush1.msra.mxu0 0.0
  %1481 = vmatprep.subr.mxu0 0.0
  %1482 = vmatpush1.msra.mxu0 0.0
  %1483 = vmatprep.subr.mxu0 0.0
  %1484 = vmatpush1.msra.mxu0 0.0
  %1485 = vmatprep.subr.mxu0 0.0
  %1486 = vmatpush1.msra.mxu0 0.0
  %1487 = vmatprep.subr.mxu0 0.0
  %1488 = vmatpush1.msra.mxu0 %v1455
  %1489 = vmatprep.subr.mxu0 0.0
  %1490 = vmatpush2.msra.mxu0 0.0
  %1491 = vmatprep.subr.mxu0 0.0
  %1492 = vmatpush2.msra.mxu0 0.0
  %1493 = vmatprep.subr.mxu0 0.0
  %1494 = vmatpush2.msra.mxu0 0.0
  %1495 = vmatprep.subr.mxu0 0.0
  %1496 = vmatpush2.msra.mxu0 0.0
  %1497 = vmatprep.subr.mxu0 0.0
  %1498 = vmatpush2.msra.mxu0 0.0
  %1499 = vmatprep.subr.mxu0 0.0
  %1500 = vmatpush2.msra.mxu0 0.0
  %1501 = vmatprep.subr.mxu0 0.0
  %1502 = vmatpush2.msra.mxu0 0.0
  %1503 = vmatprep.subr.mxu0 0.0
  %1504 = vmatpush2.msra.mxu0 0.0
  %1505 = vmatprep.subr.mxu0 0.0
  %1506 = vmatpush2.msra.mxu0 0.0
  %1507 = vmatprep.subr.mxu0 0.0
  %1508 = vmatpush2.msra.mxu0 0.0
  %1509 = vmatprep.subr.mxu0 0.0
  %1510 = vmatpush2.msra.mxu0 0.0
  %1511 = vmatprep.subr.mxu0 0.0
  %1512 = vmatpush2.msra.mxu0 0.0
  %1513 = vmatprep.subr.mxu0 0.0
  %1514 = vmatpush2.msra.mxu0 0.0
  %1515 = vmatprep.subr.mxu0 0.0
  %1516 = vmatpush2.msra.mxu0 0.0
  %1517 = vmatprep.subr.mxu0 0.0
  %1518 = vmatpush2.msra.mxu0 0.0
  %1519 = vmatprep.subr.mxu0 0.0
  %1520 = vmatpush2.msra.mxu0 0.0
  %1521 = vmatprep.mubr.f32.mxu0 0.0
  %1522 = vmatmul.mubr.f32.gmra.mxu0 %v1407
  %v1523 = vpop.f32.mrf.mxu0
  %v1524 = vadd.f32 0.0, %v1523
  %v1525 = vpop.f32.mrf.mxu0
  %1526 = vmatprep.mubr.f32.mxu0 0.0
  %1527 = vmatmul.mubr.f32.gmra.mxu0 %v1410
  %v1528 = vpop.f32.mrf.mxu0
  %v1529 = vadd.f32 0.0, %v1528
  %v1530 = vpop.f32.mrf.mxu0
  %1531 = vmatprep.mubr.f32.mxu0 0.0
  %1532 = vmatmul.mubr.f32.gmra.mxu0 %v1413
  %v1533 = vpop.f32.mrf.mxu0
  %v1534 = vadd.f32 0.0, %v1533
  %v1535 = vpop.f32.mrf.mxu0
  %1536 = vmatprep.mubr.f32.mxu0 0.0
  %1537 = vmatmul.mubr.f32.gmra.mxu0 %v1416
  %v1538 = vpop.f32.mrf.mxu0
  %v1539 = vadd.f32 0.0, %v1538
  %v1540 = vpop.f32.mrf.mxu0
  %1541 = vmatprep.mubr.f32.mxu0 0.0
  %1542 = vmatmul.mubr.f32.gmra.mxu0 %v1419
  %v1543 = vpop.f32.mrf.mxu0
  %v1544 = vadd.f32 0.0, %v1543
  %v1545 = vpop.f32.mrf.mxu0
  %1546 = vmatprep.mubr.f32.mxu0 0.0
  %1547 = vmatmul.mubr.f32.gmra.mxu0 %v1422
  %v1548 = vpop.f32.mrf.mxu0
  %v1549 = vadd.f32 0.0, %v1548
  %v1550 = vpop.f32.mrf.mxu0
  %1551 = vmatprep.mubr.f32.mxu0 0.0
  %1552 = vmatmul.mubr.f32.gmra.mxu0 %v1425
  %v1553 = vpop.f32.mrf.mxu0
  %v1554 = vadd.f32 0.0, %v1553
  %v1555 = vpop.f32.mrf.mxu0
  %1556 = vmatprep.mubr.f32.mxu0 0.0
  %1557 = vmatmul.mubr.f32.gmra.mxu0 %v1428
  %v1558 = vpop.f32.mrf.mxu0
  %v1559 = vadd.f32 0.0, %v1558
  %v1560 = vpop.f32.mrf.mxu0
  %1561 = vmatprep.mubr.f32.mxu0 0.0
  %1562 = vmatmul.mubr.f32.gmra.mxu0 %v1431
  %v1563 = vpop.f32.mrf.mxu0
  %v1564 = vadd.f32 0.0, %v1563
  %v1565 = vpop.f32.mrf.mxu0
  %1566 = vmatprep.mubr.f32.mxu0 0.0
  %1567 = vmatmul.mubr.f32.gmra.mxu0 %v1434
  %v1568 = vpop.f32.mrf.mxu0
  %v1569 = vadd.f32 0.0, %v1568
  %v1570 = vpop.f32.mrf.mxu0
  %1571 = vmatprep.mubr.f32.mxu0 0.0
  %1572 = vmatmul.mubr.f32.gmra.mxu0 %v1437
  %v1573 = vpop.f32.mrf.mxu0
  %v1574 = vadd.f32 0.0, %v1573
  %v1575 = vpop.f32.mrf.mxu0
  %1576 = vmatprep.mubr.f32.mxu0 0.0
  %1577 = vmatmul.mubr.f32.gmra.mxu0 %v1440
  %v1578 = vpop.f32.mrf.mxu0
  %v1579 = vadd.f32 0.0, %v1578
  %v1580 = vpop.f32.mrf.mxu0
  %1581 = vmatprep.mubr.f32.mxu0 0.0
  %1582 = vmatmul.mubr.f32.gmra.mxu0 %v1443
  %v1583 = vpop.f32.mrf.mxu0
  %v1584 = vadd.f32 0.0, %v1583
  %v1585 = vpop.f32.mrf.mxu0
  %1586 = vmatprep.mubr.f32.mxu0 0.0
  %1587 = vmatmul.mubr.f32.gmra.mxu0 %v1446
  %v1588 = vpop.f32.mrf.mxu0
  %v1589 = vadd.f32 0.0, %v1588
  %v1590 = vpop.f32.mrf.mxu0
  %1591 = vmatprep.mubr.f32.mxu0 0.0
  %1592 = vmatmul.mubr.f32.gmra.mxu0 %v1449
  %v1593 = vpop.f32.mrf.mxu0
  %v1594 = vadd.f32 0.0, %v1593
  %v1595 = vpop.f32.mrf.mxu0
  %1596 = vmatprep.mubr.f32.mxu0 0.0
  %1597 = vmatmul.mubr.f32.gmra.mxu0 %v1452
  %v1598 = vpop.f32.mrf.mxu0
  %v1599 = vadd.f32 0.0, %v1598
  %v1600 = vpop.f32.mrf.mxu0
  %1601 = vdwg.mxu0
  %v1602 = vadd.f32 %v1371, %v1524
  %v1603 = vadd.f32 %v1372, %v1529
  %v1604 = vadd.f32 %v1373, %v1534
  %v1605 = vadd.f32 %v1374, %v1539
  %v1606 = vadd.f32 %v1375, %v1544
  %v1607 = vadd.f32 %v1376, %v1549
  %v1608 = vadd.f32 %v1377, %v1554
  %v1609 = vadd.f32 %v1378, %v1559
  %v1610 = vadd.f32 %v1379, %v1564
  %v1611 = vadd.f32 %v1380, %v1569
  %v1612 = vadd.f32 %v1381, %v1574
  %v1613 = vadd.f32 %v1382, %v1579
  %v1614 = vadd.f32 %v1383, %v1584
  %v1615 = vadd.f32 %v1384, %v1589
  %v1616 = vadd.f32 %v1385, %v1594
  %v1617 = vadd.f32 %v1386, %v1599
  %s1618 = scalar_lea.vmem %s1, 16
  %v1619 = vld [vmem:[%s1618] sm:$0xff]
  %v1620 = vld [vmem:[%s1618 + $0x10] sm:$0xff]
  %v1621 = vld [vmem:[%s1618 + $0x20] sm:$0xff]
  %v1622 = vld [vmem:[%s1618 + $0x30] sm:$0xff]
  %v1623 = vld [vmem:[%s1618 + $0x40] sm:$0xff]
  %v1624 = vld [vmem:[%s1618 + $0x50] sm:$0xff]
  %v1625 = vld [vmem:[%s1618 + $0x60] sm:$0xff]
  %v1626 = vld [vmem:[%s1618 + $0x70] sm:$0xff]
  %v1627 = vld [vmem:[%s1618 + $0x90] sm:$0xff]
  %v1628 = vld [vmem:[%s1618 + $0xa0] sm:$0xff]
  %v1629 = vld [vmem:[%s1618 + $0xb0] sm:$0xff]
  %v1630 = vld [vmem:[%s1618 + $0xc0] sm:$0xff]
  %v1631 = vld [vmem:[%s1618 + $0xd0] sm:$0xff]
  %v1632 = vld [vmem:[%s1618 + $0xe0] sm:$0xff]
  %v1633 = vld [vmem:[%s1618 + $0xf0] sm:$0xff]
  %v1634 = vld [vmem:[%s1618 + $0x100] sm:$0xff]
  %s1635 = scalar_lea.vmem %s4, 28
  %v1636 = vld [vmem:[%s1635] sm:$0xf]
  %v1638 = vsel %vm73, %v1619, 0
  %v1641 = vsel %vm73, %v1620, 0
  %v1644 = vsel %vm73, %v1621, 0
  %v1647 = vsel %vm73, %v1622, 0
  %v1650 = vsel %vm73, %v1623, 0
  %v1653 = vsel %vm73, %v1624, 0
  %v1656 = vsel %vm73, %v1625, 0
  %v1659 = vsel %vm73, %v1626, 0
  %v1662 = vsel %vm73, %v1627, 0
  %v1665 = vsel %vm73, %v1628, 0
  %v1668 = vsel %vm73, %v1629, 0
  %v1671 = vsel %vm73, %v1630, 0
  %v1674 = vsel %vm73, %v1631, 0
  %v1677 = vsel %vm73, %v1632, 0
  %v1680 = vsel %vm73, %v1633, 0
  %v1683 = vsel %vm73, %v1634, 0
  %v1686 = vsel %vm122, %v1636, 0
  %1688 = vmatprep.subr.mxu0 0.0
  %1689 = vmatpush1.msra.mxu0 0.0
  %1690 = vmatprep.subr.mxu0 0.0
  %1691 = vmatpush1.msra.mxu0 0.0
  %1692 = vmatprep.subr.mxu0 0.0
  %1693 = vmatpush1.msra.mxu0 0.0
  %1694 = vmatprep.subr.mxu0 0.0
  %1695 = vmatpush1.msra.mxu0 0.0
  %1696 = vmatprep.subr.mxu0 0.0
  %1697 = vmatpush1.msra.mxu0 0.0
  %1698 = vmatprep.subr.mxu0 0.0
  %1699 = vmatpush1.msra.mxu0 0.0
  %1700 = vmatprep.subr.mxu0 0.0
  %1701 = vmatpush1.msra.mxu0 0.0
  %1702 = vmatprep.subr.mxu0 0.0
  %1703 = vmatpush1.msra.mxu0 0.0
  %1704 = vmatprep.subr.mxu0 0.0
  %1705 = vmatpush1.msra.mxu0 0.0
  %1706 = vmatprep.subr.mxu0 0.0
  %1707 = vmatpush1.msra.mxu0 0.0
  %1708 = vmatprep.subr.mxu0 0.0
  %1709 = vmatpush1.msra.mxu0 0.0
  %1710 = vmatprep.subr.mxu0 0.0
  %1711 = vmatpush1.msra.mxu0 0.0
  %1712 = vmatprep.subr.mxu0 0.0
  %1713 = vmatpush1.msra.mxu0 0.0
  %1714 = vmatprep.subr.mxu0 0.0
  %1715 = vmatpush1.msra.mxu0 0.0
  %1716 = vmatprep.subr.mxu0 0.0
  %1717 = vmatpush1.msra.mxu0 0.0
  %1718 = vmatprep.subr.mxu0 0.0
  %1719 = vmatpush1.msra.mxu0 %v1686
  %1720 = vmatprep.subr.mxu0 0.0
  %1721 = vmatpush2.msra.mxu0 0.0
  %1722 = vmatprep.subr.mxu0 0.0
  %1723 = vmatpush2.msra.mxu0 0.0
  %1724 = vmatprep.subr.mxu0 0.0
  %1725 = vmatpush2.msra.mxu0 0.0
  %1726 = vmatprep.subr.mxu0 0.0
  %1727 = vmatpush2.msra.mxu0 0.0
  %1728 = vmatprep.subr.mxu0 0.0
  %1729 = vmatpush2.msra.mxu0 0.0
  %1730 = vmatprep.subr.mxu0 0.0
  %1731 = vmatpush2.msra.mxu0 0.0
  %1732 = vmatprep.subr.mxu0 0.0
  %1733 = vmatpush2.msra.mxu0 0.0
  %1734 = vmatprep.subr.mxu0 0.0
  %1735 = vmatpush2.msra.mxu0 0.0
  %1736 = vmatprep.subr.mxu0 0.0
  %1737 = vmatpush2.msra.mxu0 0.0
  %1738 = vmatprep.subr.mxu0 0.0
  %1739 = vmatpush2.msra.mxu0 0.0
  %1740 = vmatprep.subr.mxu0 0.0
  %1741 = vmatpush2.msra.mxu0 0.0
  %1742 = vmatprep.subr.mxu0 0.0
  %1743 = vmatpush2.msra.mxu0 0.0
  %1744 = vmatprep.subr.mxu0 0.0
  %1745 = vmatpush2.msra.mxu0 0.0
  %1746 = vmatprep.subr.mxu0 0.0
  %1747 = vmatpush2.msra.mxu0 0.0
  %1748 = vmatprep.subr.mxu0 0.0
  %1749 = vmatpush2.msra.mxu0 0.0
  %1750 = vmatprep.subr.mxu0 0.0
  %1751 = vmatpush2.msra.mxu0 0.0
  %1752 = vmatprep.mubr.f32.mxu0 0.0
  %1753 = vmatmul.mubr.f32.gmra.mxu0 %v1638
  %v1754 = vpop.f32.mrf.mxu0
  %v1755 = vadd.f32 0.0, %v1754
  %v1756 = vpop.f32.mrf.mxu0
  %1757 = vmatprep.mubr.f32.mxu0 0.0
  %1758 = vmatmul.mubr.f32.gmra.mxu0 %v1641
  %v1759 = vpop.f32.mrf.mxu0
  %v1760 = vadd.f32 0.0, %v1759
  %v1761 = vpop.f32.mrf.mxu0
  %1762 = vmatprep.mubr.f32.mxu0 0.0
  %1763 = vmatmul.mubr.f32.gmra.mxu0 %v1644
  %v1764 = vpop.f32.mrf.mxu0
  %v1765 = vadd.f32 0.0, %v1764
  %v1766 = vpop.f32.mrf.mxu0
  %1767 = vmatprep.mubr.f32.mxu0 0.0
  %1768 = vmatmul.mubr.f32.gmra.mxu0 %v1647
  %v1769 = vpop.f32.mrf.mxu0
  %v1770 = vadd.f32 0.0, %v1769
  %v1771 = vpop.f32.mrf.mxu0
  %1772 = vmatprep.mubr.f32.mxu0 0.0
  %1773 = vmatmul.mubr.f32.gmra.mxu0 %v1650
  %v1774 = vpop.f32.mrf.mxu0
  %v1775 = vadd.f32 0.0, %v1774
  %v1776 = vpop.f32.mrf.mxu0
  %1777 = vmatprep.mubr.f32.mxu0 0.0
  %1778 = vmatmul.mubr.f32.gmra.mxu0 %v1653
  %v1779 = vpop.f32.mrf.mxu0
  %v1780 = vadd.f32 0.0, %v1779
  %v1781 = vpop.f32.mrf.mxu0
  %1782 = vmatprep.mubr.f32.mxu0 0.0
  %1783 = vmatmul.mubr.f32.gmra.mxu0 %v1656
  %v1784 = vpop.f32.mrf.mxu0
  %v1785 = vadd.f32 0.0, %v1784
  %v1786 = vpop.f32.mrf.mxu0
  %1787 = vmatprep.mubr.f32.mxu0 0.0
  %1788 = vmatmul.mubr.f32.gmra.mxu0 %v1659
  %v1789 = vpop.f32.mrf.mxu0
  %v1790 = vadd.f32 0.0, %v1789
  %v1791 = vpop.f32.mrf.mxu0
  %1792 = vmatprep.mubr.f32.mxu0 0.0
  %1793 = vmatmul.mubr.f32.gmra.mxu0 %v1662
  %v1794 = vpop.f32.mrf.mxu0
  %v1795 = vadd.f32 0.0, %v1794
  %v1796 = vpop.f32.mrf.mxu0
  %1797 = vmatprep.mubr.f32.mxu0 0.0
  %1798 = vmatmul.mubr.f32.gmra.mxu0 %v1665
  %v1799 = vpop.f32.mrf.mxu0
  %v1800 = vadd.f32 0.0, %v1799
  %v1801 = vpop.f32.mrf.mxu0
  %1802 = vmatprep.mubr.f32.mxu0 0.0
  %1803 = vmatmul.mubr.f32.gmra.mxu0 %v1668
  %v1804 = vpop.f32.mrf.mxu0
  %v1805 = vadd.f32 0.0, %v1804
  %v1806 = vpop.f32.mrf.mxu0
  %1807 = vmatprep.mubr.f32.mxu0 0.0
  %1808 = vmatmul.mubr.f32.gmra.mxu0 %v1671
  %v1809 = vpop.f32.mrf.mxu0
  %v1810 = vadd.f32 0.0, %v1809
  %v1811 = vpop.f32.mrf.mxu0
  %1812 = vmatprep.mubr.f32.mxu0 0.0
  %1813 = vmatmul.mubr.f32.gmra.mxu0 %v1674
  %v1814 = vpop.f32.mrf.mxu0
  %v1815 = vadd.f32 0.0, %v1814
  %v1816 = vpop.f32.mrf.mxu0
  %1817 = vmatprep.mubr.f32.mxu0 0.0
  %1818 = vmatmul.mubr.f32.gmra.mxu0 %v1677
  %v1819 = vpop.f32.mrf.mxu0
  %v1820 = vadd.f32 0.0, %v1819
  %v1821 = vpop.f32.mrf.mxu0
  %1822 = vmatprep.mubr.f32.mxu0 0.0
  %1823 = vmatmul.mubr.f32.gmra.mxu0 %v1680
  %v1824 = vpop.f32.mrf.mxu0
  %v1825 = vadd.f32 0.0, %v1824
  %v1826 = vpop.f32.mrf.mxu0
  %1827 = vmatprep.mubr.f32.mxu0 0.0
  %1828 = vmatmul.mubr.f32.gmra.mxu0 %v1683
  %v1829 = vpop.f32.mrf.mxu0
  %v1830 = vadd.f32 0.0, %v1829
  %v1831 = vpop.f32.mrf.mxu0
  %1832 = vdwg.mxu0
  %v1833 = vadd.f32 %v1602, %v1755
  %v1834 = vadd.f32 %v1603, %v1760
  %v1835 = vadd.f32 %v1604, %v1765
  %v1836 = vadd.f32 %v1605, %v1770
  %v1837 = vadd.f32 %v1606, %v1775
  %v1838 = vadd.f32 %v1607, %v1780
  %v1839 = vadd.f32 %v1608, %v1785
  %v1840 = vadd.f32 %v1609, %v1790
  %v1841 = vadd.f32 %v1610, %v1795
  %v1842 = vadd.f32 %v1611, %v1800
  %v1843 = vadd.f32 %v1612, %v1805
  %v1844 = vadd.f32 %v1613, %v1810
  %v1845 = vadd.f32 %v1614, %v1815
  %v1846 = vadd.f32 %v1615, %v1820
  %v1847 = vadd.f32 %v1616, %v1825
  %v1848 = vadd.f32 %v1617, %v1830
  %v1849 = vld [vmem:[%s1387 + $0x1] sm:$0xff]
  %v1850 = vld [vmem:[%s1387 + $0x11] sm:$0xff]
  %v1851 = vld [vmem:[%s1387 + $0x21] sm:$0xff]
  %v1852 = vld [vmem:[%s1387 + $0x31] sm:$0xff]
  %v1853 = vld [vmem:[%s1387 + $0x41] sm:$0xff]
  %v1854 = vld [vmem:[%s1387 + $0x51] sm:$0xff]
  %v1855 = vld [vmem:[%s1387 + $0x61] sm:$0xff]
  %v1856 = vld [vmem:[%s1387 + $0x71] sm:$0xff]
  %v1857 = vld [vmem:[%s1387 + $0x91] sm:$0xff]
  %v1858 = vld [vmem:[%s1387 + $0xa1] sm:$0xff]
  %v1859 = vld [vmem:[%s1387 + $0xb1] sm:$0xff]
  %v1860 = vld [vmem:[%s1387 + $0xc1] sm:$0xff]
  %v1861 = vld [vmem:[%s1387 + $0xd1] sm:$0xff]
  %v1862 = vld [vmem:[%s1387 + $0xe1] sm:$0xff]
  %v1863 = vld [vmem:[%s1387 + $0xf1] sm:$0xff]
  %v1864 = vld [vmem:[%s1387 + $0x101] sm:$0xff]
  %s1865 = scalar_lea.vmem %s4, 32
  %v1866 = vld [vmem:[%s1865] sm:$0xf]
  %v1868 = vsel %vm73, %v1849, 0
  %v1871 = vsel %vm73, %v1850, 0
  %v1874 = vsel %vm73, %v1851, 0
  %v1877 = vsel %vm73, %v1852, 0
  %v1880 = vsel %vm73, %v1853, 0
  %v1883 = vsel %vm73, %v1854, 0
  %v1886 = vsel %vm73, %v1855, 0
  %v1889 = vsel %vm73, %v1856, 0
  %v1892 = vsel %vm73, %v1857, 0
  %v1895 = vsel %vm73, %v1858, 0
  %v1898 = vsel %vm73, %v1859, 0
  %v1901 = vsel %vm73, %v1860, 0
  %v1904 = vsel %vm73, %v1861, 0
  %v1907 = vsel %vm73, %v1862, 0
  %v1910 = vsel %vm73, %v1863, 0
  %v1913 = vsel %vm73, %v1864, 0
  %v1916 = vsel %vm122, %v1866, 0
  %1918 = vmatprep.subr.mxu0 0.0
  %1919 = vmatpush1.msra.mxu0 0.0
  %1920 = vmatprep.subr.mxu0 0.0
  %1921 = vmatpush1.msra.mxu0 0.0
  %1922 = vmatprep.subr.mxu0 0.0
  %1923 = vmatpush1.msra.mxu0 0.0
  %1924 = vmatprep.subr.mxu0 0.0
  %1925 = vmatpush1.msra.mxu0 0.0
  %1926 = vmatprep.subr.mxu0 0.0
  %1927 = vmatpush1.msra.mxu0 0.0
  %1928 = vmatprep.subr.mxu0 0.0
  %1929 = vmatpush1.msra.mxu0 0.0
  %1930 = vmatprep.subr.mxu0 0.0
  %1931 = vmatpush1.msra.mxu0 0.0
  %1932 = vmatprep.subr.mxu0 0.0
  %1933 = vmatpush1.msra.mxu0 0.0
  %1934 = vmatprep.subr.mxu0 0.0
  %1935 = vmatpush1.msra.mxu0 0.0
  %1936 = vmatprep.subr.mxu0 0.0
  %1937 = vmatpush1.msra.mxu0 0.0
  %1938 = vmatprep.subr.mxu0 0.0
  %1939 = vmatpush1.msra.mxu0 0.0
  %1940 = vmatprep.subr.mxu0 0.0
  %1941 = vmatpush1.msra.mxu0 0.0
  %1942 = vmatprep.subr.mxu0 0.0
  %1943 = vmatpush1.msra.mxu0 0.0
  %1944 = vmatprep.subr.mxu0 0.0
  %1945 = vmatpush1.msra.mxu0 0.0
  %1946 = vmatprep.subr.mxu0 0.0
  %1947 = vmatpush1.msra.mxu0 0.0
  %1948 = vmatprep.subr.mxu0 0.0
  %1949 = vmatpush1.msra.mxu0 %v1916
  %1950 = vmatprep.subr.mxu0 0.0
  %1951 = vmatpush2.msra.mxu0 0.0
  %1952 = vmatprep.subr.mxu0 0.0
  %1953 = vmatpush2.msra.mxu0 0.0
  %1954 = vmatprep.subr.mxu0 0.0
  %1955 = vmatpush2.msra.mxu0 0.0
  %1956 = vmatprep.subr.mxu0 0.0
  %1957 = vmatpush2.msra.mxu0 0.0
  %1958 = vmatprep.subr.mxu0 0.0
  %1959 = vmatpush2.msra.mxu0 0.0
  %1960 = vmatprep.subr.mxu0 0.0
  %1961 = vmatpush2.msra.mxu0 0.0
  %1962 = vmatprep.subr.mxu0 0.0
  %1963 = vmatpush2.msra.mxu0 0.0
  %1964 = vmatprep.subr.mxu0 0.0
  %1965 = vmatpush2.msra.mxu0 0.0
  %1966 = vmatprep.subr.mxu0 0.0
  %1967 = vmatpush2.msra.mxu0 0.0
  %1968 = vmatprep.subr.mxu0 0.0
  %1969 = vmatpush2.msra.mxu0 0.0
  %1970 = vmatprep.subr.mxu0 0.0
  %1971 = vmatpush2.msra.mxu0 0.0
  %1972 = vmatprep.subr.mxu0 0.0
  %1973 = vmatpush2.msra.mxu0 0.0
  %1974 = vmatprep.subr.mxu0 0.0
  %1975 = vmatpush2.msra.mxu0 0.0
  %1976 = vmatprep.subr.mxu0 0.0
  %1977 = vmatpush2.msra.mxu0 0.0
  %1978 = vmatprep.subr.mxu0 0.0
  %1979 = vmatpush2.msra.mxu0 0.0
  %1980 = vmatprep.subr.mxu0 0.0
  %1981 = vmatpush2.msra.mxu0 0.0
  %1982 = vmatprep.mubr.f32.mxu0 0.0
  %1983 = vmatmul.mubr.f32.gmra.mxu0 %v1868
  %v1984 = vpop.f32.mrf.mxu0
  %v1985 = vadd.f32 0.0, %v1984
  %v1986 = vpop.f32.mrf.mxu0
  %1987 = vmatprep.mubr.f32.mxu0 0.0
  %1988 = vmatmul.mubr.f32.gmra.mxu0 %v1871
  %v1989 = vpop.f32.mrf.mxu0
  %v1990 = vadd.f32 0.0, %v1989
  %v1991 = vpop.f32.mrf.mxu0
  %1992 = vmatprep.mubr.f32.mxu0 0.0
  %1993 = vmatmul.mubr.f32.gmra.mxu0 %v1874
  %v1994 = vpop.f32.mrf.mxu0
  %v1995 = vadd.f32 0.0, %v1994
  %v1996 = vpop.f32.mrf.mxu0
  %1997 = vmatprep.mubr.f32.mxu0 0.0
  %1998 = vmatmul.mubr.f32.gmra.mxu0 %v1877
  %v1999 = vpop.f32.mrf.mxu0
  %v2000 = vadd.f32 0.0, %v1999
  %v2001 = vpop.f32.mrf.mxu0
  %2002 = vmatprep.mubr.f32.mxu0 0.0
  %2003 = vmatmul.mubr.f32.gmra.mxu0 %v1880
  %v2004 = vpop.f32.mrf.mxu0
  %v2005 = vadd.f32 0.0, %v2004
  %v2006 = vpop.f32.mrf.mxu0
  %2007 = vmatprep.mubr.f32.mxu0 0.0
  %2008 = vmatmul.mubr.f32.gmra.mxu0 %v1883
  %v2009 = vpop.f32.mrf.mxu0
  %v2010 = vadd.f32 0.0, %v2009
  %v2011 = vpop.f32.mrf.mxu0
  %2012 = vmatprep.mubr.f32.mxu0 0.0
  %2013 = vmatmul.mubr.f32.gmra.mxu0 %v1886
  %v2014 = vpop.f32.mrf.mxu0
  %v2015 = vadd.f32 0.0, %v2014
  %v2016 = vpop.f32.mrf.mxu0
  %2017 = vmatprep.mubr.f32.mxu0 0.0
  %2018 = vmatmul.mubr.f32.gmra.mxu0 %v1889
  %v2019 = vpop.f32.mrf.mxu0
  %v2020 = vadd.f32 0.0, %v2019
  %v2021 = vpop.f32.mrf.mxu0
  %2022 = vmatprep.mubr.f32.mxu0 0.0
  %2023 = vmatmul.mubr.f32.gmra.mxu0 %v1892
  %v2024 = vpop.f32.mrf.mxu0
  %v2025 = vadd.f32 0.0, %v2024
  %v2026 = vpop.f32.mrf.mxu0
  %2027 = vmatprep.mubr.f32.mxu0 0.0
  %2028 = vmatmul.mubr.f32.gmra.mxu0 %v1895
  %v2029 = vpop.f32.mrf.mxu0
  %v2030 = vadd.f32 0.0, %v2029
  %v2031 = vpop.f32.mrf.mxu0
  %2032 = vmatprep.mubr.f32.mxu0 0.0
  %2033 = vmatmul.mubr.f32.gmra.mxu0 %v1898
  %v2034 = vpop.f32.mrf.mxu0
  %v2035 = vadd.f32 0.0, %v2034
  %v2036 = vpop.f32.mrf.mxu0
  %2037 = vmatprep.mubr.f32.mxu0 0.0
  %2038 = vmatmul.mubr.f32.gmra.mxu0 %v1901
  %v2039 = vpop.f32.mrf.mxu0
  %v2040 = vadd.f32 0.0, %v2039
  %v2041 = vpop.f32.mrf.mxu0
  %2042 = vmatprep.mubr.f32.mxu0 0.0
  %2043 = vmatmul.mubr.f32.gmra.mxu0 %v1904
  %v2044 = vpop.f32.mrf.mxu0
  %v2045 = vadd.f32 0.0, %v2044
  %v2046 = vpop.f32.mrf.mxu0
  %2047 = vmatprep.mubr.f32.mxu0 0.0
  %2048 = vmatmul.mubr.f32.gmra.mxu0 %v1907
  %v2049 = vpop.f32.mrf.mxu0
  %v2050 = vadd.f32 0.0, %v2049
  %v2051 = vpop.f32.mrf.mxu0
  %2052 = vmatprep.mubr.f32.mxu0 0.0
  %2053 = vmatmul.mubr.f32.gmra.mxu0 %v1910
  %v2054 = vpop.f32.mrf.mxu0
  %v2055 = vadd.f32 0.0, %v2054
  %v2056 = vpop.f32.mrf.mxu0
  %2057 = vmatprep.mubr.f32.mxu0 0.0
  %2058 = vmatmul.mubr.f32.gmra.mxu0 %v1913
  %v2059 = vpop.f32.mrf.mxu0
  %v2060 = vadd.f32 0.0, %v2059
  %v2061 = vpop.f32.mrf.mxu0
  %2062 = vdwg.mxu0
  %v2063 = vadd.f32 %v1833, %v1985
  %v2064 = vadd.f32 %v1834, %v1990
  %v2065 = vadd.f32 %v1835, %v1995
  %v2066 = vadd.f32 %v1836, %v2000
  %v2067 = vadd.f32 %v1837, %v2005
  %v2068 = vadd.f32 %v1838, %v2010
  %v2069 = vadd.f32 %v1839, %v2015
  %v2070 = vadd.f32 %v1840, %v2020
  %v2071 = vadd.f32 %v1841, %v2025
  %v2072 = vadd.f32 %v1842, %v2030
  %v2073 = vadd.f32 %v1843, %v2035
  %v2074 = vadd.f32 %v1844, %v2040
  %v2075 = vadd.f32 %v1845, %v2045
  %v2076 = vadd.f32 %v1846, %v2050
  %v2077 = vadd.f32 %v1847, %v2055
  %v2078 = vadd.f32 %v1848, %v2060
  %v2079 = vsel %vm73, %v2063, 0.0
  %v2080 = vsel %vm73, %v2064, 0.0
  %v2081 = vadd.f32 %v2079, %v2080
  %v2082 = vsel %vm73, %v2065, 0.0
  %v2083 = vadd.f32 %v2081, %v2082
  %v2084 = vsel %vm73, %v2066, 0.0
  %v2085 = vadd.f32 %v2083, %v2084
  %v2086 = vsel %vm73, %v2067, 0.0
  %v2087 = vadd.f32 %v2085, %v2086
  %v2088 = vsel %vm73, %v2068, 0.0
  %v2089 = vadd.f32 %v2087, %v2088
  %v2090 = vsel %vm73, %v2069, 0.0
  %v2091 = vadd.f32 %v2089, %v2090
  %v2092 = vsel %vm73, %v2070, 0.0
  %v2093 = vadd.f32 %v2091, %v2092
  %v2094 = vsel %vm73, %v2071, 0.0
  %v2095 = vadd.f32 %v2093, %v2094
  %v2096 = vsel %vm73, %v2072, 0.0
  %v2097 = vadd.f32 %v2095, %v2096
  %v2098 = vsel %vm73, %v2073, 0.0
  %v2099 = vadd.f32 %v2097, %v2098
  %v2100 = vsel %vm73, %v2074, 0.0
  %v2101 = vadd.f32 %v2099, %v2100
  %v2102 = vsel %vm73, %v2075, 0.0
  %v2103 = vadd.f32 %v2101, %v2102
  %v2104 = vsel %vm73, %v2076, 0.0
  %v2105 = vadd.f32 %v2103, %v2104
  %v2106 = vsel %vm73, %v2077, 0.0
  %v2107 = vadd.f32 %v2105, %v2106
  %v2108 = vsel %vm73, %v2078, 0.0
  %v2109 = vadd.f32 %v2107, %v2108
  %v2110 = vrot.slane %v2109, 4
  %v2111 = vadd.f32 %v2109, %v2110
  %v2112 = vrot.slane %v2111, 2
  %v2113 = vadd.f32 %v2111, %v2112
  %v2114 = vrot.slane %v2113, 1
  %v2115 = vadd.f32 %v2113, %v2114
  %v2116 = vadd.f32 %v2115, 0.0
  %v2117 = vmul.f32 %v2063, %v2063
  %v2118 = vmul.f32 %v2064, %v2064
  %v2119 = vmul.f32 %v2065, %v2065
  %v2120 = vmul.f32 %v2066, %v2066
  %v2121 = vmul.f32 %v2067, %v2067
  %v2122 = vmul.f32 %v2068, %v2068
  %v2123 = vmul.f32 %v2069, %v2069
  %v2124 = vmul.f32 %v2070, %v2070
  %v2125 = vmul.f32 %v2071, %v2071
  %v2126 = vmul.f32 %v2072, %v2072
  %v2127 = vmul.f32 %v2073, %v2073
  %v2128 = vmul.f32 %v2074, %v2074
  %v2129 = vmul.f32 %v2075, %v2075
  %v2130 = vmul.f32 %v2076, %v2076
  %v2131 = vmul.f32 %v2077, %v2077
  %v2132 = vmul.f32 %v2078, %v2078
  %v2133 = vsel %vm73, %v2117, 0.0
  %v2134 = vsel %vm73, %v2118, 0.0
  %v2135 = vadd.f32 %v2133, %v2134
  %v2136 = vsel %vm73, %v2119, 0.0
  %v2137 = vadd.f32 %v2135, %v2136
  %v2138 = vsel %vm73, %v2120, 0.0
  %v2139 = vadd.f32 %v2137, %v2138
  %v2140 = vsel %vm73, %v2121, 0.0
  %v2141 = vadd.f32 %v2139, %v2140
  %v2142 = vsel %vm73, %v2122, 0.0
  %v2143 = vadd.f32 %v2141, %v2142
  %v2144 = vsel %vm73, %v2123, 0.0
  %v2145 = vadd.f32 %v2143, %v2144
  %v2146 = vsel %vm73, %v2124, 0.0
  %v2147 = vadd.f32 %v2145, %v2146
  %v2148 = vsel %vm73, %v2125, 0.0
  %v2149 = vadd.f32 %v2147, %v2148
  %v2150 = vsel %vm73, %v2126, 0.0
  %v2151 = vadd.f32 %v2149, %v2150
  %v2152 = vsel %vm73, %v2127, 0.0
  %v2153 = vadd.f32 %v2151, %v2152
  %v2154 = vsel %vm73, %v2128, 0.0
  %v2155 = vadd.f32 %v2153, %v2154
  %v2156 = vsel %vm73, %v2129, 0.0
  %v2157 = vadd.f32 %v2155, %v2156
  %v2158 = vsel %vm73, %v2130, 0.0
  %v2159 = vadd.f32 %v2157, %v2158
  %v2160 = vsel %vm73, %v2131, 0.0
  %v2161 = vadd.f32 %v2159, %v2160
  %v2162 = vsel %vm73, %v2132, 0.0
  %v2163 = vadd.f32 %v2161, %v2162
  %v2164 = vrot.slane %v2163, 4
  %v2165 = vadd.f32 %v2163, %v2164
  %v2166 = vrot.slane %v2165, 2
  %v2167 = vadd.f32 %v2165, %v2166
  %v2168 = vrot.slane %v2167, 1
  %v2169 = vadd.f32 %v2167, %v2168
  %v2170 = vadd.f32 %v2169, 0.0
  %2171 = vmatprep.subr.mxu0 0.0
  %2172 = vmatpush1.msra.mxu0 0.0
  %2173 = vmatprep.subr.mxu0 0.0
  %2174 = vmatpush1.msra.mxu0 0.0
  %2175 = vmatprep.subr.mxu0 0.0
  %2176 = vmatpush1.msra.mxu0 0.0
  %2177 = vmatprep.subr.mxu0 0.0
  %2178 = vmatpush1.msra.mxu0 0.0
  %2179 = vmatprep.subr.mxu0 0.0
  %2180 = vmatpush1.msra.mxu0 0.0
  %2181 = vmatprep.subr.mxu0 0.0
  %2182 = vmatpush1.msra.mxu0 0.0
  %2183 = vmatprep.subr.mxu0 0.0
  %2184 = vmatpush1.msra.mxu0 0.0
  %2185 = vmatprep.subr.mxu0 0.0
  %2186 = vmatpush1.msra.mxu0 0.0
  %2187 = vmatprep.subr.mxu0 0.0
  %2188 = vmatpush1.msra.mxu0 0.0
  %2189 = vmatprep.subr.mxu0 0.0
  %2190 = vmatpush1.msra.mxu0 0.0
  %2191 = vmatprep.subr.mxu0 0.0
  %2192 = vmatpush1.msra.mxu0 0.0
  %2193 = vmatprep.subr.mxu0 0.0
  %2194 = vmatpush1.msra.mxu0 0.0
  %2195 = vmatprep.subr.mxu0 0.0
  %2196 = vmatpush1.msra.mxu0 0.0
  %2197 = vmatprep.subr.mxu0 0.0
  %2198 = vmatpush1.msra.mxu0 0.0
  %2199 = vmatprep.subr.mxu0 0.0
  %2200 = vmatpush1.msra.mxu0 0.0
  %2201 = vmatprep.subr.mxu0 0.0
  %2202 = vmatpush1.msra.mxu0 %v124
  %2203 = vmatprep.subr.mxu0 0.0
  %2204 = vmatpush2.msra.mxu0 0.0
  %2205 = vmatprep.subr.mxu0 0.0
  %2206 = vmatpush2.msra.mxu0 0.0
  %2207 = vmatprep.subr.mxu0 0.0
  %2208 = vmatpush2.msra.mxu0 0.0
  %2209 = vmatprep.subr.mxu0 0.0
  %2210 = vmatpush2.msra.mxu0 0.0
  %2211 = vmatprep.subr.mxu0 0.0
  %2212 = vmatpush2.msra.mxu0 0.0
  %2213 = vmatprep.subr.mxu0 0.0
  %2214 = vmatpush2.msra.mxu0 0.0
  %2215 = vmatprep.subr.mxu0 0.0
  %2216 = vmatpush2.msra.mxu0 0.0
  %2217 = vmatprep.subr.mxu0 0.0
  %2218 = vmatpush2.msra.mxu0 0.0
  %2219 = vmatprep.subr.mxu0 0.0
  %2220 = vmatpush2.msra.mxu0 0.0
  %2221 = vmatprep.subr.mxu0 0.0
  %2222 = vmatpush2.msra.mxu0 0.0
  %2223 = vmatprep.subr.mxu0 0.0
  %2224 = vmatpush2.msra.mxu0 0.0
  %2225 = vmatprep.subr.mxu0 0.0
  %2226 = vmatpush2.msra.mxu0 0.0
  %2227 = vmatprep.subr.mxu0 0.0
  %2228 = vmatpush2.msra.mxu0 0.0
  %2229 = vmatprep.subr.mxu0 0.0
  %2230 = vmatpush2.msra.mxu0 0.0
  %2231 = vmatprep.subr.mxu0 0.0
  %2232 = vmatpush2.msra.mxu0 0.0
  %2233 = vmatprep.subr.mxu0 0.0
  %2234 = vmatpush2.msra.mxu0 0.0
  %2235 = vmatprep.mubr.f32.mxu0 0.0
  %2236 = vmatmul.mubr.f32.gmra.mxu0 %v486
  %v2237 = vpop.f32.mrf.mxu0
  %v2238 = vadd.f32 0.0, %v2237
  %v2239 = vpop.f32.mrf.mxu0
  %2240 = vmatprep.mubr.f32.mxu0 0.0
  %2241 = vmatmul.mubr.f32.gmra.mxu0 %v489
  %v2242 = vpop.f32.mrf.mxu0
  %v2243 = vadd.f32 0.0, %v2242
  %v2244 = vpop.f32.mrf.mxu0
  %2245 = vmatprep.mubr.f32.mxu0 0.0
  %2246 = vmatmul.mubr.f32.gmra.mxu0 %v492
  %v2247 = vpop.f32.mrf.mxu0
  %v2248 = vadd.f32 0.0, %v2247
  %v2249 = vpop.f32.mrf.mxu0
  %2250 = vmatprep.mubr.f32.mxu0 0.0
  %2251 = vmatmul.mubr.f32.gmra.mxu0 %v495
  %v2252 = vpop.f32.mrf.mxu0
  %v2253 = vadd.f32 0.0, %v2252
  %v2254 = vpop.f32.mrf.mxu0
  %2255 = vmatprep.mubr.f32.mxu0 0.0
  %2256 = vmatmul.mubr.f32.gmra.mxu0 %v498
  %v2257 = vpop.f32.mrf.mxu0
  %v2258 = vadd.f32 0.0, %v2257
  %v2259 = vpop.f32.mrf.mxu0
  %2260 = vmatprep.mubr.f32.mxu0 0.0
  %2261 = vmatmul.mubr.f32.gmra.mxu0 %v501
  %v2262 = vpop.f32.mrf.mxu0
  %v2263 = vadd.f32 0.0, %v2262
  %v2264 = vpop.f32.mrf.mxu0
  %2265 = vmatprep.mubr.f32.mxu0 0.0
  %2266 = vmatmul.mubr.f32.gmra.mxu0 %v504
  %v2267 = vpop.f32.mrf.mxu0
  %v2268 = vadd.f32 0.0, %v2267
  %v2269 = vpop.f32.mrf.mxu0
  %2270 = vmatprep.mubr.f32.mxu0 0.0
  %2271 = vmatmul.mubr.f32.gmra.mxu0 %v507
  %v2272 = vpop.f32.mrf.mxu0
  %v2273 = vadd.f32 0.0, %v2272
  %v2274 = vpop.f32.mrf.mxu0
  %2275 = vmatprep.mubr.f32.mxu0 0.0
  %2276 = vmatmul.mubr.f32.gmra.mxu0 %v510
  %v2277 = vpop.f32.mrf.mxu0
  %v2278 = vadd.f32 0.0, %v2277
  %v2279 = vpop.f32.mrf.mxu0
  %2280 = vmatprep.mubr.f32.mxu0 0.0
  %2281 = vmatmul.mubr.f32.gmra.mxu0 %v513
  %v2282 = vpop.f32.mrf.mxu0
  %v2283 = vadd.f32 0.0, %v2282
  %v2284 = vpop.f32.mrf.mxu0
  %2285 = vmatprep.mubr.f32.mxu0 0.0
  %2286 = vmatmul.mubr.f32.gmra.mxu0 %v516
  %v2287 = vpop.f32.mrf.mxu0
  %v2288 = vadd.f32 0.0, %v2287
  %v2289 = vpop.f32.mrf.mxu0
  %2290 = vmatprep.mubr.f32.mxu0 0.0
  %2291 = vmatmul.mubr.f32.gmra.mxu0 %v519
  %v2292 = vpop.f32.mrf.mxu0
  %v2293 = vadd.f32 0.0, %v2292
  %v2294 = vpop.f32.mrf.mxu0
  %2295 = vmatprep.mubr.f32.mxu0 0.0
  %2296 = vmatmul.mubr.f32.gmra.mxu0 %v522
  %v2297 = vpop.f32.mrf.mxu0
  %v2298 = vadd.f32 0.0, %v2297
  %v2299 = vpop.f32.mrf.mxu0
  %2300 = vmatprep.mubr.f32.mxu0 0.0
  %2301 = vmatmul.mubr.f32.gmra.mxu0 %v525
  %v2302 = vpop.f32.mrf.mxu0
  %v2303 = vadd.f32 0.0, %v2302
  %v2304 = vpop.f32.mrf.mxu0
  %2305 = vmatprep.mubr.f32.mxu0 0.0
  %2306 = vmatmul.mubr.f32.gmra.mxu0 %v528
  %v2307 = vpop.f32.mrf.mxu0
  %v2308 = vadd.f32 0.0, %v2307
  %v2309 = vpop.f32.mrf.mxu0
  %2310 = vmatprep.mubr.f32.mxu0 0.0
  %2311 = vmatmul.mubr.f32.gmra.mxu0 %v531
  %v2312 = vpop.f32.mrf.mxu0
  %v2313 = vadd.f32 0.0, %v2312
  %v2314 = vpop.f32.mrf.mxu0
  %2315 = vdwg.mxu0
  %2316 = vmatprep.subr.mxu0 0.0
  %2317 = vmatpush1.msra.mxu0 0.0
  %2318 = vmatprep.subr.mxu0 0.0
  %2319 = vmatpush1.msra.mxu0 0.0
  %2320 = vmatprep.subr.mxu0 0.0
  %2321 = vmatpush1.msra.mxu0 0.0
  %2322 = vmatprep.subr.mxu0 0.0
  %2323 = vmatpush1.msra.mxu0 0.0
  %2324 = vmatprep.subr.mxu0 0.0
  %2325 = vmatpush1.msra.mxu0 0.0
  %2326 = vmatprep.subr.mxu0 0.0
  %2327 = vmatpush1.msra.mxu0 0.0
  %2328 = vmatprep.subr.mxu0 0.0
  %2329 = vmatpush1.msra.mxu0 0.0
  %2330 = vmatprep.subr.mxu0 0.0
  %2331 = vmatpush1.msra.mxu0 0.0
  %2332 = vmatprep.subr.mxu0 0.0
  %2333 = vmatpush1.msra.mxu0 0.0
  %2334 = vmatprep.subr.mxu0 0.0
  %2335 = vmatpush1.msra.mxu0 0.0
  %2336 = vmatprep.subr.mxu0 0.0
  %2337 = vmatpush1.msra.mxu0 0.0
  %2338 = vmatprep.subr.mxu0 0.0
  %2339 = vmatpush1.msra.mxu0 0.0
  %2340 = vmatprep.subr.mxu0 0.0
  %2341 = vmatpush1.msra.mxu0 0.0
  %2342 = vmatprep.subr.mxu0 0.0
  %2343 = vmatpush1.msra.mxu0 0.0
  %2344 = vmatprep.subr.mxu0 0.0
  %2345 = vmatpush1.msra.mxu0 0.0
  %2346 = vmatprep.subr.mxu0 0.0
  %2347 = vmatpush1.msra.mxu0 %v320
  %2348 = vmatprep.subr.mxu0 0.0
  %2349 = vmatpush2.msra.mxu0 0.0
  %2350 = vmatprep.subr.mxu0 0.0
  %2351 = vmatpush2.msra.mxu0 0.0
  %2352 = vmatprep.subr.mxu0 0.0
  %2353 = vmatpush2.msra.mxu0 0.0
  %2354 = vmatprep.subr.mxu0 0.0
  %2355 = vmatpush2.msra.mxu0 0.0
  %2356 = vmatprep.subr.mxu0 0.0
  %2357 = vmatpush2.msra.mxu0 0.0
  %2358 = vmatprep.subr.mxu0 0.0
  %2359 = vmatpush2.msra.mxu0 0.0
  %2360 = vmatprep.subr.mxu0 0.0
  %2361 = vmatpush2.msra.mxu0 0.0
  %2362 = vmatprep.subr.mxu0 0.0
  %2363 = vmatpush2.msra.mxu0 0.0
  %2364 = vmatprep.subr.mxu0 0.0
  %2365 = vmatpush2.msra.mxu0 0.0
  %2366 = vmatprep.subr.mxu0 0.0
  %2367 = vmatpush2.msra.mxu0 0.0
  %2368 = vmatprep.subr.mxu0 0.0
  %2369 = vmatpush2.msra.mxu0 0.0
  %2370 = vmatprep.subr.mxu0 0.0
  %2371 = vmatpush2.msra.mxu0 0.0
  %2372 = vmatprep.subr.mxu0 0.0
  %2373 = vmatpush2.msra.mxu0 0.0
  %2374 = vmatprep.subr.mxu0 0.0
  %2375 = vmatpush2.msra.mxu0 0.0
  %2376 = vmatprep.subr.mxu0 0.0
  %2377 = vmatpush2.msra.mxu0 0.0
  %2378 = vmatprep.subr.mxu0 0.0
  %2379 = vmatpush2.msra.mxu0 0.0
  %2380 = vmatprep.mubr.f32.mxu0 0.0
  %2381 = vmatmul.mubr.f32.gmra.mxu0 %v75
  %v2382 = vpop.f32.mrf.mxu0
  %v2383 = vadd.f32 %v2238, %v2382
  %v2384 = vpop.f32.mrf.mxu0
  %2385 = vmatprep.mubr.f32.mxu0 0.0
  %2386 = vmatmul.mubr.f32.gmra.mxu0 %v78
  %v2387 = vpop.f32.mrf.mxu0
  %v2388 = vadd.f32 %v2243, %v2387
  %v2389 = vpop.f32.mrf.mxu0
  %2390 = vmatprep.mubr.f32.mxu0 0.0
  %2391 = vmatmul.mubr.f32.gmra.mxu0 %v81
  %v2392 = vpop.f32.mrf.mxu0
  %v2393 = vadd.f32 %v2248, %v2392
  %v2394 = vpop.f32.mrf.mxu0
  %2395 = vmatprep.mubr.f32.mxu0 0.0
  %2396 = vmatmul.mubr.f32.gmra.mxu0 %v84
  %v2397 = vpop.f32.mrf.mxu0
  %v2398 = vadd.f32 %v2253, %v2397
  %v2399 = vpop.f32.mrf.mxu0
  %2400 = vmatprep.mubr.f32.mxu0 0.0
  %2401 = vmatmul.mubr.f32.gmra.mxu0 %v87
  %v2402 = vpop.f32.mrf.mxu0
  %v2403 = vadd.f32 %v2258, %v2402
  %v2404 = vpop.f32.mrf.mxu0
  %2405 = vmatprep.mubr.f32.mxu0 0.0
  %2406 = vmatmul.mubr.f32.gmra.mxu0 %v90
  %v2407 = vpop.f32.mrf.mxu0
  %v2408 = vadd.f32 %v2263, %v2407
  %v2409 = vpop.f32.mrf.mxu0
  %2410 = vmatprep.mubr.f32.mxu0 0.0
  %2411 = vmatmul.mubr.f32.gmra.mxu0 %v93
  %v2412 = vpop.f32.mrf.mxu0
  %v2413 = vadd.f32 %v2268, %v2412
  %v2414 = vpop.f32.mrf.mxu0
  %2415 = vmatprep.mubr.f32.mxu0 0.0
  %2416 = vmatmul.mubr.f32.gmra.mxu0 %v96
  %v2417 = vpop.f32.mrf.mxu0
  %v2418 = vadd.f32 %v2273, %v2417
  %v2419 = vpop.f32.mrf.mxu0
  %2420 = vmatprep.mubr.f32.mxu0 0.0
  %2421 = vmatmul.mubr.f32.gmra.mxu0 %v99
  %v2422 = vpop.f32.mrf.mxu0
  %v2423 = vadd.f32 %v2278, %v2422
  %v2424 = vpop.f32.mrf.mxu0
  %2425 = vmatprep.mubr.f32.mxu0 0.0
  %2426 = vmatmul.mubr.f32.gmra.mxu0 %v102
  %v2427 = vpop.f32.mrf.mxu0
  %v2428 = vadd.f32 %v2283, %v2427
  %v2429 = vpop.f32.mrf.mxu0
  %2430 = vmatprep.mubr.f32.mxu0 0.0
  %2431 = vmatmul.mubr.f32.gmra.mxu0 %v105
  %v2432 = vpop.f32.mrf.mxu0
  %v2433 = vadd.f32 %v2288, %v2432
  %v2434 = vpop.f32.mrf.mxu0
  %2435 = vmatprep.mubr.f32.mxu0 0.0
  %2436 = vmatmul.mubr.f32.gmra.mxu0 %v108
  %v2437 = vpop.f32.mrf.mxu0
  %v2438 = vadd.f32 %v2293, %v2437
  %v2439 = vpop.f32.mrf.mxu0
  %2440 = vmatprep.mubr.f32.mxu0 0.0
  %2441 = vmatmul.mubr.f32.gmra.mxu0 %v111
  %v2442 = vpop.f32.mrf.mxu0
  %v2443 = vadd.f32 %v2298, %v2442
  %v2444 = vpop.f32.mrf.mxu0
  %2445 = vmatprep.mubr.f32.mxu0 0.0
  %2446 = vmatmul.mubr.f32.gmra.mxu0 %v114
  %v2447 = vpop.f32.mrf.mxu0
  %v2448 = vadd.f32 %v2303, %v2447
  %v2449 = vpop.f32.mrf.mxu0
  %2450 = vmatprep.mubr.f32.mxu0 0.0
  %2451 = vmatmul.mubr.f32.gmra.mxu0 %v117
  %v2452 = vpop.f32.mrf.mxu0
  %v2453 = vadd.f32 %v2308, %v2452
  %v2454 = vpop.f32.mrf.mxu0
  %2455 = vmatprep.mubr.f32.mxu0 0.0
  %2456 = vmatmul.mubr.f32.gmra.mxu0 %v120
  %v2457 = vpop.f32.mrf.mxu0
  %v2458 = vadd.f32 %v2313, %v2457
  %v2459 = vpop.f32.mrf.mxu0
  %2460 = vdwg.mxu0
  %v2461 = vld [vmem:[%s1 + $0x1] sm:$0xff]
  %v2462 = vld [vmem:[%s1 + $0x11] sm:$0xff]
  %v2463 = vld [vmem:[%s1 + $0x21] sm:$0xff]
  %v2464 = vld [vmem:[%s1 + $0x31] sm:$0xff]
  %v2465 = vld [vmem:[%s1 + $0x41] sm:$0xff]
  %v2466 = vld [vmem:[%s1 + $0x51] sm:$0xff]
  %v2467 = vld [vmem:[%s1 + $0x61] sm:$0xff]
  %v2468 = vld [vmem:[%s1 + $0x71] sm:$0xff]
  %v2469 = vld [vmem:[%s1 + $0x91] sm:$0xff]
  %v2470 = vld [vmem:[%s1 + $0xa1] sm:$0xff]
  %v2471 = vld [vmem:[%s1 + $0xb1] sm:$0xff]
  %v2472 = vld [vmem:[%s1 + $0xc1] sm:$0xff]
  %v2473 = vld [vmem:[%s1 + $0xd1] sm:$0xff]
  %v2474 = vld [vmem:[%s1 + $0xe1] sm:$0xff]
  %v2475 = vld [vmem:[%s1 + $0xf1] sm:$0xff]
  %v2476 = vld [vmem:[%s1 + $0x101] sm:$0xff]
  %v2478 = vsel %vm73, %v2461, 0
  %v2481 = vsel %vm73, %v2462, 0
  %v2484 = vsel %vm73, %v2463, 0
  %v2487 = vsel %vm73, %v2464, 0
  %v2490 = vsel %vm73, %v2465, 0
  %v2493 = vsel %vm73, %v2466, 0
  %v2496 = vsel %vm73, %v2467, 0
  %v2499 = vsel %vm73, %v2468, 0
  %v2502 = vsel %vm73, %v2469, 0
  %v2505 = vsel %vm73, %v2470, 0
  %v2508 = vsel %vm73, %v2471, 0
  %v2511 = vsel %vm73, %v2472, 0
  %v2514 = vsel %vm73, %v2473, 0
  %v2517 = vsel %vm73, %v2474, 0
  %v2520 = vsel %vm73, %v2475, 0
  %v2523 = vsel %vm73, %v2476, 0
  %2525 = vmatprep.subr.mxu0 0.0
  %2526 = vmatpush1.msra.mxu0 0.0
  %2527 = vmatprep.subr.mxu0 0.0
  %2528 = vmatpush1.msra.mxu0 0.0
  %2529 = vmatprep.subr.mxu0 0.0
  %2530 = vmatpush1.msra.mxu0 0.0
  %2531 = vmatprep.subr.mxu0 0.0
  %2532 = vmatpush1.msra.mxu0 0.0
  %2533 = vmatprep.subr.mxu0 0.0
  %2534 = vmatpush1.msra.mxu0 0.0
  %2535 = vmatprep.subr.mxu0 0.0
  %2536 = vmatpush1.msra.mxu0 0.0
  %2537 = vmatprep.subr.mxu0 0.0
  %2538 = vmatpush1.msra.mxu0 0.0
  %2539 = vmatprep.subr.mxu0 0.0
  %2540 = vmatpush1.msra.mxu0 0.0
  %2541 = vmatprep.subr.mxu0 0.0
  %2542 = vmatpush1.msra.mxu0 0.0
  %2543 = vmatprep.subr.mxu0 0.0
  %2544 = vmatpush1.msra.mxu0 0.0
  %2545 = vmatprep.subr.mxu0 0.0
  %2546 = vmatpush1.msra.mxu0 0.0
  %2547 = vmatprep.subr.mxu0 0.0
  %2548 = vmatpush1.msra.mxu0 0.0
  %2549 = vmatprep.subr.mxu0 0.0
  %2550 = vmatpush1.msra.mxu0 0.0
  %2551 = vmatprep.subr.mxu0 0.0
  %2552 = vmatpush1.msra.mxu0 0.0
  %2553 = vmatprep.subr.mxu0 0.0
  %2554 = vmatpush1.msra.mxu0 0.0
  %2555 = vmatprep.subr.mxu0 0.0
  %2556 = vmatpush1.msra.mxu0 %v534
  %2557 = vmatprep.subr.mxu0 0.0
  %2558 = vmatpush2.msra.mxu0 0.0
  %2559 = vmatprep.subr.mxu0 0.0
  %2560 = vmatpush2.msra.mxu0 0.0
  %2561 = vmatprep.subr.mxu0 0.0
  %2562 = vmatpush2.msra.mxu0 0.0
  %2563 = vmatprep.subr.mxu0 0.0
  %2564 = vmatpush2.msra.mxu0 0.0
  %2565 = vmatprep.subr.mxu0 0.0
  %2566 = vmatpush2.msra.mxu0 0.0
  %2567 = vmatprep.subr.mxu0 0.0
  %2568 = vmatpush2.msra.mxu0 0.0
  %2569 = vmatprep.subr.mxu0 0.0
  %2570 = vmatpush2.msra.mxu0 0.0
  %2571 = vmatprep.subr.mxu0 0.0
  %2572 = vmatpush2.msra.mxu0 0.0
  %2573 = vmatprep.subr.mxu0 0.0
  %2574 = vmatpush2.msra.mxu0 0.0
  %2575 = vmatprep.subr.mxu0 0.0
  %2576 = vmatpush2.msra.mxu0 0.0
  %2577 = vmatprep.subr.mxu0 0.0
  %2578 = vmatpush2.msra.mxu0 0.0
  %2579 = vmatprep.subr.mxu0 0.0
  %2580 = vmatpush2.msra.mxu0 0.0
  %2581 = vmatprep.subr.mxu0 0.0
  %2582 = vmatpush2.msra.mxu0 0.0
  %2583 = vmatprep.subr.mxu0 0.0
  %2584 = vmatpush2.msra.mxu0 0.0
  %2585 = vmatprep.subr.mxu0 0.0
  %2586 = vmatpush2.msra.mxu0 0.0
  %2587 = vmatprep.subr.mxu0 0.0
  %2588 = vmatpush2.msra.mxu0 0.0
  %2589 = vmatprep.mubr.f32.mxu0 0.0
  %2590 = vmatmul.mubr.f32.gmra.mxu0 %v2478
  %v2591 = vpop.f32.mrf.mxu0
  %v2592 = vadd.f32 0.0, %v2591
  %v2593 = vpop.f32.mrf.mxu0
  %2594 = vmatprep.mubr.f32.mxu0 0.0
  %2595 = vmatmul.mubr.f32.gmra.mxu0 %v2481
  %v2596 = vpop.f32.mrf.mxu0
  %v2597 = vadd.f32 0.0, %v2596
  %v2598 = vpop.f32.mrf.mxu0
  %2599 = vmatprep.mubr.f32.mxu0 0.0
  %2600 = vmatmul.mubr.f32.gmra.mxu0 %v2484
  %v2601 = vpop.f32.mrf.mxu0
  %v2602 = vadd.f32 0.0, %v2601
  %v2603 = vpop.f32.mrf.mxu0
  %2604 = vmatprep.mubr.f32.mxu0 0.0
  %2605 = vmatmul.mubr.f32.gmra.mxu0 %v2487
  %v2606 = vpop.f32.mrf.mxu0
  %v2607 = vadd.f32 0.0, %v2606
  %v2608 = vpop.f32.mrf.mxu0
  %2609 = vmatprep.mubr.f32.mxu0 0.0
  %2610 = vmatmul.mubr.f32.gmra.mxu0 %v2490
  %v2611 = vpop.f32.mrf.mxu0
  %v2612 = vadd.f32 0.0, %v2611
  %v2613 = vpop.f32.mrf.mxu0
  %2614 = vmatprep.mubr.f32.mxu0 0.0
  %2615 = vmatmul.mubr.f32.gmra.mxu0 %v2493
  %v2616 = vpop.f32.mrf.mxu0
  %v2617 = vadd.f32 0.0, %v2616
  %v2618 = vpop.f32.mrf.mxu0
  %2619 = vmatprep.mubr.f32.mxu0 0.0
  %2620 = vmatmul.mubr.f32.gmra.mxu0 %v2496
  %v2621 = vpop.f32.mrf.mxu0
  %v2622 = vadd.f32 0.0, %v2621
  %v2623 = vpop.f32.mrf.mxu0
  %2624 = vmatprep.mubr.f32.mxu0 0.0
  %2625 = vmatmul.mubr.f32.gmra.mxu0 %v2499
  %v2626 = vpop.f32.mrf.mxu0
  %v2627 = vadd.f32 0.0, %v2626
  %v2628 = vpop.f32.mrf.mxu0
  %2629 = vmatprep.mubr.f32.mxu0 0.0
  %2630 = vmatmul.mubr.f32.gmra.mxu0 %v2502
  %v2631 = vpop.f32.mrf.mxu0
  %v2632 = vadd.f32 0.0, %v2631
  %v2633 = vpop.f32.mrf.mxu0
  %2634 = vmatprep.mubr.f32.mxu0 0.0
  %2635 = vmatmul.mubr.f32.gmra.mxu0 %v2505
  %v2636 = vpop.f32.mrf.mxu0
  %v2637 = vadd.f32 0.0, %v2636
  %v2638 = vpop.f32.mrf.mxu0
  %2639 = vmatprep.mubr.f32.mxu0 0.0
  %2640 = vmatmul.mubr.f32.gmra.mxu0 %v2508
  %v2641 = vpop.f32.mrf.mxu0
  %v2642 = vadd.f32 0.0, %v2641
  %v2643 = vpop.f32.mrf.mxu0
  %2644 = vmatprep.mubr.f32.mxu0 0.0
  %2645 = vmatmul.mubr.f32.gmra.mxu0 %v2511
  %v2646 = vpop.f32.mrf.mxu0
  %v2647 = vadd.f32 0.0, %v2646
  %v2648 = vpop.f32.mrf.mxu0
  %2649 = vmatprep.mubr.f32.mxu0 0.0
  %2650 = vmatmul.mubr.f32.gmra.mxu0 %v2514
  %v2651 = vpop.f32.mrf.mxu0
  %v2652 = vadd.f32 0.0, %v2651
  %v2653 = vpop.f32.mrf.mxu0
  %2654 = vmatprep.mubr.f32.mxu0 0.0
  %2655 = vmatmul.mubr.f32.gmra.mxu0 %v2517
  %v2656 = vpop.f32.mrf.mxu0
  %v2657 = vadd.f32 0.0, %v2656
  %v2658 = vpop.f32.mrf.mxu0
  %2659 = vmatprep.mubr.f32.mxu0 0.0
  %2660 = vmatmul.mubr.f32.gmra.mxu0 %v2520
  %v2661 = vpop.f32.mrf.mxu0
  %v2662 = vadd.f32 0.0, %v2661
  %v2663 = vpop.f32.mrf.mxu0
  %2664 = vmatprep.mubr.f32.mxu0 0.0
  %2665 = vmatmul.mubr.f32.gmra.mxu0 %v2523
  %v2666 = vpop.f32.mrf.mxu0
  %v2667 = vadd.f32 0.0, %v2666
  %v2668 = vpop.f32.mrf.mxu0
  %2669 = vdwg.mxu0
  %v2670 = vadd.f32 %v2383, %v2592
  %v2671 = vadd.f32 %v2388, %v2597
  %v2672 = vadd.f32 %v2393, %v2602
  %v2673 = vadd.f32 %v2398, %v2607
  %v2674 = vadd.f32 %v2403, %v2612
  %v2675 = vadd.f32 %v2408, %v2617
  %v2676 = vadd.f32 %v2413, %v2622
  %v2677 = vadd.f32 %v2418, %v2627
  %v2678 = vadd.f32 %v2423, %v2632
  %v2679 = vadd.f32 %v2428, %v2637
  %v2680 = vadd.f32 %v2433, %v2642
  %v2681 = vadd.f32 %v2438, %v2647
  %v2682 = vadd.f32 %v2443, %v2652
  %v2683 = vadd.f32 %v2448, %v2657
  %v2684 = vadd.f32 %v2453, %v2662
  %v2685 = vadd.f32 %v2458, %v2667
  %2686 = vmatprep.subr.mxu0 0.0
  %2687 = vmatpush1.msra.mxu0 0.0
  %2688 = vmatprep.subr.mxu0 0.0
  %2689 = vmatpush1.msra.mxu0 0.0
  %2690 = vmatprep.subr.mxu0 0.0
  %2691 = vmatpush1.msra.mxu0 0.0
  %2692 = vmatprep.subr.mxu0 0.0
  %2693 = vmatpush1.msra.mxu0 0.0
  %2694 = vmatprep.subr.mxu0 0.0
  %2695 = vmatpush1.msra.mxu0 0.0
  %2696 = vmatprep.subr.mxu0 0.0
  %2697 = vmatpush1.msra.mxu0 0.0
  %2698 = vmatprep.subr.mxu0 0.0
  %2699 = vmatpush1.msra.mxu0 0.0
  %2700 = vmatprep.subr.mxu0 0.0
  %2701 = vmatpush1.msra.mxu0 0.0
  %2702 = vmatprep.subr.mxu0 0.0
  %2703 = vmatpush1.msra.mxu0 0.0
  %2704 = vmatprep.subr.mxu0 0.0
  %2705 = vmatpush1.msra.mxu0 0.0
  %2706 = vmatprep.subr.mxu0 0.0
  %2707 = vmatpush1.msra.mxu0 0.0
  %2708 = vmatprep.subr.mxu0 0.0
  %2709 = vmatpush1.msra.mxu0 0.0
  %2710 = vmatprep.subr.mxu0 0.0
  %2711 = vmatpush1.msra.mxu0 0.0
  %2712 = vmatprep.subr.mxu0 0.0
  %2713 = vmatpush1.msra.mxu0 0.0
  %2714 = vmatprep.subr.mxu0 0.0
  %2715 = vmatpush1.msra.mxu0 0.0
  %2716 = vmatprep.subr.mxu0 0.0
  %2717 = vmatpush1.msra.mxu0 %v764
  %2718 = vmatprep.subr.mxu0 0.0
  %2719 = vmatpush2.msra.mxu0 0.0
  %2720 = vmatprep.subr.mxu0 0.0
  %2721 = vmatpush2.msra.mxu0 0.0
  %2722 = vmatprep.subr.mxu0 0.0
  %2723 = vmatpush2.msra.mxu0 0.0
  %2724 = vmatprep.subr.mxu0 0.0
  %2725 = vmatpush2.msra.mxu0 0.0
  %2726 = vmatprep.subr.mxu0 0.0
  %2727 = vmatpush2.msra.mxu0 0.0
  %2728 = vmatprep.subr.mxu0 0.0
  %2729 = vmatpush2.msra.mxu0 0.0
  %2730 = vmatprep.subr.mxu0 0.0
  %2731 = vmatpush2.msra.mxu0 0.0
  %2732 = vmatprep.subr.mxu0 0.0
  %2733 = vmatpush2.msra.mxu0 0.0
  %2734 = vmatprep.subr.mxu0 0.0
  %2735 = vmatpush2.msra.mxu0 0.0
  %2736 = vmatprep.subr.mxu0 0.0
  %2737 = vmatpush2.msra.mxu0 0.0
  %2738 = vmatprep.subr.mxu0 0.0
  %2739 = vmatpush2.msra.mxu0 0.0
  %2740 = vmatprep.subr.mxu0 0.0
  %2741 = vmatpush2.msra.mxu0 0.0
  %2742 = vmatprep.subr.mxu0 0.0
  %2743 = vmatpush2.msra.mxu0 0.0
  %2744 = vmatprep.subr.mxu0 0.0
  %2745 = vmatpush2.msra.mxu0 0.0
  %2746 = vmatprep.subr.mxu0 0.0
  %2747 = vmatpush2.msra.mxu0 0.0
  %2748 = vmatprep.subr.mxu0 0.0
  %2749 = vmatpush2.msra.mxu0 0.0
  %2750 = vmatprep.mubr.f32.mxu0 0.0
  %2751 = vmatmul.mubr.f32.gmra.mxu0 %v946
  %v2752 = vpop.f32.mrf.mxu0
  %v2753 = vadd.f32 0.0, %v2752
  %v2754 = vpop.f32.mrf.mxu0
  %2755 = vmatprep.mubr.f32.mxu0 0.0
  %2756 = vmatmul.mubr.f32.gmra.mxu0 %v949
  %v2757 = vpop.f32.mrf.mxu0
  %v2758 = vadd.f32 0.0, %v2757
  %v2759 = vpop.f32.mrf.mxu0
  %2760 = vmatprep.mubr.f32.mxu0 0.0
  %2761 = vmatmul.mubr.f32.gmra.mxu0 %v952
  %v2762 = vpop.f32.mrf.mxu0
  %v2763 = vadd.f32 0.0, %v2762
  %v2764 = vpop.f32.mrf.mxu0
  %2765 = vmatprep.mubr.f32.mxu0 0.0
  %2766 = vmatmul.mubr.f32.gmra.mxu0 %v955
  %v2767 = vpop.f32.mrf.mxu0
  %v2768 = vadd.f32 0.0, %v2767
  %v2769 = vpop.f32.mrf.mxu0
  %2770 = vmatprep.mubr.f32.mxu0 0.0
  %2771 = vmatmul.mubr.f32.gmra.mxu0 %v958
  %v2772 = vpop.f32.mrf.mxu0
  %v2773 = vadd.f32 0.0, %v2772
  %v2774 = vpop.f32.mrf.mxu0
  %2775 = vmatprep.mubr.f32.mxu0 0.0
  %2776 = vmatmul.mubr.f32.gmra.mxu0 %v961
  %v2777 = vpop.f32.mrf.mxu0
  %v2778 = vadd.f32 0.0, %v2777
  %v2779 = vpop.f32.mrf.mxu0
  %2780 = vmatprep.mubr.f32.mxu0 0.0
  %2781 = vmatmul.mubr.f32.gmra.mxu0 %v964
  %v2782 = vpop.f32.mrf.mxu0
  %v2783 = vadd.f32 0.0, %v2782
  %v2784 = vpop.f32.mrf.mxu0
  %2785 = vmatprep.mubr.f32.mxu0 0.0
  %2786 = vmatmul.mubr.f32.gmra.mxu0 %v967
  %v2787 = vpop.f32.mrf.mxu0
  %v2788 = vadd.f32 0.0, %v2787
  %v2789 = vpop.f32.mrf.mxu0
  %2790 = vmatprep.mubr.f32.mxu0 0.0
  %2791 = vmatmul.mubr.f32.gmra.mxu0 %v970
  %v2792 = vpop.f32.mrf.mxu0
  %v2793 = vadd.f32 0.0, %v2792
  %v2794 = vpop.f32.mrf.mxu0
  %2795 = vmatprep.mubr.f32.mxu0 0.0
  %2796 = vmatmul.mubr.f32.gmra.mxu0 %v973
  %v2797 = vpop.f32.mrf.mxu0
  %v2798 = vadd.f32 0.0, %v2797
  %v2799 = vpop.f32.mrf.mxu0
  %2800 = vmatprep.mubr.f32.mxu0 0.0
  %2801 = vmatmul.mubr.f32.gmra.mxu0 %v976
  %v2802 = vpop.f32.mrf.mxu0
  %v2803 = vadd.f32 0.0, %v2802
  %v2804 = vpop.f32.mrf.mxu0
  %2805 = vmatprep.mubr.f32.mxu0 0.0
  %2806 = vmatmul.mubr.f32.gmra.mxu0 %v979
  %v2807 = vpop.f32.mrf.mxu0
  %v2808 = vadd.f32 0.0, %v2807
  %v2809 = vpop.f32.mrf.mxu0
  %2810 = vmatprep.mubr.f32.mxu0 0.0
  %2811 = vmatmul.mubr.f32.gmra.mxu0 %v982
  %v2812 = vpop.f32.mrf.mxu0
  %v2813 = vadd.f32 0.0, %v2812
  %v2814 = vpop.f32.mrf.mxu0
  %2815 = vmatprep.mubr.f32.mxu0 0.0
  %2816 = vmatmul.mubr.f32.gmra.mxu0 %v985
  %v2817 = vpop.f32.mrf.mxu0
  %v2818 = vadd.f32 0.0, %v2817
  %v2819 = vpop.f32.mrf.mxu0
  %2820 = vmatprep.mubr.f32.mxu0 0.0
  %2821 = vmatmul.mubr.f32.gmra.mxu0 %v988
  %v2822 = vpop.f32.mrf.mxu0
  %v2823 = vadd.f32 0.0, %v2822
  %v2824 = vpop.f32.mrf.mxu0
  %2825 = vmatprep.mubr.f32.mxu0 0.0
  %2826 = vmatmul.mubr.f32.gmra.mxu0 %v991
  %v2827 = vpop.f32.mrf.mxu0
  %v2828 = vadd.f32 0.0, %v2827
  %v2829 = vpop.f32.mrf.mxu0
  %2830 = vdwg.mxu0
  %v2831 = vadd.f32 %v2670, %v2753
  %v2832 = vadd.f32 %v2671, %v2758
  %v2833 = vadd.f32 %v2672, %v2763
  %v2834 = vadd.f32 %v2673, %v2768
  %v2835 = vadd.f32 %v2674, %v2773
  %v2836 = vadd.f32 %v2675, %v2778
  %v2837 = vadd.f32 %v2676, %v2783
  %v2838 = vadd.f32 %v2677, %v2788
  %v2839 = vadd.f32 %v2678, %v2793
  %v2840 = vadd.f32 %v2679, %v2798
  %v2841 = vadd.f32 %v2680, %v2803
  %v2842 = vadd.f32 %v2681, %v2808
  %v2843 = vadd.f32 %v2682, %v2813
  %v2844 = vadd.f32 %v2683, %v2818
  %v2845 = vadd.f32 %v2684, %v2823
  %v2846 = vadd.f32 %v2685, %v2828
  %2847 = vmatprep.subr.mxu0 0.0
  %2848 = vmatpush1.msra.mxu0 0.0
  %2849 = vmatprep.subr.mxu0 0.0
  %2850 = vmatpush1.msra.mxu0 0.0
  %2851 = vmatprep.subr.mxu0 0.0
  %2852 = vmatpush1.msra.mxu0 0.0
  %2853 = vmatprep.subr.mxu0 0.0
  %2854 = vmatpush1.msra.mxu0 0.0
  %2855 = vmatprep.subr.mxu0 0.0
  %2856 = vmatpush1.msra.mxu0 0.0
  %2857 = vmatprep.subr.mxu0 0.0
  %2858 = vmatpush1.msra.mxu0 0.0
  %2859 = vmatprep.subr.mxu0 0.0
  %2860 = vmatpush1.msra.mxu0 0.0
  %2861 = vmatprep.subr.mxu0 0.0
  %2862 = vmatpush1.msra.mxu0 0.0
  %2863 = vmatprep.subr.mxu0 0.0
  %2864 = vmatpush1.msra.mxu0 0.0
  %2865 = vmatprep.subr.mxu0 0.0
  %2866 = vmatpush1.msra.mxu0 0.0
  %2867 = vmatprep.subr.mxu0 0.0
  %2868 = vmatpush1.msra.mxu0 0.0
  %2869 = vmatprep.subr.mxu0 0.0
  %2870 = vmatpush1.msra.mxu0 0.0
  %2871 = vmatprep.subr.mxu0 0.0
  %2872 = vmatpush1.msra.mxu0 0.0
  %2873 = vmatprep.subr.mxu0 0.0
  %2874 = vmatpush1.msra.mxu0 0.0
  %2875 = vmatprep.subr.mxu0 0.0
  %2876 = vmatpush1.msra.mxu0 0.0
  %2877 = vmatprep.subr.mxu0 0.0
  %2878 = vmatpush1.msra.mxu0 %v994
  %2879 = vmatprep.subr.mxu0 0.0
  %2880 = vmatpush2.msra.mxu0 0.0
  %2881 = vmatprep.subr.mxu0 0.0
  %2882 = vmatpush2.msra.mxu0 0.0
  %2883 = vmatprep.subr.mxu0 0.0
  %2884 = vmatpush2.msra.mxu0 0.0
  %2885 = vmatprep.subr.mxu0 0.0
  %2886 = vmatpush2.msra.mxu0 0.0
  %2887 = vmatprep.subr.mxu0 0.0
  %2888 = vmatpush2.msra.mxu0 0.0
  %2889 = vmatprep.subr.mxu0 0.0
  %2890 = vmatpush2.msra.mxu0 0.0
  %2891 = vmatprep.subr.mxu0 0.0
  %2892 = vmatpush2.msra.mxu0 0.0
  %2893 = vmatprep.subr.mxu0 0.0
  %2894 = vmatpush2.msra.mxu0 0.0
  %2895 = vmatprep.subr.mxu0 0.0
  %2896 = vmatpush2.msra.mxu0 0.0
  %2897 = vmatprep.subr.mxu0 0.0
  %2898 = vmatpush2.msra.mxu0 0.0
  %2899 = vmatprep.subr.mxu0 0.0
  %2900 = vmatpush2.msra.mxu0 0.0
  %2901 = vmatprep.subr.mxu0 0.0
  %2902 = vmatpush2.msra.mxu0 0.0
  %2903 = vmatprep.subr.mxu0 0.0
  %2904 = vmatpush2.msra.mxu0 0.0
  %2905 = vmatprep.subr.mxu0 0.0
  %2906 = vmatpush2.msra.mxu0 0.0
  %2907 = vmatprep.subr.mxu0 0.0
  %2908 = vmatpush2.msra.mxu0 0.0
  %2909 = vmatprep.subr.mxu0 0.0
  %2910 = vmatpush2.msra.mxu0 0.0
  %2911 = vmatprep.mubr.f32.mxu0 0.0
  %2912 = vmatmul.mubr.f32.gmra.mxu0 %v1176
  %v2913 = vpop.f32.mrf.mxu0
  %v2914 = vadd.f32 0.0, %v2913
  %v2915 = vpop.f32.mrf.mxu0
  %2916 = vmatprep.mubr.f32.mxu0 0.0
  %2917 = vmatmul.mubr.f32.gmra.mxu0 %v1179
  %v2918 = vpop.f32.mrf.mxu0
  %v2919 = vadd.f32 0.0, %v2918
  %v2920 = vpop.f32.mrf.mxu0
  %2921 = vmatprep.mubr.f32.mxu0 0.0
  %2922 = vmatmul.mubr.f32.gmra.mxu0 %v1182
  %v2923 = vpop.f32.mrf.mxu0
  %v2924 = vadd.f32 0.0, %v2923
  %v2925 = vpop.f32.mrf.mxu0
  %2926 = vmatprep.mubr.f32.mxu0 0.0
  %2927 = vmatmul.mubr.f32.gmra.mxu0 %v1185
  %v2928 = vpop.f32.mrf.mxu0
  %v2929 = vadd.f32 0.0, %v2928
  %v2930 = vpop.f32.mrf.mxu0
  %2931 = vmatprep.mubr.f32.mxu0 0.0
  %2932 = vmatmul.mubr.f32.gmra.mxu0 %v1188
  %v2933 = vpop.f32.mrf.mxu0
  %v2934 = vadd.f32 0.0, %v2933
  %v2935 = vpop.f32.mrf.mxu0
  %2936 = vmatprep.mubr.f32.mxu0 0.0
  %2937 = vmatmul.mubr.f32.gmra.mxu0 %v1191
  %v2938 = vpop.f32.mrf.mxu0
  %v2939 = vadd.f32 0.0, %v2938
  %v2940 = vpop.f32.mrf.mxu0
  %2941 = vmatprep.mubr.f32.mxu0 0.0
  %2942 = vmatmul.mubr.f32.gmra.mxu0 %v1194
  %v2943 = vpop.f32.mrf.mxu0
  %v2944 = vadd.f32 0.0, %v2943
  %v2945 = vpop.f32.mrf.mxu0
  %2946 = vmatprep.mubr.f32.mxu0 0.0
  %2947 = vmatmul.mubr.f32.gmra.mxu0 %v1197
  %v2948 = vpop.f32.mrf.mxu0
  %v2949 = vadd.f32 0.0, %v2948
  %v2950 = vpop.f32.mrf.mxu0
  %2951 = vmatprep.mubr.f32.mxu0 0.0
  %2952 = vmatmul.mubr.f32.gmra.mxu0 %v1200
  %v2953 = vpop.f32.mrf.mxu0
  %v2954 = vadd.f32 0.0, %v2953
  %v2955 = vpop.f32.mrf.mxu0
  %2956 = vmatprep.mubr.f32.mxu0 0.0
  %2957 = vmatmul.mubr.f32.gmra.mxu0 %v1203
  %v2958 = vpop.f32.mrf.mxu0
  %v2959 = vadd.f32 0.0, %v2958
  %v2960 = vpop.f32.mrf.mxu0
  %2961 = vmatprep.mubr.f32.mxu0 0.0
  %2962 = vmatmul.mubr.f32.gmra.mxu0 %v1206
  %v2963 = vpop.f32.mrf.mxu0
  %v2964 = vadd.f32 0.0, %v2963
  %v2965 = vpop.f32.mrf.mxu0
  %2966 = vmatprep.mubr.f32.mxu0 0.0
  %2967 = vmatmul.mubr.f32.gmra.mxu0 %v1209
  %v2968 = vpop.f32.mrf.mxu0
  %v2969 = vadd.f32 0.0, %v2968
  %v2970 = vpop.f32.mrf.mxu0
  %2971 = vmatprep.mubr.f32.mxu0 0.0
  %2972 = vmatmul.mubr.f32.gmra.mxu0 %v1212
  %v2973 = vpop.f32.mrf.mxu0
  %v2974 = vadd.f32 0.0, %v2973
  %v2975 = vpop.f32.mrf.mxu0
  %2976 = vmatprep.mubr.f32.mxu0 0.0
  %2977 = vmatmul.mubr.f32.gmra.mxu0 %v1215
  %v2978 = vpop.f32.mrf.mxu0
  %v2979 = vadd.f32 0.0, %v2978
  %v2980 = vpop.f32.mrf.mxu0
  %2981 = vmatprep.mubr.f32.mxu0 0.0
  %2982 = vmatmul.mubr.f32.gmra.mxu0 %v1218
  %v2983 = vpop.f32.mrf.mxu0
  %v2984 = vadd.f32 0.0, %v2983
  %v2985 = vpop.f32.mrf.mxu0
  %2986 = vmatprep.mubr.f32.mxu0 0.0
  %2987 = vmatmul.mubr.f32.gmra.mxu0 %v1221
  %v2988 = vpop.f32.mrf.mxu0
  %v2989 = vadd.f32 0.0, %v2988
  %v2990 = vpop.f32.mrf.mxu0
  %2991 = vdwg.mxu0
  %v2992 = vadd.f32 %v2831, %v2914
  %v2993 = vadd.f32 %v2832, %v2919
  %v2994 = vadd.f32 %v2833, %v2924
  %v2995 = vadd.f32 %v2834, %v2929
  %v2996 = vadd.f32 %v2835, %v2934
  %v2997 = vadd.f32 %v2836, %v2939
  %v2998 = vadd.f32 %v2837, %v2944
  %v2999 = vadd.f32 %v2838, %v2949
  %v3000 = vadd.f32 %v2839, %v2954
  %v3001 = vadd.f32 %v2840, %v2959
  %v3002 = vadd.f32 %v2841, %v2964
  %v3003 = vadd.f32 %v2842, %v2969
  %v3004 = vadd.f32 %v2843, %v2974
  %v3005 = vadd.f32 %v2844, %v2979
  %v3006 = vadd.f32 %v2845, %v2984
  %v3007 = vadd.f32 %v2846, %v2989
  %v3008 = vld [vmem:[%s3 + $0x1] sm:$0xff]
  %v3009 = vld [vmem:[%s3 + $0x11] sm:$0xff]
  %v3010 = vld [vmem:[%s3 + $0x21] sm:$0xff]
  %v3011 = vld [vmem:[%s3 + $0x31] sm:$0xff]
  %v3012 = vld [vmem:[%s3 + $0x41] sm:$0xff]
  %v3013 = vld [vmem:[%s3 + $0x51] sm:$0xff]
  %v3014 = vld [vmem:[%s3 + $0x61] sm:$0xff]
  %v3015 = vld [vmem:[%s3 + $0x71] sm:$0xff]
  %v3016 = vld [vmem:[%s3 + $0x91] sm:$0xff]
  %v3017 = vld [vmem:[%s3 + $0xa1] sm:$0xff]
  %v3018 = vld [vmem:[%s3 + $0xb1] sm:$0xff]
  %v3019 = vld [vmem:[%s3 + $0xc1] sm:$0xff]
  %v3020 = vld [vmem:[%s3 + $0xd1] sm:$0xff]
  %v3021 = vld [vmem:[%s3 + $0xe1] sm:$0xff]
  %v3022 = vld [vmem:[%s3 + $0xf1] sm:$0xff]
  %v3023 = vld [vmem:[%s3 + $0x101] sm:$0xff]
  %v3025 = vsel %vm73, %v3008, 0
  %v3028 = vsel %vm73, %v3009, 0
  %v3031 = vsel %vm73, %v3010, 0
  %v3034 = vsel %vm73, %v3011, 0
  %v3037 = vsel %vm73, %v3012, 0
  %v3040 = vsel %vm73, %v3013, 0
  %v3043 = vsel %vm73, %v3014, 0
  %v3046 = vsel %vm73, %v3015, 0
  %v3049 = vsel %vm73, %v3016, 0
  %v3052 = vsel %vm73, %v3017, 0
  %v3055 = vsel %vm73, %v3018, 0
  %v3058 = vsel %vm73, %v3019, 0
  %v3061 = vsel %vm73, %v3020, 0
  %v3064 = vsel %vm73, %v3021, 0
  %v3067 = vsel %vm73, %v3022, 0
  %v3070 = vsel %vm73, %v3023, 0
  %3072 = vmatprep.subr.mxu0 0.0
  %3073 = vmatpush1.msra.mxu0 0.0
  %3074 = vmatprep.subr.mxu0 0.0
  %3075 = vmatpush1.msra.mxu0 0.0
  %3076 = vmatprep.subr.mxu0 0.0
  %3077 = vmatpush1.msra.mxu0 0.0
  %3078 = vmatprep.subr.mxu0 0.0
  %3079 = vmatpush1.msra.mxu0 0.0
  %3080 = vmatprep.subr.mxu0 0.0
  %3081 = vmatpush1.msra.mxu0 0.0
  %3082 = vmatprep.subr.mxu0 0.0
  %3083 = vmatpush1.msra.mxu0 0.0
  %3084 = vmatprep.subr.mxu0 0.0
  %3085 = vmatpush1.msra.mxu0 0.0
  %3086 = vmatprep.subr.mxu0 0.0
  %3087 = vmatpush1.msra.mxu0 0.0
  %3088 = vmatprep.subr.mxu0 0.0
  %3089 = vmatpush1.msra.mxu0 0.0
  %3090 = vmatprep.subr.mxu0 0.0
  %3091 = vmatpush1.msra.mxu0 0.0
  %3092 = vmatprep.subr.mxu0 0.0
  %3093 = vmatpush1.msra.mxu0 0.0
  %3094 = vmatprep.subr.mxu0 0.0
  %3095 = vmatpush1.msra.mxu0 0.0
  %3096 = vmatprep.subr.mxu0 0.0
  %3097 = vmatpush1.msra.mxu0 0.0
  %3098 = vmatprep.subr.mxu0 0.0
  %3099 = vmatpush1.msra.mxu0 0.0
  %3100 = vmatprep.subr.mxu0 0.0
  %3101 = vmatpush1.msra.mxu0 0.0
  %3102 = vmatprep.subr.mxu0 0.0
  %3103 = vmatpush1.msra.mxu0 %v1224
  %3104 = vmatprep.subr.mxu0 0.0
  %3105 = vmatpush2.msra.mxu0 0.0
  %3106 = vmatprep.subr.mxu0 0.0
  %3107 = vmatpush2.msra.mxu0 0.0
  %3108 = vmatprep.subr.mxu0 0.0
  %3109 = vmatpush2.msra.mxu0 0.0
  %3110 = vmatprep.subr.mxu0 0.0
  %3111 = vmatpush2.msra.mxu0 0.0
  %3112 = vmatprep.subr.mxu0 0.0
  %3113 = vmatpush2.msra.mxu0 0.0
  %3114 = vmatprep.subr.mxu0 0.0
  %3115 = vmatpush2.msra.mxu0 0.0
  %3116 = vmatprep.subr.mxu0 0.0
  %3117 = vmatpush2.msra.mxu0 0.0
  %3118 = vmatprep.subr.mxu0 0.0
  %3119 = vmatpush2.msra.mxu0 0.0
  %3120 = vmatprep.subr.mxu0 0.0
  %3121 = vmatpush2.msra.mxu0 0.0
  %3122 = vmatprep.subr.mxu0 0.0
  %3123 = vmatpush2.msra.mxu0 0.0
  %3124 = vmatprep.subr.mxu0 0.0
  %3125 = vmatpush2.msra.mxu0 0.0
  %3126 = vmatprep.subr.mxu0 0.0
  %3127 = vmatpush2.msra.mxu0 0.0
  %3128 = vmatprep.subr.mxu0 0.0
  %3129 = vmatpush2.msra.mxu0 0.0
  %3130 = vmatprep.subr.mxu0 0.0
  %3131 = vmatpush2.msra.mxu0 0.0
  %3132 = vmatprep.subr.mxu0 0.0
  %3133 = vmatpush2.msra.mxu0 0.0
  %3134 = vmatprep.subr.mxu0 0.0
  %3135 = vmatpush2.msra.mxu0 0.0
  %3136 = vmatprep.mubr.f32.mxu0 0.0
  %3137 = vmatmul.mubr.f32.gmra.mxu0 %v3025
  %v3138 = vpop.f32.mrf.mxu0
  %v3139 = vadd.f32 0.0, %v3138
  %v3140 = vpop.f32.mrf.mxu0
  %3141 = vmatprep.mubr.f32.mxu0 0.0
  %3142 = vmatmul.mubr.f32.gmra.mxu0 %v3028
  %v3143 = vpop.f32.mrf.mxu0
  %v3144 = vadd.f32 0.0, %v3143
  %v3145 = vpop.f32.mrf.mxu0
  %3146 = vmatprep.mubr.f32.mxu0 0.0
  %3147 = vmatmul.mubr.f32.gmra.mxu0 %v3031
  %v3148 = vpop.f32.mrf.mxu0
  %v3149 = vadd.f32 0.0, %v3148
  %v3150 = vpop.f32.mrf.mxu0
  %3151 = vmatprep.mubr.f32.mxu0 0.0
  %3152 = vmatmul.mubr.f32.gmra.mxu0 %v3034
  %v3153 = vpop.f32.mrf.mxu0
  %v3154 = vadd.f32 0.0, %v3153
  %v3155 = vpop.f32.mrf.mxu0
  %3156 = vmatprep.mubr.f32.mxu0 0.0
  %3157 = vmatmul.mubr.f32.gmra.mxu0 %v3037
  %v3158 = vpop.f32.mrf.mxu0
  %v3159 = vadd.f32 0.0, %v3158
  %v3160 = vpop.f32.mrf.mxu0
  %3161 = vmatprep.mubr.f32.mxu0 0.0
  %3162 = vmatmul.mubr.f32.gmra.mxu0 %v3040
  %v3163 = vpop.f32.mrf.mxu0
  %v3164 = vadd.f32 0.0, %v3163
  %v3165 = vpop.f32.mrf.mxu0
  %3166 = vmatprep.mubr.f32.mxu0 0.0
  %3167 = vmatmul.mubr.f32.gmra.mxu0 %v3043
  %v3168 = vpop.f32.mrf.mxu0
  %v3169 = vadd.f32 0.0, %v3168
  %v3170 = vpop.f32.mrf.mxu0
  %3171 = vmatprep.mubr.f32.mxu0 0.0
  %3172 = vmatmul.mubr.f32.gmra.mxu0 %v3046
  %v3173 = vpop.f32.mrf.mxu0
  %v3174 = vadd.f32 0.0, %v3173
  %v3175 = vpop.f32.mrf.mxu0
  %3176 = vmatprep.mubr.f32.mxu0 0.0
  %3177 = vmatmul.mubr.f32.gmra.mxu0 %v3049
  %v3178 = vpop.f32.mrf.mxu0
  %v3179 = vadd.f32 0.0, %v3178
  %v3180 = vpop.f32.mrf.mxu0
  %3181 = vmatprep.mubr.f32.mxu0 0.0
  %3182 = vmatmul.mubr.f32.gmra.mxu0 %v3052
  %v3183 = vpop.f32.mrf.mxu0
  %v3184 = vadd.f32 0.0, %v3183
  %v3185 = vpop.f32.mrf.mxu0
  %3186 = vmatprep.mubr.f32.mxu0 0.0
  %3187 = vmatmul.mubr.f32.gmra.mxu0 %v3055
  %v3188 = vpop.f32.mrf.mxu0
  %v3189 = vadd.f32 0.0, %v3188
  %v3190 = vpop.f32.mrf.mxu0
  %3191 = vmatprep.mubr.f32.mxu0 0.0
  %3192 = vmatmul.mubr.f32.gmra.mxu0 %v3058
  %v3193 = vpop.f32.mrf.mxu0
  %v3194 = vadd.f32 0.0, %v3193
  %v3195 = vpop.f32.mrf.mxu0
  %3196 = vmatprep.mubr.f32.mxu0 0.0
  %3197 = vmatmul.mubr.f32.gmra.mxu0 %v3061
  %v3198 = vpop.f32.mrf.mxu0
  %v3199 = vadd.f32 0.0, %v3198
  %v3200 = vpop.f32.mrf.mxu0
  %3201 = vmatprep.mubr.f32.mxu0 0.0
  %3202 = vmatmul.mubr.f32.gmra.mxu0 %v3064
  %v3203 = vpop.f32.mrf.mxu0
  %v3204 = vadd.f32 0.0, %v3203
  %v3205 = vpop.f32.mrf.mxu0
  %3206 = vmatprep.mubr.f32.mxu0 0.0
  %3207 = vmatmul.mubr.f32.gmra.mxu0 %v3067
  %v3208 = vpop.f32.mrf.mxu0
  %v3209 = vadd.f32 0.0, %v3208
  %v3210 = vpop.f32.mrf.mxu0
  %3211 = vmatprep.mubr.f32.mxu0 0.0
  %3212 = vmatmul.mubr.f32.gmra.mxu0 %v3070
  %v3213 = vpop.f32.mrf.mxu0
  %v3214 = vadd.f32 0.0, %v3213
  %v3215 = vpop.f32.mrf.mxu0
  %3216 = vdwg.mxu0
  %v3217 = vadd.f32 %v2992, %v3139
  %v3218 = vadd.f32 %v2993, %v3144
  %v3219 = vadd.f32 %v2994, %v3149
  %v3220 = vadd.f32 %v2995, %v3154
  %v3221 = vadd.f32 %v2996, %v3159
  %v3222 = vadd.f32 %v2997, %v3164
  %v3223 = vadd.f32 %v2998, %v3169
  %v3224 = vadd.f32 %v2999, %v3174
  %v3225 = vadd.f32 %v3000, %v3179
  %v3226 = vadd.f32 %v3001, %v3184
  %v3227 = vadd.f32 %v3002, %v3189
  %v3228 = vadd.f32 %v3003, %v3194
  %v3229 = vadd.f32 %v3004, %v3199
  %v3230 = vadd.f32 %v3005, %v3204
  %v3231 = vadd.f32 %v3006, %v3209
  %v3232 = vadd.f32 %v3007, %v3214
  %3233 = vmatprep.subr.mxu0 0.0
  %3234 = vmatpush1.msra.mxu0 0.0
  %3235 = vmatprep.subr.mxu0 0.0
  %3236 = vmatpush1.msra.mxu0 0.0
  %3237 = vmatprep.subr.mxu0 0.0
  %3238 = vmatpush1.msra.mxu0 0.0
  %3239 = vmatprep.subr.mxu0 0.0
  %3240 = vmatpush1.msra.mxu0 0.0
  %3241 = vmatprep.subr.mxu0 0.0
  %3242 = vmatpush1.msra.mxu0 0.0
  %3243 = vmatprep.subr.mxu0 0.0
  %3244 = vmatpush1.msra.mxu0 0.0
  %3245 = vmatprep.subr.mxu0 0.0
  %3246 = vmatpush1.msra.mxu0 0.0
  %3247 = vmatprep.subr.mxu0 0.0
  %3248 = vmatpush1.msra.mxu0 0.0
  %3249 = vmatprep.subr.mxu0 0.0
  %3250 = vmatpush1.msra.mxu0 0.0
  %3251 = vmatprep.subr.mxu0 0.0
  %3252 = vmatpush1.msra.mxu0 0.0
  %3253 = vmatprep.subr.mxu0 0.0
  %3254 = vmatpush1.msra.mxu0 0.0
  %3255 = vmatprep.subr.mxu0 0.0
  %3256 = vmatpush1.msra.mxu0 0.0
  %3257 = vmatprep.subr.mxu0 0.0
  %3258 = vmatpush1.msra.mxu0 0.0
  %3259 = vmatprep.subr.mxu0 0.0
  %3260 = vmatpush1.msra.mxu0 0.0
  %3261 = vmatprep.subr.mxu0 0.0
  %3262 = vmatpush1.msra.mxu0 0.0
  %3263 = vmatprep.subr.mxu0 0.0
  %3264 = vmatpush1.msra.mxu0 %v1455
  %3265 = vmatprep.subr.mxu0 0.0
  %3266 = vmatpush2.msra.mxu0 0.0
  %3267 = vmatprep.subr.mxu0 0.0
  %3268 = vmatpush2.msra.mxu0 0.0
  %3269 = vmatprep.subr.mxu0 0.0
  %3270 = vmatpush2.msra.mxu0 0.0
  %3271 = vmatprep.subr.mxu0 0.0
  %3272 = vmatpush2.msra.mxu0 0.0
  %3273 = vmatprep.subr.mxu0 0.0
  %3274 = vmatpush2.msra.mxu0 0.0
  %3275 = vmatprep.subr.mxu0 0.0
  %3276 = vmatpush2.msra.mxu0 0.0
  %3277 = vmatprep.subr.mxu0 0.0
  %3278 = vmatpush2.msra.mxu0 0.0
  %3279 = vmatprep.subr.mxu0 0.0
  %3280 = vmatpush2.msra.mxu0 0.0
  %3281 = vmatprep.subr.mxu0 0.0
  %3282 = vmatpush2.msra.mxu0 0.0
  %3283 = vmatprep.subr.mxu0 0.0
  %3284 = vmatpush2.msra.mxu0 0.0
  %3285 = vmatprep.subr.mxu0 0.0
  %3286 = vmatpush2.msra.mxu0 0.0
  %3287 = vmatprep.subr.mxu0 0.0
  %3288 = vmatpush2.msra.mxu0 0.0
  %3289 = vmatprep.subr.mxu0 0.0
  %3290 = vmatpush2.msra.mxu0 0.0
  %3291 = vmatprep.subr.mxu0 0.0
  %3292 = vmatpush2.msra.mxu0 0.0
  %3293 = vmatprep.subr.mxu0 0.0
  %3294 = vmatpush2.msra.mxu0 0.0
  %3295 = vmatprep.subr.mxu0 0.0
  %3296 = vmatpush2.msra.mxu0 0.0
  %3297 = vmatprep.mubr.f32.mxu0 0.0
  %3298 = vmatmul.mubr.f32.gmra.mxu0 %v1638
  %v3299 = vpop.f32.mrf.mxu0
  %v3300 = vadd.f32 0.0, %v3299
  %v3301 = vpop.f32.mrf.mxu0
  %3302 = vmatprep.mubr.f32.mxu0 0.0
  %3303 = vmatmul.mubr.f32.gmra.mxu0 %v1641
  %v3304 = vpop.f32.mrf.mxu0
  %v3305 = vadd.f32 0.0, %v3304
  %v3306 = vpop.f32.mrf.mxu0
  %3307 = vmatprep.mubr.f32.mxu0 0.0
  %3308 = vmatmul.mubr.f32.gmra.mxu0 %v1644
  %v3309 = vpop.f32.mrf.mxu0
  %v3310 = vadd.f32 0.0, %v3309
  %v3311 = vpop.f32.mrf.mxu0
  %3312 = vmatprep.mubr.f32.mxu0 0.0
  %3313 = vmatmul.mubr.f32.gmra.mxu0 %v1647
  %v3314 = vpop.f32.mrf.mxu0
  %v3315 = vadd.f32 0.0, %v3314
  %v3316 = vpop.f32.mrf.mxu0
  %3317 = vmatprep.mubr.f32.mxu0 0.0
  %3318 = vmatmul.mubr.f32.gmra.mxu0 %v1650
  %v3319 = vpop.f32.mrf.mxu0
  %v3320 = vadd.f32 0.0, %v3319
  %v3321 = vpop.f32.mrf.mxu0
  %3322 = vmatprep.mubr.f32.mxu0 0.0
  %3323 = vmatmul.mubr.f32.gmra.mxu0 %v1653
  %v3324 = vpop.f32.mrf.mxu0
  %v3325 = vadd.f32 0.0, %v3324
  %v3326 = vpop.f32.mrf.mxu0
  %3327 = vmatprep.mubr.f32.mxu0 0.0
  %3328 = vmatmul.mubr.f32.gmra.mxu0 %v1656
  %v3329 = vpop.f32.mrf.mxu0
  %v3330 = vadd.f32 0.0, %v3329
  %v3331 = vpop.f32.mrf.mxu0
  %3332 = vmatprep.mubr.f32.mxu0 0.0
  %3333 = vmatmul.mubr.f32.gmra.mxu0 %v1659
  %v3334 = vpop.f32.mrf.mxu0
  %v3335 = vadd.f32 0.0, %v3334
  %v3336 = vpop.f32.mrf.mxu0
  %3337 = vmatprep.mubr.f32.mxu0 0.0
  %3338 = vmatmul.mubr.f32.gmra.mxu0 %v1662
  %v3339 = vpop.f32.mrf.mxu0
  %v3340 = vadd.f32 0.0, %v3339
  %v3341 = vpop.f32.mrf.mxu0
  %3342 = vmatprep.mubr.f32.mxu0 0.0
  %3343 = vmatmul.mubr.f32.gmra.mxu0 %v1665
  %v3344 = vpop.f32.mrf.mxu0
  %v3345 = vadd.f32 0.0, %v3344
  %v3346 = vpop.f32.mrf.mxu0
  %3347 = vmatprep.mubr.f32.mxu0 0.0
  %3348 = vmatmul.mubr.f32.gmra.mxu0 %v1668
  %v3349 = vpop.f32.mrf.mxu0
  %v3350 = vadd.f32 0.0, %v3349
  %v3351 = vpop.f32.mrf.mxu0
  %3352 = vmatprep.mubr.f32.mxu0 0.0
  %3353 = vmatmul.mubr.f32.gmra.mxu0 %v1671
  %v3354 = vpop.f32.mrf.mxu0
  %v3355 = vadd.f32 0.0, %v3354
  %v3356 = vpop.f32.mrf.mxu0
  %3357 = vmatprep.mubr.f32.mxu0 0.0
  %3358 = vmatmul.mubr.f32.gmra.mxu0 %v1674
  %v3359 = vpop.f32.mrf.mxu0
  %v3360 = vadd.f32 0.0, %v3359
  %v3361 = vpop.f32.mrf.mxu0
  %3362 = vmatprep.mubr.f32.mxu0 0.0
  %3363 = vmatmul.mubr.f32.gmra.mxu0 %v1677
  %v3364 = vpop.f32.mrf.mxu0
  %v3365 = vadd.f32 0.0, %v3364
  %v3366 = vpop.f32.mrf.mxu0
  %3367 = vmatprep.mubr.f32.mxu0 0.0
  %3368 = vmatmul.mubr.f32.gmra.mxu0 %v1680
  %v3369 = vpop.f32.mrf.mxu0
  %v3370 = vadd.f32 0.0, %v3369
  %v3371 = vpop.f32.mrf.mxu0
  %3372 = vmatprep.mubr.f32.mxu0 0.0
  %3373 = vmatmul.mubr.f32.gmra.mxu0 %v1683
  %v3374 = vpop.f32.mrf.mxu0
  %v3375 = vadd.f32 0.0, %v3374
  %v3376 = vpop.f32.mrf.mxu0
  %3377 = vdwg.mxu0
  %v3378 = vadd.f32 %v3217, %v3300
  %v3379 = vadd.f32 %v3218, %v3305
  %v3380 = vadd.f32 %v3219, %v3310
  %v3381 = vadd.f32 %v3220, %v3315
  %v3382 = vadd.f32 %v3221, %v3320
  %v3383 = vadd.f32 %v3222, %v3325
  %v3384 = vadd.f32 %v3223, %v3330
  %v3385 = vadd.f32 %v3224, %v3335
  %v3386 = vadd.f32 %v3225, %v3340
  %v3387 = vadd.f32 %v3226, %v3345
  %v3388 = vadd.f32 %v3227, %v3350
  %v3389 = vadd.f32 %v3228, %v3355
  %v3390 = vadd.f32 %v3229, %v3360
  %v3391 = vadd.f32 %v3230, %v3365
  %v3392 = vadd.f32 %v3231, %v3370
  %v3393 = vadd.f32 %v3232, %v3375
  %3394 = vmatprep.subr.mxu0 0.0
  %3395 = vmatpush1.msra.mxu0 0.0
  %3396 = vmatprep.subr.mxu0 0.0
  %3397 = vmatpush1.msra.mxu0 0.0
  %3398 = vmatprep.subr.mxu0 0.0
  %3399 = vmatpush1.msra.mxu0 0.0
  %3400 = vmatprep.subr.mxu0 0.0
  %3401 = vmatpush1.msra.mxu0 0.0
  %3402 = vmatprep.subr.mxu0 0.0
  %3403 = vmatpush1.msra.mxu0 0.0
  %3404 = vmatprep.subr.mxu0 0.0
  %3405 = vmatpush1.msra.mxu0 0.0
  %3406 = vmatprep.subr.mxu0 0.0
  %3407 = vmatpush1.msra.mxu0 0.0
  %3408 = vmatprep.subr.mxu0 0.0
  %3409 = vmatpush1.msra.mxu0 0.0
  %3410 = vmatprep.subr.mxu0 0.0
  %3411 = vmatpush1.msra.mxu0 0.0
  %3412 = vmatprep.subr.mxu0 0.0
  %3413 = vmatpush1.msra.mxu0 0.0
  %3414 = vmatprep.subr.mxu0 0.0
  %3415 = vmatpush1.msra.mxu0 0.0
  %3416 = vmatprep.subr.mxu0 0.0
  %3417 = vmatpush1.msra.mxu0 0.0
  %3418 = vmatprep.subr.mxu0 0.0
  %3419 = vmatpush1.msra.mxu0 0.0
  %3420 = vmatprep.subr.mxu0 0.0
  %3421 = vmatpush1.msra.mxu0 0.0
  %3422 = vmatprep.subr.mxu0 0.0
  %3423 = vmatpush1.msra.mxu0 0.0
  %3424 = vmatprep.subr.mxu0 0.0
  %3425 = vmatpush1.msra.mxu0 %v1686
  %3426 = vmatprep.subr.mxu0 0.0
  %3427 = vmatpush2.msra.mxu0 0.0
  %3428 = vmatprep.subr.mxu0 0.0
  %3429 = vmatpush2.msra.mxu0 0.0
  %3430 = vmatprep.subr.mxu0 0.0
  %3431 = vmatpush2.msra.mxu0 0.0
  %3432 = vmatprep.subr.mxu0 0.0
  %3433 = vmatpush2.msra.mxu0 0.0
  %3434 = vmatprep.subr.mxu0 0.0
  %3435 = vmatpush2.msra.mxu0 0.0
  %3436 = vmatprep.subr.mxu0 0.0
  %3437 = vmatpush2.msra.mxu0 0.0
  %3438 = vmatprep.subr.mxu0 0.0
  %3439 = vmatpush2.msra.mxu0 0.0
  %3440 = vmatprep.subr.mxu0 0.0
  %3441 = vmatpush2.msra.mxu0 0.0
  %3442 = vmatprep.subr.mxu0 0.0
  %3443 = vmatpush2.msra.mxu0 0.0
  %3444 = vmatprep.subr.mxu0 0.0
  %3445 = vmatpush2.msra.mxu0 0.0
  %3446 = vmatprep.subr.mxu0 0.0
  %3447 = vmatpush2.msra.mxu0 0.0
  %3448 = vmatprep.subr.mxu0 0.0
  %3449 = vmatpush2.msra.mxu0 0.0
  %3450 = vmatprep.subr.mxu0 0.0
  %3451 = vmatpush2.msra.mxu0 0.0
  %3452 = vmatprep.subr.mxu0 0.0
  %3453 = vmatpush2.msra.mxu0 0.0
  %3454 = vmatprep.subr.mxu0 0.0
  %3455 = vmatpush2.msra.mxu0 0.0
  %3456 = vmatprep.subr.mxu0 0.0
  %3457 = vmatpush2.msra.mxu0 0.0
  %3458 = vmatprep.mubr.f32.mxu0 0.0
  %3459 = vmatmul.mubr.f32.gmra.mxu0 %v1868
  %v3460 = vpop.f32.mrf.mxu0
  %v3461 = vadd.f32 0.0, %v3460
  %v3462 = vpop.f32.mrf.mxu0
  %3463 = vmatprep.mubr.f32.mxu0 0.0
  %3464 = vmatmul.mubr.f32.gmra.mxu0 %v1871
  %v3465 = vpop.f32.mrf.mxu0
  %v3466 = vadd.f32 0.0, %v3465
  %v3467 = vpop.f32.mrf.mxu0
  %3468 = vmatprep.mubr.f32.mxu0 0.0
  %3469 = vmatmul.mubr.f32.gmra.mxu0 %v1874
  %v3470 = vpop.f32.mrf.mxu0
  %v3471 = vadd.f32 0.0, %v3470
  %v3472 = vpop.f32.mrf.mxu0
  %3473 = vmatprep.mubr.f32.mxu0 0.0
  %3474 = vmatmul.mubr.f32.gmra.mxu0 %v1877
  %v3475 = vpop.f32.mrf.mxu0
  %v3476 = vadd.f32 0.0, %v3475
  %v3477 = vpop.f32.mrf.mxu0
  %3478 = vmatprep.mubr.f32.mxu0 0.0
  %3479 = vmatmul.mubr.f32.gmra.mxu0 %v1880
  %v3480 = vpop.f32.mrf.mxu0
  %v3481 = vadd.f32 0.0, %v3480
  %v3482 = vpop.f32.mrf.mxu0
  %3483 = vmatprep.mubr.f32.mxu0 0.0
  %3484 = vmatmul.mubr.f32.gmra.mxu0 %v1883
  %v3485 = vpop.f32.mrf.mxu0
  %v3486 = vadd.f32 0.0, %v3485
  %v3487 = vpop.f32.mrf.mxu0
  %3488 = vmatprep.mubr.f32.mxu0 0.0
  %3489 = vmatmul.mubr.f32.gmra.mxu0 %v1886
  %v3490 = vpop.f32.mrf.mxu0
  %v3491 = vadd.f32 0.0, %v3490
  %v3492 = vpop.f32.mrf.mxu0
  %3493 = vmatprep.mubr.f32.mxu0 0.0
  %3494 = vmatmul.mubr.f32.gmra.mxu0 %v1889
  %v3495 = vpop.f32.mrf.mxu0
  %v3496 = vadd.f32 0.0, %v3495
  %v3497 = vpop.f32.mrf.mxu0
  %3498 = vmatprep.mubr.f32.mxu0 0.0
  %3499 = vmatmul.mubr.f32.gmra.mxu0 %v1892
  %v3500 = vpop.f32.mrf.mxu0
  %v3501 = vadd.f32 0.0, %v3500
  %v3502 = vpop.f32.mrf.mxu0
  %3503 = vmatprep.mubr.f32.mxu0 0.0
  %3504 = vmatmul.mubr.f32.gmra.mxu0 %v1895
  %v3505 = vpop.f32.mrf.mxu0
  %v3506 = vadd.f32 0.0, %v3505
  %v3507 = vpop.f32.mrf.mxu0
  %3508 = vmatprep.mubr.f32.mxu0 0.0
  %3509 = vmatmul.mubr.f32.gmra.mxu0 %v1898
  %v3510 = vpop.f32.mrf.mxu0
  %v3511 = vadd.f32 0.0, %v3510
  %v3512 = vpop.f32.mrf.mxu0
  %3513 = vmatprep.mubr.f32.mxu0 0.0
  %3514 = vmatmul.mubr.f32.gmra.mxu0 %v1901
  %v3515 = vpop.f32.mrf.mxu0
  %v3516 = vadd.f32 0.0, %v3515
  %v3517 = vpop.f32.mrf.mxu0
  %3518 = vmatprep.mubr.f32.mxu0 0.0
  %3519 = vmatmul.mubr.f32.gmra.mxu0 %v1904
  %v3520 = vpop.f32.mrf.mxu0
  %v3521 = vadd.f32 0.0, %v3520
  %v3522 = vpop.f32.mrf.mxu0
  %3523 = vmatprep.mubr.f32.mxu0 0.0
  %3524 = vmatmul.mubr.f32.gmra.mxu0 %v1907
  %v3525 = vpop.f32.mrf.mxu0
  %v3526 = vadd.f32 0.0, %v3525
  %v3527 = vpop.f32.mrf.mxu0
  %3528 = vmatprep.mubr.f32.mxu0 0.0
  %3529 = vmatmul.mubr.f32.gmra.mxu0 %v1910
  %v3530 = vpop.f32.mrf.mxu0
  %v3531 = vadd.f32 0.0, %v3530
  %v3532 = vpop.f32.mrf.mxu0
  %3533 = vmatprep.mubr.f32.mxu0 0.0
  %3534 = vmatmul.mubr.f32.gmra.mxu0 %v1913
  %v3535 = vpop.f32.mrf.mxu0
  %v3536 = vadd.f32 0.0, %v3535
  %v3537 = vpop.f32.mrf.mxu0
  %3538 = vdwg.mxu0
  %v3539 = vadd.f32 %v3378, %v3461
  %v3540 = vadd.f32 %v3379, %v3466
  %v3541 = vadd.f32 %v3380, %v3471
  %v3542 = vadd.f32 %v3381, %v3476
  %v3543 = vadd.f32 %v3382, %v3481
  %v3544 = vadd.f32 %v3383, %v3486
  %v3545 = vadd.f32 %v3384, %v3491
  %v3546 = vadd.f32 %v3385, %v3496
  %v3547 = vadd.f32 %v3386, %v3501
  %v3548 = vadd.f32 %v3387, %v3506
  %v3549 = vadd.f32 %v3388, %v3511
  %v3550 = vadd.f32 %v3389, %v3516
  %v3551 = vadd.f32 %v3390, %v3521
  %v3552 = vadd.f32 %v3391, %v3526
  %v3553 = vadd.f32 %v3392, %v3531
  %v3554 = vadd.f32 %v3393, %v3536
  %v3555 = vld [vmem:[%s1618 + $0x1] sm:$0xff]
  %v3556 = vld [vmem:[%s1618 + $0x11] sm:$0xff]
  %v3557 = vld [vmem:[%s1618 + $0x21] sm:$0xff]
  %v3558 = vld [vmem:[%s1618 + $0x31] sm:$0xff]
  %v3559 = vld [vmem:[%s1618 + $0x41] sm:$0xff]
  %v3560 = vld [vmem:[%s1618 + $0x51] sm:$0xff]
  %v3561 = vld [vmem:[%s1618 + $0x61] sm:$0xff]
  %v3562 = vld [vmem:[%s1618 + $0x71] sm:$0xff]
  %v3563 = vld [vmem:[%s1618 + $0x91] sm:$0xff]
  %v3564 = vld [vmem:[%s1618 + $0xa1] sm:$0xff]
  %v3565 = vld [vmem:[%s1618 + $0xb1] sm:$0xff]
  %v3566 = vld [vmem:[%s1618 + $0xc1] sm:$0xff]
  %v3567 = vld [vmem:[%s1618 + $0xd1] sm:$0xff]
  %v3568 = vld [vmem:[%s1618 + $0xe1] sm:$0xff]
  %v3569 = vld [vmem:[%s1618 + $0xf1] sm:$0xff]
  %v3570 = vld [vmem:[%s1618 + $0x101] sm:$0xff]
  %v3572 = vsel %vm73, %v3555, 0
  %v3575 = vsel %vm73, %v3556, 0
  %v3578 = vsel %vm73, %v3557, 0
  %v3581 = vsel %vm73, %v3558, 0
  %v3584 = vsel %vm73, %v3559, 0
  %v3587 = vsel %vm73, %v3560, 0
  %v3590 = vsel %vm73, %v3561, 0
  %v3593 = vsel %vm73, %v3562, 0
  %v3596 = vsel %vm73, %v3563, 0
  %v3599 = vsel %vm73, %v3564, 0
  %v3602 = vsel %vm73, %v3565, 0
  %v3605 = vsel %vm73, %v3566, 0
  %v3608 = vsel %vm73, %v3567, 0
  %v3611 = vsel %vm73, %v3568, 0
  %v3614 = vsel %vm73, %v3569, 0
  %v3617 = vsel %vm73, %v3570, 0
  %3619 = vmatprep.subr.mxu0 0.0
  %3620 = vmatpush1.msra.mxu0 0.0
  %3621 = vmatprep.subr.mxu0 0.0
  %3622 = vmatpush1.msra.mxu0 0.0
  %3623 = vmatprep.subr.mxu0 0.0
  %3624 = vmatpush1.msra.mxu0 0.0
  %3625 = vmatprep.subr.mxu0 0.0
  %3626 = vmatpush1.msra.mxu0 0.0
  %3627 = vmatprep.subr.mxu0 0.0
  %3628 = vmatpush1.msra.mxu0 0.0
  %3629 = vmatprep.subr.mxu0 0.0
  %3630 = vmatpush1.msra.mxu0 0.0
  %3631 = vmatprep.subr.mxu0 0.0
  %3632 = vmatpush1.msra.mxu0 0.0
  %3633 = vmatprep.subr.mxu0 0.0
  %3634 = vmatpush1.msra.mxu0 0.0
  %3635 = vmatprep.subr.mxu0 0.0
  %3636 = vmatpush1.msra.mxu0 0.0
  %3637 = vmatprep.subr.mxu0 0.0
  %3638 = vmatpush1.msra.mxu0 0.0
  %3639 = vmatprep.subr.mxu0 0.0
  %3640 = vmatpush1.msra.mxu0 0.0
  %3641 = vmatprep.subr.mxu0 0.0
  %3642 = vmatpush1.msra.mxu0 0.0
  %3643 = vmatprep.subr.mxu0 0.0
  %3644 = vmatpush1.msra.mxu0 0.0
  %3645 = vmatprep.subr.mxu0 0.0
  %3646 = vmatpush1.msra.mxu0 0.0
  %3647 = vmatprep.subr.mxu0 0.0
  %3648 = vmatpush1.msra.mxu0 0.0
  %3649 = vmatprep.subr.mxu0 0.0
  %3650 = vmatpush1.msra.mxu0 %v1916
  %3651 = vmatprep.subr.mxu0 0.0
  %3652 = vmatpush2.msra.mxu0 0.0
  %3653 = vmatprep.subr.mxu0 0.0
  %3654 = vmatpush2.msra.mxu0 0.0
  %3655 = vmatprep.subr.mxu0 0.0
  %3656 = vmatpush2.msra.mxu0 0.0
  %3657 = vmatprep.subr.mxu0 0.0
  %3658 = vmatpush2.msra.mxu0 0.0
  %3659 = vmatprep.subr.mxu0 0.0
  %3660 = vmatpush2.msra.mxu0 0.0
  %3661 = vmatprep.subr.mxu0 0.0
  %3662 = vmatpush2.msra.mxu0 0.0
  %3663 = vmatprep.subr.mxu0 0.0
  %3664 = vmatpush2.msra.mxu0 0.0
  %3665 = vmatprep.subr.mxu0 0.0
  %3666 = vmatpush2.msra.mxu0 0.0
  %3667 = vmatprep.subr.mxu0 0.0
  %3668 = vmatpush2.msra.mxu0 0.0
  %3669 = vmatprep.subr.mxu0 0.0
  %3670 = vmatpush2.msra.mxu0 0.0
  %3671 = vmatprep.subr.mxu0 0.0
  %3672 = vmatpush2.msra.mxu0 0.0
  %3673 = vmatprep.subr.mxu0 0.0
  %3674 = vmatpush2.msra.mxu0 0.0
  %3675 = vmatprep.subr.mxu0 0.0
  %3676 = vmatpush2.msra.mxu0 0.0
  %3677 = vmatprep.subr.mxu0 0.0
  %3678 = vmatpush2.msra.mxu0 0.0
  %3679 = vmatprep.subr.mxu0 0.0
  %3680 = vmatpush2.msra.mxu0 0.0
  %3681 = vmatprep.subr.mxu0 0.0
  %3682 = vmatpush2.msra.mxu0 0.0
  %3683 = vmatprep.mubr.f32.mxu0 0.0
  %3684 = vmatmul.mubr.f32.gmra.mxu0 %v3572
  %v3685 = vpop.f32.mrf.mxu0
  %v3686 = vadd.f32 0.0, %v3685
  %v3687 = vpop.f32.mrf.mxu0
  %3688 = vmatprep.mubr.f32.mxu0 0.0
  %3689 = vmatmul.mubr.f32.gmra.mxu0 %v3575
  %v3690 = vpop.f32.mrf.mxu0
  %v3691 = vadd.f32 0.0, %v3690
  %v3692 = vpop.f32.mrf.mxu0
  %3693 = vmatprep.mubr.f32.mxu0 0.0
  %3694 = vmatmul.mubr.f32.gmra.mxu0 %v3578
  %v3695 = vpop.f32.mrf.mxu0
  %v3696 = vadd.f32 0.0, %v3695
  %v3697 = vpop.f32.mrf.mxu0
  %3698 = vmatprep.mubr.f32.mxu0 0.0
  %3699 = vmatmul.mubr.f32.gmra.mxu0 %v3581
  %v3700 = vpop.f32.mrf.mxu0
  %v3701 = vadd.f32 0.0, %v3700
  %v3702 = vpop.f32.mrf.mxu0
  %3703 = vmatprep.mubr.f32.mxu0 0.0
  %3704 = vmatmul.mubr.f32.gmra.mxu0 %v3584
  %v3705 = vpop.f32.mrf.mxu0
  %v3706 = vadd.f32 0.0, %v3705
  %v3707 = vpop.f32.mrf.mxu0
  %3708 = vmatprep.mubr.f32.mxu0 0.0
  %3709 = vmatmul.mubr.f32.gmra.mxu0 %v3587
  %v3710 = vpop.f32.mrf.mxu0
  %v3711 = vadd.f32 0.0, %v3710
  %v3712 = vpop.f32.mrf.mxu0
  %3713 = vmatprep.mubr.f32.mxu0 0.0
  %3714 = vmatmul.mubr.f32.gmra.mxu0 %v3590
  %v3715 = vpop.f32.mrf.mxu0
  %v3716 = vadd.f32 0.0, %v3715
  %v3717 = vpop.f32.mrf.mxu0
  %3718 = vmatprep.mubr.f32.mxu0 0.0
  %3719 = vmatmul.mubr.f32.gmra.mxu0 %v3593
  %v3720 = vpop.f32.mrf.mxu0
  %v3721 = vadd.f32 0.0, %v3720
  %v3722 = vpop.f32.mrf.mxu0
  %3723 = vmatprep.mubr.f32.mxu0 0.0
  %3724 = vmatmul.mubr.f32.gmra.mxu0 %v3596
  %v3725 = vpop.f32.mrf.mxu0
  %v3726 = vadd.f32 0.0, %v3725
  %v3727 = vpop.f32.mrf.mxu0
  %3728 = vmatprep.mubr.f32.mxu0 0.0
  %3729 = vmatmul.mubr.f32.gmra.mxu0 %v3599
  %v3730 = vpop.f32.mrf.mxu0
  %v3731 = vadd.f32 0.0, %v3730
  %v3732 = vpop.f32.mrf.mxu0
  %3733 = vmatprep.mubr.f32.mxu0 0.0
  %3734 = vmatmul.mubr.f32.gmra.mxu0 %v3602
  %v3735 = vpop.f32.mrf.mxu0
  %v3736 = vadd.f32 0.0, %v3735
  %v3737 = vpop.f32.mrf.mxu0
  %3738 = vmatprep.mubr.f32.mxu0 0.0
  %3739 = vmatmul.mubr.f32.gmra.mxu0 %v3605
  %v3740 = vpop.f32.mrf.mxu0
  %v3741 = vadd.f32 0.0, %v3740
  %v3742 = vpop.f32.mrf.mxu0
  %3743 = vmatprep.mubr.f32.mxu0 0.0
  %3744 = vmatmul.mubr.f32.gmra.mxu0 %v3608
  %v3745 = vpop.f32.mrf.mxu0
  %v3746 = vadd.f32 0.0, %v3745
  %v3747 = vpop.f32.mrf.mxu0
  %3748 = vmatprep.mubr.f32.mxu0 0.0
  %3749 = vmatmul.mubr.f32.gmra.mxu0 %v3611
  %v3750 = vpop.f32.mrf.mxu0
  %v3751 = vadd.f32 0.0, %v3750
  %v3752 = vpop.f32.mrf.mxu0
  %3753 = vmatprep.mubr.f32.mxu0 0.0
  %3754 = vmatmul.mubr.f32.gmra.mxu0 %v3614
  %v3755 = vpop.f32.mrf.mxu0
  %v3756 = vadd.f32 0.0, %v3755
  %v3757 = vpop.f32.mrf.mxu0
  %3758 = vmatprep.mubr.f32.mxu0 0.0
  %3759 = vmatmul.mubr.f32.gmra.mxu0 %v3617
  %v3760 = vpop.f32.mrf.mxu0
  %v3761 = vadd.f32 0.0, %v3760
  %v3762 = vpop.f32.mrf.mxu0
  %3763 = vdwg.mxu0
  %v3764 = vadd.f32 %v3539, %v3686
  %v3765 = vadd.f32 %v3540, %v3691
  %v3766 = vadd.f32 %v3541, %v3696
  %v3767 = vadd.f32 %v3542, %v3701
  %v3768 = vadd.f32 %v3543, %v3706
  %v3769 = vadd.f32 %v3544, %v3711
  %v3770 = vadd.f32 %v3545, %v3716
  %v3771 = vadd.f32 %v3546, %v3721
  %v3772 = vadd.f32 %v3547, %v3726
  %v3773 = vadd.f32 %v3548, %v3731
  %v3774 = vadd.f32 %v3549, %v3736
  %v3775 = vadd.f32 %v3550, %v3741
  %v3776 = vadd.f32 %v3551, %v3746
  %v3777 = vadd.f32 %v3552, %v3751
  %v3778 = vadd.f32 %v3553, %v3756
  %v3779 = vadd.f32 %v3554, %v3761
  %v3780 = vsel %vm73, %v3764, 0.0
  %v3781 = vsel %vm73, %v3765, 0.0
  %v3782 = vadd.f32 %v3780, %v3781
  %v3783 = vsel %vm73, %v3766, 0.0
  %v3784 = vadd.f32 %v3782, %v3783
  %v3785 = vsel %vm73, %v3767, 0.0
  %v3786 = vadd.f32 %v3784, %v3785
  %v3787 = vsel %vm73, %v3768, 0.0
  %v3788 = vadd.f32 %v3786, %v3787
  %v3789 = vsel %vm73, %v3769, 0.0
  %v3790 = vadd.f32 %v3788, %v3789
  %v3791 = vsel %vm73, %v3770, 0.0
  %v3792 = vadd.f32 %v3790, %v3791
  %v3793 = vsel %vm73, %v3771, 0.0
  %v3794 = vadd.f32 %v3792, %v3793
  %v3795 = vsel %vm73, %v3772, 0.0
  %v3796 = vadd.f32 %v3794, %v3795
  %v3797 = vsel %vm73, %v3773, 0.0
  %v3798 = vadd.f32 %v3796, %v3797
  %v3799 = vsel %vm73, %v3774, 0.0
  %v3800 = vadd.f32 %v3798, %v3799
  %v3801 = vsel %vm73, %v3775, 0.0
  %v3802 = vadd.f32 %v3800, %v3801
  %v3803 = vsel %vm73, %v3776, 0.0
  %v3804 = vadd.f32 %v3802, %v3803
  %v3805 = vsel %vm73, %v3777, 0.0
  %v3806 = vadd.f32 %v3804, %v3805
  %v3807 = vsel %vm73, %v3778, 0.0
  %v3808 = vadd.f32 %v3806, %v3807
  %v3809 = vsel %vm73, %v3779, 0.0
  %v3810 = vadd.f32 %v3808, %v3809
  %v3811 = vrot.slane %v3810, 4
  %v3812 = vadd.f32 %v3810, %v3811
  %v3813 = vrot.slane %v3812, 2
  %v3814 = vadd.f32 %v3812, %v3813
  %v3815 = vrot.slane %v3814, 1
  %v3816 = vadd.f32 %v3814, %v3815
  %v3817 = vadd.f32 %v2116, %v3816
  %v3818 = vmul.f32 %v3764, %v3764
  %v3819 = vmul.f32 %v3765, %v3765
  %v3820 = vmul.f32 %v3766, %v3766
  %v3821 = vmul.f32 %v3767, %v3767
  %v3822 = vmul.f32 %v3768, %v3768
  %v3823 = vmul.f32 %v3769, %v3769
  %v3824 = vmul.f32 %v3770, %v3770
  %v3825 = vmul.f32 %v3771, %v3771
  %v3826 = vmul.f32 %v3772, %v3772
  %v3827 = vmul.f32 %v3773, %v3773
  %v3828 = vmul.f32 %v3774, %v3774
  %v3829 = vmul.f32 %v3775, %v3775
  %v3830 = vmul.f32 %v3776, %v3776
  %v3831 = vmul.f32 %v3777, %v3777
  %v3832 = vmul.f32 %v3778, %v3778
  %v3833 = vmul.f32 %v3779, %v3779
  %v3834 = vsel %vm73, %v3818, 0.0
  %v3835 = vsel %vm73, %v3819, 0.0
  %v3836 = vadd.f32 %v3834, %v3835
  %v3837 = vsel %vm73, %v3820, 0.0
  %v3838 = vadd.f32 %v3836, %v3837
  %v3839 = vsel %vm73, %v3821, 0.0
  %v3840 = vadd.f32 %v3838, %v3839
  %v3841 = vsel %vm73, %v3822, 0.0
  %v3842 = vadd.f32 %v3840, %v3841
  %v3843 = vsel %vm73, %v3823, 0.0
  %v3844 = vadd.f32 %v3842, %v3843
  %v3845 = vsel %vm73, %v3824, 0.0
  %v3846 = vadd.f32 %v3844, %v3845
  %v3847 = vsel %vm73, %v3825, 0.0
  %v3848 = vadd.f32 %v3846, %v3847
  %v3849 = vsel %vm73, %v3826, 0.0
  %v3850 = vadd.f32 %v3848, %v3849
  %v3851 = vsel %vm73, %v3827, 0.0
  %v3852 = vadd.f32 %v3850, %v3851
  %v3853 = vsel %vm73, %v3828, 0.0
  %v3854 = vadd.f32 %v3852, %v3853
  %v3855 = vsel %vm73, %v3829, 0.0
  %v3856 = vadd.f32 %v3854, %v3855
  %v3857 = vsel %vm73, %v3830, 0.0
  %v3858 = vadd.f32 %v3856, %v3857
  %v3859 = vsel %vm73, %v3831, 0.0
  %v3860 = vadd.f32 %v3858, %v3859
  %v3861 = vsel %vm73, %v3832, 0.0
  %v3862 = vadd.f32 %v3860, %v3861
  %v3863 = vsel %vm73, %v3833, 0.0
  %v3864 = vadd.f32 %v3862, %v3863
  %v3865 = vrot.slane %v3864, 4
  %v3866 = vadd.f32 %v3864, %v3865
  %v3867 = vrot.slane %v3866, 2
  %v3868 = vadd.f32 %v3866, %v3867
  %v3869 = vrot.slane %v3868, 1
  %v3870 = vadd.f32 %v3868, %v3869
  %v3871 = vadd.f32 %v2170, %v3870
  %3872 = vmatprep.subr.mxu0 0.0
  %3873 = vmatpush1.msra.mxu0 0.0
  %3874 = vmatprep.subr.mxu0 0.0
  %3875 = vmatpush1.msra.mxu0 0.0
  %3876 = vmatprep.subr.mxu0 0.0
  %3877 = vmatpush1.msra.mxu0 0.0
  %3878 = vmatprep.subr.mxu0 0.0
  %3879 = vmatpush1.msra.mxu0 0.0
  %3880 = vmatprep.subr.mxu0 0.0
  %3881 = vmatpush1.msra.mxu0 0.0
  %3882 = vmatprep.subr.mxu0 0.0
  %3883 = vmatpush1.msra.mxu0 0.0
  %3884 = vmatprep.subr.mxu0 0.0
  %3885 = vmatpush1.msra.mxu0 0.0
  %3886 = vmatprep.subr.mxu0 0.0
  %3887 = vmatpush1.msra.mxu0 0.0
  %3888 = vmatprep.subr.mxu0 0.0
  %3889 = vmatpush1.msra.mxu0 0.0
  %3890 = vmatprep.subr.mxu0 0.0
  %3891 = vmatpush1.msra.mxu0 0.0
  %3892 = vmatprep.subr.mxu0 0.0
  %3893 = vmatpush1.msra.mxu0 0.0
  %3894 = vmatprep.subr.mxu0 0.0
  %3895 = vmatpush1.msra.mxu0 0.0
  %3896 = vmatprep.subr.mxu0 0.0
  %3897 = vmatpush1.msra.mxu0 0.0
  %3898 = vmatprep.subr.mxu0 0.0
  %3899 = vmatpush1.msra.mxu0 0.0
  %3900 = vmatprep.subr.mxu0 0.0
  %3901 = vmatpush1.msra.mxu0 0.0
  %3902 = vmatprep.subr.mxu0 0.0
  %3903 = vmatpush1.msra.mxu0 %v124
  %3904 = vmatprep.subr.mxu0 0.0
  %3905 = vmatpush2.msra.mxu0 0.0
  %3906 = vmatprep.subr.mxu0 0.0
  %3907 = vmatpush2.msra.mxu0 0.0
  %3908 = vmatprep.subr.mxu0 0.0
  %3909 = vmatpush2.msra.mxu0 0.0
  %3910 = vmatprep.subr.mxu0 0.0
  %3911 = vmatpush2.msra.mxu0 0.0
  %3912 = vmatprep.subr.mxu0 0.0
  %3913 = vmatpush2.msra.mxu0 0.0
  %3914 = vmatprep.subr.mxu0 0.0
  %3915 = vmatpush2.msra.mxu0 0.0
  %3916 = vmatprep.subr.mxu0 0.0
  %3917 = vmatpush2.msra.mxu0 0.0
  %3918 = vmatprep.subr.mxu0 0.0
  %3919 = vmatpush2.msra.mxu0 0.0
  %3920 = vmatprep.subr.mxu0 0.0
  %3921 = vmatpush2.msra.mxu0 0.0
  %3922 = vmatprep.subr.mxu0 0.0
  %3923 = vmatpush2.msra.mxu0 0.0
  %3924 = vmatprep.subr.mxu0 0.0
  %3925 = vmatpush2.msra.mxu0 0.0
  %3926 = vmatprep.subr.mxu0 0.0
  %3927 = vmatpush2.msra.mxu0 0.0
  %3928 = vmatprep.subr.mxu0 0.0
  %3929 = vmatpush2.msra.mxu0 0.0
  %3930 = vmatprep.subr.mxu0 0.0
  %3931 = vmatpush2.msra.mxu0 0.0
  %3932 = vmatprep.subr.mxu0 0.0
  %3933 = vmatpush2.msra.mxu0 0.0
  %3934 = vmatprep.subr.mxu0 0.0
  %3935 = vmatpush2.msra.mxu0 0.0
  %3936 = vmatprep.mubr.f32.mxu0 0.0
  %3937 = vmatmul.mubr.f32.gmra.mxu0 %v946
  %v3938 = vpop.f32.mrf.mxu0
  %v3939 = vadd.f32 0.0, %v3938
  %v3940 = vpop.f32.mrf.mxu0
  %3941 = vmatprep.mubr.f32.mxu0 0.0
  %3942 = vmatmul.mubr.f32.gmra.mxu0 %v949
  %v3943 = vpop.f32.mrf.mxu0
  %v3944 = vadd.f32 0.0, %v3943
  %v3945 = vpop.f32.mrf.mxu0
  %3946 = vmatprep.mubr.f32.mxu0 0.0
  %3947 = vmatmul.mubr.f32.gmra.mxu0 %v952
  %v3948 = vpop.f32.mrf.mxu0
  %v3949 = vadd.f32 0.0, %v3948
  %v3950 = vpop.f32.mrf.mxu0
  %3951 = vmatprep.mubr.f32.mxu0 0.0
  %3952 = vmatmul.mubr.f32.gmra.mxu0 %v955
  %v3953 = vpop.f32.mrf.mxu0
  %v3954 = vadd.f32 0.0, %v3953
  %v3955 = vpop.f32.mrf.mxu0
  %3956 = vmatprep.mubr.f32.mxu0 0.0
  %3957 = vmatmul.mubr.f32.gmra.mxu0 %v958
  %v3958 = vpop.f32.mrf.mxu0
  %v3959 = vadd.f32 0.0, %v3958
  %v3960 = vpop.f32.mrf.mxu0
  %3961 = vmatprep.mubr.f32.mxu0 0.0
  %3962 = vmatmul.mubr.f32.gmra.mxu0 %v961
  %v3963 = vpop.f32.mrf.mxu0
  %v3964 = vadd.f32 0.0, %v3963
  %v3965 = vpop.f32.mrf.mxu0
  %3966 = vmatprep.mubr.f32.mxu0 0.0
  %3967 = vmatmul.mubr.f32.gmra.mxu0 %v964
  %v3968 = vpop.f32.mrf.mxu0
  %v3969 = vadd.f32 0.0, %v3968
  %v3970 = vpop.f32.mrf.mxu0
  %3971 = vmatprep.mubr.f32.mxu0 0.0
  %3972 = vmatmul.mubr.f32.gmra.mxu0 %v967
  %v3973 = vpop.f32.mrf.mxu0
  %v3974 = vadd.f32 0.0, %v3973
  %v3975 = vpop.f32.mrf.mxu0
  %3976 = vmatprep.mubr.f32.mxu0 0.0
  %3977 = vmatmul.mubr.f32.gmra.mxu0 %v970
  %v3978 = vpop.f32.mrf.mxu0
  %v3979 = vadd.f32 0.0, %v3978
  %v3980 = vpop.f32.mrf.mxu0
  %3981 = vmatprep.mubr.f32.mxu0 0.0
  %3982 = vmatmul.mubr.f32.gmra.mxu0 %v973
  %v3983 = vpop.f32.mrf.mxu0
  %v3984 = vadd.f32 0.0, %v3983
  %v3985 = vpop.f32.mrf.mxu0
  %3986 = vmatprep.mubr.f32.mxu0 0.0
  %3987 = vmatmul.mubr.f32.gmra.mxu0 %v976
  %v3988 = vpop.f32.mrf.mxu0
  %v3989 = vadd.f32 0.0, %v3988
  %v3990 = vpop.f32.mrf.mxu0
  %3991 = vmatprep.mubr.f32.mxu0 0.0
  %3992 = vmatmul.mubr.f32.gmra.mxu0 %v979
  %v3993 = vpop.f32.mrf.mxu0
  %v3994 = vadd.f32 0.0, %v3993
  %v3995 = vpop.f32.mrf.mxu0
  %3996 = vmatprep.mubr.f32.mxu0 0.0
  %3997 = vmatmul.mubr.f32.gmra.mxu0 %v982
  %v3998 = vpop.f32.mrf.mxu0
  %v3999 = vadd.f32 0.0, %v3998
  %v4000 = vpop.f32.mrf.mxu0
  %4001 = vmatprep.mubr.f32.mxu0 0.0
  %4002 = vmatmul.mubr.f32.gmra.mxu0 %v985
  %v4003 = vpop.f32.mrf.mxu0
  %v4004 = vadd.f32 0.0, %v4003
  %v4005 = vpop.f32.mrf.mxu0
  %4006 = vmatprep.mubr.f32.mxu0 0.0
  %4007 = vmatmul.mubr.f32.gmra.mxu0 %v988
  %v4008 = vpop.f32.mrf.mxu0
  %v4009 = vadd.f32 0.0, %v4008
  %v4010 = vpop.f32.mrf.mxu0
  %4011 = vmatprep.mubr.f32.mxu0 0.0
  %4012 = vmatmul.mubr.f32.gmra.mxu0 %v991
  %v4013 = vpop.f32.mrf.mxu0
  %v4014 = vadd.f32 0.0, %v4013
  %v4015 = vpop.f32.mrf.mxu0
  %4016 = vdwg.mxu0
  %4017 = vmatprep.subr.mxu0 0.0
  %4018 = vmatpush1.msra.mxu0 0.0
  %4019 = vmatprep.subr.mxu0 0.0
  %4020 = vmatpush1.msra.mxu0 0.0
  %4021 = vmatprep.subr.mxu0 0.0
  %4022 = vmatpush1.msra.mxu0 0.0
  %4023 = vmatprep.subr.mxu0 0.0
  %4024 = vmatpush1.msra.mxu0 0.0
  %4025 = vmatprep.subr.mxu0 0.0
  %4026 = vmatpush1.msra.mxu0 0.0
  %4027 = vmatprep.subr.mxu0 0.0
  %4028 = vmatpush1.msra.mxu0 0.0
  %4029 = vmatprep.subr.mxu0 0.0
  %4030 = vmatpush1.msra.mxu0 0.0
  %4031 = vmatprep.subr.mxu0 0.0
  %4032 = vmatpush1.msra.mxu0 0.0
  %4033 = vmatprep.subr.mxu0 0.0
  %4034 = vmatpush1.msra.mxu0 0.0
  %4035 = vmatprep.subr.mxu0 0.0
  %4036 = vmatpush1.msra.mxu0 0.0
  %4037 = vmatprep.subr.mxu0 0.0
  %4038 = vmatpush1.msra.mxu0 0.0
  %4039 = vmatprep.subr.mxu0 0.0
  %4040 = vmatpush1.msra.mxu0 0.0
  %4041 = vmatprep.subr.mxu0 0.0
  %4042 = vmatpush1.msra.mxu0 0.0
  %4043 = vmatprep.subr.mxu0 0.0
  %4044 = vmatpush1.msra.mxu0 0.0
  %4045 = vmatprep.subr.mxu0 0.0
  %4046 = vmatpush1.msra.mxu0 0.0
  %4047 = vmatprep.subr.mxu0 0.0
  %4048 = vmatpush1.msra.mxu0 %v320
  %4049 = vmatprep.subr.mxu0 0.0
  %4050 = vmatpush2.msra.mxu0 0.0
  %4051 = vmatprep.subr.mxu0 0.0
  %4052 = vmatpush2.msra.mxu0 0.0
  %4053 = vmatprep.subr.mxu0 0.0
  %4054 = vmatpush2.msra.mxu0 0.0
  %4055 = vmatprep.subr.mxu0 0.0
  %4056 = vmatpush2.msra.mxu0 0.0
  %4057 = vmatprep.subr.mxu0 0.0
  %4058 = vmatpush2.msra.mxu0 0.0
  %4059 = vmatprep.subr.mxu0 0.0
  %4060 = vmatpush2.msra.mxu0 0.0
  %4061 = vmatprep.subr.mxu0 0.0
  %4062 = vmatpush2.msra.mxu0 0.0
  %4063 = vmatprep.subr.mxu0 0.0
  %4064 = vmatpush2.msra.mxu0 0.0
  %4065 = vmatprep.subr.mxu0 0.0
  %4066 = vmatpush2.msra.mxu0 0.0
  %4067 = vmatprep.subr.mxu0 0.0
  %4068 = vmatpush2.msra.mxu0 0.0
  %4069 = vmatprep.subr.mxu0 0.0
  %4070 = vmatpush2.msra.mxu0 0.0
  %4071 = vmatprep.subr.mxu0 0.0
  %4072 = vmatpush2.msra.mxu0 0.0
  %4073 = vmatprep.subr.mxu0 0.0
  %4074 = vmatpush2.msra.mxu0 0.0
  %4075 = vmatprep.subr.mxu0 0.0
  %4076 = vmatpush2.msra.mxu0 0.0
  %4077 = vmatprep.subr.mxu0 0.0
  %4078 = vmatpush2.msra.mxu0 0.0
  %4079 = vmatprep.subr.mxu0 0.0
  %4080 = vmatpush2.msra.mxu0 0.0
  %4081 = vmatprep.mubr.f32.mxu0 0.0
  %4082 = vmatmul.mubr.f32.gmra.mxu0 %v716
  %v4083 = vpop.f32.mrf.mxu0
  %v4084 = vadd.f32 %v3939, %v4083
  %v4085 = vpop.f32.mrf.mxu0
  %4086 = vmatprep.mubr.f32.mxu0 0.0
  %4087 = vmatmul.mubr.f32.gmra.mxu0 %v719
  %v4088 = vpop.f32.mrf.mxu0
  %v4089 = vadd.f32 %v3944, %v4088
  %v4090 = vpop.f32.mrf.mxu0
  %4091 = vmatprep.mubr.f32.mxu0 0.0
  %4092 = vmatmul.mubr.f32.gmra.mxu0 %v722
  %v4093 = vpop.f32.mrf.mxu0
  %v4094 = vadd.f32 %v3949, %v4093
  %v4095 = vpop.f32.mrf.mxu0
  %4096 = vmatprep.mubr.f32.mxu0 0.0
  %4097 = vmatmul.mubr.f32.gmra.mxu0 %v725
  %v4098 = vpop.f32.mrf.mxu0
  %v4099 = vadd.f32 %v3954, %v4098
  %v4100 = vpop.f32.mrf.mxu0
  %4101 = vmatprep.mubr.f32.mxu0 0.0
  %4102 = vmatmul.mubr.f32.gmra.mxu0 %v728
  %v4103 = vpop.f32.mrf.mxu0
  %v4104 = vadd.f32 %v3959, %v4103
  %v4105 = vpop.f32.mrf.mxu0
  %4106 = vmatprep.mubr.f32.mxu0 0.0
  %4107 = vmatmul.mubr.f32.gmra.mxu0 %v731
  %v4108 = vpop.f32.mrf.mxu0
  %v4109 = vadd.f32 %v3964, %v4108
  %v4110 = vpop.f32.mrf.mxu0
  %4111 = vmatprep.mubr.f32.mxu0 0.0
  %4112 = vmatmul.mubr.f32.gmra.mxu0 %v734
  %v4113 = vpop.f32.mrf.mxu0
  %v4114 = vadd.f32 %v3969, %v4113
  %v4115 = vpop.f32.mrf.mxu0
  %4116 = vmatprep.mubr.f32.mxu0 0.0
  %4117 = vmatmul.mubr.f32.gmra.mxu0 %v737
  %v4118 = vpop.f32.mrf.mxu0
  %v4119 = vadd.f32 %v3974, %v4118
  %v4120 = vpop.f32.mrf.mxu0
  %4121 = vmatprep.mubr.f32.mxu0 0.0
  %4122 = vmatmul.mubr.f32.gmra.mxu0 %v740
  %v4123 = vpop.f32.mrf.mxu0
  %v4124 = vadd.f32 %v3979, %v4123
  %v4125 = vpop.f32.mrf.mxu0
  %4126 = vmatprep.mubr.f32.mxu0 0.0
  %4127 = vmatmul.mubr.f32.gmra.mxu0 %v743
  %v4128 = vpop.f32.mrf.mxu0
  %v4129 = vadd.f32 %v3984, %v4128
  %v4130 = vpop.f32.mrf.mxu0
  %4131 = vmatprep.mubr.f32.mxu0 0.0
  %4132 = vmatmul.mubr.f32.gmra.mxu0 %v746
  %v4133 = vpop.f32.mrf.mxu0
  %v4134 = vadd.f32 %v3989, %v4133
  %v4135 = vpop.f32.mrf.mxu0
  %4136 = vmatprep.mubr.f32.mxu0 0.0
  %4137 = vmatmul.mubr.f32.gmra.mxu0 %v749
  %v4138 = vpop.f32.mrf.mxu0
  %v4139 = vadd.f32 %v3994, %v4138
  %v4140 = vpop.f32.mrf.mxu0
  %4141 = vmatprep.mubr.f32.mxu0 0.0
  %4142 = vmatmul.mubr.f32.gmra.mxu0 %v752
  %v4143 = vpop.f32.mrf.mxu0
  %v4144 = vadd.f32 %v3999, %v4143
  %v4145 = vpop.f32.mrf.mxu0
  %4146 = vmatprep.mubr.f32.mxu0 0.0
  %4147 = vmatmul.mubr.f32.gmra.mxu0 %v755
  %v4148 = vpop.f32.mrf.mxu0
  %v4149 = vadd.f32 %v4004, %v4148
  %v4150 = vpop.f32.mrf.mxu0
  %4151 = vmatprep.mubr.f32.mxu0 0.0
  %4152 = vmatmul.mubr.f32.gmra.mxu0 %v758
  %v4153 = vpop.f32.mrf.mxu0
  %v4154 = vadd.f32 %v4009, %v4153
  %v4155 = vpop.f32.mrf.mxu0
  %4156 = vmatprep.mubr.f32.mxu0 0.0
  %4157 = vmatmul.mubr.f32.gmra.mxu0 %v761
  %v4158 = vpop.f32.mrf.mxu0
  %v4159 = vadd.f32 %v4014, %v4158
  %v4160 = vpop.f32.mrf.mxu0
  %4161 = vdwg.mxu0
  %4162 = vmatprep.subr.mxu0 0.0
  %4163 = vmatpush1.msra.mxu0 0.0
  %4164 = vmatprep.subr.mxu0 0.0
  %4165 = vmatpush1.msra.mxu0 0.0
  %4166 = vmatprep.subr.mxu0 0.0
  %4167 = vmatpush1.msra.mxu0 0.0
  %4168 = vmatprep.subr.mxu0 0.0
  %4169 = vmatpush1.msra.mxu0 0.0
  %4170 = vmatprep.subr.mxu0 0.0
  %4171 = vmatpush1.msra.mxu0 0.0
  %4172 = vmatprep.subr.mxu0 0.0
  %4173 = vmatpush1.msra.mxu0 0.0
  %4174 = vmatprep.subr.mxu0 0.0
  %4175 = vmatpush1.msra.mxu0 0.0
  %4176 = vmatprep.subr.mxu0 0.0
  %4177 = vmatpush1.msra.mxu0 0.0
  %4178 = vmatprep.subr.mxu0 0.0
  %4179 = vmatpush1.msra.mxu0 0.0
  %4180 = vmatprep.subr.mxu0 0.0
  %4181 = vmatpush1.msra.mxu0 0.0
  %4182 = vmatprep.subr.mxu0 0.0
  %4183 = vmatpush1.msra.mxu0 0.0
  %4184 = vmatprep.subr.mxu0 0.0
  %4185 = vmatpush1.msra.mxu0 0.0
  %4186 = vmatprep.subr.mxu0 0.0
  %4187 = vmatpush1.msra.mxu0 0.0
  %4188 = vmatprep.subr.mxu0 0.0
  %4189 = vmatpush1.msra.mxu0 0.0
  %4190 = vmatprep.subr.mxu0 0.0
  %4191 = vmatpush1.msra.mxu0 0.0
  %4192 = vmatprep.subr.mxu0 0.0
  %4193 = vmatpush1.msra.mxu0 %v534
  %4194 = vmatprep.subr.mxu0 0.0
  %4195 = vmatpush2.msra.mxu0 0.0
  %4196 = vmatprep.subr.mxu0 0.0
  %4197 = vmatpush2.msra.mxu0 0.0
  %4198 = vmatprep.subr.mxu0 0.0
  %4199 = vmatpush2.msra.mxu0 0.0
  %4200 = vmatprep.subr.mxu0 0.0
  %4201 = vmatpush2.msra.mxu0 0.0
  %4202 = vmatprep.subr.mxu0 0.0
  %4203 = vmatpush2.msra.mxu0 0.0
  %4204 = vmatprep.subr.mxu0 0.0
  %4205 = vmatpush2.msra.mxu0 0.0
  %4206 = vmatprep.subr.mxu0 0.0
  %4207 = vmatpush2.msra.mxu0 0.0
  %4208 = vmatprep.subr.mxu0 0.0
  %4209 = vmatpush2.msra.mxu0 0.0
  %4210 = vmatprep.subr.mxu0 0.0
  %4211 = vmatpush2.msra.mxu0 0.0
  %4212 = vmatprep.subr.mxu0 0.0
  %4213 = vmatpush2.msra.mxu0 0.0
  %4214 = vmatprep.subr.mxu0 0.0
  %4215 = vmatpush2.msra.mxu0 0.0
  %4216 = vmatprep.subr.mxu0 0.0
  %4217 = vmatpush2.msra.mxu0 0.0
  %4218 = vmatprep.subr.mxu0 0.0
  %4219 = vmatpush2.msra.mxu0 0.0
  %4220 = vmatprep.subr.mxu0 0.0
  %4221 = vmatpush2.msra.mxu0 0.0
  %4222 = vmatprep.subr.mxu0 0.0
  %4223 = vmatpush2.msra.mxu0 0.0
  %4224 = vmatprep.subr.mxu0 0.0
  %4225 = vmatpush2.msra.mxu0 0.0
  %4226 = vmatprep.mubr.f32.mxu0 0.0
  %4227 = vmatmul.mubr.f32.gmra.mxu0 %v1176
  %v4228 = vpop.f32.mrf.mxu0
  %v4229 = vadd.f32 0.0, %v4228
  %v4230 = vpop.f32.mrf.mxu0
  %4231 = vmatprep.mubr.f32.mxu0 0.0
  %4232 = vmatmul.mubr.f32.gmra.mxu0 %v1179
  %v4233 = vpop.f32.mrf.mxu0
  %v4234 = vadd.f32 0.0, %v4233
  %v4235 = vpop.f32.mrf.mxu0
  %4236 = vmatprep.mubr.f32.mxu0 0.0
  %4237 = vmatmul.mubr.f32.gmra.mxu0 %v1182
  %v4238 = vpop.f32.mrf.mxu0
  %v4239 = vadd.f32 0.0, %v4238
  %v4240 = vpop.f32.mrf.mxu0
  %4241 = vmatprep.mubr.f32.mxu0 0.0
  %4242 = vmatmul.mubr.f32.gmra.mxu0 %v1185
  %v4243 = vpop.f32.mrf.mxu0
  %v4244 = vadd.f32 0.0, %v4243
  %v4245 = vpop.f32.mrf.mxu0
  %4246 = vmatprep.mubr.f32.mxu0 0.0
  %4247 = vmatmul.mubr.f32.gmra.mxu0 %v1188
  %v4248 = vpop.f32.mrf.mxu0
  %v4249 = vadd.f32 0.0, %v4248
  %v4250 = vpop.f32.mrf.mxu0
  %4251 = vmatprep.mubr.f32.mxu0 0.0
  %4252 = vmatmul.mubr.f32.gmra.mxu0 %v1191
  %v4253 = vpop.f32.mrf.mxu0
  %v4254 = vadd.f32 0.0, %v4253
  %v4255 = vpop.f32.mrf.mxu0
  %4256 = vmatprep.mubr.f32.mxu0 0.0
  %4257 = vmatmul.mubr.f32.gmra.mxu0 %v1194
  %v4258 = vpop.f32.mrf.mxu0
  %v4259 = vadd.f32 0.0, %v4258
  %v4260 = vpop.f32.mrf.mxu0
  %4261 = vmatprep.mubr.f32.mxu0 0.0
  %4262 = vmatmul.mubr.f32.gmra.mxu0 %v1197
  %v4263 = vpop.f32.mrf.mxu0
  %v4264 = vadd.f32 0.0, %v4263
  %v4265 = vpop.f32.mrf.mxu0
  %4266 = vmatprep.mubr.f32.mxu0 0.0
  %4267 = vmatmul.mubr.f32.gmra.mxu0 %v1200
  %v4268 = vpop.f32.mrf.mxu0
  %v4269 = vadd.f32 0.0, %v4268
  %v4270 = vpop.f32.mrf.mxu0
  %4271 = vmatprep.mubr.f32.mxu0 0.0
  %4272 = vmatmul.mubr.f32.gmra.mxu0 %v1203
  %v4273 = vpop.f32.mrf.mxu0
  %v4274 = vadd.f32 0.0, %v4273
  %v4275 = vpop.f32.mrf.mxu0
  %4276 = vmatprep.mubr.f32.mxu0 0.0
  %4277 = vmatmul.mubr.f32.gmra.mxu0 %v1206
  %v4278 = vpop.f32.mrf.mxu0
  %v4279 = vadd.f32 0.0, %v4278
  %v4280 = vpop.f32.mrf.mxu0
  %4281 = vmatprep.mubr.f32.mxu0 0.0
  %4282 = vmatmul.mubr.f32.gmra.mxu0 %v1209
  %v4283 = vpop.f32.mrf.mxu0
  %v4284 = vadd.f32 0.0, %v4283
  %v4285 = vpop.f32.mrf.mxu0
  %4286 = vmatprep.mubr.f32.mxu0 0.0
  %4287 = vmatmul.mubr.f32.gmra.mxu0 %v1212
  %v4288 = vpop.f32.mrf.mxu0
  %v4289 = vadd.f32 0.0, %v4288
  %v4290 = vpop.f32.mrf.mxu0
  %4291 = vmatprep.mubr.f32.mxu0 0.0
  %4292 = vmatmul.mubr.f32.gmra.mxu0 %v1215
  %v4293 = vpop.f32.mrf.mxu0
  %v4294 = vadd.f32 0.0, %v4293
  %v4295 = vpop.f32.mrf.mxu0
  %4296 = vmatprep.mubr.f32.mxu0 0.0
  %4297 = vmatmul.mubr.f32.gmra.mxu0 %v1218
  %v4298 = vpop.f32.mrf.mxu0
  %v4299 = vadd.f32 0.0, %v4298
  %v4300 = vpop.f32.mrf.mxu0
  %4301 = vmatprep.mubr.f32.mxu0 0.0
  %4302 = vmatmul.mubr.f32.gmra.mxu0 %v1221
  %v4303 = vpop.f32.mrf.mxu0
  %v4304 = vadd.f32 0.0, %v4303
  %v4305 = vpop.f32.mrf.mxu0
  %4306 = vdwg.mxu0
  %v4307 = vadd.f32 %v4084, %v4229
  %v4308 = vadd.f32 %v4089, %v4234
  %v4309 = vadd.f32 %v4094, %v4239
  %v4310 = vadd.f32 %v4099, %v4244
  %v4311 = vadd.f32 %v4104, %v4249
  %v4312 = vadd.f32 %v4109, %v4254
  %v4313 = vadd.f32 %v4114, %v4259
  %v4314 = vadd.f32 %v4119, %v4264
  %v4315 = vadd.f32 %v4124, %v4269
  %v4316 = vadd.f32 %v4129, %v4274
  %v4317 = vadd.f32 %v4134, %v4279
  %v4318 = vadd.f32 %v4139, %v4284
  %v4319 = vadd.f32 %v4144, %v4289
  %v4320 = vadd.f32 %v4149, %v4294
  %v4321 = vadd.f32 %v4154, %v4299
  %v4322 = vadd.f32 %v4159, %v4304
  %4323 = vmatprep.subr.mxu0 0.0
  %4324 = vmatpush1.msra.mxu0 0.0
  %4325 = vmatprep.subr.mxu0 0.0
  %4326 = vmatpush1.msra.mxu0 0.0
  %4327 = vmatprep.subr.mxu0 0.0
  %4328 = vmatpush1.msra.mxu0 0.0
  %4329 = vmatprep.subr.mxu0 0.0
  %4330 = vmatpush1.msra.mxu0 0.0
  %4331 = vmatprep.subr.mxu0 0.0
  %4332 = vmatpush1.msra.mxu0 0.0
  %4333 = vmatprep.subr.mxu0 0.0
  %4334 = vmatpush1.msra.mxu0 0.0
  %4335 = vmatprep.subr.mxu0 0.0
  %4336 = vmatpush1.msra.mxu0 0.0
  %4337 = vmatprep.subr.mxu0 0.0
  %4338 = vmatpush1.msra.mxu0 0.0
  %4339 = vmatprep.subr.mxu0 0.0
  %4340 = vmatpush1.msra.mxu0 0.0
  %4341 = vmatprep.subr.mxu0 0.0
  %4342 = vmatpush1.msra.mxu0 0.0
  %4343 = vmatprep.subr.mxu0 0.0
  %4344 = vmatpush1.msra.mxu0 0.0
  %4345 = vmatprep.subr.mxu0 0.0
  %4346 = vmatpush1.msra.mxu0 0.0
  %4347 = vmatprep.subr.mxu0 0.0
  %4348 = vmatpush1.msra.mxu0 0.0
  %4349 = vmatprep.subr.mxu0 0.0
  %4350 = vmatpush1.msra.mxu0 0.0
  %4351 = vmatprep.subr.mxu0 0.0
  %4352 = vmatpush1.msra.mxu0 0.0
  %4353 = vmatprep.subr.mxu0 0.0
  %4354 = vmatpush1.msra.mxu0 %v764
  %4355 = vmatprep.subr.mxu0 0.0
  %4356 = vmatpush2.msra.mxu0 0.0
  %4357 = vmatprep.subr.mxu0 0.0
  %4358 = vmatpush2.msra.mxu0 0.0
  %4359 = vmatprep.subr.mxu0 0.0
  %4360 = vmatpush2.msra.mxu0 0.0
  %4361 = vmatprep.subr.mxu0 0.0
  %4362 = vmatpush2.msra.mxu0 0.0
  %4363 = vmatprep.subr.mxu0 0.0
  %4364 = vmatpush2.msra.mxu0 0.0
  %4365 = vmatprep.subr.mxu0 0.0
  %4366 = vmatpush2.msra.mxu0 0.0
  %4367 = vmatprep.subr.mxu0 0.0
  %4368 = vmatpush2.msra.mxu0 0.0
  %4369 = vmatprep.subr.mxu0 0.0
  %4370 = vmatpush2.msra.mxu0 0.0
  %4371 = vmatprep.subr.mxu0 0.0
  %4372 = vmatpush2.msra.mxu0 0.0
  %4373 = vmatprep.subr.mxu0 0.0
  %4374 = vmatpush2.msra.mxu0 0.0
  %4375 = vmatprep.subr.mxu0 0.0
  %4376 = vmatpush2.msra.mxu0 0.0
  %4377 = vmatprep.subr.mxu0 0.0
  %4378 = vmatpush2.msra.mxu0 0.0
  %4379 = vmatprep.subr.mxu0 0.0
  %4380 = vmatpush2.msra.mxu0 0.0
  %4381 = vmatprep.subr.mxu0 0.0
  %4382 = vmatpush2.msra.mxu0 0.0
  %4383 = vmatprep.subr.mxu0 0.0
  %4384 = vmatpush2.msra.mxu0 0.0
  %4385 = vmatprep.subr.mxu0 0.0
  %4386 = vmatpush2.msra.mxu0 0.0
  %4387 = vmatprep.mubr.f32.mxu0 0.0
  %4388 = vmatmul.mubr.f32.gmra.mxu0 %v1407
  %v4389 = vpop.f32.mrf.mxu0
  %v4390 = vadd.f32 0.0, %v4389
  %v4391 = vpop.f32.mrf.mxu0
  %4392 = vmatprep.mubr.f32.mxu0 0.0
  %4393 = vmatmul.mubr.f32.gmra.mxu0 %v1410
  %v4394 = vpop.f32.mrf.mxu0
  %v4395 = vadd.f32 0.0, %v4394
  %v4396 = vpop.f32.mrf.mxu0
  %4397 = vmatprep.mubr.f32.mxu0 0.0
  %4398 = vmatmul.mubr.f32.gmra.mxu0 %v1413
  %v4399 = vpop.f32.mrf.mxu0
  %v4400 = vadd.f32 0.0, %v4399
  %v4401 = vpop.f32.mrf.mxu0
  %4402 = vmatprep.mubr.f32.mxu0 0.0
  %4403 = vmatmul.mubr.f32.gmra.mxu0 %v1416
  %v4404 = vpop.f32.mrf.mxu0
  %v4405 = vadd.f32 0.0, %v4404
  %v4406 = vpop.f32.mrf.mxu0
  %4407 = vmatprep.mubr.f32.mxu0 0.0
  %4408 = vmatmul.mubr.f32.gmra.mxu0 %v1419
  %v4409 = vpop.f32.mrf.mxu0
  %v4410 = vadd.f32 0.0, %v4409
  %v4411 = vpop.f32.mrf.mxu0
  %4412 = vmatprep.mubr.f32.mxu0 0.0
  %4413 = vmatmul.mubr.f32.gmra.mxu0 %v1422
  %v4414 = vpop.f32.mrf.mxu0
  %v4415 = vadd.f32 0.0, %v4414
  %v4416 = vpop.f32.mrf.mxu0
  %4417 = vmatprep.mubr.f32.mxu0 0.0
  %4418 = vmatmul.mubr.f32.gmra.mxu0 %v1425
  %v4419 = vpop.f32.mrf.mxu0
  %v4420 = vadd.f32 0.0, %v4419
  %v4421 = vpop.f32.mrf.mxu0
  %4422 = vmatprep.mubr.f32.mxu0 0.0
  %4423 = vmatmul.mubr.f32.gmra.mxu0 %v1428
  %v4424 = vpop.f32.mrf.mxu0
  %v4425 = vadd.f32 0.0, %v4424
  %v4426 = vpop.f32.mrf.mxu0
  %4427 = vmatprep.mubr.f32.mxu0 0.0
  %4428 = vmatmul.mubr.f32.gmra.mxu0 %v1431
  %v4429 = vpop.f32.mrf.mxu0
  %v4430 = vadd.f32 0.0, %v4429
  %v4431 = vpop.f32.mrf.mxu0
  %4432 = vmatprep.mubr.f32.mxu0 0.0
  %4433 = vmatmul.mubr.f32.gmra.mxu0 %v1434
  %v4434 = vpop.f32.mrf.mxu0
  %v4435 = vadd.f32 0.0, %v4434
  %v4436 = vpop.f32.mrf.mxu0
  %4437 = vmatprep.mubr.f32.mxu0 0.0
  %4438 = vmatmul.mubr.f32.gmra.mxu0 %v1437
  %v4439 = vpop.f32.mrf.mxu0
  %v4440 = vadd.f32 0.0, %v4439
  %v4441 = vpop.f32.mrf.mxu0
  %4442 = vmatprep.mubr.f32.mxu0 0.0
  %4443 = vmatmul.mubr.f32.gmra.mxu0 %v1440
  %v4444 = vpop.f32.mrf.mxu0
  %v4445 = vadd.f32 0.0, %v4444
  %v4446 = vpop.f32.mrf.mxu0
  %4447 = vmatprep.mubr.f32.mxu0 0.0
  %4448 = vmatmul.mubr.f32.gmra.mxu0 %v1443
  %v4449 = vpop.f32.mrf.mxu0
  %v4450 = vadd.f32 0.0, %v4449
  %v4451 = vpop.f32.mrf.mxu0
  %4452 = vmatprep.mubr.f32.mxu0 0.0
  %4453 = vmatmul.mubr.f32.gmra.mxu0 %v1446
  %v4454 = vpop.f32.mrf.mxu0
  %v4455 = vadd.f32 0.0, %v4454
  %v4456 = vpop.f32.mrf.mxu0
  %4457 = vmatprep.mubr.f32.mxu0 0.0
  %4458 = vmatmul.mubr.f32.gmra.mxu0 %v1449
  %v4459 = vpop.f32.mrf.mxu0
  %v4460 = vadd.f32 0.0, %v4459
  %v4461 = vpop.f32.mrf.mxu0
  %4462 = vmatprep.mubr.f32.mxu0 0.0
  %4463 = vmatmul.mubr.f32.gmra.mxu0 %v1452
  %v4464 = vpop.f32.mrf.mxu0
  %v4465 = vadd.f32 0.0, %v4464
  %v4466 = vpop.f32.mrf.mxu0
  %4467 = vdwg.mxu0
  %v4468 = vadd.f32 %v4307, %v4390
  %v4469 = vadd.f32 %v4308, %v4395
  %v4470 = vadd.f32 %v4309, %v4400
  %v4471 = vadd.f32 %v4310, %v4405
  %v4472 = vadd.f32 %v4311, %v4410
  %v4473 = vadd.f32 %v4312, %v4415
  %v4474 = vadd.f32 %v4313, %v4420
  %v4475 = vadd.f32 %v4314, %v4425
  %v4476 = vadd.f32 %v4315, %v4430
  %v4477 = vadd.f32 %v4316, %v4435
  %v4478 = vadd.f32 %v4317, %v4440
  %v4479 = vadd.f32 %v4318, %v4445
  %v4480 = vadd.f32 %v4319, %v4450
  %v4481 = vadd.f32 %v4320, %v4455
  %v4482 = vadd.f32 %v4321, %v4460
  %v4483 = vadd.f32 %v4322, %v4465
  %4484 = vmatprep.subr.mxu0 0.0
  %4485 = vmatpush1.msra.mxu0 0.0
  %4486 = vmatprep.subr.mxu0 0.0
  %4487 = vmatpush1.msra.mxu0 0.0
  %4488 = vmatprep.subr.mxu0 0.0
  %4489 = vmatpush1.msra.mxu0 0.0
  %4490 = vmatprep.subr.mxu0 0.0
  %4491 = vmatpush1.msra.mxu0 0.0
  %4492 = vmatprep.subr.mxu0 0.0
  %4493 = vmatpush1.msra.mxu0 0.0
  %4494 = vmatprep.subr.mxu0 0.0
  %4495 = vmatpush1.msra.mxu0 0.0
  %4496 = vmatprep.subr.mxu0 0.0
  %4497 = vmatpush1.msra.mxu0 0.0
  %4498 = vmatprep.subr.mxu0 0.0
  %4499 = vmatpush1.msra.mxu0 0.0
  %4500 = vmatprep.subr.mxu0 0.0
  %4501 = vmatpush1.msra.mxu0 0.0
  %4502 = vmatprep.subr.mxu0 0.0
  %4503 = vmatpush1.msra.mxu0 0.0
  %4504 = vmatprep.subr.mxu0 0.0
  %4505 = vmatpush1.msra.mxu0 0.0
  %4506 = vmatprep.subr.mxu0 0.0
  %4507 = vmatpush1.msra.mxu0 0.0
  %4508 = vmatprep.subr.mxu0 0.0
  %4509 = vmatpush1.msra.mxu0 0.0
  %4510 = vmatprep.subr.mxu0 0.0
  %4511 = vmatpush1.msra.mxu0 0.0
  %4512 = vmatprep.subr.mxu0 0.0
  %4513 = vmatpush1.msra.mxu0 0.0
  %4514 = vmatprep.subr.mxu0 0.0
  %4515 = vmatpush1.msra.mxu0 %v994
  %4516 = vmatprep.subr.mxu0 0.0
  %4517 = vmatpush2.msra.mxu0 0.0
  %4518 = vmatprep.subr.mxu0 0.0
  %4519 = vmatpush2.msra.mxu0 0.0
  %4520 = vmatprep.subr.mxu0 0.0
  %4521 = vmatpush2.msra.mxu0 0.0
  %4522 = vmatprep.subr.mxu0 0.0
  %4523 = vmatpush2.msra.mxu0 0.0
  %4524 = vmatprep.subr.mxu0 0.0
  %4525 = vmatpush2.msra.mxu0 0.0
  %4526 = vmatprep.subr.mxu0 0.0
  %4527 = vmatpush2.msra.mxu0 0.0
  %4528 = vmatprep.subr.mxu0 0.0
  %4529 = vmatpush2.msra.mxu0 0.0
  %4530 = vmatprep.subr.mxu0 0.0
  %4531 = vmatpush2.msra.mxu0 0.0
  %4532 = vmatprep.subr.mxu0 0.0
  %4533 = vmatpush2.msra.mxu0 0.0
  %4534 = vmatprep.subr.mxu0 0.0
  %4535 = vmatpush2.msra.mxu0 0.0
  %4536 = vmatprep.subr.mxu0 0.0
  %4537 = vmatpush2.msra.mxu0 0.0
  %4538 = vmatprep.subr.mxu0 0.0
  %4539 = vmatpush2.msra.mxu0 0.0
  %4540 = vmatprep.subr.mxu0 0.0
  %4541 = vmatpush2.msra.mxu0 0.0
  %4542 = vmatprep.subr.mxu0 0.0
  %4543 = vmatpush2.msra.mxu0 0.0
  %4544 = vmatprep.subr.mxu0 0.0
  %4545 = vmatpush2.msra.mxu0 0.0
  %4546 = vmatprep.subr.mxu0 0.0
  %4547 = vmatpush2.msra.mxu0 0.0
  %4548 = vmatprep.mubr.f32.mxu0 0.0
  %4549 = vmatmul.mubr.f32.gmra.mxu0 %v1638
  %v4550 = vpop.f32.mrf.mxu0
  %v4551 = vadd.f32 0.0, %v4550
  %v4552 = vpop.f32.mrf.mxu0
  %4553 = vmatprep.mubr.f32.mxu0 0.0
  %4554 = vmatmul.mubr.f32.gmra.mxu0 %v1641
  %v4555 = vpop.f32.mrf.mxu0
  %v4556 = vadd.f32 0.0, %v4555
  %v4557 = vpop.f32.mrf.mxu0
  %4558 = vmatprep.mubr.f32.mxu0 0.0
  %4559 = vmatmul.mubr.f32.gmra.mxu0 %v1644
  %v4560 = vpop.f32.mrf.mxu0
  %v4561 = vadd.f32 0.0, %v4560
  %v4562 = vpop.f32.mrf.mxu0
  %4563 = vmatprep.mubr.f32.mxu0 0.0
  %4564 = vmatmul.mubr.f32.gmra.mxu0 %v1647
  %v4565 = vpop.f32.mrf.mxu0
  %v4566 = vadd.f32 0.0, %v4565
  %v4567 = vpop.f32.mrf.mxu0
  %4568 = vmatprep.mubr.f32.mxu0 0.0
  %4569 = vmatmul.mubr.f32.gmra.mxu0 %v1650
  %v4570 = vpop.f32.mrf.mxu0
  %v4571 = vadd.f32 0.0, %v4570
  %v4572 = vpop.f32.mrf.mxu0
  %4573 = vmatprep.mubr.f32.mxu0 0.0
  %4574 = vmatmul.mubr.f32.gmra.mxu0 %v1653
  %v4575 = vpop.f32.mrf.mxu0
  %v4576 = vadd.f32 0.0, %v4575
  %v4577 = vpop.f32.mrf.mxu0
  %4578 = vmatprep.mubr.f32.mxu0 0.0
  %4579 = vmatmul.mubr.f32.gmra.mxu0 %v1656
  %v4580 = vpop.f32.mrf.mxu0
  %v4581 = vadd.f32 0.0, %v4580
  %v4582 = vpop.f32.mrf.mxu0
  %4583 = vmatprep.mubr.f32.mxu0 0.0
  %4584 = vmatmul.mubr.f32.gmra.mxu0 %v1659
  %v4585 = vpop.f32.mrf.mxu0
  %v4586 = vadd.f32 0.0, %v4585
  %v4587 = vpop.f32.mrf.mxu0
  %4588 = vmatprep.mubr.f32.mxu0 0.0
  %4589 = vmatmul.mubr.f32.gmra.mxu0 %v1662
  %v4590 = vpop.f32.mrf.mxu0
  %v4591 = vadd.f32 0.0, %v4590
  %v4592 = vpop.f32.mrf.mxu0
  %4593 = vmatprep.mubr.f32.mxu0 0.0
  %4594 = vmatmul.mubr.f32.gmra.mxu0 %v1665
  %v4595 = vpop.f32.mrf.mxu0
  %v4596 = vadd.f32 0.0, %v4595
  %v4597 = vpop.f32.mrf.mxu0
  %4598 = vmatprep.mubr.f32.mxu0 0.0
  %4599 = vmatmul.mubr.f32.gmra.mxu0 %v1668
  %v4600 = vpop.f32.mrf.mxu0
  %v4601 = vadd.f32 0.0, %v4600
  %v4602 = vpop.f32.mrf.mxu0
  %4603 = vmatprep.mubr.f32.mxu0 0.0
  %4604 = vmatmul.mubr.f32.gmra.mxu0 %v1671
  %v4605 = vpop.f32.mrf.mxu0
  %v4606 = vadd.f32 0.0, %v4605
  %v4607 = vpop.f32.mrf.mxu0
  %4608 = vmatprep.mubr.f32.mxu0 0.0
  %4609 = vmatmul.mubr.f32.gmra.mxu0 %v1674
  %v4610 = vpop.f32.mrf.mxu0
  %v4611 = vadd.f32 0.0, %v4610
  %v4612 = vpop.f32.mrf.mxu0
  %4613 = vmatprep.mubr.f32.mxu0 0.0
  %4614 = vmatmul.mubr.f32.gmra.mxu0 %v1677
  %v4615 = vpop.f32.mrf.mxu0
  %v4616 = vadd.f32 0.0, %v4615
  %v4617 = vpop.f32.mrf.mxu0
  %4618 = vmatprep.mubr.f32.mxu0 0.0
  %4619 = vmatmul.mubr.f32.gmra.mxu0 %v1680
  %v4620 = vpop.f32.mrf.mxu0
  %v4621 = vadd.f32 0.0, %v4620
  %v4622 = vpop.f32.mrf.mxu0
  %4623 = vmatprep.mubr.f32.mxu0 0.0
  %4624 = vmatmul.mubr.f32.gmra.mxu0 %v1683
  %v4625 = vpop.f32.mrf.mxu0
  %v4626 = vadd.f32 0.0, %v4625
  %v4627 = vpop.f32.mrf.mxu0
  %4628 = vdwg.mxu0
  %v4629 = vadd.f32 %v4468, %v4551
  %v4630 = vadd.f32 %v4469, %v4556
  %v4631 = vadd.f32 %v4470, %v4561
  %v4632 = vadd.f32 %v4471, %v4566
  %v4633 = vadd.f32 %v4472, %v4571
  %v4634 = vadd.f32 %v4473, %v4576
  %v4635 = vadd.f32 %v4474, %v4581
  %v4636 = vadd.f32 %v4475, %v4586
  %v4637 = vadd.f32 %v4476, %v4591
  %v4638 = vadd.f32 %v4477, %v4596
  %v4639 = vadd.f32 %v4478, %v4601
  %v4640 = vadd.f32 %v4479, %v4606
  %v4641 = vadd.f32 %v4480, %v4611
  %v4642 = vadd.f32 %v4481, %v4616
  %v4643 = vadd.f32 %v4482, %v4621
  %v4644 = vadd.f32 %v4483, %v4626
  %4645 = vmatprep.subr.mxu0 0.0
  %4646 = vmatpush1.msra.mxu0 0.0
  %4647 = vmatprep.subr.mxu0 0.0
  %4648 = vmatpush1.msra.mxu0 0.0
  %4649 = vmatprep.subr.mxu0 0.0
  %4650 = vmatpush1.msra.mxu0 0.0
  %4651 = vmatprep.subr.mxu0 0.0
  %4652 = vmatpush1.msra.mxu0 0.0
  %4653 = vmatprep.subr.mxu0 0.0
  %4654 = vmatpush1.msra.mxu0 0.0
  %4655 = vmatprep.subr.mxu0 0.0
  %4656 = vmatpush1.msra.mxu0 0.0
  %4657 = vmatprep.subr.mxu0 0.0
  %4658 = vmatpush1.msra.mxu0 0.0
  %4659 = vmatprep.subr.mxu0 0.0
  %4660 = vmatpush1.msra.mxu0 0.0
  %4661 = vmatprep.subr.mxu0 0.0
  %4662 = vmatpush1.msra.mxu0 0.0
  %4663 = vmatprep.subr.mxu0 0.0
  %4664 = vmatpush1.msra.mxu0 0.0
  %4665 = vmatprep.subr.mxu0 0.0
  %4666 = vmatpush1.msra.mxu0 0.0
  %4667 = vmatprep.subr.mxu0 0.0
  %4668 = vmatpush1.msra.mxu0 0.0
  %4669 = vmatprep.subr.mxu0 0.0
  %4670 = vmatpush1.msra.mxu0 0.0
  %4671 = vmatprep.subr.mxu0 0.0
  %4672 = vmatpush1.msra.mxu0 0.0
  %4673 = vmatprep.subr.mxu0 0.0
  %4674 = vmatpush1.msra.mxu0 0.0
  %4675 = vmatprep.subr.mxu0 0.0
  %4676 = vmatpush1.msra.mxu0 %v1224
  %4677 = vmatprep.subr.mxu0 0.0
  %4678 = vmatpush2.msra.mxu0 0.0
  %4679 = vmatprep.subr.mxu0 0.0
  %4680 = vmatpush2.msra.mxu0 0.0
  %4681 = vmatprep.subr.mxu0 0.0
  %4682 = vmatpush2.msra.mxu0 0.0
  %4683 = vmatprep.subr.mxu0 0.0
  %4684 = vmatpush2.msra.mxu0 0.0
  %4685 = vmatprep.subr.mxu0 0.0
  %4686 = vmatpush2.msra.mxu0 0.0
  %4687 = vmatprep.subr.mxu0 0.0
  %4688 = vmatpush2.msra.mxu0 0.0
  %4689 = vmatprep.subr.mxu0 0.0
  %4690 = vmatpush2.msra.mxu0 0.0
  %4691 = vmatprep.subr.mxu0 0.0
  %4692 = vmatpush2.msra.mxu0 0.0
  %4693 = vmatprep.subr.mxu0 0.0
  %4694 = vmatpush2.msra.mxu0 0.0
  %4695 = vmatprep.subr.mxu0 0.0
  %4696 = vmatpush2.msra.mxu0 0.0
  %4697 = vmatprep.subr.mxu0 0.0
  %4698 = vmatpush2.msra.mxu0 0.0
  %4699 = vmatprep.subr.mxu0 0.0
  %4700 = vmatpush2.msra.mxu0 0.0
  %4701 = vmatprep.subr.mxu0 0.0
  %4702 = vmatpush2.msra.mxu0 0.0
  %4703 = vmatprep.subr.mxu0 0.0
  %4704 = vmatpush2.msra.mxu0 0.0
  %4705 = vmatprep.subr.mxu0 0.0
  %4706 = vmatpush2.msra.mxu0 0.0
  %4707 = vmatprep.subr.mxu0 0.0
  %4708 = vmatpush2.msra.mxu0 0.0
  %4709 = vmatprep.mubr.f32.mxu0 0.0
  %4710 = vmatmul.mubr.f32.gmra.mxu0 %v1868
  %v4711 = vpop.f32.mrf.mxu0
  %v4712 = vadd.f32 0.0, %v4711
  %v4713 = vpop.f32.mrf.mxu0
  %4714 = vmatprep.mubr.f32.mxu0 0.0
  %4715 = vmatmul.mubr.f32.gmra.mxu0 %v1871
  %v4716 = vpop.f32.mrf.mxu0
  %v4717 = vadd.f32 0.0, %v4716
  %v4718 = vpop.f32.mrf.mxu0
  %4719 = vmatprep.mubr.f32.mxu0 0.0
  %4720 = vmatmul.mubr.f32.gmra.mxu0 %v1874
  %v4721 = vpop.f32.mrf.mxu0
  %v4722 = vadd.f32 0.0, %v4721
  %v4723 = vpop.f32.mrf.mxu0
  %4724 = vmatprep.mubr.f32.mxu0 0.0
  %4725 = vmatmul.mubr.f32.gmra.mxu0 %v1877
  %v4726 = vpop.f32.mrf.mxu0
  %v4727 = vadd.f32 0.0, %v4726
  %v4728 = vpop.f32.mrf.mxu0
  %4729 = vmatprep.mubr.f32.mxu0 0.0
  %4730 = vmatmul.mubr.f32.gmra.mxu0 %v1880
  %v4731 = vpop.f32.mrf.mxu0
  %v4732 = vadd.f32 0.0, %v4731
  %v4733 = vpop.f32.mrf.mxu0
  %4734 = vmatprep.mubr.f32.mxu0 0.0
  %4735 = vmatmul.mubr.f32.gmra.mxu0 %v1883
  %v4736 = vpop.f32.mrf.mxu0
  %v4737 = vadd.f32 0.0, %v4736
  %v4738 = vpop.f32.mrf.mxu0
  %4739 = vmatprep.mubr.f32.mxu0 0.0
  %4740 = vmatmul.mubr.f32.gmra.mxu0 %v1886
  %v4741 = vpop.f32.mrf.mxu0
  %v4742 = vadd.f32 0.0, %v4741
  %v4743 = vpop.f32.mrf.mxu0
  %4744 = vmatprep.mubr.f32.mxu0 0.0
  %4745 = vmatmul.mubr.f32.gmra.mxu0 %v1889
  %v4746 = vpop.f32.mrf.mxu0
  %v4747 = vadd.f32 0.0, %v4746
  %v4748 = vpop.f32.mrf.mxu0
  %4749 = vmatprep.mubr.f32.mxu0 0.0
  %4750 = vmatmul.mubr.f32.gmra.mxu0 %v1892
  %v4751 = vpop.f32.mrf.mxu0
  %v4752 = vadd.f32 0.0, %v4751
  %v4753 = vpop.f32.mrf.mxu0
  %4754 = vmatprep.mubr.f32.mxu0 0.0
  %4755 = vmatmul.mubr.f32.gmra.mxu0 %v1895
  %v4756 = vpop.f32.mrf.mxu0
  %v4757 = vadd.f32 0.0, %v4756
  %v4758 = vpop.f32.mrf.mxu0
  %4759 = vmatprep.mubr.f32.mxu0 0.0
  %4760 = vmatmul.mubr.f32.gmra.mxu0 %v1898
  %v4761 = vpop.f32.mrf.mxu0
  %v4762 = vadd.f32 0.0, %v4761
  %v4763 = vpop.f32.mrf.mxu0
  %4764 = vmatprep.mubr.f32.mxu0 0.0
  %4765 = vmatmul.mubr.f32.gmra.mxu0 %v1901
  %v4766 = vpop.f32.mrf.mxu0
  %v4767 = vadd.f32 0.0, %v4766
  %v4768 = vpop.f32.mrf.mxu0
  %4769 = vmatprep.mubr.f32.mxu0 0.0
  %4770 = vmatmul.mubr.f32.gmra.mxu0 %v1904
  %v4771 = vpop.f32.mrf.mxu0
  %v4772 = vadd.f32 0.0, %v4771
  %v4773 = vpop.f32.mrf.mxu0
  %4774 = vmatprep.mubr.f32.mxu0 0.0
  %4775 = vmatmul.mubr.f32.gmra.mxu0 %v1907
  %v4776 = vpop.f32.mrf.mxu0
  %v4777 = vadd.f32 0.0, %v4776
  %v4778 = vpop.f32.mrf.mxu0
  %4779 = vmatprep.mubr.f32.mxu0 0.0
  %4780 = vmatmul.mubr.f32.gmra.mxu0 %v1910
  %v4781 = vpop.f32.mrf.mxu0
  %v4782 = vadd.f32 0.0, %v4781
  %v4783 = vpop.f32.mrf.mxu0
  %4784 = vmatprep.mubr.f32.mxu0 0.0
  %4785 = vmatmul.mubr.f32.gmra.mxu0 %v1913
  %v4786 = vpop.f32.mrf.mxu0
  %v4787 = vadd.f32 0.0, %v4786
  %v4788 = vpop.f32.mrf.mxu0
  %4789 = vdwg.mxu0
  %v4790 = vadd.f32 %v4629, %v4712
  %v4791 = vadd.f32 %v4630, %v4717
  %v4792 = vadd.f32 %v4631, %v4722
  %v4793 = vadd.f32 %v4632, %v4727
  %v4794 = vadd.f32 %v4633, %v4732
  %v4795 = vadd.f32 %v4634, %v4737
  %v4796 = vadd.f32 %v4635, %v4742
  %v4797 = vadd.f32 %v4636, %v4747
  %v4798 = vadd.f32 %v4637, %v4752
  %v4799 = vadd.f32 %v4638, %v4757
  %v4800 = vadd.f32 %v4639, %v4762
  %v4801 = vadd.f32 %v4640, %v4767
  %v4802 = vadd.f32 %v4641, %v4772
  %v4803 = vadd.f32 %v4642, %v4777
  %v4804 = vadd.f32 %v4643, %v4782
  %v4805 = vadd.f32 %v4644, %v4787
  %s4806 = scalar_lea.vmem %s2, 16
  %v4807 = vld [vmem:[%s4806] sm:$0xff]
  %v4808 = vld [vmem:[%s4806 + $0x10] sm:$0xff]
  %v4809 = vld [vmem:[%s4806 + $0x20] sm:$0xff]
  %v4810 = vld [vmem:[%s4806 + $0x30] sm:$0xff]
  %v4811 = vld [vmem:[%s4806 + $0x40] sm:$0xff]
  %v4812 = vld [vmem:[%s4806 + $0x50] sm:$0xff]
  %v4813 = vld [vmem:[%s4806 + $0x60] sm:$0xff]
  %v4814 = vld [vmem:[%s4806 + $0x70] sm:$0xff]
  %v4815 = vld [vmem:[%s4806 + $0x90] sm:$0xff]
  %v4816 = vld [vmem:[%s4806 + $0xa0] sm:$0xff]
  %v4817 = vld [vmem:[%s4806 + $0xb0] sm:$0xff]
  %v4818 = vld [vmem:[%s4806 + $0xc0] sm:$0xff]
  %v4819 = vld [vmem:[%s4806 + $0xd0] sm:$0xff]
  %v4820 = vld [vmem:[%s4806 + $0xe0] sm:$0xff]
  %v4821 = vld [vmem:[%s4806 + $0xf0] sm:$0xff]
  %v4822 = vld [vmem:[%s4806 + $0x100] sm:$0xff]
  %v4824 = vsel %vm73, %v4807, 0
  %v4827 = vsel %vm73, %v4808, 0
  %v4830 = vsel %vm73, %v4809, 0
  %v4833 = vsel %vm73, %v4810, 0
  %v4836 = vsel %vm73, %v4811, 0
  %v4839 = vsel %vm73, %v4812, 0
  %v4842 = vsel %vm73, %v4813, 0
  %v4845 = vsel %vm73, %v4814, 0
  %v4848 = vsel %vm73, %v4815, 0
  %v4851 = vsel %vm73, %v4816, 0
  %v4854 = vsel %vm73, %v4817, 0
  %v4857 = vsel %vm73, %v4818, 0
  %v4860 = vsel %vm73, %v4819, 0
  %v4863 = vsel %vm73, %v4820, 0
  %v4866 = vsel %vm73, %v4821, 0
  %v4869 = vsel %vm73, %v4822, 0
  %4871 = vmatprep.subr.mxu0 0.0
  %4872 = vmatpush1.msra.mxu0 0.0
  %4873 = vmatprep.subr.mxu0 0.0
  %4874 = vmatpush1.msra.mxu0 0.0
  %4875 = vmatprep.subr.mxu0 0.0
  %4876 = vmatpush1.msra.mxu0 0.0
  %4877 = vmatprep.subr.mxu0 0.0
  %4878 = vmatpush1.msra.mxu0 0.0
  %4879 = vmatprep.subr.mxu0 0.0
  %4880 = vmatpush1.msra.mxu0 0.0
  %4881 = vmatprep.subr.mxu0 0.0
  %4882 = vmatpush1.msra.mxu0 0.0
  %4883 = vmatprep.subr.mxu0 0.0
  %4884 = vmatpush1.msra.mxu0 0.0
  %4885 = vmatprep.subr.mxu0 0.0
  %4886 = vmatpush1.msra.mxu0 0.0
  %4887 = vmatprep.subr.mxu0 0.0
  %4888 = vmatpush1.msra.mxu0 0.0
  %4889 = vmatprep.subr.mxu0 0.0
  %4890 = vmatpush1.msra.mxu0 0.0
  %4891 = vmatprep.subr.mxu0 0.0
  %4892 = vmatpush1.msra.mxu0 0.0
  %4893 = vmatprep.subr.mxu0 0.0
  %4894 = vmatpush1.msra.mxu0 0.0
  %4895 = vmatprep.subr.mxu0 0.0
  %4896 = vmatpush1.msra.mxu0 0.0
  %4897 = vmatprep.subr.mxu0 0.0
  %4898 = vmatpush1.msra.mxu0 0.0
  %4899 = vmatprep.subr.mxu0 0.0
  %4900 = vmatpush1.msra.mxu0 0.0
  %4901 = vmatprep.subr.mxu0 0.0
  %4902 = vmatpush1.msra.mxu0 %v1455
  %4903 = vmatprep.subr.mxu0 0.0
  %4904 = vmatpush2.msra.mxu0 0.0
  %4905 = vmatprep.subr.mxu0 0.0
  %4906 = vmatpush2.msra.mxu0 0.0
  %4907 = vmatprep.subr.mxu0 0.0
  %4908 = vmatpush2.msra.mxu0 0.0
  %4909 = vmatprep.subr.mxu0 0.0
  %4910 = vmatpush2.msra.mxu0 0.0
  %4911 = vmatprep.subr.mxu0 0.0
  %4912 = vmatpush2.msra.mxu0 0.0
  %4913 = vmatprep.subr.mxu0 0.0
  %4914 = vmatpush2.msra.mxu0 0.0
  %4915 = vmatprep.subr.mxu0 0.0
  %4916 = vmatpush2.msra.mxu0 0.0
  %4917 = vmatprep.subr.mxu0 0.0
  %4918 = vmatpush2.msra.mxu0 0.0
  %4919 = vmatprep.subr.mxu0 0.0
  %4920 = vmatpush2.msra.mxu0 0.0
  %4921 = vmatprep.subr.mxu0 0.0
  %4922 = vmatpush2.msra.mxu0 0.0
  %4923 = vmatprep.subr.mxu0 0.0
  %4924 = vmatpush2.msra.mxu0 0.0
  %4925 = vmatprep.subr.mxu0 0.0
  %4926 = vmatpush2.msra.mxu0 0.0
  %4927 = vmatprep.subr.mxu0 0.0
  %4928 = vmatpush2.msra.mxu0 0.0
  %4929 = vmatprep.subr.mxu0 0.0
  %4930 = vmatpush2.msra.mxu0 0.0
  %4931 = vmatprep.subr.mxu0 0.0
  %4932 = vmatpush2.msra.mxu0 0.0
  %4933 = vmatprep.subr.mxu0 0.0
  %4934 = vmatpush2.msra.mxu0 0.0
  %4935 = vmatprep.mubr.f32.mxu0 0.0
  %4936 = vmatmul.mubr.f32.gmra.mxu0 %v4824
  %v4937 = vpop.f32.mrf.mxu0
  %v4938 = vadd.f32 0.0, %v4937
  %v4939 = vpop.f32.mrf.mxu0
  %4940 = vmatprep.mubr.f32.mxu0 0.0
  %4941 = vmatmul.mubr.f32.gmra.mxu0 %v4827
  %v4942 = vpop.f32.mrf.mxu0
  %v4943 = vadd.f32 0.0, %v4942
  %v4944 = vpop.f32.mrf.mxu0
  %4945 = vmatprep.mubr.f32.mxu0 0.0
  %4946 = vmatmul.mubr.f32.gmra.mxu0 %v4830
  %v4947 = vpop.f32.mrf.mxu0
  %v4948 = vadd.f32 0.0, %v4947
  %v4949 = vpop.f32.mrf.mxu0
  %4950 = vmatprep.mubr.f32.mxu0 0.0
  %4951 = vmatmul.mubr.f32.gmra.mxu0 %v4833
  %v4952 = vpop.f32.mrf.mxu0
  %v4953 = vadd.f32 0.0, %v4952
  %v4954 = vpop.f32.mrf.mxu0
  %4955 = vmatprep.mubr.f32.mxu0 0.0
  %4956 = vmatmul.mubr.f32.gmra.mxu0 %v4836
  %v4957 = vpop.f32.mrf.mxu0
  %v4958 = vadd.f32 0.0, %v4957
  %v4959 = vpop.f32.mrf.mxu0
  %4960 = vmatprep.mubr.f32.mxu0 0.0
  %4961 = vmatmul.mubr.f32.gmra.mxu0 %v4839
  %v4962 = vpop.f32.mrf.mxu0
  %v4963 = vadd.f32 0.0, %v4962
  %v4964 = vpop.f32.mrf.mxu0
  %4965 = vmatprep.mubr.f32.mxu0 0.0
  %4966 = vmatmul.mubr.f32.gmra.mxu0 %v4842
  %v4967 = vpop.f32.mrf.mxu0
  %v4968 = vadd.f32 0.0, %v4967
  %v4969 = vpop.f32.mrf.mxu0
  %4970 = vmatprep.mubr.f32.mxu0 0.0
  %4971 = vmatmul.mubr.f32.gmra.mxu0 %v4845
  %v4972 = vpop.f32.mrf.mxu0
  %v4973 = vadd.f32 0.0, %v4972
  %v4974 = vpop.f32.mrf.mxu0
  %4975 = vmatprep.mubr.f32.mxu0 0.0
  %4976 = vmatmul.mubr.f32.gmra.mxu0 %v4848
  %v4977 = vpop.f32.mrf.mxu0
  %v4978 = vadd.f32 0.0, %v4977
  %v4979 = vpop.f32.mrf.mxu0
  %4980 = vmatprep.mubr.f32.mxu0 0.0
  %4981 = vmatmul.mubr.f32.gmra.mxu0 %v4851
  %v4982 = vpop.f32.mrf.mxu0
  %v4983 = vadd.f32 0.0, %v4982
  %v4984 = vpop.f32.mrf.mxu0
  %4985 = vmatprep.mubr.f32.mxu0 0.0
  %4986 = vmatmul.mubr.f32.gmra.mxu0 %v4854
  %v4987 = vpop.f32.mrf.mxu0
  %v4988 = vadd.f32 0.0, %v4987
  %v4989 = vpop.f32.mrf.mxu0
  %4990 = vmatprep.mubr.f32.mxu0 0.0
  %4991 = vmatmul.mubr.f32.gmra.mxu0 %v4857
  %v4992 = vpop.f32.mrf.mxu0
  %v4993 = vadd.f32 0.0, %v4992
  %v4994 = vpop.f32.mrf.mxu0
  %4995 = vmatprep.mubr.f32.mxu0 0.0
  %4996 = vmatmul.mubr.f32.gmra.mxu0 %v4860
  %v4997 = vpop.f32.mrf.mxu0
  %v4998 = vadd.f32 0.0, %v4997
  %v4999 = vpop.f32.mrf.mxu0
  %5000 = vmatprep.mubr.f32.mxu0 0.0
  %5001 = vmatmul.mubr.f32.gmra.mxu0 %v4863
  %v5002 = vpop.f32.mrf.mxu0
  %v5003 = vadd.f32 0.0, %v5002
  %v5004 = vpop.f32.mrf.mxu0
  %5005 = vmatprep.mubr.f32.mxu0 0.0
  %5006 = vmatmul.mubr.f32.gmra.mxu0 %v4866
  %v5007 = vpop.f32.mrf.mxu0
  %v5008 = vadd.f32 0.0, %v5007
  %v5009 = vpop.f32.mrf.mxu0
  %5010 = vmatprep.mubr.f32.mxu0 0.0
  %5011 = vmatmul.mubr.f32.gmra.mxu0 %v4869
  %v5012 = vpop.f32.mrf.mxu0
  %v5013 = vadd.f32 0.0, %v5012
  %v5014 = vpop.f32.mrf.mxu0
  %5015 = vdwg.mxu0
  %v5016 = vadd.f32 %v4790, %v4938
  %v5017 = vadd.f32 %v4791, %v4943
  %v5018 = vadd.f32 %v4792, %v4948
  %v5019 = vadd.f32 %v4793, %v4953
  %v5020 = vadd.f32 %v4794, %v4958
  %v5021 = vadd.f32 %v4795, %v4963
  %v5022 = vadd.f32 %v4796, %v4968
  %v5023 = vadd.f32 %v4797, %v4973
  %v5024 = vadd.f32 %v4798, %v4978
  %v5025 = vadd.f32 %v4799, %v4983
  %v5026 = vadd.f32 %v4800, %v4988
  %v5027 = vadd.f32 %v4801, %v4993
  %v5028 = vadd.f32 %v4802, %v4998
  %v5029 = vadd.f32 %v4803, %v5003
  %v5030 = vadd.f32 %v4804, %v5008
  %v5031 = vadd.f32 %v4805, %v5013
  %s5032 = scalar_lea.vmem %s3, 16
  %v5033 = vld [vmem:[%s5032] sm:$0xff]
  %v5034 = vld [vmem:[%s5032 + $0x10] sm:$0xff]
  %v5035 = vld [vmem:[%s5032 + $0x20] sm:$0xff]
  %v5036 = vld [vmem:[%s5032 + $0x30] sm:$0xff]
  %v5037 = vld [vmem:[%s5032 + $0x40] sm:$0xff]
  %v5038 = vld [vmem:[%s5032 + $0x50] sm:$0xff]
  %v5039 = vld [vmem:[%s5032 + $0x60] sm:$0xff]
  %v5040 = vld [vmem:[%s5032 + $0x70] sm:$0xff]
  %v5041 = vld [vmem:[%s5032 + $0x90] sm:$0xff]
  %v5042 = vld [vmem:[%s5032 + $0xa0] sm:$0xff]
  %v5043 = vld [vmem:[%s5032 + $0xb0] sm:$0xff]
  %v5044 = vld [vmem:[%s5032 + $0xc0] sm:$0xff]
  %v5045 = vld [vmem:[%s5032 + $0xd0] sm:$0xff]
  %v5046 = vld [vmem:[%s5032 + $0xe0] sm:$0xff]
  %v5047 = vld [vmem:[%s5032 + $0xf0] sm:$0xff]
  %v5048 = vld [vmem:[%s5032 + $0x100] sm:$0xff]
  %v5050 = vsel %vm73, %v5033, 0
  %v5053 = vsel %vm73, %v5034, 0
  %v5056 = vsel %vm73, %v5035, 0
  %v5059 = vsel %vm73, %v5036, 0
  %v5062 = vsel %vm73, %v5037, 0
  %v5065 = vsel %vm73, %v5038, 0
  %v5068 = vsel %vm73, %v5039, 0
  %v5071 = vsel %vm73, %v5040, 0
  %v5074 = vsel %vm73, %v5041, 0
  %v5077 = vsel %vm73, %v5042, 0
  %v5080 = vsel %vm73, %v5043, 0
  %v5083 = vsel %vm73, %v5044, 0
  %v5086 = vsel %vm73, %v5045, 0
  %v5089 = vsel %vm73, %v5046, 0
  %v5092 = vsel %vm73, %v5047, 0
  %v5095 = vsel %vm73, %v5048, 0
  %5097 = vmatprep.subr.mxu0 0.0
  %5098 = vmatpush1.msra.mxu0 0.0
  %5099 = vmatprep.subr.mxu0 0.0
  %5100 = vmatpush1.msra.mxu0 0.0
  %5101 = vmatprep.subr.mxu0 0.0
  %5102 = vmatpush1.msra.mxu0 0.0
  %5103 = vmatprep.subr.mxu0 0.0
  %5104 = vmatpush1.msra.mxu0 0.0
  %5105 = vmatprep.subr.mxu0 0.0
  %5106 = vmatpush1.msra.mxu0 0.0
  %5107 = vmatprep.subr.mxu0 0.0
  %5108 = vmatpush1.msra.mxu0 0.0
  %5109 = vmatprep.subr.mxu0 0.0
  %5110 = vmatpush1.msra.mxu0 0.0
  %5111 = vmatprep.subr.mxu0 0.0
  %5112 = vmatpush1.msra.mxu0 0.0
  %5113 = vmatprep.subr.mxu0 0.0
  %5114 = vmatpush1.msra.mxu0 0.0
  %5115 = vmatprep.subr.mxu0 0.0
  %5116 = vmatpush1.msra.mxu0 0.0
  %5117 = vmatprep.subr.mxu0 0.0
  %5118 = vmatpush1.msra.mxu0 0.0
  %5119 = vmatprep.subr.mxu0 0.0
  %5120 = vmatpush1.msra.mxu0 0.0
  %5121 = vmatprep.subr.mxu0 0.0
  %5122 = vmatpush1.msra.mxu0 0.0
  %5123 = vmatprep.subr.mxu0 0.0
  %5124 = vmatpush1.msra.mxu0 0.0
  %5125 = vmatprep.subr.mxu0 0.0
  %5126 = vmatpush1.msra.mxu0 0.0
  %5127 = vmatprep.subr.mxu0 0.0
  %5128 = vmatpush1.msra.mxu0 %v1686
  %5129 = vmatprep.subr.mxu0 0.0
  %5130 = vmatpush2.msra.mxu0 0.0
  %5131 = vmatprep.subr.mxu0 0.0
  %5132 = vmatpush2.msra.mxu0 0.0
  %5133 = vmatprep.subr.mxu0 0.0
  %5134 = vmatpush2.msra.mxu0 0.0
  %5135 = vmatprep.subr.mxu0 0.0
  %5136 = vmatpush2.msra.mxu0 0.0
  %5137 = vmatprep.subr.mxu0 0.0
  %5138 = vmatpush2.msra.mxu0 0.0
  %5139 = vmatprep.subr.mxu0 0.0
  %5140 = vmatpush2.msra.mxu0 0.0
  %5141 = vmatprep.subr.mxu0 0.0
  %5142 = vmatpush2.msra.mxu0 0.0
  %5143 = vmatprep.subr.mxu0 0.0
  %5144 = vmatpush2.msra.mxu0 0.0
  %5145 = vmatprep.subr.mxu0 0.0
  %5146 = vmatpush2.msra.mxu0 0.0
  %5147 = vmatprep.subr.mxu0 0.0
  %5148 = vmatpush2.msra.mxu0 0.0
  %5149 = vmatprep.subr.mxu0 0.0
  %5150 = vmatpush2.msra.mxu0 0.0
  %5151 = vmatprep.subr.mxu0 0.0
  %5152 = vmatpush2.msra.mxu0 0.0
  %5153 = vmatprep.subr.mxu0 0.0
  %5154 = vmatpush2.msra.mxu0 0.0
  %5155 = vmatprep.subr.mxu0 0.0
  %5156 = vmatpush2.msra.mxu0 0.0
  %5157 = vmatprep.subr.mxu0 0.0
  %5158 = vmatpush2.msra.mxu0 0.0
  %5159 = vmatprep.subr.mxu0 0.0
  %5160 = vmatpush2.msra.mxu0 0.0
  %5161 = vmatprep.mubr.f32.mxu0 0.0
  %5162 = vmatmul.mubr.f32.gmra.mxu0 %v5050
  %v5163 = vpop.f32.mrf.mxu0
  %v5164 = vadd.f32 0.0, %v5163
  %v5165 = vpop.f32.mrf.mxu0
  %5166 = vmatprep.mubr.f32.mxu0 0.0
  %5167 = vmatmul.mubr.f32.gmra.mxu0 %v5053
  %v5168 = vpop.f32.mrf.mxu0
  %v5169 = vadd.f32 0.0, %v5168
  %v5170 = vpop.f32.mrf.mxu0
  %5171 = vmatprep.mubr.f32.mxu0 0.0
  %5172 = vmatmul.mubr.f32.gmra.mxu0 %v5056
  %v5173 = vpop.f32.mrf.mxu0
  %v5174 = vadd.f32 0.0, %v5173
  %v5175 = vpop.f32.mrf.mxu0
  %5176 = vmatprep.mubr.f32.mxu0 0.0
  %5177 = vmatmul.mubr.f32.gmra.mxu0 %v5059
  %v5178 = vpop.f32.mrf.mxu0
  %v5179 = vadd.f32 0.0, %v5178
  %v5180 = vpop.f32.mrf.mxu0
  %5181 = vmatprep.mubr.f32.mxu0 0.0
  %5182 = vmatmul.mubr.f32.gmra.mxu0 %v5062
  %v5183 = vpop.f32.mrf.mxu0
  %v5184 = vadd.f32 0.0, %v5183
  %v5185 = vpop.f32.mrf.mxu0
  %5186 = vmatprep.mubr.f32.mxu0 0.0
  %5187 = vmatmul.mubr.f32.gmra.mxu0 %v5065
  %v5188 = vpop.f32.mrf.mxu0
  %v5189 = vadd.f32 0.0, %v5188
  %v5190 = vpop.f32.mrf.mxu0
  %5191 = vmatprep.mubr.f32.mxu0 0.0
  %5192 = vmatmul.mubr.f32.gmra.mxu0 %v5068
  %v5193 = vpop.f32.mrf.mxu0
  %v5194 = vadd.f32 0.0, %v5193
  %v5195 = vpop.f32.mrf.mxu0
  %5196 = vmatprep.mubr.f32.mxu0 0.0
  %5197 = vmatmul.mubr.f32.gmra.mxu0 %v5071
  %v5198 = vpop.f32.mrf.mxu0
  %v5199 = vadd.f32 0.0, %v5198
  %v5200 = vpop.f32.mrf.mxu0
  %5201 = vmatprep.mubr.f32.mxu0 0.0
  %5202 = vmatmul.mubr.f32.gmra.mxu0 %v5074
  %v5203 = vpop.f32.mrf.mxu0
  %v5204 = vadd.f32 0.0, %v5203
  %v5205 = vpop.f32.mrf.mxu0
  %5206 = vmatprep.mubr.f32.mxu0 0.0
  %5207 = vmatmul.mubr.f32.gmra.mxu0 %v5077
  %v5208 = vpop.f32.mrf.mxu0
  %v5209 = vadd.f32 0.0, %v5208
  %v5210 = vpop.f32.mrf.mxu0
  %5211 = vmatprep.mubr.f32.mxu0 0.0
  %5212 = vmatmul.mubr.f32.gmra.mxu0 %v5080
  %v5213 = vpop.f32.mrf.mxu0
  %v5214 = vadd.f32 0.0, %v5213
  %v5215 = vpop.f32.mrf.mxu0
  %5216 = vmatprep.mubr.f32.mxu0 0.0
  %5217 = vmatmul.mubr.f32.gmra.mxu0 %v5083
  %v5218 = vpop.f32.mrf.mxu0
  %v5219 = vadd.f32 0.0, %v5218
  %v5220 = vpop.f32.mrf.mxu0
  %5221 = vmatprep.mubr.f32.mxu0 0.0
  %5222 = vmatmul.mubr.f32.gmra.mxu0 %v5086
  %v5223 = vpop.f32.mrf.mxu0
  %v5224 = vadd.f32 0.0, %v5223
  %v5225 = vpop.f32.mrf.mxu0
  %5226 = vmatprep.mubr.f32.mxu0 0.0
  %5227 = vmatmul.mubr.f32.gmra.mxu0 %v5089
  %v5228 = vpop.f32.mrf.mxu0
  %v5229 = vadd.f32 0.0, %v5228
  %v5230 = vpop.f32.mrf.mxu0
  %5231 = vmatprep.mubr.f32.mxu0 0.0
  %5232 = vmatmul.mubr.f32.gmra.mxu0 %v5092
  %v5233 = vpop.f32.mrf.mxu0
  %v5234 = vadd.f32 0.0, %v5233
  %v5235 = vpop.f32.mrf.mxu0
  %5236 = vmatprep.mubr.f32.mxu0 0.0
  %5237 = vmatmul.mubr.f32.gmra.mxu0 %v5095
  %v5238 = vpop.f32.mrf.mxu0
  %v5239 = vadd.f32 0.0, %v5238
  %v5240 = vpop.f32.mrf.mxu0
  %5241 = vdwg.mxu0
  %v5242 = vadd.f32 %v5016, %v5164
  %v5243 = vadd.f32 %v5017, %v5169
  %v5244 = vadd.f32 %v5018, %v5174
  %v5245 = vadd.f32 %v5019, %v5179
  %v5246 = vadd.f32 %v5020, %v5184
  %v5247 = vadd.f32 %v5021, %v5189
  %v5248 = vadd.f32 %v5022, %v5194
  %v5249 = vadd.f32 %v5023, %v5199
  %v5250 = vadd.f32 %v5024, %v5204
  %v5251 = vadd.f32 %v5025, %v5209
  %v5252 = vadd.f32 %v5026, %v5214
  %v5253 = vadd.f32 %v5027, %v5219
  %v5254 = vadd.f32 %v5028, %v5224
  %v5255 = vadd.f32 %v5029, %v5229
  %v5256 = vadd.f32 %v5030, %v5234
  %v5257 = vadd.f32 %v5031, %v5239
  %v5258 = vld [vmem:[%s4806 + $0x1] sm:$0xff]
  %v5259 = vld [vmem:[%s4806 + $0x11] sm:$0xff]
  %v5260 = vld [vmem:[%s4806 + $0x21] sm:$0xff]
  %v5261 = vld [vmem:[%s4806 + $0x31] sm:$0xff]
  %v5262 = vld [vmem:[%s4806 + $0x41] sm:$0xff]
  %v5263 = vld [vmem:[%s4806 + $0x51] sm:$0xff]
  %v5264 = vld [vmem:[%s4806 + $0x61] sm:$0xff]
  %v5265 = vld [vmem:[%s4806 + $0x71] sm:$0xff]
  %v5266 = vld [vmem:[%s4806 + $0x91] sm:$0xff]
  %v5267 = vld [vmem:[%s4806 + $0xa1] sm:$0xff]
  %v5268 = vld [vmem:[%s4806 + $0xb1] sm:$0xff]
  %v5269 = vld [vmem:[%s4806 + $0xc1] sm:$0xff]
  %v5270 = vld [vmem:[%s4806 + $0xd1] sm:$0xff]
  %v5271 = vld [vmem:[%s4806 + $0xe1] sm:$0xff]
  %v5272 = vld [vmem:[%s4806 + $0xf1] sm:$0xff]
  %v5273 = vld [vmem:[%s4806 + $0x101] sm:$0xff]
  %v5275 = vsel %vm73, %v5258, 0
  %v5278 = vsel %vm73, %v5259, 0
  %v5281 = vsel %vm73, %v5260, 0
  %v5284 = vsel %vm73, %v5261, 0
  %v5287 = vsel %vm73, %v5262, 0
  %v5290 = vsel %vm73, %v5263, 0
  %v5293 = vsel %vm73, %v5264, 0
  %v5296 = vsel %vm73, %v5265, 0
  %v5299 = vsel %vm73, %v5266, 0
  %v5302 = vsel %vm73, %v5267, 0
  %v5305 = vsel %vm73, %v5268, 0
  %v5308 = vsel %vm73, %v5269, 0
  %v5311 = vsel %vm73, %v5270, 0
  %v5314 = vsel %vm73, %v5271, 0
  %v5317 = vsel %vm73, %v5272, 0
  %v5320 = vsel %vm73, %v5273, 0
  %5322 = vmatprep.subr.mxu0 0.0
  %5323 = vmatpush1.msra.mxu0 0.0
  %5324 = vmatprep.subr.mxu0 0.0
  %5325 = vmatpush1.msra.mxu0 0.0
  %5326 = vmatprep.subr.mxu0 0.0
  %5327 = vmatpush1.msra.mxu0 0.0
  %5328 = vmatprep.subr.mxu0 0.0
  %5329 = vmatpush1.msra.mxu0 0.0
  %5330 = vmatprep.subr.mxu0 0.0
  %5331 = vmatpush1.msra.mxu0 0.0
  %5332 = vmatprep.subr.mxu0 0.0
  %5333 = vmatpush1.msra.mxu0 0.0
  %5334 = vmatprep.subr.mxu0 0.0
  %5335 = vmatpush1.msra.mxu0 0.0
  %5336 = vmatprep.subr.mxu0 0.0
  %5337 = vmatpush1.msra.mxu0 0.0
  %5338 = vmatprep.subr.mxu0 0.0
  %5339 = vmatpush1.msra.mxu0 0.0
  %5340 = vmatprep.subr.mxu0 0.0
  %5341 = vmatpush1.msra.mxu0 0.0
  %5342 = vmatprep.subr.mxu0 0.0
  %5343 = vmatpush1.msra.mxu0 0.0
  %5344 = vmatprep.subr.mxu0 0.0
  %5345 = vmatpush1.msra.mxu0 0.0
  %5346 = vmatprep.subr.mxu0 0.0
  %5347 = vmatpush1.msra.mxu0 0.0
  %5348 = vmatprep.subr.mxu0 0.0
  %5349 = vmatpush1.msra.mxu0 0.0
  %5350 = vmatprep.subr.mxu0 0.0
  %5351 = vmatpush1.msra.mxu0 0.0
  %5352 = vmatprep.subr.mxu0 0.0
  %5353 = vmatpush1.msra.mxu0 %v1916
  %5354 = vmatprep.subr.mxu0 0.0
  %5355 = vmatpush2.msra.mxu0 0.0
  %5356 = vmatprep.subr.mxu0 0.0
  %5357 = vmatpush2.msra.mxu0 0.0
  %5358 = vmatprep.subr.mxu0 0.0
  %5359 = vmatpush2.msra.mxu0 0.0
  %5360 = vmatprep.subr.mxu0 0.0
  %5361 = vmatpush2.msra.mxu0 0.0
  %5362 = vmatprep.subr.mxu0 0.0
  %5363 = vmatpush2.msra.mxu0 0.0
  %5364 = vmatprep.subr.mxu0 0.0
  %5365 = vmatpush2.msra.mxu0 0.0
  %5366 = vmatprep.subr.mxu0 0.0
  %5367 = vmatpush2.msra.mxu0 0.0
  %5368 = vmatprep.subr.mxu0 0.0
  %5369 = vmatpush2.msra.mxu0 0.0
  %5370 = vmatprep.subr.mxu0 0.0
  %5371 = vmatpush2.msra.mxu0 0.0
  %5372 = vmatprep.subr.mxu0 0.0
  %5373 = vmatpush2.msra.mxu0 0.0
  %5374 = vmatprep.subr.mxu0 0.0
  %5375 = vmatpush2.msra.mxu0 0.0
  %5376 = vmatprep.subr.mxu0 0.0
  %5377 = vmatpush2.msra.mxu0 0.0
  %5378 = vmatprep.subr.mxu0 0.0
  %5379 = vmatpush2.msra.mxu0 0.0
  %5380 = vmatprep.subr.mxu0 0.0
  %5381 = vmatpush2.msra.mxu0 0.0
  %5382 = vmatprep.subr.mxu0 0.0
  %5383 = vmatpush2.msra.mxu0 0.0
  %5384 = vmatprep.subr.mxu0 0.0
  %5385 = vmatpush2.msra.mxu0 0.0
  %5386 = vmatprep.mubr.f32.mxu0 0.0
  %5387 = vmatmul.mubr.f32.gmra.mxu0 %v5275
  %v5388 = vpop.f32.mrf.mxu0
  %v5389 = vadd.f32 0.0, %v5388
  %v5390 = vpop.f32.mrf.mxu0
  %5391 = vmatprep.mubr.f32.mxu0 0.0
  %5392 = vmatmul.mubr.f32.gmra.mxu0 %v5278
  %v5393 = vpop.f32.mrf.mxu0
  %v5394 = vadd.f32 0.0, %v5393
  %v5395 = vpop.f32.mrf.mxu0
  %5396 = vmatprep.mubr.f32.mxu0 0.0
  %5397 = vmatmul.mubr.f32.gmra.mxu0 %v5281
  %v5398 = vpop.f32.mrf.mxu0
  %v5399 = vadd.f32 0.0, %v5398
  %v5400 = vpop.f32.mrf.mxu0
  %5401 = vmatprep.mubr.f32.mxu0 0.0
  %5402 = vmatmul.mubr.f32.gmra.mxu0 %v5284
  %v5403 = vpop.f32.mrf.mxu0
  %v5404 = vadd.f32 0.0, %v5403
  %v5405 = vpop.f32.mrf.mxu0
  %5406 = vmatprep.mubr.f32.mxu0 0.0
  %5407 = vmatmul.mubr.f32.gmra.mxu0 %v5287
  %v5408 = vpop.f32.mrf.mxu0
  %v5409 = vadd.f32 0.0, %v5408
  %v5410 = vpop.f32.mrf.mxu0
  %5411 = vmatprep.mubr.f32.mxu0 0.0
  %5412 = vmatmul.mubr.f32.gmra.mxu0 %v5290
  %v5413 = vpop.f32.mrf.mxu0
  %v5414 = vadd.f32 0.0, %v5413
  %v5415 = vpop.f32.mrf.mxu0
  %5416 = vmatprep.mubr.f32.mxu0 0.0
  %5417 = vmatmul.mubr.f32.gmra.mxu0 %v5293
  %v5418 = vpop.f32.mrf.mxu0
  %v5419 = vadd.f32 0.0, %v5418
  %v5420 = vpop.f32.mrf.mxu0
  %5421 = vmatprep.mubr.f32.mxu0 0.0
  %5422 = vmatmul.mubr.f32.gmra.mxu0 %v5296
  %v5423 = vpop.f32.mrf.mxu0
  %v5424 = vadd.f32 0.0, %v5423
  %v5425 = vpop.f32.mrf.mxu0
  %5426 = vmatprep.mubr.f32.mxu0 0.0
  %5427 = vmatmul.mubr.f32.gmra.mxu0 %v5299
  %v5428 = vpop.f32.mrf.mxu0
  %v5429 = vadd.f32 0.0, %v5428
  %v5430 = vpop.f32.mrf.mxu0
  %5431 = vmatprep.mubr.f32.mxu0 0.0
  %5432 = vmatmul.mubr.f32.gmra.mxu0 %v5302
  %v5433 = vpop.f32.mrf.mxu0
  %v5434 = vadd.f32 0.0, %v5433
  %v5435 = vpop.f32.mrf.mxu0
  %5436 = vmatprep.mubr.f32.mxu0 0.0
  %5437 = vmatmul.mubr.f32.gmra.mxu0 %v5305
  %v5438 = vpop.f32.mrf.mxu0
  %v5439 = vadd.f32 0.0, %v5438
  %v5440 = vpop.f32.mrf.mxu0
  %5441 = vmatprep.mubr.f32.mxu0 0.0
  %5442 = vmatmul.mubr.f32.gmra.mxu0 %v5308
  %v5443 = vpop.f32.mrf.mxu0
  %v5444 = vadd.f32 0.0, %v5443
  %v5445 = vpop.f32.mrf.mxu0
  %5446 = vmatprep.mubr.f32.mxu0 0.0
  %5447 = vmatmul.mubr.f32.gmra.mxu0 %v5311
  %v5448 = vpop.f32.mrf.mxu0
  %v5449 = vadd.f32 0.0, %v5448
  %v5450 = vpop.f32.mrf.mxu0
  %5451 = vmatprep.mubr.f32.mxu0 0.0
  %5452 = vmatmul.mubr.f32.gmra.mxu0 %v5314
  %v5453 = vpop.f32.mrf.mxu0
  %v5454 = vadd.f32 0.0, %v5453
  %v5455 = vpop.f32.mrf.mxu0
  %5456 = vmatprep.mubr.f32.mxu0 0.0
  %5457 = vmatmul.mubr.f32.gmra.mxu0 %v5317
  %v5458 = vpop.f32.mrf.mxu0
  %v5459 = vadd.f32 0.0, %v5458
  %v5460 = vpop.f32.mrf.mxu0
  %5461 = vmatprep.mubr.f32.mxu0 0.0
  %5462 = vmatmul.mubr.f32.gmra.mxu0 %v5320
  %v5463 = vpop.f32.mrf.mxu0
  %v5464 = vadd.f32 0.0, %v5463
  %v5465 = vpop.f32.mrf.mxu0
  %5466 = vdwg.mxu0
  %v5467 = vadd.f32 %v5242, %v5389
  %v5468 = vadd.f32 %v5243, %v5394
  %v5469 = vadd.f32 %v5244, %v5399
  %v5470 = vadd.f32 %v5245, %v5404
  %v5471 = vadd.f32 %v5246, %v5409
  %v5472 = vadd.f32 %v5247, %v5414
  %v5473 = vadd.f32 %v5248, %v5419
  %v5474 = vadd.f32 %v5249, %v5424
  %v5475 = vadd.f32 %v5250, %v5429
  %v5476 = vadd.f32 %v5251, %v5434
  %v5477 = vadd.f32 %v5252, %v5439
  %v5478 = vadd.f32 %v5253, %v5444
  %v5479 = vadd.f32 %v5254, %v5449
  %v5480 = vadd.f32 %v5255, %v5454
  %v5481 = vadd.f32 %v5256, %v5459
  %v5482 = vadd.f32 %v5257, %v5464
  %v5483 = vsel %vm73, %v5467, 0.0
  %v5484 = vsel %vm73, %v5468, 0.0
  %v5485 = vadd.f32 %v5483, %v5484
  %v5486 = vsel %vm73, %v5469, 0.0
  %v5487 = vadd.f32 %v5485, %v5486
  %v5488 = vsel %vm73, %v5470, 0.0
  %v5489 = vadd.f32 %v5487, %v5488
  %v5490 = vsel %vm73, %v5471, 0.0
  %v5491 = vadd.f32 %v5489, %v5490
  %v5492 = vsel %vm73, %v5472, 0.0
  %v5493 = vadd.f32 %v5491, %v5492
  %v5494 = vsel %vm73, %v5473, 0.0
  %v5495 = vadd.f32 %v5493, %v5494
  %v5496 = vsel %vm73, %v5474, 0.0
  %v5497 = vadd.f32 %v5495, %v5496
  %v5498 = vsel %vm73, %v5475, 0.0
  %v5499 = vadd.f32 %v5497, %v5498
  %v5500 = vsel %vm73, %v5476, 0.0
  %v5501 = vadd.f32 %v5499, %v5500
  %v5502 = vsel %vm73, %v5477, 0.0
  %v5503 = vadd.f32 %v5501, %v5502
  %v5504 = vsel %vm73, %v5478, 0.0
  %v5505 = vadd.f32 %v5503, %v5504
  %v5506 = vsel %vm73, %v5479, 0.0
  %v5507 = vadd.f32 %v5505, %v5506
  %v5508 = vsel %vm73, %v5480, 0.0
  %v5509 = vadd.f32 %v5507, %v5508
  %v5510 = vsel %vm73, %v5481, 0.0
  %v5511 = vadd.f32 %v5509, %v5510
  %v5512 = vsel %vm73, %v5482, 0.0
  %v5513 = vadd.f32 %v5511, %v5512
  %v5514 = vrot.slane %v5513, 4
  %v5515 = vadd.f32 %v5513, %v5514
  %v5516 = vrot.slane %v5515, 2
  %v5517 = vadd.f32 %v5515, %v5516
  %v5518 = vrot.slane %v5517, 1
  %v5519 = vadd.f32 %v5517, %v5518
  %v5520 = vadd.f32 %v3817, %v5519
  %v5521 = vmul.f32 %v5467, %v5467
  %v5522 = vmul.f32 %v5468, %v5468
  %v5523 = vmul.f32 %v5469, %v5469
  %v5524 = vmul.f32 %v5470, %v5470
  %v5525 = vmul.f32 %v5471, %v5471
  %v5526 = vmul.f32 %v5472, %v5472
  %v5527 = vmul.f32 %v5473, %v5473
  %v5528 = vmul.f32 %v5474, %v5474
  %v5529 = vmul.f32 %v5475, %v5475
  %v5530 = vmul.f32 %v5476, %v5476
  %v5531 = vmul.f32 %v5477, %v5477
  %v5532 = vmul.f32 %v5478, %v5478
  %v5533 = vmul.f32 %v5479, %v5479
  %v5534 = vmul.f32 %v5480, %v5480
  %v5535 = vmul.f32 %v5481, %v5481
  %v5536 = vmul.f32 %v5482, %v5482
  %v5537 = vsel %vm73, %v5521, 0.0
  %v5538 = vsel %vm73, %v5522, 0.0
  %v5539 = vadd.f32 %v5537, %v5538
  %v5540 = vsel %vm73, %v5523, 0.0
  %v5541 = vadd.f32 %v5539, %v5540
  %v5542 = vsel %vm73, %v5524, 0.0
  %v5543 = vadd.f32 %v5541, %v5542
  %v5544 = vsel %vm73, %v5525, 0.0
  %v5545 = vadd.f32 %v5543, %v5544
  %v5546 = vsel %vm73, %v5526, 0.0
  %v5547 = vadd.f32 %v5545, %v5546
  %v5548 = vsel %vm73, %v5527, 0.0
  %v5549 = vadd.f32 %v5547, %v5548
  %v5550 = vsel %vm73, %v5528, 0.0
  %v5551 = vadd.f32 %v5549, %v5550
  %v5552 = vsel %vm73, %v5529, 0.0
  %v5553 = vadd.f32 %v5551, %v5552
  %v5554 = vsel %vm73, %v5530, 0.0
  %v5555 = vadd.f32 %v5553, %v5554
  %v5556 = vsel %vm73, %v5531, 0.0
  %v5557 = vadd.f32 %v5555, %v5556
  %v5558 = vsel %vm73, %v5532, 0.0
  %v5559 = vadd.f32 %v5557, %v5558
  %v5560 = vsel %vm73, %v5533, 0.0
  %v5561 = vadd.f32 %v5559, %v5560
  %v5562 = vsel %vm73, %v5534, 0.0
  %v5563 = vadd.f32 %v5561, %v5562
  %v5564 = vsel %vm73, %v5535, 0.0
  %v5565 = vadd.f32 %v5563, %v5564
  %v5566 = vsel %vm73, %v5536, 0.0
  %v5567 = vadd.f32 %v5565, %v5566
  %v5568 = vrot.slane %v5567, 4
  %v5569 = vadd.f32 %v5567, %v5568
  %v5570 = vrot.slane %v5569, 2
  %v5571 = vadd.f32 %v5569, %v5570
  %v5572 = vrot.slane %v5571, 1
  %v5573 = vadd.f32 %v5571, %v5572
  %v5574 = vadd.f32 %v3871, %v5573
  %5575 = vmatprep.subr.mxu0 0.0
  %5576 = vmatpush1.msra.mxu0 0.0
  %5577 = vmatprep.subr.mxu0 0.0
  %5578 = vmatpush1.msra.mxu0 0.0
  %5579 = vmatprep.subr.mxu0 0.0
  %5580 = vmatpush1.msra.mxu0 0.0
  %5581 = vmatprep.subr.mxu0 0.0
  %5582 = vmatpush1.msra.mxu0 0.0
  %5583 = vmatprep.subr.mxu0 0.0
  %5584 = vmatpush1.msra.mxu0 0.0
  %5585 = vmatprep.subr.mxu0 0.0
  %5586 = vmatpush1.msra.mxu0 0.0
  %5587 = vmatprep.subr.mxu0 0.0
  %5588 = vmatpush1.msra.mxu0 0.0
  %5589 = vmatprep.subr.mxu0 0.0
  %5590 = vmatpush1.msra.mxu0 0.0
  %5591 = vmatprep.subr.mxu0 0.0
  %5592 = vmatpush1.msra.mxu0 0.0
  %5593 = vmatprep.subr.mxu0 0.0
  %5594 = vmatpush1.msra.mxu0 0.0
  %5595 = vmatprep.subr.mxu0 0.0
  %5596 = vmatpush1.msra.mxu0 0.0
  %5597 = vmatprep.subr.mxu0 0.0
  %5598 = vmatpush1.msra.mxu0 0.0
  %5599 = vmatprep.subr.mxu0 0.0
  %5600 = vmatpush1.msra.mxu0 0.0
  %5601 = vmatprep.subr.mxu0 0.0
  %5602 = vmatpush1.msra.mxu0 0.0
  %5603 = vmatprep.subr.mxu0 0.0
  %5604 = vmatpush1.msra.mxu0 0.0
  %5605 = vmatprep.subr.mxu0 0.0
  %5606 = vmatpush1.msra.mxu0 %v124
  %5607 = vmatprep.subr.mxu0 0.0
  %5608 = vmatpush2.msra.mxu0 0.0
  %5609 = vmatprep.subr.mxu0 0.0
  %5610 = vmatpush2.msra.mxu0 0.0
  %5611 = vmatprep.subr.mxu0 0.0
  %5612 = vmatpush2.msra.mxu0 0.0
  %5613 = vmatprep.subr.mxu0 0.0
  %5614 = vmatpush2.msra.mxu0 0.0
  %5615 = vmatprep.subr.mxu0 0.0
  %5616 = vmatpush2.msra.mxu0 0.0
  %5617 = vmatprep.subr.mxu0 0.0
  %5618 = vmatpush2.msra.mxu0 0.0
  %5619 = vmatprep.subr.mxu0 0.0
  %5620 = vmatpush2.msra.mxu0 0.0
  %5621 = vmatprep.subr.mxu0 0.0
  %5622 = vmatpush2.msra.mxu0 0.0
  %5623 = vmatprep.subr.mxu0 0.0
  %5624 = vmatpush2.msra.mxu0 0.0
  %5625 = vmatprep.subr.mxu0 0.0
  %5626 = vmatpush2.msra.mxu0 0.0
  %5627 = vmatprep.subr.mxu0 0.0
  %5628 = vmatpush2.msra.mxu0 0.0
  %5629 = vmatprep.subr.mxu0 0.0
  %5630 = vmatpush2.msra.mxu0 0.0
  %5631 = vmatprep.subr.mxu0 0.0
  %5632 = vmatpush2.msra.mxu0 0.0
  %5633 = vmatprep.subr.mxu0 0.0
  %5634 = vmatpush2.msra.mxu0 0.0
  %5635 = vmatprep.subr.mxu0 0.0
  %5636 = vmatpush2.msra.mxu0 0.0
  %5637 = vmatprep.subr.mxu0 0.0
  %5638 = vmatpush2.msra.mxu0 0.0
  %5639 = vmatprep.mubr.f32.mxu0 0.0
  %5640 = vmatmul.mubr.f32.gmra.mxu0 %v1176
  %v5641 = vpop.f32.mrf.mxu0
  %v5642 = vadd.f32 0.0, %v5641
  %v5643 = vpop.f32.mrf.mxu0
  %5644 = vmatprep.mubr.f32.mxu0 0.0
  %5645 = vmatmul.mubr.f32.gmra.mxu0 %v1179
  %v5646 = vpop.f32.mrf.mxu0
  %v5647 = vadd.f32 0.0, %v5646
  %v5648 = vpop.f32.mrf.mxu0
  %5649 = vmatprep.mubr.f32.mxu0 0.0
  %5650 = vmatmul.mubr.f32.gmra.mxu0 %v1182
  %v5651 = vpop.f32.mrf.mxu0
  %v5652 = vadd.f32 0.0, %v5651
  %v5653 = vpop.f32.mrf.mxu0
  %5654 = vmatprep.mubr.f32.mxu0 0.0
  %5655 = vmatmul.mubr.f32.gmra.mxu0 %v1185
  %v5656 = vpop.f32.mrf.mxu0
  %v5657 = vadd.f32 0.0, %v5656
  %v5658 = vpop.f32.mrf.mxu0
  %5659 = vmatprep.mubr.f32.mxu0 0.0
  %5660 = vmatmul.mubr.f32.gmra.mxu0 %v1188
  %v5661 = vpop.f32.mrf.mxu0
  %v5662 = vadd.f32 0.0, %v5661
  %v5663 = vpop.f32.mrf.mxu0
  %5664 = vmatprep.mubr.f32.mxu0 0.0
  %5665 = vmatmul.mubr.f32.gmra.mxu0 %v1191
  %v5666 = vpop.f32.mrf.mxu0
  %v5667 = vadd.f32 0.0, %v5666
  %v5668 = vpop.f32.mrf.mxu0
  %5669 = vmatprep.mubr.f32.mxu0 0.0
  %5670 = vmatmul.mubr.f32.gmra.mxu0 %v1194
  %v5671 = vpop.f32.mrf.mxu0
  %v5672 = vadd.f32 0.0, %v5671
  %v5673 = vpop.f32.mrf.mxu0
  %5674 = vmatprep.mubr.f32.mxu0 0.0
  %5675 = vmatmul.mubr.f32.gmra.mxu0 %v1197
  %v5676 = vpop.f32.mrf.mxu0
  %v5677 = vadd.f32 0.0, %v5676
  %v5678 = vpop.f32.mrf.mxu0
  %5679 = vmatprep.mubr.f32.mxu0 0.0
  %5680 = vmatmul.mubr.f32.gmra.mxu0 %v1200
  %v5681 = vpop.f32.mrf.mxu0
  %v5682 = vadd.f32 0.0, %v5681
  %v5683 = vpop.f32.mrf.mxu0
  %5684 = vmatprep.mubr.f32.mxu0 0.0
  %5685 = vmatmul.mubr.f32.gmra.mxu0 %v1203
  %v5686 = vpop.f32.mrf.mxu0
  %v5687 = vadd.f32 0.0, %v5686
  %v5688 = vpop.f32.mrf.mxu0
  %5689 = vmatprep.mubr.f32.mxu0 0.0
  %5690 = vmatmul.mubr.f32.gmra.mxu0 %v1206
  %v5691 = vpop.f32.mrf.mxu0
  %v5692 = vadd.f32 0.0, %v5691
  %v5693 = vpop.f32.mrf.mxu0
  %5694 = vmatprep.mubr.f32.mxu0 0.0
  %5695 = vmatmul.mubr.f32.gmra.mxu0 %v1209
  %v5696 = vpop.f32.mrf.mxu0
  %v5697 = vadd.f32 0.0, %v5696
  %v5698 = vpop.f32.mrf.mxu0
  %5699 = vmatprep.mubr.f32.mxu0 0.0
  %5700 = vmatmul.mubr.f32.gmra.mxu0 %v1212
  %v5701 = vpop.f32.mrf.mxu0
  %v5702 = vadd.f32 0.0, %v5701
  %v5703 = vpop.f32.mrf.mxu0
  %5704 = vmatprep.mubr.f32.mxu0 0.0
  %5705 = vmatmul.mubr.f32.gmra.mxu0 %v1215
  %v5706 = vpop.f32.mrf.mxu0
  %v5707 = vadd.f32 0.0, %v5706
  %v5708 = vpop.f32.mrf.mxu0
  %5709 = vmatprep.mubr.f32.mxu0 0.0
  %5710 = vmatmul.mubr.f32.gmra.mxu0 %v1218
  %v5711 = vpop.f32.mrf.mxu0
  %v5712 = vadd.f32 0.0, %v5711
  %v5713 = vpop.f32.mrf.mxu0
  %5714 = vmatprep.mubr.f32.mxu0 0.0
  %5715 = vmatmul.mubr.f32.gmra.mxu0 %v1221
  %v5716 = vpop.f32.mrf.mxu0
  %v5717 = vadd.f32 0.0, %v5716
  %v5718 = vpop.f32.mrf.mxu0
  %5719 = vdwg.mxu0
  %5720 = vmatprep.subr.mxu0 0.0
  %5721 = vmatpush1.msra.mxu0 0.0
  %5722 = vmatprep.subr.mxu0 0.0
  %5723 = vmatpush1.msra.mxu0 0.0
  %5724 = vmatprep.subr.mxu0 0.0
  %5725 = vmatpush1.msra.mxu0 0.0
  %5726 = vmatprep.subr.mxu0 0.0
  %5727 = vmatpush1.msra.mxu0 0.0
  %5728 = vmatprep.subr.mxu0 0.0
  %5729 = vmatpush1.msra.mxu0 0.0
  %5730 = vmatprep.subr.mxu0 0.0
  %5731 = vmatpush1.msra.mxu0 0.0
  %5732 = vmatprep.subr.mxu0 0.0
  %5733 = vmatpush1.msra.mxu0 0.0
  %5734 = vmatprep.subr.mxu0 0.0
  %5735 = vmatpush1.msra.mxu0 0.0
  %5736 = vmatprep.subr.mxu0 0.0
  %5737 = vmatpush1.msra.mxu0 0.0
  %5738 = vmatprep.subr.mxu0 0.0
  %5739 = vmatpush1.msra.mxu0 0.0
  %5740 = vmatprep.subr.mxu0 0.0
  %5741 = vmatpush1.msra.mxu0 0.0
  %5742 = vmatprep.subr.mxu0 0.0
  %5743 = vmatpush1.msra.mxu0 0.0
  %5744 = vmatprep.subr.mxu0 0.0
  %5745 = vmatpush1.msra.mxu0 0.0
  %5746 = vmatprep.subr.mxu0 0.0
  %5747 = vmatpush1.msra.mxu0 0.0
  %5748 = vmatprep.subr.mxu0 0.0
  %5749 = vmatpush1.msra.mxu0 0.0
  %5750 = vmatprep.subr.mxu0 0.0
  %5751 = vmatpush1.msra.mxu0 %v320
  %5752 = vmatprep.subr.mxu0 0.0
  %5753 = vmatpush2.msra.mxu0 0.0
  %5754 = vmatprep.subr.mxu0 0.0
  %5755 = vmatpush2.msra.mxu0 0.0
  %5756 = vmatprep.subr.mxu0 0.0
  %5757 = vmatpush2.msra.mxu0 0.0
  %5758 = vmatprep.subr.mxu0 0.0
  %5759 = vmatpush2.msra.mxu0 0.0
  %5760 = vmatprep.subr.mxu0 0.0
  %5761 = vmatpush2.msra.mxu0 0.0
  %5762 = vmatprep.subr.mxu0 0.0
  %5763 = vmatpush2.msra.mxu0 0.0
  %5764 = vmatprep.subr.mxu0 0.0
  %5765 = vmatpush2.msra.mxu0 0.0
  %5766 = vmatprep.subr.mxu0 0.0
  %5767 = vmatpush2.msra.mxu0 0.0
  %5768 = vmatprep.subr.mxu0 0.0
  %5769 = vmatpush2.msra.mxu0 0.0
  %5770 = vmatprep.subr.mxu0 0.0
  %5771 = vmatpush2.msra.mxu0 0.0
  %5772 = vmatprep.subr.mxu0 0.0
  %5773 = vmatpush2.msra.mxu0 0.0
  %5774 = vmatprep.subr.mxu0 0.0
  %5775 = vmatpush2.msra.mxu0 0.0
  %5776 = vmatprep.subr.mxu0 0.0
  %5777 = vmatpush2.msra.mxu0 0.0
  %5778 = vmatprep.subr.mxu0 0.0
  %5779 = vmatpush2.msra.mxu0 0.0
  %5780 = vmatprep.subr.mxu0 0.0
  %5781 = vmatpush2.msra.mxu0 0.0
  %5782 = vmatprep.subr.mxu0 0.0
  %5783 = vmatpush2.msra.mxu0 0.0
  %5784 = vmatprep.mubr.f32.mxu0 0.0
  %5785 = vmatmul.mubr.f32.gmra.mxu0 %v946
  %v5786 = vpop.f32.mrf.mxu0
  %v5787 = vadd.f32 %v5642, %v5786
  %v5788 = vpop.f32.mrf.mxu0
  %5789 = vmatprep.mubr.f32.mxu0 0.0
  %5790 = vmatmul.mubr.f32.gmra.mxu0 %v949
  %v5791 = vpop.f32.mrf.mxu0
  %v5792 = vadd.f32 %v5647, %v5791
  %v5793 = vpop.f32.mrf.mxu0
  %5794 = vmatprep.mubr.f32.mxu0 0.0
  %5795 = vmatmul.mubr.f32.gmra.mxu0 %v952
  %v5796 = vpop.f32.mrf.mxu0
  %v5797 = vadd.f32 %v5652, %v5796
  %v5798 = vpop.f32.mrf.mxu0
  %5799 = vmatprep.mubr.f32.mxu0 0.0
  %5800 = vmatmul.mubr.f32.gmra.mxu0 %v955
  %v5801 = vpop.f32.mrf.mxu0
  %v5802 = vadd.f32 %v5657, %v5801
  %v5803 = vpop.f32.mrf.mxu0
  %5804 = vmatprep.mubr.f32.mxu0 0.0
  %5805 = vmatmul.mubr.f32.gmra.mxu0 %v958
  %v5806 = vpop.f32.mrf.mxu0
  %v5807 = vadd.f32 %v5662, %v5806
  %v5808 = vpop.f32.mrf.mxu0
  %5809 = vmatprep.mubr.f32.mxu0 0.0
  %5810 = vmatmul.mubr.f32.gmra.mxu0 %v961
  %v5811 = vpop.f32.mrf.mxu0
  %v5812 = vadd.f32 %v5667, %v5811
  %v5813 = vpop.f32.mrf.mxu0
  %5814 = vmatprep.mubr.f32.mxu0 0.0
  %5815 = vmatmul.mubr.f32.gmra.mxu0 %v964
  %v5816 = vpop.f32.mrf.mxu0
  %v5817 = vadd.f32 %v5672, %v5816
  %v5818 = vpop.f32.mrf.mxu0
  %5819 = vmatprep.mubr.f32.mxu0 0.0
  %5820 = vmatmul.mubr.f32.gmra.mxu0 %v967
  %v5821 = vpop.f32.mrf.mxu0
  %v5822 = vadd.f32 %v5677, %v5821
  %v5823 = vpop.f32.mrf.mxu0
  %5824 = vmatprep.mubr.f32.mxu0 0.0
  %5825 = vmatmul.mubr.f32.gmra.mxu0 %v970
  %v5826 = vpop.f32.mrf.mxu0
  %v5827 = vadd.f32 %v5682, %v5826
  %v5828 = vpop.f32.mrf.mxu0
  %5829 = vmatprep.mubr.f32.mxu0 0.0
  %5830 = vmatmul.mubr.f32.gmra.mxu0 %v973
  %v5831 = vpop.f32.mrf.mxu0
  %v5832 = vadd.f32 %v5687, %v5831
  %v5833 = vpop.f32.mrf.mxu0
  %5834 = vmatprep.mubr.f32.mxu0 0.0
  %5835 = vmatmul.mubr.f32.gmra.mxu0 %v976
  %v5836 = vpop.f32.mrf.mxu0
  %v5837 = vadd.f32 %v5692, %v5836
  %v5838 = vpop.f32.mrf.mxu0
  %5839 = vmatprep.mubr.f32.mxu0 0.0
  %5840 = vmatmul.mubr.f32.gmra.mxu0 %v979
  %v5841 = vpop.f32.mrf.mxu0
  %v5842 = vadd.f32 %v5697, %v5841
  %v5843 = vpop.f32.mrf.mxu0
  %5844 = vmatprep.mubr.f32.mxu0 0.0
  %5845 = vmatmul.mubr.f32.gmra.mxu0 %v982
  %v5846 = vpop.f32.mrf.mxu0
  %v5847 = vadd.f32 %v5702, %v5846
  %v5848 = vpop.f32.mrf.mxu0
  %5849 = vmatprep.mubr.f32.mxu0 0.0
  %5850 = vmatmul.mubr.f32.gmra.mxu0 %v985
  %v5851 = vpop.f32.mrf.mxu0
  %v5852 = vadd.f32 %v5707, %v5851
  %v5853 = vpop.f32.mrf.mxu0
  %5854 = vmatprep.mubr.f32.mxu0 0.0
  %5855 = vmatmul.mubr.f32.gmra.mxu0 %v988
  %v5856 = vpop.f32.mrf.mxu0
  %v5857 = vadd.f32 %v5712, %v5856
  %v5858 = vpop.f32.mrf.mxu0
  %5859 = vmatprep.mubr.f32.mxu0 0.0
  %5860 = vmatmul.mubr.f32.gmra.mxu0 %v991
  %v5861 = vpop.f32.mrf.mxu0
  %v5862 = vadd.f32 %v5717, %v5861
  %v5863 = vpop.f32.mrf.mxu0
  %5864 = vdwg.mxu0
  %5865 = vmatprep.subr.mxu0 0.0
  %5866 = vmatpush1.msra.mxu0 0.0
  %5867 = vmatprep.subr.mxu0 0.0
  %5868 = vmatpush1.msra.mxu0 0.0
  %5869 = vmatprep.subr.mxu0 0.0
  %5870 = vmatpush1.msra.mxu0 0.0
  %5871 = vmatprep.subr.mxu0 0.0
  %5872 = vmatpush1.msra.mxu0 0.0
  %5873 = vmatprep.subr.mxu0 0.0
  %5874 = vmatpush1.msra.mxu0 0.0
  %5875 = vmatprep.subr.mxu0 0.0
  %5876 = vmatpush1.msra.mxu0 0.0
  %5877 = vmatprep.subr.mxu0 0.0
  %5878 = vmatpush1.msra.mxu0 0.0
  %5879 = vmatprep.subr.mxu0 0.0
  %5880 = vmatpush1.msra.mxu0 0.0
  %5881 = vmatprep.subr.mxu0 0.0
  %5882 = vmatpush1.msra.mxu0 0.0
  %5883 = vmatprep.subr.mxu0 0.0
  %5884 = vmatpush1.msra.mxu0 0.0
  %5885 = vmatprep.subr.mxu0 0.0
  %5886 = vmatpush1.msra.mxu0 0.0
  %5887 = vmatprep.subr.mxu0 0.0
  %5888 = vmatpush1.msra.mxu0 0.0
  %5889 = vmatprep.subr.mxu0 0.0
  %5890 = vmatpush1.msra.mxu0 0.0
  %5891 = vmatprep.subr.mxu0 0.0
  %5892 = vmatpush1.msra.mxu0 0.0
  %5893 = vmatprep.subr.mxu0 0.0
  %5894 = vmatpush1.msra.mxu0 0.0
  %5895 = vmatprep.subr.mxu0 0.0
  %5896 = vmatpush1.msra.mxu0 %v534
  %5897 = vmatprep.subr.mxu0 0.0
  %5898 = vmatpush2.msra.mxu0 0.0
  %5899 = vmatprep.subr.mxu0 0.0
  %5900 = vmatpush2.msra.mxu0 0.0
  %5901 = vmatprep.subr.mxu0 0.0
  %5902 = vmatpush2.msra.mxu0 0.0
  %5903 = vmatprep.subr.mxu0 0.0
  %5904 = vmatpush2.msra.mxu0 0.0
  %5905 = vmatprep.subr.mxu0 0.0
  %5906 = vmatpush2.msra.mxu0 0.0
  %5907 = vmatprep.subr.mxu0 0.0
  %5908 = vmatpush2.msra.mxu0 0.0
  %5909 = vmatprep.subr.mxu0 0.0
  %5910 = vmatpush2.msra.mxu0 0.0
  %5911 = vmatprep.subr.mxu0 0.0
  %5912 = vmatpush2.msra.mxu0 0.0
  %5913 = vmatprep.subr.mxu0 0.0
  %5914 = vmatpush2.msra.mxu0 0.0
  %5915 = vmatprep.subr.mxu0 0.0
  %5916 = vmatpush2.msra.mxu0 0.0
  %5917 = vmatprep.subr.mxu0 0.0
  %5918 = vmatpush2.msra.mxu0 0.0
  %5919 = vmatprep.subr.mxu0 0.0
  %5920 = vmatpush2.msra.mxu0 0.0
  %5921 = vmatprep.subr.mxu0 0.0
  %5922 = vmatpush2.msra.mxu0 0.0
  %5923 = vmatprep.subr.mxu0 0.0
  %5924 = vmatpush2.msra.mxu0 0.0
  %5925 = vmatprep.subr.mxu0 0.0
  %5926 = vmatpush2.msra.mxu0 0.0
  %5927 = vmatprep.subr.mxu0 0.0
  %5928 = vmatpush2.msra.mxu0 0.0
  %5929 = vmatprep.mubr.f32.mxu0 0.0
  %5930 = vmatmul.mubr.f32.gmra.mxu0 %v3025
  %v5931 = vpop.f32.mrf.mxu0
  %v5932 = vadd.f32 0.0, %v5931
  %v5933 = vpop.f32.mrf.mxu0
  %5934 = vmatprep.mubr.f32.mxu0 0.0
  %5935 = vmatmul.mubr.f32.gmra.mxu0 %v3028
  %v5936 = vpop.f32.mrf.mxu0
  %v5937 = vadd.f32 0.0, %v5936
  %v5938 = vpop.f32.mrf.mxu0
  %5939 = vmatprep.mubr.f32.mxu0 0.0
  %5940 = vmatmul.mubr.f32.gmra.mxu0 %v3031
  %v5941 = vpop.f32.mrf.mxu0
  %v5942 = vadd.f32 0.0, %v5941
  %v5943 = vpop.f32.mrf.mxu0
  %5944 = vmatprep.mubr.f32.mxu0 0.0
  %5945 = vmatmul.mubr.f32.gmra.mxu0 %v3034
  %v5946 = vpop.f32.mrf.mxu0
  %v5947 = vadd.f32 0.0, %v5946
  %v5948 = vpop.f32.mrf.mxu0
  %5949 = vmatprep.mubr.f32.mxu0 0.0
  %5950 = vmatmul.mubr.f32.gmra.mxu0 %v3037
  %v5951 = vpop.f32.mrf.mxu0
  %v5952 = vadd.f32 0.0, %v5951
  %v5953 = vpop.f32.mrf.mxu0
  %5954 = vmatprep.mubr.f32.mxu0 0.0
  %5955 = vmatmul.mubr.f32.gmra.mxu0 %v3040
  %v5956 = vpop.f32.mrf.mxu0
  %v5957 = vadd.f32 0.0, %v5956
  %v5958 = vpop.f32.mrf.mxu0
  %5959 = vmatprep.mubr.f32.mxu0 0.0
  %5960 = vmatmul.mubr.f32.gmra.mxu0 %v3043
  %v5961 = vpop.f32.mrf.mxu0
  %v5962 = vadd.f32 0.0, %v5961
  %v5963 = vpop.f32.mrf.mxu0
  %5964 = vmatprep.mubr.f32.mxu0 0.0
  %5965 = vmatmul.mubr.f32.gmra.mxu0 %v3046
  %v5966 = vpop.f32.mrf.mxu0
  %v5967 = vadd.f32 0.0, %v5966
  %v5968 = vpop.f32.mrf.mxu0
  %5969 = vmatprep.mubr.f32.mxu0 0.0
  %5970 = vmatmul.mubr.f32.gmra.mxu0 %v3049
  %v5971 = vpop.f32.mrf.mxu0
  %v5972 = vadd.f32 0.0, %v5971
  %v5973 = vpop.f32.mrf.mxu0
  %5974 = vmatprep.mubr.f32.mxu0 0.0
  %5975 = vmatmul.mubr.f32.gmra.mxu0 %v3052
  %v5976 = vpop.f32.mrf.mxu0
  %v5977 = vadd.f32 0.0, %v5976
  %v5978 = vpop.f32.mrf.mxu0
  %5979 = vmatprep.mubr.f32.mxu0 0.0
  %5980 = vmatmul.mubr.f32.gmra.mxu0 %v3055
  %v5981 = vpop.f32.mrf.mxu0
  %v5982 = vadd.f32 0.0, %v5981
  %v5983 = vpop.f32.mrf.mxu0
  %5984 = vmatprep.mubr.f32.mxu0 0.0
  %5985 = vmatmul.mubr.f32.gmra.mxu0 %v3058
  %v5986 = vpop.f32.mrf.mxu0
  %v5987 = vadd.f32 0.0, %v5986
  %v5988 = vpop.f32.mrf.mxu0
  %5989 = vmatprep.mubr.f32.mxu0 0.0
  %5990 = vmatmul.mubr.f32.gmra.mxu0 %v3061
  %v5991 = vpop.f32.mrf.mxu0
  %v5992 = vadd.f32 0.0, %v5991
  %v5993 = vpop.f32.mrf.mxu0
  %5994 = vmatprep.mubr.f32.mxu0 0.0
  %5995 = vmatmul.mubr.f32.gmra.mxu0 %v3064
  %v5996 = vpop.f32.mrf.mxu0
  %v5997 = vadd.f32 0.0, %v5996
  %v5998 = vpop.f32.mrf.mxu0
  %5999 = vmatprep.mubr.f32.mxu0 0.0
  %6000 = vmatmul.mubr.f32.gmra.mxu0 %v3067
  %v6001 = vpop.f32.mrf.mxu0
  %v6002 = vadd.f32 0.0, %v6001
  %v6003 = vpop.f32.mrf.mxu0
  %6004 = vmatprep.mubr.f32.mxu0 0.0
  %6005 = vmatmul.mubr.f32.gmra.mxu0 %v3070
  %v6006 = vpop.f32.mrf.mxu0
  %v6007 = vadd.f32 0.0, %v6006
  %v6008 = vpop.f32.mrf.mxu0
  %6009 = vdwg.mxu0
  %v6010 = vadd.f32 %v5787, %v5932
  %v6011 = vadd.f32 %v5792, %v5937
  %v6012 = vadd.f32 %v5797, %v5942
  %v6013 = vadd.f32 %v5802, %v5947
  %v6014 = vadd.f32 %v5807, %v5952
  %v6015 = vadd.f32 %v5812, %v5957
  %v6016 = vadd.f32 %v5817, %v5962
  %v6017 = vadd.f32 %v5822, %v5967
  %v6018 = vadd.f32 %v5827, %v5972
  %v6019 = vadd.f32 %v5832, %v5977
  %v6020 = vadd.f32 %v5837, %v5982
  %v6021 = vadd.f32 %v5842, %v5987
  %v6022 = vadd.f32 %v5847, %v5992
  %v6023 = vadd.f32 %v5852, %v5997
  %v6024 = vadd.f32 %v5857, %v6002
  %v6025 = vadd.f32 %v5862, %v6007
  %6026 = vmatprep.subr.mxu0 0.0
  %6027 = vmatpush1.msra.mxu0 0.0
  %6028 = vmatprep.subr.mxu0 0.0
  %6029 = vmatpush1.msra.mxu0 0.0
  %6030 = vmatprep.subr.mxu0 0.0
  %6031 = vmatpush1.msra.mxu0 0.0
  %6032 = vmatprep.subr.mxu0 0.0
  %6033 = vmatpush1.msra.mxu0 0.0
  %6034 = vmatprep.subr.mxu0 0.0
  %6035 = vmatpush1.msra.mxu0 0.0
  %6036 = vmatprep.subr.mxu0 0.0
  %6037 = vmatpush1.msra.mxu0 0.0
  %6038 = vmatprep.subr.mxu0 0.0
  %6039 = vmatpush1.msra.mxu0 0.0
  %6040 = vmatprep.subr.mxu0 0.0
  %6041 = vmatpush1.msra.mxu0 0.0
  %6042 = vmatprep.subr.mxu0 0.0
  %6043 = vmatpush1.msra.mxu0 0.0
  %6044 = vmatprep.subr.mxu0 0.0
  %6045 = vmatpush1.msra.mxu0 0.0
  %6046 = vmatprep.subr.mxu0 0.0
  %6047 = vmatpush1.msra.mxu0 0.0
  %6048 = vmatprep.subr.mxu0 0.0
  %6049 = vmatpush1.msra.mxu0 0.0
  %6050 = vmatprep.subr.mxu0 0.0
  %6051 = vmatpush1.msra.mxu0 0.0
  %6052 = vmatprep.subr.mxu0 0.0
  %6053 = vmatpush1.msra.mxu0 0.0
  %6054 = vmatprep.subr.mxu0 0.0
  %6055 = vmatpush1.msra.mxu0 0.0
  %6056 = vmatprep.subr.mxu0 0.0
  %6057 = vmatpush1.msra.mxu0 %v764
  %6058 = vmatprep.subr.mxu0 0.0
  %6059 = vmatpush2.msra.mxu0 0.0
  %6060 = vmatprep.subr.mxu0 0.0
  %6061 = vmatpush2.msra.mxu0 0.0
  %6062 = vmatprep.subr.mxu0 0.0
  %6063 = vmatpush2.msra.mxu0 0.0
  %6064 = vmatprep.subr.mxu0 0.0
  %6065 = vmatpush2.msra.mxu0 0.0
  %6066 = vmatprep.subr.mxu0 0.0
  %6067 = vmatpush2.msra.mxu0 0.0
  %6068 = vmatprep.subr.mxu0 0.0
  %6069 = vmatpush2.msra.mxu0 0.0
  %6070 = vmatprep.subr.mxu0 0.0
  %6071 = vmatpush2.msra.mxu0 0.0
  %6072 = vmatprep.subr.mxu0 0.0
  %6073 = vmatpush2.msra.mxu0 0.0
  %6074 = vmatprep.subr.mxu0 0.0
  %6075 = vmatpush2.msra.mxu0 0.0
  %6076 = vmatprep.subr.mxu0 0.0
  %6077 = vmatpush2.msra.mxu0 0.0
  %6078 = vmatprep.subr.mxu0 0.0
  %6079 = vmatpush2.msra.mxu0 0.0
  %6080 = vmatprep.subr.mxu0 0.0
  %6081 = vmatpush2.msra.mxu0 0.0
  %6082 = vmatprep.subr.mxu0 0.0
  %6083 = vmatpush2.msra.mxu0 0.0
  %6084 = vmatprep.subr.mxu0 0.0
  %6085 = vmatpush2.msra.mxu0 0.0
  %6086 = vmatprep.subr.mxu0 0.0
  %6087 = vmatpush2.msra.mxu0 0.0
  %6088 = vmatprep.subr.mxu0 0.0
  %6089 = vmatpush2.msra.mxu0 0.0
  %6090 = vmatprep.mubr.f32.mxu0 0.0
  %6091 = vmatmul.mubr.f32.gmra.mxu0 %v1638
  %v6092 = vpop.f32.mrf.mxu0
  %v6093 = vadd.f32 0.0, %v6092
  %v6094 = vpop.f32.mrf.mxu0
  %6095 = vmatprep.mubr.f32.mxu0 0.0
  %6096 = vmatmul.mubr.f32.gmra.mxu0 %v1641
  %v6097 = vpop.f32.mrf.mxu0
  %v6098 = vadd.f32 0.0, %v6097
  %v6099 = vpop.f32.mrf.mxu0
  %6100 = vmatprep.mubr.f32.mxu0 0.0
  %6101 = vmatmul.mubr.f32.gmra.mxu0 %v1644
  %v6102 = vpop.f32.mrf.mxu0
  %v6103 = vadd.f32 0.0, %v6102
  %v6104 = vpop.f32.mrf.mxu0
  %6105 = vmatprep.mubr.f32.mxu0 0.0
  %6106 = vmatmul.mubr.f32.gmra.mxu0 %v1647
  %v6107 = vpop.f32.mrf.mxu0
  %v6108 = vadd.f32 0.0, %v6107
  %v6109 = vpop.f32.mrf.mxu0
  %6110 = vmatprep.mubr.f32.mxu0 0.0
  %6111 = vmatmul.mubr.f32.gmra.mxu0 %v1650
  %v6112 = vpop.f32.mrf.mxu0
  %v6113 = vadd.f32 0.0, %v6112
  %v6114 = vpop.f32.mrf.mxu0
  %6115 = vmatprep.mubr.f32.mxu0 0.0
  %6116 = vmatmul.mubr.f32.gmra.mxu0 %v1653
  %v6117 = vpop.f32.mrf.mxu0
  %v6118 = vadd.f32 0.0, %v6117
  %v6119 = vpop.f32.mrf.mxu0
  %6120 = vmatprep.mubr.f32.mxu0 0.0
  %6121 = vmatmul.mubr.f32.gmra.mxu0 %v1656
  %v6122 = vpop.f32.mrf.mxu0
  %v6123 = vadd.f32 0.0, %v6122
  %v6124 = vpop.f32.mrf.mxu0
  %6125 = vmatprep.mubr.f32.mxu0 0.0
  %6126 = vmatmul.mubr.f32.gmra.mxu0 %v1659
  %v6127 = vpop.f32.mrf.mxu0
  %v6128 = vadd.f32 0.0, %v6127
  %v6129 = vpop.f32.mrf.mxu0
  %6130 = vmatprep.mubr.f32.mxu0 0.0
  %6131 = vmatmul.mubr.f32.gmra.mxu0 %v1662
  %v6132 = vpop.f32.mrf.mxu0
  %v6133 = vadd.f32 0.0, %v6132
  %v6134 = vpop.f32.mrf.mxu0
  %6135 = vmatprep.mubr.f32.mxu0 0.0
  %6136 = vmatmul.mubr.f32.gmra.mxu0 %v1665
  %v6137 = vpop.f32.mrf.mxu0
  %v6138 = vadd.f32 0.0, %v6137
  %v6139 = vpop.f32.mrf.mxu0
  %6140 = vmatprep.mubr.f32.mxu0 0.0
  %6141 = vmatmul.mubr.f32.gmra.mxu0 %v1668
  %v6142 = vpop.f32.mrf.mxu0
  %v6143 = vadd.f32 0.0, %v6142
  %v6144 = vpop.f32.mrf.mxu0
  %6145 = vmatprep.mubr.f32.mxu0 0.0
  %6146 = vmatmul.mubr.f32.gmra.mxu0 %v1671
  %v6147 = vpop.f32.mrf.mxu0
  %v6148 = vadd.f32 0.0, %v6147
  %v6149 = vpop.f32.mrf.mxu0
  %6150 = vmatprep.mubr.f32.mxu0 0.0
  %6151 = vmatmul.mubr.f32.gmra.mxu0 %v1674
  %v6152 = vpop.f32.mrf.mxu0
  %v6153 = vadd.f32 0.0, %v6152
  %v6154 = vpop.f32.mrf.mxu0
  %6155 = vmatprep.mubr.f32.mxu0 0.0
  %6156 = vmatmul.mubr.f32.gmra.mxu0 %v1677
  %v6157 = vpop.f32.mrf.mxu0
  %v6158 = vadd.f32 0.0, %v6157
  %v6159 = vpop.f32.mrf.mxu0
  %6160 = vmatprep.mubr.f32.mxu0 0.0
  %6161 = vmatmul.mubr.f32.gmra.mxu0 %v1680
  %v6162 = vpop.f32.mrf.mxu0
  %v6163 = vadd.f32 0.0, %v6162
  %v6164 = vpop.f32.mrf.mxu0
  %6165 = vmatprep.mubr.f32.mxu0 0.0
  %6166 = vmatmul.mubr.f32.gmra.mxu0 %v1683
  %v6167 = vpop.f32.mrf.mxu0
  %v6168 = vadd.f32 0.0, %v6167
  %v6169 = vpop.f32.mrf.mxu0
  %6170 = vdwg.mxu0
  %v6171 = vadd.f32 %v6010, %v6093
  %v6172 = vadd.f32 %v6011, %v6098
  %v6173 = vadd.f32 %v6012, %v6103
  %v6174 = vadd.f32 %v6013, %v6108
  %v6175 = vadd.f32 %v6014, %v6113
  %v6176 = vadd.f32 %v6015, %v6118
  %v6177 = vadd.f32 %v6016, %v6123
  %v6178 = vadd.f32 %v6017, %v6128
  %v6179 = vadd.f32 %v6018, %v6133
  %v6180 = vadd.f32 %v6019, %v6138
  %v6181 = vadd.f32 %v6020, %v6143
  %v6182 = vadd.f32 %v6021, %v6148
  %v6183 = vadd.f32 %v6022, %v6153
  %v6184 = vadd.f32 %v6023, %v6158
  %v6185 = vadd.f32 %v6024, %v6163
  %v6186 = vadd.f32 %v6025, %v6168
  %6187 = vmatprep.subr.mxu0 0.0
  %6188 = vmatpush1.msra.mxu0 0.0
  %6189 = vmatprep.subr.mxu0 0.0
  %6190 = vmatpush1.msra.mxu0 0.0
  %6191 = vmatprep.subr.mxu0 0.0
  %6192 = vmatpush1.msra.mxu0 0.0
  %6193 = vmatprep.subr.mxu0 0.0
  %6194 = vmatpush1.msra.mxu0 0.0
  %6195 = vmatprep.subr.mxu0 0.0
  %6196 = vmatpush1.msra.mxu0 0.0
  %6197 = vmatprep.subr.mxu0 0.0
  %6198 = vmatpush1.msra.mxu0 0.0
  %6199 = vmatprep.subr.mxu0 0.0
  %6200 = vmatpush1.msra.mxu0 0.0
  %6201 = vmatprep.subr.mxu0 0.0
  %6202 = vmatpush1.msra.mxu0 0.0
  %6203 = vmatprep.subr.mxu0 0.0
  %6204 = vmatpush1.msra.mxu0 0.0
  %6205 = vmatprep.subr.mxu0 0.0
  %6206 = vmatpush1.msra.mxu0 0.0
  %6207 = vmatprep.subr.mxu0 0.0
  %6208 = vmatpush1.msra.mxu0 0.0
  %6209 = vmatprep.subr.mxu0 0.0
  %6210 = vmatpush1.msra.mxu0 0.0
  %6211 = vmatprep.subr.mxu0 0.0
  %6212 = vmatpush1.msra.mxu0 0.0
  %6213 = vmatprep.subr.mxu0 0.0
  %6214 = vmatpush1.msra.mxu0 0.0
  %6215 = vmatprep.subr.mxu0 0.0
  %6216 = vmatpush1.msra.mxu0 0.0
  %6217 = vmatprep.subr.mxu0 0.0
  %6218 = vmatpush1.msra.mxu0 %v994
  %6219 = vmatprep.subr.mxu0 0.0
  %6220 = vmatpush2.msra.mxu0 0.0
  %6221 = vmatprep.subr.mxu0 0.0
  %6222 = vmatpush2.msra.mxu0 0.0
  %6223 = vmatprep.subr.mxu0 0.0
  %6224 = vmatpush2.msra.mxu0 0.0
  %6225 = vmatprep.subr.mxu0 0.0
  %6226 = vmatpush2.msra.mxu0 0.0
  %6227 = vmatprep.subr.mxu0 0.0
  %6228 = vmatpush2.msra.mxu0 0.0
  %6229 = vmatprep.subr.mxu0 0.0
  %6230 = vmatpush2.msra.mxu0 0.0
  %6231 = vmatprep.subr.mxu0 0.0
  %6232 = vmatpush2.msra.mxu0 0.0
  %6233 = vmatprep.subr.mxu0 0.0
  %6234 = vmatpush2.msra.mxu0 0.0
  %6235 = vmatprep.subr.mxu0 0.0
  %6236 = vmatpush2.msra.mxu0 0.0
  %6237 = vmatprep.subr.mxu0 0.0
  %6238 = vmatpush2.msra.mxu0 0.0
  %6239 = vmatprep.subr.mxu0 0.0
  %6240 = vmatpush2.msra.mxu0 0.0
  %6241 = vmatprep.subr.mxu0 0.0
  %6242 = vmatpush2.msra.mxu0 0.0
  %6243 = vmatprep.subr.mxu0 0.0
  %6244 = vmatpush2.msra.mxu0 0.0
  %6245 = vmatprep.subr.mxu0 0.0
  %6246 = vmatpush2.msra.mxu0 0.0
  %6247 = vmatprep.subr.mxu0 0.0
  %6248 = vmatpush2.msra.mxu0 0.0
  %6249 = vmatprep.subr.mxu0 0.0
  %6250 = vmatpush2.msra.mxu0 0.0
  %6251 = vmatprep.mubr.f32.mxu0 0.0
  %6252 = vmatmul.mubr.f32.gmra.mxu0 %v1868
  %v6253 = vpop.f32.mrf.mxu0
  %v6254 = vadd.f32 0.0, %v6253
  %v6255 = vpop.f32.mrf.mxu0
  %6256 = vmatprep.mubr.f32.mxu0 0.0
  %6257 = vmatmul.mubr.f32.gmra.mxu0 %v1871
  %v6258 = vpop.f32.mrf.mxu0
  %v6259 = vadd.f32 0.0, %v6258
  %v6260 = vpop.f32.mrf.mxu0
  %6261 = vmatprep.mubr.f32.mxu0 0.0
  %6262 = vmatmul.mubr.f32.gmra.mxu0 %v1874
  %v6263 = vpop.f32.mrf.mxu0
  %v6264 = vadd.f32 0.0, %v6263
  %v6265 = vpop.f32.mrf.mxu0
  %6266 = vmatprep.mubr.f32.mxu0 0.0
  %6267 = vmatmul.mubr.f32.gmra.mxu0 %v1877
  %v6268 = vpop.f32.mrf.mxu0
  %v6269 = vadd.f32 0.0, %v6268
  %v6270 = vpop.f32.mrf.mxu0
  %6271 = vmatprep.mubr.f32.mxu0 0.0
  %6272 = vmatmul.mubr.f32.gmra.mxu0 %v1880
  %v6273 = vpop.f32.mrf.mxu0
  %v6274 = vadd.f32 0.0, %v6273
  %v6275 = vpop.f32.mrf.mxu0
  %6276 = vmatprep.mubr.f32.mxu0 0.0
  %6277 = vmatmul.mubr.f32.gmra.mxu0 %v1883
  %v6278 = vpop.f32.mrf.mxu0
  %v6279 = vadd.f32 0.0, %v6278
  %v6280 = vpop.f32.mrf.mxu0
  %6281 = vmatprep.mubr.f32.mxu0 0.0
  %6282 = vmatmul.mubr.f32.gmra.mxu0 %v1886
  %v6283 = vpop.f32.mrf.mxu0
  %v6284 = vadd.f32 0.0, %v6283
  %v6285 = vpop.f32.mrf.mxu0
  %6286 = vmatprep.mubr.f32.mxu0 0.0
  %6287 = vmatmul.mubr.f32.gmra.mxu0 %v1889
  %v6288 = vpop.f32.mrf.mxu0
  %v6289 = vadd.f32 0.0, %v6288
  %v6290 = vpop.f32.mrf.mxu0
  %6291 = vmatprep.mubr.f32.mxu0 0.0
  %6292 = vmatmul.mubr.f32.gmra.mxu0 %v1892
  %v6293 = vpop.f32.mrf.mxu0
  %v6294 = vadd.f32 0.0, %v6293
  %v6295 = vpop.f32.mrf.mxu0
  %6296 = vmatprep.mubr.f32.mxu0 0.0
  %6297 = vmatmul.mubr.f32.gmra.mxu0 %v1895
  %v6298 = vpop.f32.mrf.mxu0
  %v6299 = vadd.f32 0.0, %v6298
  %v6300 = vpop.f32.mrf.mxu0
  %6301 = vmatprep.mubr.f32.mxu0 0.0
  %6302 = vmatmul.mubr.f32.gmra.mxu0 %v1898
  %v6303 = vpop.f32.mrf.mxu0
  %v6304 = vadd.f32 0.0, %v6303
  %v6305 = vpop.f32.mrf.mxu0
  %6306 = vmatprep.mubr.f32.mxu0 0.0
  %6307 = vmatmul.mubr.f32.gmra.mxu0 %v1901
  %v6308 = vpop.f32.mrf.mxu0
  %v6309 = vadd.f32 0.0, %v6308
  %v6310 = vpop.f32.mrf.mxu0
  %6311 = vmatprep.mubr.f32.mxu0 0.0
  %6312 = vmatmul.mubr.f32.gmra.mxu0 %v1904
  %v6313 = vpop.f32.mrf.mxu0
  %v6314 = vadd.f32 0.0, %v6313
  %v6315 = vpop.f32.mrf.mxu0
  %6316 = vmatprep.mubr.f32.mxu0 0.0
  %6317 = vmatmul.mubr.f32.gmra.mxu0 %v1907
  %v6318 = vpop.f32.mrf.mxu0
  %v6319 = vadd.f32 0.0, %v6318
  %v6320 = vpop.f32.mrf.mxu0
  %6321 = vmatprep.mubr.f32.mxu0 0.0
  %6322 = vmatmul.mubr.f32.gmra.mxu0 %v1910
  %v6323 = vpop.f32.mrf.mxu0
  %v6324 = vadd.f32 0.0, %v6323
  %v6325 = vpop.f32.mrf.mxu0
  %6326 = vmatprep.mubr.f32.mxu0 0.0
  %6327 = vmatmul.mubr.f32.gmra.mxu0 %v1913
  %v6328 = vpop.f32.mrf.mxu0
  %v6329 = vadd.f32 0.0, %v6328
  %v6330 = vpop.f32.mrf.mxu0
  %6331 = vdwg.mxu0
  %v6332 = vadd.f32 %v6171, %v6254
  %v6333 = vadd.f32 %v6172, %v6259
  %v6334 = vadd.f32 %v6173, %v6264
  %v6335 = vadd.f32 %v6174, %v6269
  %v6336 = vadd.f32 %v6175, %v6274
  %v6337 = vadd.f32 %v6176, %v6279
  %v6338 = vadd.f32 %v6177, %v6284
  %v6339 = vadd.f32 %v6178, %v6289
  %v6340 = vadd.f32 %v6179, %v6294
  %v6341 = vadd.f32 %v6180, %v6299
  %v6342 = vadd.f32 %v6181, %v6304
  %v6343 = vadd.f32 %v6182, %v6309
  %v6344 = vadd.f32 %v6183, %v6314
  %v6345 = vadd.f32 %v6184, %v6319
  %v6346 = vadd.f32 %v6185, %v6324
  %v6347 = vadd.f32 %v6186, %v6329
  %6348 = vmatprep.subr.mxu0 0.0
  %6349 = vmatpush1.msra.mxu0 0.0
  %6350 = vmatprep.subr.mxu0 0.0
  %6351 = vmatpush1.msra.mxu0 0.0
  %6352 = vmatprep.subr.mxu0 0.0
  %6353 = vmatpush1.msra.mxu0 0.0
  %6354 = vmatprep.subr.mxu0 0.0
  %6355 = vmatpush1.msra.mxu0 0.0
  %6356 = vmatprep.subr.mxu0 0.0
  %6357 = vmatpush1.msra.mxu0 0.0
  %6358 = vmatprep.subr.mxu0 0.0
  %6359 = vmatpush1.msra.mxu0 0.0
  %6360 = vmatprep.subr.mxu0 0.0
  %6361 = vmatpush1.msra.mxu0 0.0
  %6362 = vmatprep.subr.mxu0 0.0
  %6363 = vmatpush1.msra.mxu0 0.0
  %6364 = vmatprep.subr.mxu0 0.0
  %6365 = vmatpush1.msra.mxu0 0.0
  %6366 = vmatprep.subr.mxu0 0.0
  %6367 = vmatpush1.msra.mxu0 0.0
  %6368 = vmatprep.subr.mxu0 0.0
  %6369 = vmatpush1.msra.mxu0 0.0
  %6370 = vmatprep.subr.mxu0 0.0
  %6371 = vmatpush1.msra.mxu0 0.0
  %6372 = vmatprep.subr.mxu0 0.0
  %6373 = vmatpush1.msra.mxu0 0.0
  %6374 = vmatprep.subr.mxu0 0.0
  %6375 = vmatpush1.msra.mxu0 0.0
  %6376 = vmatprep.subr.mxu0 0.0
  %6377 = vmatpush1.msra.mxu0 0.0
  %6378 = vmatprep.subr.mxu0 0.0
  %6379 = vmatpush1.msra.mxu0 %v1224
  %6380 = vmatprep.subr.mxu0 0.0
  %6381 = vmatpush2.msra.mxu0 0.0
  %6382 = vmatprep.subr.mxu0 0.0
  %6383 = vmatpush2.msra.mxu0 0.0
  %6384 = vmatprep.subr.mxu0 0.0
  %6385 = vmatpush2.msra.mxu0 0.0
  %6386 = vmatprep.subr.mxu0 0.0
  %6387 = vmatpush2.msra.mxu0 0.0
  %6388 = vmatprep.subr.mxu0 0.0
  %6389 = vmatpush2.msra.mxu0 0.0
  %6390 = vmatprep.subr.mxu0 0.0
  %6391 = vmatpush2.msra.mxu0 0.0
  %6392 = vmatprep.subr.mxu0 0.0
  %6393 = vmatpush2.msra.mxu0 0.0
  %6394 = vmatprep.subr.mxu0 0.0
  %6395 = vmatpush2.msra.mxu0 0.0
  %6396 = vmatprep.subr.mxu0 0.0
  %6397 = vmatpush2.msra.mxu0 0.0
  %6398 = vmatprep.subr.mxu0 0.0
  %6399 = vmatpush2.msra.mxu0 0.0
  %6400 = vmatprep.subr.mxu0 0.0
  %6401 = vmatpush2.msra.mxu0 0.0
  %6402 = vmatprep.subr.mxu0 0.0
  %6403 = vmatpush2.msra.mxu0 0.0
  %6404 = vmatprep.subr.mxu0 0.0
  %6405 = vmatpush2.msra.mxu0 0.0
  %6406 = vmatprep.subr.mxu0 0.0
  %6407 = vmatpush2.msra.mxu0 0.0
  %6408 = vmatprep.subr.mxu0 0.0
  %6409 = vmatpush2.msra.mxu0 0.0
  %6410 = vmatprep.subr.mxu0 0.0
  %6411 = vmatpush2.msra.mxu0 0.0
  %6412 = vmatprep.mubr.f32.mxu0 0.0
  %6413 = vmatmul.mubr.f32.gmra.mxu0 %v3572
  %v6414 = vpop.f32.mrf.mxu0
  %v6415 = vadd.f32 0.0, %v6414
  %v6416 = vpop.f32.mrf.mxu0
  %6417 = vmatprep.mubr.f32.mxu0 0.0
  %6418 = vmatmul.mubr.f32.gmra.mxu0 %v3575
  %v6419 = vpop.f32.mrf.mxu0
  %v6420 = vadd.f32 0.0, %v6419
  %v6421 = vpop.f32.mrf.mxu0
  %6422 = vmatprep.mubr.f32.mxu0 0.0
  %6423 = vmatmul.mubr.f32.gmra.mxu0 %v3578
  %v6424 = vpop.f32.mrf.mxu0
  %v6425 = vadd.f32 0.0, %v6424
  %v6426 = vpop.f32.mrf.mxu0
  %6427 = vmatprep.mubr.f32.mxu0 0.0
  %6428 = vmatmul.mubr.f32.gmra.mxu0 %v3581
  %v6429 = vpop.f32.mrf.mxu0
  %v6430 = vadd.f32 0.0, %v6429
  %v6431 = vpop.f32.mrf.mxu0
  %6432 = vmatprep.mubr.f32.mxu0 0.0
  %6433 = vmatmul.mubr.f32.gmra.mxu0 %v3584
  %v6434 = vpop.f32.mrf.mxu0
  %v6435 = vadd.f32 0.0, %v6434
  %v6436 = vpop.f32.mrf.mxu0
  %6437 = vmatprep.mubr.f32.mxu0 0.0
  %6438 = vmatmul.mubr.f32.gmra.mxu0 %v3587
  %v6439 = vpop.f32.mrf.mxu0
  %v6440 = vadd.f32 0.0, %v6439
  %v6441 = vpop.f32.mrf.mxu0
  %6442 = vmatprep.mubr.f32.mxu0 0.0
  %6443 = vmatmul.mubr.f32.gmra.mxu0 %v3590
  %v6444 = vpop.f32.mrf.mxu0
  %v6445 = vadd.f32 0.0, %v6444
  %v6446 = vpop.f32.mrf.mxu0
  %6447 = vmatprep.mubr.f32.mxu0 0.0
  %6448 = vmatmul.mubr.f32.gmra.mxu0 %v3593
  %v6449 = vpop.f32.mrf.mxu0
  %v6450 = vadd.f32 0.0, %v6449
  %v6451 = vpop.f32.mrf.mxu0
  %6452 = vmatprep.mubr.f32.mxu0 0.0
  %6453 = vmatmul.mubr.f32.gmra.mxu0 %v3596
  %v6454 = vpop.f32.mrf.mxu0
  %v6455 = vadd.f32 0.0, %v6454
  %v6456 = vpop.f32.mrf.mxu0
  %6457 = vmatprep.mubr.f32.mxu0 0.0
  %6458 = vmatmul.mubr.f32.gmra.mxu0 %v3599
  %v6459 = vpop.f32.mrf.mxu0
  %v6460 = vadd.f32 0.0, %v6459
  %v6461 = vpop.f32.mrf.mxu0
  %6462 = vmatprep.mubr.f32.mxu0 0.0
  %6463 = vmatmul.mubr.f32.gmra.mxu0 %v3602
  %v6464 = vpop.f32.mrf.mxu0
  %v6465 = vadd.f32 0.0, %v6464
  %v6466 = vpop.f32.mrf.mxu0
  %6467 = vmatprep.mubr.f32.mxu0 0.0
  %6468 = vmatmul.mubr.f32.gmra.mxu0 %v3605
  %v6469 = vpop.f32.mrf.mxu0
  %v6470 = vadd.f32 0.0, %v6469
  %v6471 = vpop.f32.mrf.mxu0
  %6472 = vmatprep.mubr.f32.mxu0 0.0
  %6473 = vmatmul.mubr.f32.gmra.mxu0 %v3608
  %v6474 = vpop.f32.mrf.mxu0
  %v6475 = vadd.f32 0.0, %v6474
  %v6476 = vpop.f32.mrf.mxu0
  %6477 = vmatprep.mubr.f32.mxu0 0.0
  %6478 = vmatmul.mubr.f32.gmra.mxu0 %v3611
  %v6479 = vpop.f32.mrf.mxu0
  %v6480 = vadd.f32 0.0, %v6479
  %v6481 = vpop.f32.mrf.mxu0
  %6482 = vmatprep.mubr.f32.mxu0 0.0
  %6483 = vmatmul.mubr.f32.gmra.mxu0 %v3614
  %v6484 = vpop.f32.mrf.mxu0
  %v6485 = vadd.f32 0.0, %v6484
  %v6486 = vpop.f32.mrf.mxu0
  %6487 = vmatprep.mubr.f32.mxu0 0.0
  %6488 = vmatmul.mubr.f32.gmra.mxu0 %v3617
  %v6489 = vpop.f32.mrf.mxu0
  %v6490 = vadd.f32 0.0, %v6489
  %v6491 = vpop.f32.mrf.mxu0
  %6492 = vdwg.mxu0
  %v6493 = vadd.f32 %v6332, %v6415
  %v6494 = vadd.f32 %v6333, %v6420
  %v6495 = vadd.f32 %v6334, %v6425
  %v6496 = vadd.f32 %v6335, %v6430
  %v6497 = vadd.f32 %v6336, %v6435
  %v6498 = vadd.f32 %v6337, %v6440
  %v6499 = vadd.f32 %v6338, %v6445
  %v6500 = vadd.f32 %v6339, %v6450
  %v6501 = vadd.f32 %v6340, %v6455
  %v6502 = vadd.f32 %v6341, %v6460
  %v6503 = vadd.f32 %v6342, %v6465
  %v6504 = vadd.f32 %v6343, %v6470
  %v6505 = vadd.f32 %v6344, %v6475
  %v6506 = vadd.f32 %v6345, %v6480
  %v6507 = vadd.f32 %v6346, %v6485
  %v6508 = vadd.f32 %v6347, %v6490
  %6509 = vmatprep.subr.mxu0 0.0
  %6510 = vmatpush1.msra.mxu0 0.0
  %6511 = vmatprep.subr.mxu0 0.0
  %6512 = vmatpush1.msra.mxu0 0.0
  %6513 = vmatprep.subr.mxu0 0.0
  %6514 = vmatpush1.msra.mxu0 0.0
  %6515 = vmatprep.subr.mxu0 0.0
  %6516 = vmatpush1.msra.mxu0 0.0
  %6517 = vmatprep.subr.mxu0 0.0
  %6518 = vmatpush1.msra.mxu0 0.0
  %6519 = vmatprep.subr.mxu0 0.0
  %6520 = vmatpush1.msra.mxu0 0.0
  %6521 = vmatprep.subr.mxu0 0.0
  %6522 = vmatpush1.msra.mxu0 0.0
  %6523 = vmatprep.subr.mxu0 0.0
  %6524 = vmatpush1.msra.mxu0 0.0
  %6525 = vmatprep.subr.mxu0 0.0
  %6526 = vmatpush1.msra.mxu0 0.0
  %6527 = vmatprep.subr.mxu0 0.0
  %6528 = vmatpush1.msra.mxu0 0.0
  %6529 = vmatprep.subr.mxu0 0.0
  %6530 = vmatpush1.msra.mxu0 0.0
  %6531 = vmatprep.subr.mxu0 0.0
  %6532 = vmatpush1.msra.mxu0 0.0
  %6533 = vmatprep.subr.mxu0 0.0
  %6534 = vmatpush1.msra.mxu0 0.0
  %6535 = vmatprep.subr.mxu0 0.0
  %6536 = vmatpush1.msra.mxu0 0.0
  %6537 = vmatprep.subr.mxu0 0.0
  %6538 = vmatpush1.msra.mxu0 0.0
  %6539 = vmatprep.subr.mxu0 0.0
  %6540 = vmatpush1.msra.mxu0 %v1455
  %6541 = vmatprep.subr.mxu0 0.0
  %6542 = vmatpush2.msra.mxu0 0.0
  %6543 = vmatprep.subr.mxu0 0.0
  %6544 = vmatpush2.msra.mxu0 0.0
  %6545 = vmatprep.subr.mxu0 0.0
  %6546 = vmatpush2.msra.mxu0 0.0
  %6547 = vmatprep.subr.mxu0 0.0
  %6548 = vmatpush2.msra.mxu0 0.0
  %6549 = vmatprep.subr.mxu0 0.0
  %6550 = vmatpush2.msra.mxu0 0.0
  %6551 = vmatprep.subr.mxu0 0.0
  %6552 = vmatpush2.msra.mxu0 0.0
  %6553 = vmatprep.subr.mxu0 0.0
  %6554 = vmatpush2.msra.mxu0 0.0
  %6555 = vmatprep.subr.mxu0 0.0
  %6556 = vmatpush2.msra.mxu0 0.0
  %6557 = vmatprep.subr.mxu0 0.0
  %6558 = vmatpush2.msra.mxu0 0.0
  %6559 = vmatprep.subr.mxu0 0.0
  %6560 = vmatpush2.msra.mxu0 0.0
  %6561 = vmatprep.subr.mxu0 0.0
  %6562 = vmatpush2.msra.mxu0 0.0
  %6563 = vmatprep.subr.mxu0 0.0
  %6564 = vmatpush2.msra.mxu0 0.0
  %6565 = vmatprep.subr.mxu0 0.0
  %6566 = vmatpush2.msra.mxu0 0.0
  %6567 = vmatprep.subr.mxu0 0.0
  %6568 = vmatpush2.msra.mxu0 0.0
  %6569 = vmatprep.subr.mxu0 0.0
  %6570 = vmatpush2.msra.mxu0 0.0
  %6571 = vmatprep.subr.mxu0 0.0
  %6572 = vmatpush2.msra.mxu0 0.0
  %6573 = vmatprep.mubr.f32.mxu0 0.0
  %6574 = vmatmul.mubr.f32.gmra.mxu0 %v5050
  %v6575 = vpop.f32.mrf.mxu0
  %v6576 = vadd.f32 0.0, %v6575
  %v6577 = vpop.f32.mrf.mxu0
  %6578 = vmatprep.mubr.f32.mxu0 0.0
  %6579 = vmatmul.mubr.f32.gmra.mxu0 %v5053
  %v6580 = vpop.f32.mrf.mxu0
  %v6581 = vadd.f32 0.0, %v6580
  %v6582 = vpop.f32.mrf.mxu0
  %6583 = vmatprep.mubr.f32.mxu0 0.0
  %6584 = vmatmul.mubr.f32.gmra.mxu0 %v5056
  %v6585 = vpop.f32.mrf.mxu0
  %v6586 = vadd.f32 0.0, %v6585
  %v6587 = vpop.f32.mrf.mxu0
  %6588 = vmatprep.mubr.f32.mxu0 0.0
  %6589 = vmatmul.mubr.f32.gmra.mxu0 %v5059
  %v6590 = vpop.f32.mrf.mxu0
  %v6591 = vadd.f32 0.0, %v6590
  %v6592 = vpop.f32.mrf.mxu0
  %6593 = vmatprep.mubr.f32.mxu0 0.0
  %6594 = vmatmul.mubr.f32.gmra.mxu0 %v5062
  %v6595 = vpop.f32.mrf.mxu0
  %v6596 = vadd.f32 0.0, %v6595
  %v6597 = vpop.f32.mrf.mxu0
  %6598 = vmatprep.mubr.f32.mxu0 0.0
  %6599 = vmatmul.mubr.f32.gmra.mxu0 %v5065
  %v6600 = vpop.f32.mrf.mxu0
  %v6601 = vadd.f32 0.0, %v6600
  %v6602 = vpop.f32.mrf.mxu0
  %6603 = vmatprep.mubr.f32.mxu0 0.0
  %6604 = vmatmul.mubr.f32.gmra.mxu0 %v5068
  %v6605 = vpop.f32.mrf.mxu0
  %v6606 = vadd.f32 0.0, %v6605
  %v6607 = vpop.f32.mrf.mxu0
  %6608 = vmatprep.mubr.f32.mxu0 0.0
  %6609 = vmatmul.mubr.f32.gmra.mxu0 %v5071
  %v6610 = vpop.f32.mrf.mxu0
  %v6611 = vadd.f32 0.0, %v6610
  %v6612 = vpop.f32.mrf.mxu0
  %6613 = vmatprep.mubr.f32.mxu0 0.0
  %6614 = vmatmul.mubr.f32.gmra.mxu0 %v5074
  %v6615 = vpop.f32.mrf.mxu0
  %v6616 = vadd.f32 0.0, %v6615
  %v6617 = vpop.f32.mrf.mxu0
  %6618 = vmatprep.mubr.f32.mxu0 0.0
  %6619 = vmatmul.mubr.f32.gmra.mxu0 %v5077
  %v6620 = vpop.f32.mrf.mxu0
  %v6621 = vadd.f32 0.0, %v6620
  %v6622 = vpop.f32.mrf.mxu0
  %6623 = vmatprep.mubr.f32.mxu0 0.0
  %6624 = vmatmul.mubr.f32.gmra.mxu0 %v5080
  %v6625 = vpop.f32.mrf.mxu0
  %v6626 = vadd.f32 0.0, %v6625
  %v6627 = vpop.f32.mrf.mxu0
  %6628 = vmatprep.mubr.f32.mxu0 0.0
  %6629 = vmatmul.mubr.f32.gmra.mxu0 %v5083
  %v6630 = vpop.f32.mrf.mxu0
  %v6631 = vadd.f32 0.0, %v6630
  %v6632 = vpop.f32.mrf.mxu0
  %6633 = vmatprep.mubr.f32.mxu0 0.0
  %6634 = vmatmul.mubr.f32.gmra.mxu0 %v5086
  %v6635 = vpop.f32.mrf.mxu0
  %v6636 = vadd.f32 0.0, %v6635
  %v6637 = vpop.f32.mrf.mxu0
  %6638 = vmatprep.mubr.f32.mxu0 0.0
  %6639 = vmatmul.mubr.f32.gmra.mxu0 %v5089
  %v6640 = vpop.f32.mrf.mxu0
  %v6641 = vadd.f32 0.0, %v6640
  %v6642 = vpop.f32.mrf.mxu0
  %6643 = vmatprep.mubr.f32.mxu0 0.0
  %6644 = vmatmul.mubr.f32.gmra.mxu0 %v5092
  %v6645 = vpop.f32.mrf.mxu0
  %v6646 = vadd.f32 0.0, %v6645
  %v6647 = vpop.f32.mrf.mxu0
  %6648 = vmatprep.mubr.f32.mxu0 0.0
  %6649 = vmatmul.mubr.f32.gmra.mxu0 %v5095
  %v6650 = vpop.f32.mrf.mxu0
  %v6651 = vadd.f32 0.0, %v6650
  %v6652 = vpop.f32.mrf.mxu0
  %6653 = vdwg.mxu0
  %v6654 = vadd.f32 %v6493, %v6576
  %v6655 = vadd.f32 %v6494, %v6581
  %v6656 = vadd.f32 %v6495, %v6586
  %v6657 = vadd.f32 %v6496, %v6591
  %v6658 = vadd.f32 %v6497, %v6596
  %v6659 = vadd.f32 %v6498, %v6601
  %v6660 = vadd.f32 %v6499, %v6606
  %v6661 = vadd.f32 %v6500, %v6611
  %v6662 = vadd.f32 %v6501, %v6616
  %v6663 = vadd.f32 %v6502, %v6621
  %v6664 = vadd.f32 %v6503, %v6626
  %v6665 = vadd.f32 %v6504, %v6631
  %v6666 = vadd.f32 %v6505, %v6636
  %v6667 = vadd.f32 %v6506, %v6641
  %v6668 = vadd.f32 %v6507, %v6646
  %v6669 = vadd.f32 %v6508, %v6651
  %6670 = vmatprep.subr.mxu0 0.0
  %6671 = vmatpush1.msra.mxu0 0.0
  %6672 = vmatprep.subr.mxu0 0.0
  %6673 = vmatpush1.msra.mxu0 0.0
  %6674 = vmatprep.subr.mxu0 0.0
  %6675 = vmatpush1.msra.mxu0 0.0
  %6676 = vmatprep.subr.mxu0 0.0
  %6677 = vmatpush1.msra.mxu0 0.0
  %6678 = vmatprep.subr.mxu0 0.0
  %6679 = vmatpush1.msra.mxu0 0.0
  %6680 = vmatprep.subr.mxu0 0.0
  %6681 = vmatpush1.msra.mxu0 0.0
  %6682 = vmatprep.subr.mxu0 0.0
  %6683 = vmatpush1.msra.mxu0 0.0
  %6684 = vmatprep.subr.mxu0 0.0
  %6685 = vmatpush1.msra.mxu0 0.0
  %6686 = vmatprep.subr.mxu0 0.0
  %6687 = vmatpush1.msra.mxu0 0.0
  %6688 = vmatprep.subr.mxu0 0.0
  %6689 = vmatpush1.msra.mxu0 0.0
  %6690 = vmatprep.subr.mxu0 0.0
  %6691 = vmatpush1.msra.mxu0 0.0
  %6692 = vmatprep.subr.mxu0 0.0
  %6693 = vmatpush1.msra.mxu0 0.0
  %6694 = vmatprep.subr.mxu0 0.0
  %6695 = vmatpush1.msra.mxu0 0.0
  %6696 = vmatprep.subr.mxu0 0.0
  %6697 = vmatpush1.msra.mxu0 0.0
  %6698 = vmatprep.subr.mxu0 0.0
  %6699 = vmatpush1.msra.mxu0 0.0
  %6700 = vmatprep.subr.mxu0 0.0
  %6701 = vmatpush1.msra.mxu0 %v1686
  %6702 = vmatprep.subr.mxu0 0.0
  %6703 = vmatpush2.msra.mxu0 0.0
  %6704 = vmatprep.subr.mxu0 0.0
  %6705 = vmatpush2.msra.mxu0 0.0
  %6706 = vmatprep.subr.mxu0 0.0
  %6707 = vmatpush2.msra.mxu0 0.0
  %6708 = vmatprep.subr.mxu0 0.0
  %6709 = vmatpush2.msra.mxu0 0.0
  %6710 = vmatprep.subr.mxu0 0.0
  %6711 = vmatpush2.msra.mxu0 0.0
  %6712 = vmatprep.subr.mxu0 0.0
  %6713 = vmatpush2.msra.mxu0 0.0
  %6714 = vmatprep.subr.mxu0 0.0
  %6715 = vmatpush2.msra.mxu0 0.0
  %6716 = vmatprep.subr.mxu0 0.0
  %6717 = vmatpush2.msra.mxu0 0.0
  %6718 = vmatprep.subr.mxu0 0.0
  %6719 = vmatpush2.msra.mxu0 0.0
  %6720 = vmatprep.subr.mxu0 0.0
  %6721 = vmatpush2.msra.mxu0 0.0
  %6722 = vmatprep.subr.mxu0 0.0
  %6723 = vmatpush2.msra.mxu0 0.0
  %6724 = vmatprep.subr.mxu0 0.0
  %6725 = vmatpush2.msra.mxu0 0.0
  %6726 = vmatprep.subr.mxu0 0.0
  %6727 = vmatpush2.msra.mxu0 0.0
  %6728 = vmatprep.subr.mxu0 0.0
  %6729 = vmatpush2.msra.mxu0 0.0
  %6730 = vmatprep.subr.mxu0 0.0
  %6731 = vmatpush2.msra.mxu0 0.0
  %6732 = vmatprep.subr.mxu0 0.0
  %6733 = vmatpush2.msra.mxu0 0.0
  %6734 = vmatprep.mubr.f32.mxu0 0.0
  %6735 = vmatmul.mubr.f32.gmra.mxu0 %v5275
  %v6736 = vpop.f32.mrf.mxu0
  %v6737 = vadd.f32 0.0, %v6736
  %v6738 = vpop.f32.mrf.mxu0
  %6739 = vmatprep.mubr.f32.mxu0 0.0
  %6740 = vmatmul.mubr.f32.gmra.mxu0 %v5278
  %v6741 = vpop.f32.mrf.mxu0
  %v6742 = vadd.f32 0.0, %v6741
  %v6743 = vpop.f32.mrf.mxu0
  %6744 = vmatprep.mubr.f32.mxu0 0.0
  %6745 = vmatmul.mubr.f32.gmra.mxu0 %v5281
  %v6746 = vpop.f32.mrf.mxu0
  %v6747 = vadd.f32 0.0, %v6746
  %v6748 = vpop.f32.mrf.mxu0
  %6749 = vmatprep.mubr.f32.mxu0 0.0
  %6750 = vmatmul.mubr.f32.gmra.mxu0 %v5284
  %v6751 = vpop.f32.mrf.mxu0
  %v6752 = vadd.f32 0.0, %v6751
  %v6753 = vpop.f32.mrf.mxu0
  %6754 = vmatprep.mubr.f32.mxu0 0.0
  %6755 = vmatmul.mubr.f32.gmra.mxu0 %v5287
  %v6756 = vpop.f32.mrf.mxu0
  %v6757 = vadd.f32 0.0, %v6756
  %v6758 = vpop.f32.mrf.mxu0
  %6759 = vmatprep.mubr.f32.mxu0 0.0
  %6760 = vmatmul.mubr.f32.gmra.mxu0 %v5290
  %v6761 = vpop.f32.mrf.mxu0
  %v6762 = vadd.f32 0.0, %v6761
  %v6763 = vpop.f32.mrf.mxu0
  %6764 = vmatprep.mubr.f32.mxu0 0.0
  %6765 = vmatmul.mubr.f32.gmra.mxu0 %v5293
  %v6766 = vpop.f32.mrf.mxu0
  %v6767 = vadd.f32 0.0, %v6766
  %v6768 = vpop.f32.mrf.mxu0
  %6769 = vmatprep.mubr.f32.mxu0 0.0
  %6770 = vmatmul.mubr.f32.gmra.mxu0 %v5296
  %v6771 = vpop.f32.mrf.mxu0
  %v6772 = vadd.f32 0.0, %v6771
  %v6773 = vpop.f32.mrf.mxu0
  %6774 = vmatprep.mubr.f32.mxu0 0.0
  %6775 = vmatmul.mubr.f32.gmra.mxu0 %v5299
  %v6776 = vpop.f32.mrf.mxu0
  %v6777 = vadd.f32 0.0, %v6776
  %v6778 = vpop.f32.mrf.mxu0
  %6779 = vmatprep.mubr.f32.mxu0 0.0
  %6780 = vmatmul.mubr.f32.gmra.mxu0 %v5302
  %v6781 = vpop.f32.mrf.mxu0
  %v6782 = vadd.f32 0.0, %v6781
  %v6783 = vpop.f32.mrf.mxu0
  %6784 = vmatprep.mubr.f32.mxu0 0.0
  %6785 = vmatmul.mubr.f32.gmra.mxu0 %v5305
  %v6786 = vpop.f32.mrf.mxu0
  %v6787 = vadd.f32 0.0, %v6786
  %v6788 = vpop.f32.mrf.mxu0
  %6789 = vmatprep.mubr.f32.mxu0 0.0
  %6790 = vmatmul.mubr.f32.gmra.mxu0 %v5308
  %v6791 = vpop.f32.mrf.mxu0
  %v6792 = vadd.f32 0.0, %v6791
  %v6793 = vpop.f32.mrf.mxu0
  %6794 = vmatprep.mubr.f32.mxu0 0.0
  %6795 = vmatmul.mubr.f32.gmra.mxu0 %v5311
  %v6796 = vpop.f32.mrf.mxu0
  %v6797 = vadd.f32 0.0, %v6796
  %v6798 = vpop.f32.mrf.mxu0
  %6799 = vmatprep.mubr.f32.mxu0 0.0
  %6800 = vmatmul.mubr.f32.gmra.mxu0 %v5314
  %v6801 = vpop.f32.mrf.mxu0
  %v6802 = vadd.f32 0.0, %v6801
  %v6803 = vpop.f32.mrf.mxu0
  %6804 = vmatprep.mubr.f32.mxu0 0.0
  %6805 = vmatmul.mubr.f32.gmra.mxu0 %v5317
  %v6806 = vpop.f32.mrf.mxu0
  %v6807 = vadd.f32 0.0, %v6806
  %v6808 = vpop.f32.mrf.mxu0
  %6809 = vmatprep.mubr.f32.mxu0 0.0
  %6810 = vmatmul.mubr.f32.gmra.mxu0 %v5320
  %v6811 = vpop.f32.mrf.mxu0
  %v6812 = vadd.f32 0.0, %v6811
  %v6813 = vpop.f32.mrf.mxu0
  %6814 = vdwg.mxu0
  %v6815 = vadd.f32 %v6654, %v6737
  %v6816 = vadd.f32 %v6655, %v6742
  %v6817 = vadd.f32 %v6656, %v6747
  %v6818 = vadd.f32 %v6657, %v6752
  %v6819 = vadd.f32 %v6658, %v6757
  %v6820 = vadd.f32 %v6659, %v6762
  %v6821 = vadd.f32 %v6660, %v6767
  %v6822 = vadd.f32 %v6661, %v6772
  %v6823 = vadd.f32 %v6662, %v6777
  %v6824 = vadd.f32 %v6663, %v6782
  %v6825 = vadd.f32 %v6664, %v6787
  %v6826 = vadd.f32 %v6665, %v6792
  %v6827 = vadd.f32 %v6666, %v6797
  %v6828 = vadd.f32 %v6667, %v6802
  %v6829 = vadd.f32 %v6668, %v6807
  %v6830 = vadd.f32 %v6669, %v6812
  %v6831 = vld [vmem:[%s5032 + $0x1] sm:$0xff]
  %v6832 = vld [vmem:[%s5032 + $0x11] sm:$0xff]
  %v6833 = vld [vmem:[%s5032 + $0x21] sm:$0xff]
  %v6834 = vld [vmem:[%s5032 + $0x31] sm:$0xff]
  %v6835 = vld [vmem:[%s5032 + $0x41] sm:$0xff]
  %v6836 = vld [vmem:[%s5032 + $0x51] sm:$0xff]
  %v6837 = vld [vmem:[%s5032 + $0x61] sm:$0xff]
  %v6838 = vld [vmem:[%s5032 + $0x71] sm:$0xff]
  %v6839 = vld [vmem:[%s5032 + $0x91] sm:$0xff]
  %v6840 = vld [vmem:[%s5032 + $0xa1] sm:$0xff]
  %v6841 = vld [vmem:[%s5032 + $0xb1] sm:$0xff]
  %v6842 = vld [vmem:[%s5032 + $0xc1] sm:$0xff]
  %v6843 = vld [vmem:[%s5032 + $0xd1] sm:$0xff]
  %v6844 = vld [vmem:[%s5032 + $0xe1] sm:$0xff]
  %v6845 = vld [vmem:[%s5032 + $0xf1] sm:$0xff]
  %v6846 = vld [vmem:[%s5032 + $0x101] sm:$0xff]
  %v6848 = vsel %vm73, %v6831, 0
  %v6851 = vsel %vm73, %v6832, 0
  %v6854 = vsel %vm73, %v6833, 0
  %v6857 = vsel %vm73, %v6834, 0
  %v6860 = vsel %vm73, %v6835, 0
  %v6863 = vsel %vm73, %v6836, 0
  %v6866 = vsel %vm73, %v6837, 0
  %v6869 = vsel %vm73, %v6838, 0
  %v6872 = vsel %vm73, %v6839, 0
  %v6875 = vsel %vm73, %v6840, 0
  %v6878 = vsel %vm73, %v6841, 0
  %v6881 = vsel %vm73, %v6842, 0
  %v6884 = vsel %vm73, %v6843, 0
  %v6887 = vsel %vm73, %v6844, 0
  %v6890 = vsel %vm73, %v6845, 0
  %v6893 = vsel %vm73, %v6846, 0
  %6895 = vmatprep.subr.mxu0 0.0
  %6896 = vmatpush1.msra.mxu0 0.0
  %6897 = vmatprep.subr.mxu0 0.0
  %6898 = vmatpush1.msra.mxu0 0.0
  %6899 = vmatprep.subr.mxu0 0.0
  %6900 = vmatpush1.msra.mxu0 0.0
  %6901 = vmatprep.subr.mxu0 0.0
  %6902 = vmatpush1.msra.mxu0 0.0
  %6903 = vmatprep.subr.mxu0 0.0
  %6904 = vmatpush1.msra.mxu0 0.0
  %6905 = vmatprep.subr.mxu0 0.0
  %6906 = vmatpush1.msra.mxu0 0.0
  %6907 = vmatprep.subr.mxu0 0.0
  %6908 = vmatpush1.msra.mxu0 0.0
  %6909 = vmatprep.subr.mxu0 0.0
  %6910 = vmatpush1.msra.mxu0 0.0
  %6911 = vmatprep.subr.mxu0 0.0
  %6912 = vmatpush1.msra.mxu0 0.0
  %6913 = vmatprep.subr.mxu0 0.0
  %6914 = vmatpush1.msra.mxu0 0.0
  %6915 = vmatprep.subr.mxu0 0.0
  %6916 = vmatpush1.msra.mxu0 0.0
  %6917 = vmatprep.subr.mxu0 0.0
  %6918 = vmatpush1.msra.mxu0 0.0
  %6919 = vmatprep.subr.mxu0 0.0
  %6920 = vmatpush1.msra.mxu0 0.0
  %6921 = vmatprep.subr.mxu0 0.0
  %6922 = vmatpush1.msra.mxu0 0.0
  %6923 = vmatprep.subr.mxu0 0.0
  %6924 = vmatpush1.msra.mxu0 0.0
  %6925 = vmatprep.subr.mxu0 0.0
  %6926 = vmatpush1.msra.mxu0 %v1916
  %6927 = vmatprep.subr.mxu0 0.0
  %6928 = vmatpush2.msra.mxu0 0.0
  %6929 = vmatprep.subr.mxu0 0.0
  %6930 = vmatpush2.msra.mxu0 0.0
  %6931 = vmatprep.subr.mxu0 0.0
  %6932 = vmatpush2.msra.mxu0 0.0
  %6933 = vmatprep.subr.mxu0 0.0
  %6934 = vmatpush2.msra.mxu0 0.0
  %6935 = vmatprep.subr.mxu0 0.0
  %6936 = vmatpush2.msra.mxu0 0.0
  %6937 = vmatprep.subr.mxu0 0.0
  %6938 = vmatpush2.msra.mxu0 0.0
  %6939 = vmatprep.subr.mxu0 0.0
  %6940 = vmatpush2.msra.mxu0 0.0
  %6941 = vmatprep.subr.mxu0 0.0
  %6942 = vmatpush2.msra.mxu0 0.0
  %6943 = vmatprep.subr.mxu0 0.0
  %6944 = vmatpush2.msra.mxu0 0.0
  %6945 = vmatprep.subr.mxu0 0.0
  %6946 = vmatpush2.msra.mxu0 0.0
  %6947 = vmatprep.subr.mxu0 0.0
  %6948 = vmatpush2.msra.mxu0 0.0
  %6949 = vmatprep.subr.mxu0 0.0
  %6950 = vmatpush2.msra.mxu0 0.0
  %6951 = vmatprep.subr.mxu0 0.0
  %6952 = vmatpush2.msra.mxu0 0.0
  %6953 = vmatprep.subr.mxu0 0.0
  %6954 = vmatpush2.msra.mxu0 0.0
  %6955 = vmatprep.subr.mxu0 0.0
  %6956 = vmatpush2.msra.mxu0 0.0
  %6957 = vmatprep.subr.mxu0 0.0
  %6958 = vmatpush2.msra.mxu0 0.0
  %6959 = vmatprep.mubr.f32.mxu0 0.0
  %6960 = vmatmul.mubr.f32.gmra.mxu0 %v6848
  %v6961 = vpop.f32.mrf.mxu0
  %v6962 = vadd.f32 0.0, %v6961
  %v6963 = vpop.f32.mrf.mxu0
  %6964 = vmatprep.mubr.f32.mxu0 0.0
  %6965 = vmatmul.mubr.f32.gmra.mxu0 %v6851
  %v6966 = vpop.f32.mrf.mxu0
  %v6967 = vadd.f32 0.0, %v6966
  %v6968 = vpop.f32.mrf.mxu0
  %6969 = vmatprep.mubr.f32.mxu0 0.0
  %6970 = vmatmul.mubr.f32.gmra.mxu0 %v6854
  %v6971 = vpop.f32.mrf.mxu0
  %v6972 = vadd.f32 0.0, %v6971
  %v6973 = vpop.f32.mrf.mxu0
  %6974 = vmatprep.mubr.f32.mxu0 0.0
  %6975 = vmatmul.mubr.f32.gmra.mxu0 %v6857
  %v6976 = vpop.f32.mrf.mxu0
  %v6977 = vadd.f32 0.0, %v6976
  %v6978 = vpop.f32.mrf.mxu0
  %6979 = vmatprep.mubr.f32.mxu0 0.0
  %6980 = vmatmul.mubr.f32.gmra.mxu0 %v6860
  %v6981 = vpop.f32.mrf.mxu0
  %v6982 = vadd.f32 0.0, %v6981
  %v6983 = vpop.f32.mrf.mxu0
  %6984 = vmatprep.mubr.f32.mxu0 0.0
  %6985 = vmatmul.mubr.f32.gmra.mxu0 %v6863
  %v6986 = vpop.f32.mrf.mxu0
  %v6987 = vadd.f32 0.0, %v6986
  %v6988 = vpop.f32.mrf.mxu0
  %6989 = vmatprep.mubr.f32.mxu0 0.0
  %6990 = vmatmul.mubr.f32.gmra.mxu0 %v6866
  %v6991 = vpop.f32.mrf.mxu0
  %v6992 = vadd.f32 0.0, %v6991
  %v6993 = vpop.f32.mrf.mxu0
  %6994 = vmatprep.mubr.f32.mxu0 0.0
  %6995 = vmatmul.mubr.f32.gmra.mxu0 %v6869
  %v6996 = vpop.f32.mrf.mxu0
  %v6997 = vadd.f32 0.0, %v6996
  %v6998 = vpop.f32.mrf.mxu0
  %6999 = vmatprep.mubr.f32.mxu0 0.0
  %7000 = vmatmul.mubr.f32.gmra.mxu0 %v6872
  %v7001 = vpop.f32.mrf.mxu0
  %v7002 = vadd.f32 0.0, %v7001
  %v7003 = vpop.f32.mrf.mxu0
  %7004 = vmatprep.mubr.f32.mxu0 0.0
  %7005 = vmatmul.mubr.f32.gmra.mxu0 %v6875
  %v7006 = vpop.f32.mrf.mxu0
  %v7007 = vadd.f32 0.0, %v7006
  %v7008 = vpop.f32.mrf.mxu0
  %7009 = vmatprep.mubr.f32.mxu0 0.0
  %7010 = vmatmul.mubr.f32.gmra.mxu0 %v6878
  %v7011 = vpop.f32.mrf.mxu0
  %v7012 = vadd.f32 0.0, %v7011
  %v7013 = vpop.f32.mrf.mxu0
  %7014 = vmatprep.mubr.f32.mxu0 0.0
  %7015 = vmatmul.mubr.f32.gmra.mxu0 %v6881
  %v7016 = vpop.f32.mrf.mxu0
  %v7017 = vadd.f32 0.0, %v7016
  %v7018 = vpop.f32.mrf.mxu0
  %7019 = vmatprep.mubr.f32.mxu0 0.0
  %7020 = vmatmul.mubr.f32.gmra.mxu0 %v6884
  %v7021 = vpop.f32.mrf.mxu0
  %v7022 = vadd.f32 0.0, %v7021
  %v7023 = vpop.f32.mrf.mxu0
  %7024 = vmatprep.mubr.f32.mxu0 0.0
  %7025 = vmatmul.mubr.f32.gmra.mxu0 %v6887
  %v7026 = vpop.f32.mrf.mxu0
  %v7027 = vadd.f32 0.0, %v7026
  %v7028 = vpop.f32.mrf.mxu0
  %7029 = vmatprep.mubr.f32.mxu0 0.0
  %7030 = vmatmul.mubr.f32.gmra.mxu0 %v6890
  %v7031 = vpop.f32.mrf.mxu0
  %v7032 = vadd.f32 0.0, %v7031
  %v7033 = vpop.f32.mrf.mxu0
  %7034 = vmatprep.mubr.f32.mxu0 0.0
  %7035 = vmatmul.mubr.f32.gmra.mxu0 %v6893
  %v7036 = vpop.f32.mrf.mxu0
  %v7037 = vadd.f32 0.0, %v7036
  %v7038 = vpop.f32.mrf.mxu0
  %7039 = vdwg.mxu0
  %v7040 = vadd.f32 %v6815, %v6962
  %v7041 = vadd.f32 %v6816, %v6967
  %v7042 = vadd.f32 %v6817, %v6972
  %v7043 = vadd.f32 %v6818, %v6977
  %v7044 = vadd.f32 %v6819, %v6982
  %v7045 = vadd.f32 %v6820, %v6987
  %v7046 = vadd.f32 %v6821, %v6992
  %v7047 = vadd.f32 %v6822, %v6997
  %v7048 = vadd.f32 %v6823, %v7002
  %v7049 = vadd.f32 %v6824, %v7007
  %v7050 = vadd.f32 %v6825, %v7012
  %v7051 = vadd.f32 %v6826, %v7017
  %v7052 = vadd.f32 %v6827, %v7022
  %v7053 = vadd.f32 %v6828, %v7027
  %v7054 = vadd.f32 %v6829, %v7032
  %v7055 = vadd.f32 %v6830, %v7037
  %v7056 = vsel %vm73, %v7040, 0.0
  %v7057 = vsel %vm73, %v7041, 0.0
  %v7058 = vadd.f32 %v7056, %v7057
  %v7059 = vsel %vm73, %v7042, 0.0
  %v7060 = vadd.f32 %v7058, %v7059
  %v7061 = vsel %vm73, %v7043, 0.0
  %v7062 = vadd.f32 %v7060, %v7061
  %v7063 = vsel %vm73, %v7044, 0.0
  %v7064 = vadd.f32 %v7062, %v7063
  %v7065 = vsel %vm73, %v7045, 0.0
  %v7066 = vadd.f32 %v7064, %v7065
  %v7067 = vsel %vm73, %v7046, 0.0
  %v7068 = vadd.f32 %v7066, %v7067
  %v7069 = vsel %vm73, %v7047, 0.0
  %v7070 = vadd.f32 %v7068, %v7069
  %v7071 = vsel %vm73, %v7048, 0.0
  %v7072 = vadd.f32 %v7070, %v7071
  %v7073 = vsel %vm73, %v7049, 0.0
  %v7074 = vadd.f32 %v7072, %v7073
  %v7075 = vsel %vm73, %v7050, 0.0
  %v7076 = vadd.f32 %v7074, %v7075
  %v7077 = vsel %vm73, %v7051, 0.0
  %v7078 = vadd.f32 %v7076, %v7077
  %v7079 = vsel %vm73, %v7052, 0.0
  %v7080 = vadd.f32 %v7078, %v7079
  %v7081 = vsel %vm73, %v7053, 0.0
  %v7082 = vadd.f32 %v7080, %v7081
  %v7083 = vsel %vm73, %v7054, 0.0
  %v7084 = vadd.f32 %v7082, %v7083
  %v7085 = vsel %vm73, %v7055, 0.0
  %v7086 = vadd.f32 %v7084, %v7085
  %v7087 = vrot.slane %v7086, 4
  %v7088 = vadd.f32 %v7086, %v7087
  %v7089 = vrot.slane %v7088, 2
  %v7090 = vadd.f32 %v7088, %v7089
  %v7091 = vrot.slane %v7090, 1
  %v7092 = vadd.f32 %v7090, %v7091
  %v7093 = vadd.f32 %v5520, %v7092
  %v7094 = vmul.f32 %v7040, %v7040
  %v7095 = vmul.f32 %v7041, %v7041
  %v7096 = vmul.f32 %v7042, %v7042
  %v7097 = vmul.f32 %v7043, %v7043
  %v7098 = vmul.f32 %v7044, %v7044
  %v7099 = vmul.f32 %v7045, %v7045
  %v7100 = vmul.f32 %v7046, %v7046
  %v7101 = vmul.f32 %v7047, %v7047
  %v7102 = vmul.f32 %v7048, %v7048
  %v7103 = vmul.f32 %v7049, %v7049
  %v7104 = vmul.f32 %v7050, %v7050
  %v7105 = vmul.f32 %v7051, %v7051
  %v7106 = vmul.f32 %v7052, %v7052
  %v7107 = vmul.f32 %v7053, %v7053
  %v7108 = vmul.f32 %v7054, %v7054
  %v7109 = vmul.f32 %v7055, %v7055
  %v7110 = vsel %vm73, %v7094, 0.0
  %v7111 = vsel %vm73, %v7095, 0.0
  %v7112 = vadd.f32 %v7110, %v7111
  %v7113 = vsel %vm73, %v7096, 0.0
  %v7114 = vadd.f32 %v7112, %v7113
  %v7115 = vsel %vm73, %v7097, 0.0
  %v7116 = vadd.f32 %v7114, %v7115
  %v7117 = vsel %vm73, %v7098, 0.0
  %v7118 = vadd.f32 %v7116, %v7117
  %v7119 = vsel %vm73, %v7099, 0.0
  %v7120 = vadd.f32 %v7118, %v7119
  %v7121 = vsel %vm73, %v7100, 0.0
  %v7122 = vadd.f32 %v7120, %v7121
  %v7123 = vsel %vm73, %v7101, 0.0
  %v7124 = vadd.f32 %v7122, %v7123
  %v7125 = vsel %vm73, %v7102, 0.0
  %v7126 = vadd.f32 %v7124, %v7125
  %v7127 = vsel %vm73, %v7103, 0.0
  %v7128 = vadd.f32 %v7126, %v7127
  %v7129 = vsel %vm73, %v7104, 0.0
  %v7130 = vadd.f32 %v7128, %v7129
  %v7131 = vsel %vm73, %v7105, 0.0
  %v7132 = vadd.f32 %v7130, %v7131
  %v7133 = vsel %vm73, %v7106, 0.0
  %v7134 = vadd.f32 %v7132, %v7133
  %v7135 = vsel %vm73, %v7107, 0.0
  %v7136 = vadd.f32 %v7134, %v7135
  %v7137 = vsel %vm73, %v7108, 0.0
  %v7138 = vadd.f32 %v7136, %v7137
  %v7139 = vsel %vm73, %v7109, 0.0
  %v7140 = vadd.f32 %v7138, %v7139
  %v7141 = vrot.slane %v7140, 4
  %v7142 = vadd.f32 %v7140, %v7141
  %v7143 = vrot.slane %v7142, 2
  %v7144 = vadd.f32 %v7142, %v7143
  %v7145 = vrot.slane %v7144, 1
  %v7146 = vadd.f32 %v7144, %v7145
  %v7147 = vadd.f32 %v5574, %v7146
  %v7148 = vrcp.pop 512.0
  %v7149 = vmul.f32 %v7093, %v7148
  %v7150 = vmul.f32 %v7147, %v7148
  %v7151 = vmul.f32 %v7149, %v7149
  %v7152 = vsub.f32 %v7150, %v7151
  %v7153 = vadd.f32 %v7152, 1e-05
  %v7154 = vrsqrt.pop %v7153
  %v7155 = vld [vmem:[%s5] sm:$0x1]
  %v7156 = vmul.f32 %v7154, %v7155
  %v7157 = vld [vmem:[%s6] sm:$0x1]
  %v7158 = vmul.f32 %v7149, %v7156
  %v7159 = vsub.f32 %v7157, %v7158
  %7160 = vst.msk [vmem:[#allocation2] sm:$0xff] %vm73, 0.0
  %vm7161 = vcmask 24576
  %7162 = vst.msk [vmem:[#allocation2 + $0x8] sm:$0x1] %vm7161, 0.0
  %7163 = vst.msk [vmem:[#allocation2 + $0x10] sm:$0xff] %vm73, 0.0
  %7164 = vst.msk [vmem:[#allocation2 + $0x18] sm:$0x1] %vm7161, 0.0
  %7165 = vst.msk [vmem:[#allocation2 + $0x20] sm:$0xff] %vm73, 0.0
  %7166 = vst.msk [vmem:[#allocation2 + $0x28] sm:$0x1] %vm7161, 0.0
  %7167 = vst.msk [vmem:[#allocation2 + $0x30] sm:$0xff] %vm73, 0.0
  %7168 = vst.msk [vmem:[#allocation2 + $0x38] sm:$0x1] %vm7161, 0.0
  %7169 = vst.msk [vmem:[#allocation2 + $0x40] sm:$0xff] %vm73, 0.0
  %7170 = vst.msk [vmem:[#allocation2 + $0x48] sm:$0x1] %vm7161, 0.0
  %7171 = vst.msk [vmem:[#allocation2 + $0x50] sm:$0xff] %vm73, 0.0
  %7172 = vst.msk [vmem:[#allocation2 + $0x58] sm:$0x1] %vm7161, 0.0
  %7173 = vst.msk [vmem:[#allocation2 + $0x60] sm:$0xff] %vm73, 0.0
  %7174 = vst.msk [vmem:[#allocation2 + $0x68] sm:$0x1] %vm7161, 0.0
  %7175 = vst.msk [vmem:[#allocation2 + $0x70] sm:$0xff] %vm73, 0.0
  %7176 = vst.msk [vmem:[#allocation2 + $0x78] sm:$0x1] %vm7161, 0.0
  %7177 = vst.msk [vmem:[#allocation2 + $0x80] sm:$0xff] %vm73, 0.0
  %7178 = vst.msk [vmem:[#allocation2 + $0x88] sm:$0x1] %vm7161, 0.0
  %7179 = vst.msk [vmem:[#allocation2 + $0x90] sm:$0xff] %vm73, 0.0
  %7180 = vst.msk [vmem:[#allocation2 + $0x98] sm:$0x1] %vm7161, 0.0
  %7181 = vst.msk [vmem:[#allocation2 + $0xa0] sm:$0xff] %vm73, 0.0
  %7182 = vst.msk [vmem:[#allocation2 + $0xa8] sm:$0x1] %vm7161, 0.0
  %7183 = vst.msk [vmem:[#allocation2 + $0xb0] sm:$0xff] %vm73, 0.0
  %7184 = vst.msk [vmem:[#allocation2 + $0xb8] sm:$0x1] %vm7161, 0.0
  %7185 = vst.msk [vmem:[#allocation2 + $0xc0] sm:$0xff] %vm73, 0.0
  %7186 = vst.msk [vmem:[#allocation2 + $0xc8] sm:$0x1] %vm7161, 0.0
  %7187 = vst.msk [vmem:[#allocation2 + $0xd0] sm:$0xff] %vm73, 0.0
  %7188 = vst.msk [vmem:[#allocation2 + $0xd8] sm:$0x1] %vm7161, 0.0
  %7189 = vst.msk [vmem:[#allocation2 + $0xe0] sm:$0xff] %vm73, 0.0
  %7190 = vst.msk [vmem:[#allocation2 + $0xe8] sm:$0x1] %vm7161, 0.0
  %7191 = vst.msk [vmem:[#allocation2 + $0xf0] sm:$0xff] %vm73, 0.0
  %7192 = vst.msk [vmem:[#allocation2 + $0xf8] sm:$0x1] %vm7161, 0.0
  %7193 = vst.msk [vmem:[#allocation2 + $0x100] sm:$0xff] %vm73, 0.0
  %7194 = vst.msk [vmem:[#allocation2 + $0x108] sm:$0x1] %vm7161, 0.0
  %7195 = vst.msk [vmem:[#allocation2 + $0x110] sm:$0xff] %vm73, 0.0
  %7196 = vst.msk [vmem:[#allocation2 + $0x118] sm:$0x1] %vm7161, 0.0
  %7197 = vst.msk [vmem:[#allocation3] sm:$0xff] %vm73, 0.0
  %7198 = vst.msk [vmem:[#allocation3 + $0x8] sm:$0x1] %vm7161, 0.0
  %7199 = vst.msk [vmem:[#allocation3 + $0x10] sm:$0xff] %vm73, 0.0
  %7200 = vst.msk [vmem:[#allocation3 + $0x18] sm:$0x1] %vm7161, 0.0
  %7201 = vst.msk [vmem:[#allocation3 + $0x20] sm:$0xff] %vm73, 0.0
  %7202 = vst.msk [vmem:[#allocation3 + $0x28] sm:$0x1] %vm7161, 0.0
  %7203 = vst.msk [vmem:[#allocation3 + $0x30] sm:$0xff] %vm73, 0.0
  %7204 = vst.msk [vmem:[#allocation3 + $0x38] sm:$0x1] %vm7161, 0.0
  %7205 = vst.msk [vmem:[#allocation3 + $0x40] sm:$0xff] %vm73, 0.0
  %7206 = vst.msk [vmem:[#allocation3 + $0x48] sm:$0x1] %vm7161, 0.0
  %7207 = vst.msk [vmem:[#allocation3 + $0x50] sm:$0xff] %vm73, 0.0
  %7208 = vst.msk [vmem:[#allocation3 + $0x58] sm:$0x1] %vm7161, 0.0
  %7209 = vst.msk [vmem:[#allocation3 + $0x60] sm:$0xff] %vm73, 0.0
  %7210 = vst.msk [vmem:[#allocation3 + $0x68] sm:$0x1] %vm7161, 0.0
  %7211 = vst.msk [vmem:[#allocation3 + $0x70] sm:$0xff] %vm73, 0.0
  %7212 = vst.msk [vmem:[#allocation3 + $0x78] sm:$0x1] %vm7161, 0.0
  %7213 = vst.msk [vmem:[#allocation3 + $0x80] sm:$0xff] %vm73, 0.0
  %7214 = vst.msk [vmem:[#allocation3 + $0x88] sm:$0x1] %vm7161, 0.0
  %7215 = vst.msk [vmem:[#allocation3 + $0x90] sm:$0xff] %vm73, 0.0
  %7216 = vst.msk [vmem:[#allocation3 + $0x98] sm:$0x1] %vm7161, 0.0
  %7217 = vst.msk [vmem:[#allocation3 + $0xa0] sm:$0xff] %vm73, 0.0
  %7218 = vst.msk [vmem:[#allocation3 + $0xa8] sm:$0x1] %vm7161, 0.0
  %7219 = vst.msk [vmem:[#allocation3 + $0xb0] sm:$0xff] %vm73, 0.0
  %7220 = vst.msk [vmem:[#allocation3 + $0xb8] sm:$0x1] %vm7161, 0.0
  %7221 = vst.msk [vmem:[#allocation3 + $0xc0] sm:$0xff] %vm73, 0.0
  %7222 = vst.msk [vmem:[#allocation3 + $0xc8] sm:$0x1] %vm7161, 0.0
  %7223 = vst.msk [vmem:[#allocation3 + $0xd0] sm:$0xff] %vm73, 0.0
  %7224 = vst.msk [vmem:[#allocation3 + $0xd8] sm:$0x1] %vm7161, 0.0
  %7225 = vst.msk [vmem:[#allocation3 + $0xe0] sm:$0xff] %vm73, 0.0
  %7226 = vst.msk [vmem:[#allocation3 + $0xe8] sm:$0x1] %vm7161, 0.0
  %7227 = vst.msk [vmem:[#allocation3 + $0xf0] sm:$0xff] %vm73, 0.0
  %7228 = vst.msk [vmem:[#allocation3 + $0xf8] sm:$0x1] %vm7161, 0.0
  %7229 = vst.msk [vmem:[#allocation3 + $0x100] sm:$0xff] %vm73, 0.0
  %7230 = vst.msk [vmem:[#allocation3 + $0x108] sm:$0x1] %vm7161, 0.0
  %7231 = vst.msk [vmem:[#allocation3 + $0x110] sm:$0xff] %vm73, 0.0
  %7232 = vst.msk [vmem:[#allocation3 + $0x118] sm:$0x1] %vm7161, 0.0
  %7233 = vst.msk [vmem:[#allocation4] sm:$0xff] %vm73, 0.0
  %7234 = vst.msk [vmem:[#allocation4 + $0x8] sm:$0x1] %vm7161, 0.0
  %7235 = vst.msk [vmem:[#allocation4 + $0x10] sm:$0xff] %vm73, 0.0
  %7236 = vst.msk [vmem:[#allocation4 + $0x18] sm:$0x1] %vm7161, 0.0
  %7237 = vst.msk [vmem:[#allocation4 + $0x20] sm:$0xff] %vm73, 0.0
  %7238 = vst.msk [vmem:[#allocation4 + $0x28] sm:$0x1] %vm7161, 0.0
  %7239 = vst.msk [vmem:[#allocation4 + $0x30] sm:$0xff] %vm73, 0.0
  %7240 = vst.msk [vmem:[#allocation4 + $0x38] sm:$0x1] %vm7161, 0.0
  %7241 = vst.msk [vmem:[#allocation4 + $0x40] sm:$0xff] %vm73, 0.0
  %7242 = vst.msk [vmem:[#allocation4 + $0x48] sm:$0x1] %vm7161, 0.0
  %7243 = vst.msk [vmem:[#allocation4 + $0x50] sm:$0xff] %vm73, 0.0
  %7244 = vst.msk [vmem:[#allocation4 + $0x58] sm:$0x1] %vm7161, 0.0
  %7245 = vst.msk [vmem:[#allocation4 + $0x60] sm:$0xff] %vm73, 0.0
  %7246 = vst.msk [vmem:[#allocation4 + $0x68] sm:$0x1] %vm7161, 0.0
  %7247 = vst.msk [vmem:[#allocation4 + $0x70] sm:$0xff] %vm73, 0.0
  %7248 = vst.msk [vmem:[#allocation4 + $0x78] sm:$0x1] %vm7161, 0.0
  %7249 = vst.msk [vmem:[#allocation4 + $0x80] sm:$0xff] %vm73, 0.0
  %7250 = vst.msk [vmem:[#allocation4 + $0x88] sm:$0x1] %vm7161, 0.0
  %7251 = vst.msk [vmem:[#allocation4 + $0x90] sm:$0xff] %vm73, 0.0
  %7252 = vst.msk [vmem:[#allocation4 + $0x98] sm:$0x1] %vm7161, 0.0
  %7253 = vst.msk [vmem:[#allocation4 + $0xa0] sm:$0xff] %vm73, 0.0
  %7254 = vst.msk [vmem:[#allocation4 + $0xa8] sm:$0x1] %vm7161, 0.0
  %7255 = vst.msk [vmem:[#allocation4 + $0xb0] sm:$0xff] %vm73, 0.0
  %7256 = vst.msk [vmem:[#allocation4 + $0xb8] sm:$0x1] %vm7161, 0.0
  %7257 = vst.msk [vmem:[#allocation4 + $0xc0] sm:$0xff] %vm73, 0.0
  %7258 = vst.msk [vmem:[#allocation4 + $0xc8] sm:$0x1] %vm7161, 0.0
  %7259 = vst.msk [vmem:[#allocation4 + $0xd0] sm:$0xff] %vm73, 0.0
  %7260 = vst.msk [vmem:[#allocation4 + $0xd8] sm:$0x1] %vm7161, 0.0
  %7261 = vst.msk [vmem:[#allocation4 + $0xe0] sm:$0xff] %vm73, 0.0
  %7262 = vst.msk [vmem:[#allocation4 + $0xe8] sm:$0x1] %vm7161, 0.0
  %7263 = vst.msk [vmem:[#allocation4 + $0xf0] sm:$0xff] %vm73, 0.0
  %7264 = vst.msk [vmem:[#allocation4 + $0xf8] sm:$0x1] %vm7161, 0.0
  %7265 = vst.msk [vmem:[#allocation4 + $0x100] sm:$0xff] %vm73, 0.0
  %7266 = vst.msk [vmem:[#allocation4 + $0x108] sm:$0x1] %vm7161, 0.0
  %7267 = vst.msk [vmem:[#allocation4 + $0x110] sm:$0xff] %vm73, 0.0
  %7268 = vst.msk [vmem:[#allocation4 + $0x118] sm:$0x1] %vm7161, 0.0
  %7269 = vst.msk [vmem:[#allocation5] sm:$0xff] %vm73, 0.0
  %7270 = vst.msk [vmem:[#allocation5 + $0x8] sm:$0x1] %vm7161, 0.0
  %7271 = vst.msk [vmem:[#allocation5 + $0x10] sm:$0xff] %vm73, 0.0
  %7272 = vst.msk [vmem:[#allocation5 + $0x18] sm:$0x1] %vm7161, 0.0
  %7273 = vst.msk [vmem:[#allocation5 + $0x20] sm:$0xff] %vm73, 0.0
  %7274 = vst.msk [vmem:[#allocation5 + $0x28] sm:$0x1] %vm7161, 0.0
  %7275 = vst.msk [vmem:[#allocation5 + $0x30] sm:$0xff] %vm73, 0.0
  %7276 = vst.msk [vmem:[#allocation5 + $0x38] sm:$0x1] %vm7161, 0.0
  %7277 = vst.msk [vmem:[#allocation5 + $0x40] sm:$0xff] %vm73, 0.0
  %7278 = vst.msk [vmem:[#allocation5 + $0x48] sm:$0x1] %vm7161, 0.0
  %7279 = vst.msk [vmem:[#allocation5 + $0x50] sm:$0xff] %vm73, 0.0
  %7280 = vst.msk [vmem:[#allocation5 + $0x58] sm:$0x1] %vm7161, 0.0
  %7281 = vst.msk [vmem:[#allocation5 + $0x60] sm:$0xff] %vm73, 0.0
  %7282 = vst.msk [vmem:[#allocation5 + $0x68] sm:$0x1] %vm7161, 0.0
  %7283 = vst.msk [vmem:[#allocation5 + $0x70] sm:$0xff] %vm73, 0.0
  %7284 = vst.msk [vmem:[#allocation5 + $0x78] sm:$0x1] %vm7161, 0.0
  %7285 = vst.msk [vmem:[#allocation5 + $0x80] sm:$0xff] %vm73, 0.0
  %7286 = vst.msk [vmem:[#allocation5 + $0x88] sm:$0x1] %vm7161, 0.0
  %7287 = vst.msk [vmem:[#allocation5 + $0x90] sm:$0xff] %vm73, 0.0
  %7288 = vst.msk [vmem:[#allocation5 + $0x98] sm:$0x1] %vm7161, 0.0
  %7289 = vst.msk [vmem:[#allocation5 + $0xa0] sm:$0xff] %vm73, 0.0
  %7290 = vst.msk [vmem:[#allocation5 + $0xa8] sm:$0x1] %vm7161, 0.0
  %7291 = vst.msk [vmem:[#allocation5 + $0xb0] sm:$0xff] %vm73, 0.0
  %7292 = vst.msk [vmem:[#allocation5 + $0xb8] sm:$0x1] %vm7161, 0.0
  %7293 = vst.msk [vmem:[#allocation5 + $0xc0] sm:$0xff] %vm73, 0.0
  %7294 = vst.msk [vmem:[#allocation5 + $0xc8] sm:$0x1] %vm7161, 0.0
  %7295 = vst.msk [vmem:[#allocation5 + $0xd0] sm:$0xff] %vm73, 0.0
  %7296 = vst.msk [vmem:[#allocation5 + $0xd8] sm:$0x1] %vm7161, 0.0
  %7297 = vst.msk [vmem:[#allocation5 + $0xe0] sm:$0xff] %vm73, 0.0
  %7298 = vst.msk [vmem:[#allocation5 + $0xe8] sm:$0x1] %vm7161, 0.0
  %7299 = vst.msk [vmem:[#allocation5 + $0xf0] sm:$0xff] %vm73, 0.0
  %7300 = vst.msk [vmem:[#allocation5 + $0xf8] sm:$0x1] %vm7161, 0.0
  %7301 = vst.msk [vmem:[#allocation5 + $0x100] sm:$0xff] %vm73, 0.0
  %7302 = vst.msk [vmem:[#allocation5 + $0x108] sm:$0x1] %vm7161, 0.0
  %7303 = vst.msk [vmem:[#allocation5 + $0x110] sm:$0xff] %vm73, 0.0
  %7304 = vst.msk [vmem:[#allocation5 + $0x118] sm:$0x1] %vm7161, 0.0
  %v7305 = vlaneseq
  %v7306 = vshrl.u32 %v7305, 7
  %v7307 = vsub.s32 0, %v7306
  %v7308 = vrot.slane %v7156, %v7307
  %v7309 = vmul.f32 %v7040, %v7308
  %v7310 = vmul.f32 %v7041, %v7308
  %v7311 = vmul.f32 %v7042, %v7308
  %v7312 = vmul.f32 %v7043, %v7308
  %v7313 = vmul.f32 %v7044, %v7308
  %v7314 = vmul.f32 %v7045, %v7308
  %v7315 = vmul.f32 %v7046, %v7308
  %v7316 = vmul.f32 %v7047, %v7308
  %v7317 = vmul.f32 %v7048, %v7308
  %v7318 = vmul.f32 %v7049, %v7308
  %v7319 = vmul.f32 %v7050, %v7308
  %v7320 = vmul.f32 %v7051, %v7308
  %v7321 = vmul.f32 %v7052, %v7308
  %v7322 = vmul.f32 %v7053, %v7308
  %v7323 = vmul.f32 %v7054, %v7308
  %v7324 = vmul.f32 %v7055, %v7308
  %v7326 = vlaneseq
  %v7327 = vshrl.u32 %v7326, 7
  %v7328 = vsub.s32 0, %v7327
  %v7329 = vrot.slane %v7159, %v7328
  %v7331 = vadd.f32 %v7309, %v7329
  %v7332 = vadd.f32 %v7310, %v7329
  %v7333 = vadd.f32 %v7311, %v7329
  %v7334 = vadd.f32 %v7312, %v7329
  %v7335 = vadd.f32 %v7313, %v7329
  %v7336 = vadd.f32 %v7314, %v7329
  %v7337 = vadd.f32 %v7315, %v7329
  %v7338 = vadd.f32 %v7316, %v7329
  %v7339 = vadd.f32 %v7317, %v7329
  %v7340 = vadd.f32 %v7318, %v7329
  %v7341 = vadd.f32 %v7319, %v7329
  %v7342 = vadd.f32 %v7320, %v7329
  %v7343 = vadd.f32 %v7321, %v7329
  %v7344 = vadd.f32 %v7322, %v7329
  %v7345 = vadd.f32 %v7323, %v7329
  %v7346 = vadd.f32 %v7324, %v7329
  %vm7347 = vcmp.ge.f32.partialorder %v7331, 0.0
  %vm7348 = vcmp.ge.f32.partialorder %v7332, 0.0
  %vm7349 = vcmp.ge.f32.partialorder %v7333, 0.0
  %vm7350 = vcmp.ge.f32.partialorder %v7334, 0.0
  %vm7351 = vcmp.ge.f32.partialorder %v7335, 0.0
  %vm7352 = vcmp.ge.f32.partialorder %v7336, 0.0
  %vm7353 = vcmp.ge.f32.partialorder %v7337, 0.0
  %vm7354 = vcmp.ge.f32.partialorder %v7338, 0.0
  %vm7355 = vcmp.ge.f32.partialorder %v7339, 0.0
  %vm7356 = vcmp.ge.f32.partialorder %v7340, 0.0
  %vm7357 = vcmp.ge.f32.partialorder %v7341, 0.0
  %vm7358 = vcmp.ge.f32.partialorder %v7342, 0.0
  %vm7359 = vcmp.ge.f32.partialorder %v7343, 0.0
  %vm7360 = vcmp.ge.f32.partialorder %v7344, 0.0
  %vm7361 = vcmp.ge.f32.partialorder %v7345, 0.0
  %vm7362 = vcmp.ge.f32.partialorder %v7346, 0.0
  %v7363 = vmul.f32 %v7331, 0.2
  %v7364 = vmul.f32 %v7332, 0.2
  %v7365 = vmul.f32 %v7333, 0.2
  %v7366 = vmul.f32 %v7334, 0.2
  %v7367 = vmul.f32 %v7335, 0.2
  %v7368 = vmul.f32 %v7336, 0.2
  %v7369 = vmul.f32 %v7337, 0.2
  %v7370 = vmul.f32 %v7338, 0.2
  %v7371 = vmul.f32 %v7339, 0.2
  %v7372 = vmul.f32 %v7340, 0.2
  %v7373 = vmul.f32 %v7341, 0.2
  %v7374 = vmul.f32 %v7342, 0.2
  %v7375 = vmul.f32 %v7343, 0.2
  %v7376 = vmul.f32 %v7344, 0.2
  %v7377 = vmul.f32 %v7345, 0.2
  %v7378 = vmul.f32 %v7346, 0.2
  %v7379 = vsel %vm7347, %v7331, %v7363
  %v7380 = vsel %vm7348, %v7332, %v7364
  %v7381 = vsel %vm7349, %v7333, %v7365
  %v7382 = vsel %vm7350, %v7334, %v7366
  %v7383 = vsel %vm7351, %v7335, %v7367
  %v7384 = vsel %vm7352, %v7336, %v7368
  %v7385 = vsel %vm7353, %v7337, %v7369
  %v7386 = vsel %vm7354, %v7338, %v7370
  %v7387 = vsel %vm7355, %v7339, %v7371
  %v7388 = vsel %vm7356, %v7340, %v7372
  %v7389 = vsel %vm7357, %v7341, %v7373
  %v7390 = vsel %vm7358, %v7342, %v7374
  %v7391 = vsel %vm7359, %v7343, %v7375
  %v7392 = vsel %vm7360, %v7344, %v7376
  %v7393 = vsel %vm7361, %v7345, %v7377
  %v7394 = vsel %vm7362, %v7346, %v7378
  %v7395 = vmul.f32 %v7379, 1.4142135
  %v7396 = vmul.f32 %v7380, 1.4142135
  %v7397 = vmul.f32 %v7381, 1.4142135
  %v7398 = vmul.f32 %v7382, 1.4142135
  %v7399 = vmul.f32 %v7383, 1.4142135
  %v7400 = vmul.f32 %v7384, 1.4142135
  %v7401 = vmul.f32 %v7385, 1.4142135
  %v7402 = vmul.f32 %v7386, 1.4142135
  %v7403 = vmul.f32 %v7387, 1.4142135
  %v7404 = vmul.f32 %v7388, 1.4142135
  %v7405 = vmul.f32 %v7389, 1.4142135
  %v7406 = vmul.f32 %v7390, 1.4142135
  %v7407 = vmul.f32 %v7391, 1.4142135
  %v7408 = vmul.f32 %v7392, 1.4142135
  %v7409 = vmul.f32 %v7393, 1.4142135
  %v7410 = vmul.f32 %v7394, 1.4142135
  %s7411 = scalar_lea.vmem [#allocation2], 16
  %7412 = vst.msk [vmem:[%s7411 + $0x1] sm:$0xff] %vm73, %v7395
  %7413 = vst.msk [vmem:[%s7411 + $0x11] sm:$0xff] %vm73, %v7396
  %7414 = vst.msk [vmem:[%s7411 + $0x21] sm:$0xff] %vm73, %v7397
  %7415 = vst.msk [vmem:[%s7411 + $0x31] sm:$0xff] %vm73, %v7398
  %7416 = vst.msk [vmem:[%s7411 + $0x41] sm:$0xff] %vm73, %v7399
  %7417 = vst.msk [vmem:[%s7411 + $0x51] sm:$0xff] %vm73, %v7400
  %7418 = vst.msk [vmem:[%s7411 + $0x61] sm:$0xff] %vm73, %v7401
  %7419 = vst.msk [vmem:[%s7411 + $0x71] sm:$0xff] %vm73, %v7402
  %7420 = vst.msk [vmem:[%s7411 + $0x91] sm:$0xff] %vm73, %v7403
  %7421 = vst.msk [vmem:[%s7411 + $0xa1] sm:$0xff] %vm73, %v7404
  %7422 = vst.msk [vmem:[%s7411 + $0xb1] sm:$0xff] %vm73, %v7405
  %7423 = vst.msk [vmem:[%s7411 + $0xc1] sm:$0xff] %vm73, %v7406
  %7424 = vst.msk [vmem:[%s7411 + $0xd1] sm:$0xff] %vm73, %v7407
  %7425 = vst.msk [vmem:[%s7411 + $0xe1] sm:$0xff] %vm73, %v7408
  %7426 = vst.msk [vmem:[%s7411 + $0xf1] sm:$0xff] %vm73, %v7409
  %7427 = vst.msk [vmem:[%s7411 + $0x101] sm:$0xff] %vm73, %v7410
  %v7428 = vmul.f32 %v5467, %v7308
  %v7429 = vmul.f32 %v5468, %v7308
  %v7430 = vmul.f32 %v5469, %v7308
  %v7431 = vmul.f32 %v5470, %v7308
  %v7432 = vmul.f32 %v5471, %v7308
  %v7433 = vmul.f32 %v5472, %v7308
  %v7434 = vmul.f32 %v5473, %v7308
  %v7435 = vmul.f32 %v5474, %v7308
  %v7436 = vmul.f32 %v5475, %v7308
  %v7437 = vmul.f32 %v5476, %v7308
  %v7438 = vmul.f32 %v5477, %v7308
  %v7439 = vmul.f32 %v5478, %v7308
  %v7440 = vmul.f32 %v5479, %v7308
  %v7441 = vmul.f32 %v5480, %v7308
  %v7442 = vmul.f32 %v5481, %v7308
  %v7443 = vmul.f32 %v5482, %v7308
  %v7444 = vadd.f32 %v7428, %v7329
  %v7445 = vadd.f32 %v7429, %v7329
  %v7446 = vadd.f32 %v7430, %v7329
  %v7447 = vadd.f32 %v7431, %v7329
  %v7448 = vadd.f32 %v7432, %v7329
  %v7449 = vadd.f32 %v7433, %v7329
  %v7450 = vadd.f32 %v7434, %v7329
  %v7451 = vadd.f32 %v7435, %v7329
  %v7452 = vadd.f32 %v7436, %v7329
  %v7453 = vadd.f32 %v7437, %v7329
  %v7454 = vadd.f32 %v7438, %v7329
  %v7455 = vadd.f32 %v7439, %v7329
  %v7456 = vadd.f32 %v7440, %v7329
  %v7457 = vadd.f32 %v7441, %v7329
  %v7458 = vadd.f32 %v7442, %v7329
  %v7459 = vadd.f32 %v7443, %v7329
  %vm7460 = vcmp.ge.f32.partialorder %v7444, 0.0
  %vm7461 = vcmp.ge.f32.partialorder %v7445, 0.0
  %vm7462 = vcmp.ge.f32.partialorder %v7446, 0.0
  %vm7463 = vcmp.ge.f32.partialorder %v7447, 0.0
  %vm7464 = vcmp.ge.f32.partialorder %v7448, 0.0
  %vm7465 = vcmp.ge.f32.partialorder %v7449, 0.0
  %vm7466 = vcmp.ge.f32.partialorder %v7450, 0.0
  %vm7467 = vcmp.ge.f32.partialorder %v7451, 0.0
  %vm7468 = vcmp.ge.f32.partialorder %v7452, 0.0
  %vm7469 = vcmp.ge.f32.partialorder %v7453, 0.0
  %vm7470 = vcmp.ge.f32.partialorder %v7454, 0.0
  %vm7471 = vcmp.ge.f32.partialorder %v7455, 0.0
  %vm7472 = vcmp.ge.f32.partialorder %v7456, 0.0
  %vm7473 = vcmp.ge.f32.partialorder %v7457, 0.0
  %vm7474 = vcmp.ge.f32.partialorder %v7458, 0.0
  %vm7475 = vcmp.ge.f32.partialorder %v7459, 0.0
  %v7476 = vmul.f32 %v7444, 0.2
  %v7477 = vmul.f32 %v7445, 0.2
  %v7478 = vmul.f32 %v7446, 0.2
  %v7479 = vmul.f32 %v7447, 0.2
  %v7480 = vmul.f32 %v7448, 0.2
  %v7481 = vmul.f32 %v7449, 0.2
  %v7482 = vmul.f32 %v7450, 0.2
  %v7483 = vmul.f32 %v7451, 0.2
  %v7484 = vmul.f32 %v7452, 0.2
  %v7485 = vmul.f32 %v7453, 0.2
  %v7486 = vmul.f32 %v7454, 0.2
  %v7487 = vmul.f32 %v7455, 0.2
  %v7488 = vmul.f32 %v7456, 0.2
  %v7489 = vmul.f32 %v7457, 0.2
  %v7490 = vmul.f32 %v7458, 0.2
  %v7491 = vmul.f32 %v7459, 0.2
  %v7492 = vsel %vm7460, %v7444, %v7476
  %v7493 = vsel %vm7461, %v7445, %v7477
  %v7494 = vsel %vm7462, %v7446, %v7478
  %v7495 = vsel %vm7463, %v7447, %v7479
  %v7496 = vsel %vm7464, %v7448, %v7480
  %v7497 = vsel %vm7465, %v7449, %v7481
  %v7498 = vsel %vm7466, %v7450, %v7482
  %v7499 = vsel %vm7467, %v7451, %v7483
  %v7500 = vsel %vm7468, %v7452, %v7484
  %v7501 = vsel %vm7469, %v7453, %v7485
  %v7502 = vsel %vm7470, %v7454, %v7486
  %v7503 = vsel %vm7471, %v7455, %v7487
  %v7504 = vsel %vm7472, %v7456, %v7488
  %v7505 = vsel %vm7473, %v7457, %v7489
  %v7506 = vsel %vm7474, %v7458, %v7490
  %v7507 = vsel %vm7475, %v7459, %v7491
  %v7508 = vmul.f32 %v7492, 1.4142135
  %v7509 = vmul.f32 %v7493, 1.4142135
  %v7510 = vmul.f32 %v7494, 1.4142135
  %v7511 = vmul.f32 %v7495, 1.4142135
  %v7512 = vmul.f32 %v7496, 1.4142135
  %v7513 = vmul.f32 %v7497, 1.4142135
  %v7514 = vmul.f32 %v7498, 1.4142135
  %v7515 = vmul.f32 %v7499, 1.4142135
  %v7516 = vmul.f32 %v7500, 1.4142135
  %v7517 = vmul.f32 %v7501, 1.4142135
  %v7518 = vmul.f32 %v7502, 1.4142135
  %v7519 = vmul.f32 %v7503, 1.4142135
  %v7520 = vmul.f32 %v7504, 1.4142135
  %v7521 = vmul.f32 %v7505, 1.4142135
  %v7522 = vmul.f32 %v7506, 1.4142135
  %v7523 = vmul.f32 %v7507, 1.4142135
  %s7524 = scalar_lea.vmem [#allocation3], 16
  %7525 = vst.msk [vmem:[%s7524] sm:$0xff] %vm73, %v7508
  %7526 = vst.msk [vmem:[%s7524 + $0x10] sm:$0xff] %vm73, %v7509
  %7527 = vst.msk [vmem:[%s7524 + $0x20] sm:$0xff] %vm73, %v7510
  %7528 = vst.msk [vmem:[%s7524 + $0x30] sm:$0xff] %vm73, %v7511
  %7529 = vst.msk [vmem:[%s7524 + $0x40] sm:$0xff] %vm73, %v7512
  %7530 = vst.msk [vmem:[%s7524 + $0x50] sm:$0xff] %vm73, %v7513
  %7531 = vst.msk [vmem:[%s7524 + $0x60] sm:$0xff] %vm73, %v7514
  %7532 = vst.msk [vmem:[%s7524 + $0x70] sm:$0xff] %vm73, %v7515
  %7533 = vst.msk [vmem:[%s7524 + $0x90] sm:$0xff] %vm73, %v7516
  %7534 = vst.msk [vmem:[%s7524 + $0xa0] sm:$0xff] %vm73, %v7517
  %7535 = vst.msk [vmem:[%s7524 + $0xb0] sm:$0xff] %vm73, %v7518
  %7536 = vst.msk [vmem:[%s7524 + $0xc0] sm:$0xff] %vm73, %v7519
  %7537 = vst.msk [vmem:[%s7524 + $0xd0] sm:$0xff] %vm73, %v7520
  %7538 = vst.msk [vmem:[%s7524 + $0xe0] sm:$0xff] %vm73, %v7521
  %7539 = vst.msk [vmem:[%s7524 + $0xf0] sm:$0xff] %vm73, %v7522
  %7540 = vst.msk [vmem:[%s7524 + $0x100] sm:$0xff] %vm73, %v7523
  %v7541 = vmul.f32 %v3764, %v7308
  %v7542 = vmul.f32 %v3765, %v7308
  %v7543 = vmul.f32 %v3766, %v7308
  %v7544 = vmul.f32 %v3767, %v7308
  %v7545 = vmul.f32 %v3768, %v7308
  %v7546 = vmul.f32 %v3769, %v7308
  %v7547 = vmul.f32 %v3770, %v7308
  %v7548 = vmul.f32 %v3771, %v7308
  %v7549 = vmul.f32 %v3772, %v7308
  %v7550 = vmul.f32 %v3773, %v7308
  %v7551 = vmul.f32 %v3774, %v7308
  %v7552 = vmul.f32 %v3775, %v7308
  %v7553 = vmul.f32 %v3776, %v7308
  %v7554 = vmul.f32 %v3777, %v7308
  %v7555 = vmul.f32 %v3778, %v7308
  %v7556 = vmul.f32 %v3779, %v7308
  %v7557 = vadd.f32 %v7541, %v7329
  %v7558 = vadd.f32 %v7542, %v7329
  %v7559 = vadd.f32 %v7543, %v7329
  %v7560 = vadd.f32 %v7544, %v7329
  %v7561 = vadd.f32 %v7545, %v7329
  %v7562 = vadd.f32 %v7546, %v7329
  %v7563 = vadd.f32 %v7547, %v7329
  %v7564 = vadd.f32 %v7548, %v7329
  %v7565 = vadd.f32 %v7549, %v7329
  %v7566 = vadd.f32 %v7550, %v7329
  %v7567 = vadd.f32 %v7551, %v7329
  %v7568 = vadd.f32 %v7552, %v7329
  %v7569 = vadd.f32 %v7553, %v7329
  %v7570 = vadd.f32 %v7554, %v7329
  %v7571 = vadd.f32 %v7555, %v7329
  %v7572 = vadd.f32 %v7556, %v7329
  %vm7573 = vcmp.ge.f32.partialorder %v7557, 0.0
  %vm7574 = vcmp.ge.f32.partialorder %v7558, 0.0
  %vm7575 = vcmp.ge.f32.partialorder %v7559, 0.0
  %vm7576 = vcmp.ge.f32.partialorder %v7560, 0.0
  %vm7577 = vcmp.ge.f32.partialorder %v7561, 0.0
  %vm7578 = vcmp.ge.f32.partialorder %v7562, 0.0
  %vm7579 = vcmp.ge.f32.partialorder %v7563, 0.0
  %vm7580 = vcmp.ge.f32.partialorder %v7564, 0.0
  %vm7581 = vcmp.ge.f32.partialorder %v7565, 0.0
  %vm7582 = vcmp.ge.f32.partialorder %v7566, 0.0
  %vm7583 = vcmp.ge.f32.partialorder %v7567, 0.0
  %vm7584 = vcmp.ge.f32.partialorder %v7568, 0.0
  %vm7585 = vcmp.ge.f32.partialorder %v7569, 0.0
  %vm7586 = vcmp.ge.f32.partialorder %v7570, 0.0
  %vm7587 = vcmp.ge.f32.partialorder %v7571, 0.0
  %vm7588 = vcmp.ge.f32.partialorder %v7572, 0.0
  %v7589 = vmul.f32 %v7557, 0.2
  %v7590 = vmul.f32 %v7558, 0.2
  %v7591 = vmul.f32 %v7559, 0.2
  %v7592 = vmul.f32 %v7560, 0.2
  %v7593 = vmul.f32 %v7561, 0.2
  %v7594 = vmul.f32 %v7562, 0.2
  %v7595 = vmul.f32 %v7563, 0.2
  %v7596 = vmul.f32 %v7564, 0.2
  %v7597 = vmul.f32 %v7565, 0.2
  %v7598 = vmul.f32 %v7566, 0.2
  %v7599 = vmul.f32 %v7567, 0.2
  %v7600 = vmul.f32 %v7568, 0.2
  %v7601 = vmul.f32 %v7569, 0.2
  %v7602 = vmul.f32 %v7570, 0.2
  %v7603 = vmul.f32 %v7571, 0.2
  %v7604 = vmul.f32 %v7572, 0.2
  %v7605 = vsel %vm7573, %v7557, %v7589
  %v7606 = vsel %vm7574, %v7558, %v7590
  %v7607 = vsel %vm7575, %v7559, %v7591
  %v7608 = vsel %vm7576, %v7560, %v7592
  %v7609 = vsel %vm7577, %v7561, %v7593
  %v7610 = vsel %vm7578, %v7562, %v7594
  %v7611 = vsel %vm7579, %v7563, %v7595
  %v7612 = vsel %vm7580, %v7564, %v7596
  %v7613 = vsel %vm7581, %v7565, %v7597
  %v7614 = vsel %vm7582, %v7566, %v7598
  %v7615 = vsel %vm7583, %v7567, %v7599
  %v7616 = vsel %vm7584, %v7568, %v7600
  %v7617 = vsel %vm7585, %v7569, %v7601
  %v7618 = vsel %vm7586, %v7570, %v7602
  %v7619 = vsel %vm7587, %v7571, %v7603
  %v7620 = vsel %vm7588, %v7572, %v7604
  %v7621 = vmul.f32 %v7605, 1.4142135
  %v7622 = vmul.f32 %v7606, 1.4142135
  %v7623 = vmul.f32 %v7607, 1.4142135
  %v7624 = vmul.f32 %v7608, 1.4142135
  %v7625 = vmul.f32 %v7609, 1.4142135
  %v7626 = vmul.f32 %v7610, 1.4142135
  %v7627 = vmul.f32 %v7611, 1.4142135
  %v7628 = vmul.f32 %v7612, 1.4142135
  %v7629 = vmul.f32 %v7613, 1.4142135
  %v7630 = vmul.f32 %v7614, 1.4142135
  %v7631 = vmul.f32 %v7615, 1.4142135
  %v7632 = vmul.f32 %v7616, 1.4142135
  %v7633 = vmul.f32 %v7617, 1.4142135
  %v7634 = vmul.f32 %v7618, 1.4142135
  %v7635 = vmul.f32 %v7619, 1.4142135
  %v7636 = vmul.f32 %v7620, 1.4142135
  %7637 = vst.msk [vmem:[#allocation4 + $0x1] sm:$0xff] %vm73, %v7621
  %7638 = vst.msk [vmem:[#allocation4 + $0x11] sm:$0xff] %vm73, %v7622
  %7639 = vst.msk [vmem:[#allocation4 + $0x21] sm:$0xff] %vm73, %v7623
  %7640 = vst.msk [vmem:[#allocation4 + $0x31] sm:$0xff] %vm73, %v7624
  %7641 = vst.msk [vmem:[#allocation4 + $0x41] sm:$0xff] %vm73, %v7625
  %7642 = vst.msk [vmem:[#allocation4 + $0x51] sm:$0xff] %vm73, %v7626
  %7643 = vst.msk [vmem:[#allocation4 + $0x61] sm:$0xff] %vm73, %v7627
  %7644 = vst.msk [vmem:[#allocation4 + $0x71] sm:$0xff] %vm73, %v7628
  %7645 = vst.msk [vmem:[#allocation4 + $0x91] sm:$0xff] %vm73, %v7629
  %7646 = vst.msk [vmem:[#allocation4 + $0xa1] sm:$0xff] %vm73, %v7630
  %7647 = vst.msk [vmem:[#allocation4 + $0xb1] sm:$0xff] %vm73, %v7631
  %7648 = vst.msk [vmem:[#allocation4 + $0xc1] sm:$0xff] %vm73, %v7632
  %7649 = vst.msk [vmem:[#allocation4 + $0xd1] sm:$0xff] %vm73, %v7633
  %7650 = vst.msk [vmem:[#allocation4 + $0xe1] sm:$0xff] %vm73, %v7634
  %7651 = vst.msk [vmem:[#allocation4 + $0xf1] sm:$0xff] %vm73, %v7635
  %7652 = vst.msk [vmem:[#allocation4 + $0x101] sm:$0xff] %vm73, %v7636
  %v7653 = vmul.f32 %v2063, %v7308
  %v7654 = vmul.f32 %v2064, %v7308
  %v7655 = vmul.f32 %v2065, %v7308
  %v7656 = vmul.f32 %v2066, %v7308
  %v7657 = vmul.f32 %v2067, %v7308
  %v7658 = vmul.f32 %v2068, %v7308
  %v7659 = vmul.f32 %v2069, %v7308
  %v7660 = vmul.f32 %v2070, %v7308
  %v7661 = vmul.f32 %v2071, %v7308
  %v7662 = vmul.f32 %v2072, %v7308
  %v7663 = vmul.f32 %v2073, %v7308
  %v7664 = vmul.f32 %v2074, %v7308
  %v7665 = vmul.f32 %v2075, %v7308
  %v7666 = vmul.f32 %v2076, %v7308
  %v7667 = vmul.f32 %v2077, %v7308
  %v7668 = vmul.f32 %v2078, %v7308
  %v7669 = vadd.f32 %v7653, %v7329
  %v7670 = vadd.f32 %v7654, %v7329
  %v7671 = vadd.f32 %v7655, %v7329
  %v7672 = vadd.f32 %v7656, %v7329
  %v7673 = vadd.f32 %v7657, %v7329
  %v7674 = vadd.f32 %v7658, %v7329
  %v7675 = vadd.f32 %v7659, %v7329
  %v7676 = vadd.f32 %v7660, %v7329
  %v7677 = vadd.f32 %v7661, %v7329
  %v7678 = vadd.f32 %v7662, %v7329
  %v7679 = vadd.f32 %v7663, %v7329
  %v7680 = vadd.f32 %v7664, %v7329
  %v7681 = vadd.f32 %v7665, %v7329
  %v7682 = vadd.f32 %v7666, %v7329
  %v7683 = vadd.f32 %v7667, %v7329
  %v7684 = vadd.f32 %v7668, %v7329
  %vm7685 = vcmp.ge.f32.partialorder %v7669, 0.0
  %vm7686 = vcmp.ge.f32.partialorder %v7670, 0.0
  %vm7687 = vcmp.ge.f32.partialorder %v7671, 0.0
  %vm7688 = vcmp.ge.f32.partialorder %v7672, 0.0
  %vm7689 = vcmp.ge.f32.partialorder %v7673, 0.0
  %vm7690 = vcmp.ge.f32.partialorder %v7674, 0.0
  %vm7691 = vcmp.ge.f32.partialorder %v7675, 0.0
  %vm7692 = vcmp.ge.f32.partialorder %v7676, 0.0
  %vm7693 = vcmp.ge.f32.partialorder %v7677, 0.0
  %vm7694 = vcmp.ge.f32.partialorder %v7678, 0.0
  %vm7695 = vcmp.ge.f32.partialorder %v7679, 0.0
  %vm7696 = vcmp.ge.f32.partialorder %v7680, 0.0
  %vm7697 = vcmp.ge.f32.partialorder %v7681, 0.0
  %vm7698 = vcmp.ge.f32.partialorder %v7682, 0.0
  %vm7699 = vcmp.ge.f32.partialorder %v7683, 0.0
  %vm7700 = vcmp.ge.f32.partialorder %v7684, 0.0
  %v7701 = vmul.f32 %v7669, 0.2
  %v7702 = vmul.f32 %v7670, 0.2
  %v7703 = vmul.f32 %v7671, 0.2
  %v7704 = vmul.f32 %v7672, 0.2
  %v7705 = vmul.f32 %v7673, 0.2
  %v7706 = vmul.f32 %v7674, 0.2
  %v7707 = vmul.f32 %v7675, 0.2
  %v7708 = vmul.f32 %v7676, 0.2
  %v7709 = vmul.f32 %v7677, 0.2
  %v7710 = vmul.f32 %v7678, 0.2
  %v7711 = vmul.f32 %v7679, 0.2
  %v7712 = vmul.f32 %v7680, 0.2
  %v7713 = vmul.f32 %v7681, 0.2
  %v7714 = vmul.f32 %v7682, 0.2
  %v7715 = vmul.f32 %v7683, 0.2
  %v7716 = vmul.f32 %v7684, 0.2
  %v7717 = vsel %vm7685, %v7669, %v7701
  %v7718 = vsel %vm7686, %v7670, %v7702
  %v7719 = vsel %vm7687, %v7671, %v7703
  %v7720 = vsel %vm7688, %v7672, %v7704
  %v7721 = vsel %vm7689, %v7673, %v7705
  %v7722 = vsel %vm7690, %v7674, %v7706
  %v7723 = vsel %vm7691, %v7675, %v7707
  %v7724 = vsel %vm7692, %v7676, %v7708
  %v7725 = vsel %vm7693, %v7677, %v7709
  %v7726 = vsel %vm7694, %v7678, %v7710
  %v7727 = vsel %vm7695, %v7679, %v7711
  %v7728 = vsel %vm7696, %v7680, %v7712
  %v7729 = vsel %vm7697, %v7681, %v7713
  %v7730 = vsel %vm7698, %v7682, %v7714
  %v7731 = vsel %vm7699, %v7683, %v7715
  %v7732 = vsel %vm7700, %v7684, %v7716
  %v7733 = vmul.f32 %v7717, 1.4142135
  %v7734 = vmul.f32 %v7718, 1.4142135
  %v7735 = vmul.f32 %v7719, 1.4142135
  %v7736 = vmul.f32 %v7720, 1.4142135
  %v7737 = vmul.f32 %v7721, 1.4142135
  %v7738 = vmul.f32 %v7722, 1.4142135
  %v7739 = vmul.f32 %v7723, 1.4142135
  %v7740 = vmul.f32 %v7724, 1.4142135
  %v7741 = vmul.f32 %v7725, 1.4142135
  %v7742 = vmul.f32 %v7726, 1.4142135
  %v7743 = vmul.f32 %v7727, 1.4142135
  %v7744 = vmul.f32 %v7728, 1.4142135
  %v7745 = vmul.f32 %v7729, 1.4142135
  %v7746 = vmul.f32 %v7730, 1.4142135
  %v7747 = vmul.f32 %v7731, 1.4142135
  %v7748 = vmul.f32 %v7732, 1.4142135
  %7749 = vst.msk [vmem:[#allocation5] sm:$0xff] %vm73, %v7733
  %7750 = vst.msk [vmem:[#allocation5 + $0x10] sm:$0xff] %vm73, %v7734
  %7751 = vst.msk [vmem:[#allocation5 + $0x20] sm:$0xff] %vm73, %v7735
  %7752 = vst.msk [vmem:[#allocation5 + $0x30] sm:$0xff] %vm73, %v7736
  %7753 = vst.msk [vmem:[#allocation5 + $0x40] sm:$0xff] %vm73, %v7737
  %7754 = vst.msk [vmem:[#allocation5 + $0x50] sm:$0xff] %vm73, %v7738
  %7755 = vst.msk [vmem:[#allocation5 + $0x60] sm:$0xff] %vm73, %v7739
  %7756 = vst.msk [vmem:[#allocation5 + $0x70] sm:$0xff] %vm73, %v7740
  %7757 = vst.msk [vmem:[#allocation5 + $0x90] sm:$0xff] %vm73, %v7741
  %7758 = vst.msk [vmem:[#allocation5 + $0xa0] sm:$0xff] %vm73, %v7742
  %7759 = vst.msk [vmem:[#allocation5 + $0xb0] sm:$0xff] %vm73, %v7743
  %7760 = vst.msk [vmem:[#allocation5 + $0xc0] sm:$0xff] %vm73, %v7744
  %7761 = vst.msk [vmem:[#allocation5 + $0xd0] sm:$0xff] %vm73, %v7745
  %7762 = vst.msk [vmem:[#allocation5 + $0xe0] sm:$0xff] %vm73, %v7746
  %7763 = vst.msk [vmem:[#allocation5 + $0xf0] sm:$0xff] %vm73, %v7747
  %7764 = vst.msk [vmem:[#allocation5 + $0x100] sm:$0xff] %vm73, %v7748
  %v7765 = vld [vmem:[#allocation2] sm:$0xff]
  %v7766 = vld [vmem:[#allocation2 + $0x10] sm:$0xff]
  %v7767 = vld [vmem:[#allocation2 + $0x20] sm:$0xff]
  %v7768 = vld [vmem:[#allocation2 + $0x30] sm:$0xff]
  %v7769 = vld [vmem:[#allocation2 + $0x40] sm:$0xff]
  %v7770 = vld [vmem:[#allocation2 + $0x50] sm:$0xff]
  %v7771 = vld [vmem:[#allocation2 + $0x60] sm:$0xff]
  %v7772 = vld [vmem:[#allocation2 + $0x70] sm:$0xff]
  %v7773 = vld [vmem:[#allocation2 + $0x90] sm:$0xff]
  %v7774 = vld [vmem:[#allocation2 + $0xa0] sm:$0xff]
  %v7775 = vld [vmem:[#allocation2 + $0xb0] sm:$0xff]
  %v7776 = vld [vmem:[#allocation2 + $0xc0] sm:$0xff]
  %v7777 = vld [vmem:[#allocation2 + $0xd0] sm:$0xff]
  %v7778 = vld [vmem:[#allocation2 + $0xe0] sm:$0xff]
  %v7779 = vld [vmem:[#allocation2 + $0xf0] sm:$0xff]
  %v7780 = vld [vmem:[#allocation2 + $0x100] sm:$0xff]
  %v7781 = vld [vmem:[%s7] sm:$0xf]
  %v7782 = vld [vmem:[#allocation3] sm:$0xff]
  %v7783 = vld [vmem:[#allocation3 + $0x10] sm:$0xff]
  %v7784 = vld [vmem:[#allocation3 + $0x20] sm:$0xff]
  %v7785 = vld [vmem:[#allocation3 + $0x30] sm:$0xff]
  %v7786 = vld [vmem:[#allocation3 + $0x40] sm:$0xff]
  %v7787 = vld [vmem:[#allocation3 + $0x50] sm:$0xff]
  %v7788 = vld [vmem:[#allocation3 + $0x60] sm:$0xff]
  %v7789 = vld [vmem:[#allocation3 + $0x70] sm:$0xff]
  %v7790 = vld [vmem:[#allocation3 + $0x90] sm:$0xff]
  %v7791 = vld [vmem:[#allocation3 + $0xa0] sm:$0xff]
  %v7792 = vld [vmem:[#allocation3 + $0xb0] sm:$0xff]
  %v7793 = vld [vmem:[#allocation3 + $0xc0] sm:$0xff]
  %v7794 = vld [vmem:[#allocation3 + $0xd0] sm:$0xff]
  %v7795 = vld [vmem:[#allocation3 + $0xe0] sm:$0xff]
  %v7796 = vld [vmem:[#allocation3 + $0xf0] sm:$0xff]
  %v7797 = vld [vmem:[#allocation3 + $0x100] sm:$0xff]
  %s7798 = scalar_lea.vmem %s7, 4
  %v7799 = vld [vmem:[%s7798] sm:$0xf]
  %v7801 = vsel %vm73, %v7782, 0
  %v7804 = vsel %vm73, %v7783, 0
  %v7807 = vsel %vm73, %v7784, 0
  %v7810 = vsel %vm73, %v7785, 0
  %v7813 = vsel %vm73, %v7786, 0
  %v7816 = vsel %vm73, %v7787, 0
  %v7819 = vsel %vm73, %v7788, 0
  %v7822 = vsel %vm73, %v7789, 0
  %v7825 = vsel %vm73, %v7790, 0
  %v7828 = vsel %vm73, %v7791, 0
  %v7831 = vsel %vm73, %v7792, 0
  %v7834 = vsel %vm73, %v7793, 0
  %v7837 = vsel %vm73, %v7794, 0
  %v7840 = vsel %vm73, %v7795, 0
  %v7843 = vsel %vm73, %v7796, 0
  %v7846 = vsel %vm73, %v7797, 0
  %v7849 = vsel %vm122, %v7799, 0
  %7851 = vmatprep.subr.mxu0 0.0
  %7852 = vmatpush1.msra.mxu0 0.0
  %7853 = vmatprep.subr.mxu0 0.0
  %7854 = vmatpush1.msra.mxu0 0.0
  %7855 = vmatprep.subr.mxu0 0.0
  %7856 = vmatpush1.msra.mxu0 0.0
  %7857 = vmatprep.subr.mxu0 0.0
  %7858 = vmatpush1.msra.mxu0 0.0
  %7859 = vmatprep.subr.mxu0 0.0
  %7860 = vmatpush1.msra.mxu0 0.0
  %7861 = vmatprep.subr.mxu0 0.0
  %7862 = vmatpush1.msra.mxu0 0.0
  %7863 = vmatprep.subr.mxu0 0.0
  %7864 = vmatpush1.msra.mxu0 0.0
  %7865 = vmatprep.subr.mxu0 0.0
  %7866 = vmatpush1.msra.mxu0 0.0
  %7867 = vmatprep.subr.mxu0 0.0
  %7868 = vmatpush1.msra.mxu0 0.0
  %7869 = vmatprep.subr.mxu0 0.0
  %7870 = vmatpush1.msra.mxu0 0.0
  %7871 = vmatprep.subr.mxu0 0.0
  %7872 = vmatpush1.msra.mxu0 0.0
  %7873 = vmatprep.subr.mxu0 0.0
  %7874 = vmatpush1.msra.mxu0 0.0
  %7875 = vmatprep.subr.mxu0 0.0
  %7876 = vmatpush1.msra.mxu0 0.0
  %7877 = vmatprep.subr.mxu0 0.0
  %7878 = vmatpush1.msra.mxu0 0.0
  %7879 = vmatprep.subr.mxu0 0.0
  %7880 = vmatpush1.msra.mxu0 0.0
  %7881 = vmatprep.subr.mxu0 0.0
  %7882 = vmatpush1.msra.mxu0 %v7849
  %7883 = vmatprep.subr.mxu0 0.0
  %7884 = vmatpush2.msra.mxu0 0.0
  %7885 = vmatprep.subr.mxu0 0.0
  %7886 = vmatpush2.msra.mxu0 0.0
  %7887 = vmatprep.subr.mxu0 0.0
  %7888 = vmatpush2.msra.mxu0 0.0
  %7889 = vmatprep.subr.mxu0 0.0
  %7890 = vmatpush2.msra.mxu0 0.0
  %7891 = vmatprep.subr.mxu0 0.0
  %7892 = vmatpush2.msra.mxu0 0.0
  %7893 = vmatprep.subr.mxu0 0.0
  %7894 = vmatpush2.msra.mxu0 0.0
  %7895 = vmatprep.subr.mxu0 0.0
  %7896 = vmatpush2.msra.mxu0 0.0
  %7897 = vmatprep.subr.mxu0 0.0
  %7898 = vmatpush2.msra.mxu0 0.0
  %7899 = vmatprep.subr.mxu0 0.0
  %7900 = vmatpush2.msra.mxu0 0.0
  %7901 = vmatprep.subr.mxu0 0.0
  %7902 = vmatpush2.msra.mxu0 0.0
  %7903 = vmatprep.subr.mxu0 0.0
  %7904 = vmatpush2.msra.mxu0 0.0
  %7905 = vmatprep.subr.mxu0 0.0
  %7906 = vmatpush2.msra.mxu0 0.0
  %7907 = vmatprep.subr.mxu0 0.0
  %7908 = vmatpush2.msra.mxu0 0.0
  %7909 = vmatprep.subr.mxu0 0.0
  %7910 = vmatpush2.msra.mxu0 0.0
  %7911 = vmatprep.subr.mxu0 0.0
  %7912 = vmatpush2.msra.mxu0 0.0
  %7913 = vmatprep.subr.mxu0 0.0
  %7914 = vmatpush2.msra.mxu0 0.0
  %7915 = vmatprep.mubr.f32.mxu0 0.0
  %7916 = vmatmul.mubr.f32.gmra.mxu0 %v7801
  %v7917 = vpop.f32.mrf.mxu0
  %v7918 = vadd.f32 0.0, %v7917
  %v7919 = vpop.f32.mrf.mxu0
  %7920 = vmatprep.mubr.f32.mxu0 0.0
  %7921 = vmatmul.mubr.f32.gmra.mxu0 %v7804
  %v7922 = vpop.f32.mrf.mxu0
  %v7923 = vadd.f32 0.0, %v7922
  %v7924 = vpop.f32.mrf.mxu0
  %7925 = vmatprep.mubr.f32.mxu0 0.0
  %7926 = vmatmul.mubr.f32.gmra.mxu0 %v7807
  %v7927 = vpop.f32.mrf.mxu0
  %v7928 = vadd.f32 0.0, %v7927
  %v7929 = vpop.f32.mrf.mxu0
  %7930 = vmatprep.mubr.f32.mxu0 0.0
  %7931 = vmatmul.mubr.f32.gmra.mxu0 %v7810
  %v7932 = vpop.f32.mrf.mxu0
  %v7933 = vadd.f32 0.0, %v7932
  %v7934 = vpop.f32.mrf.mxu0
  %7935 = vmatprep.mubr.f32.mxu0 0.0
  %7936 = vmatmul.mubr.f32.gmra.mxu0 %v7813
  %v7937 = vpop.f32.mrf.mxu0
  %v7938 = vadd.f32 0.0, %v7937
  %v7939 = vpop.f32.mrf.mxu0
  %7940 = vmatprep.mubr.f32.mxu0 0.0
  %7941 = vmatmul.mubr.f32.gmra.mxu0 %v7816
  %v7942 = vpop.f32.mrf.mxu0
  %v7943 = vadd.f32 0.0, %v7942
  %v7944 = vpop.f32.mrf.mxu0
  %7945 = vmatprep.mubr.f32.mxu0 0.0
  %7946 = vmatmul.mubr.f32.gmra.mxu0 %v7819
  %v7947 = vpop.f32.mrf.mxu0
  %v7948 = vadd.f32 0.0, %v7947
  %v7949 = vpop.f32.mrf.mxu0
  %7950 = vmatprep.mubr.f32.mxu0 0.0
  %7951 = vmatmul.mubr.f32.gmra.mxu0 %v7822
  %v7952 = vpop.f32.mrf.mxu0
  %v7953 = vadd.f32 0.0, %v7952
  %v7954 = vpop.f32.mrf.mxu0
  %7955 = vmatprep.mubr.f32.mxu0 0.0
  %7956 = vmatmul.mubr.f32.gmra.mxu0 %v7825
  %v7957 = vpop.f32.mrf.mxu0
  %v7958 = vadd.f32 0.0, %v7957
  %v7959 = vpop.f32.mrf.mxu0
  %7960 = vmatprep.mubr.f32.mxu0 0.0
  %7961 = vmatmul.mubr.f32.gmra.mxu0 %v7828
  %v7962 = vpop.f32.mrf.mxu0
  %v7963 = vadd.f32 0.0, %v7962
  %v7964 = vpop.f32.mrf.mxu0
  %7965 = vmatprep.mubr.f32.mxu0 0.0
  %7966 = vmatmul.mubr.f32.gmra.mxu0 %v7831
  %v7967 = vpop.f32.mrf.mxu0
  %v7968 = vadd.f32 0.0, %v7967
  %v7969 = vpop.f32.mrf.mxu0
  %7970 = vmatprep.mubr.f32.mxu0 0.0
  %7971 = vmatmul.mubr.f32.gmra.mxu0 %v7834
  %v7972 = vpop.f32.mrf.mxu0
  %v7973 = vadd.f32 0.0, %v7972
  %v7974 = vpop.f32.mrf.mxu0
  %7975 = vmatprep.mubr.f32.mxu0 0.0
  %7976 = vmatmul.mubr.f32.gmra.mxu0 %v7837
  %v7977 = vpop.f32.mrf.mxu0
  %v7978 = vadd.f32 0.0, %v7977
  %v7979 = vpop.f32.mrf.mxu0
  %7980 = vmatprep.mubr.f32.mxu0 0.0
  %7981 = vmatmul.mubr.f32.gmra.mxu0 %v7840
  %v7982 = vpop.f32.mrf.mxu0
  %v7983 = vadd.f32 0.0, %v7982
  %v7984 = vpop.f32.mrf.mxu0
  %7985 = vmatprep.mubr.f32.mxu0 0.0
  %7986 = vmatmul.mubr.f32.gmra.mxu0 %v7843
  %v7987 = vpop.f32.mrf.mxu0
  %v7988 = vadd.f32 0.0, %v7987
  %v7989 = vpop.f32.mrf.mxu0
  %7990 = vmatprep.mubr.f32.mxu0 0.0
  %7991 = vmatmul.mubr.f32.gmra.mxu0 %v7846
  %v7992 = vpop.f32.mrf.mxu0
  %v7993 = vadd.f32 0.0, %v7992
  %v7994 = vpop.f32.mrf.mxu0
  %7995 = vdwg.mxu0
  %v7997 = vsel %vm73, %v7765, 0
  %v8000 = vsel %vm73, %v7766, 0
  %v8003 = vsel %vm73, %v7767, 0
  %v8006 = vsel %vm73, %v7768, 0
  %v8009 = vsel %vm73, %v7769, 0
  %v8012 = vsel %vm73, %v7770, 0
  %v8015 = vsel %vm73, %v7771, 0
  %v8018 = vsel %vm73, %v7772, 0
  %v8021 = vsel %vm73, %v7773, 0
  %v8024 = vsel %vm73, %v7774, 0
  %v8027 = vsel %vm73, %v7775, 0
  %v8030 = vsel %vm73, %v7776, 0
  %v8033 = vsel %vm73, %v7777, 0
  %v8036 = vsel %vm73, %v7778, 0
  %v8039 = vsel %vm73, %v7779, 0
  %v8042 = vsel %vm73, %v7780, 0
  %v8045 = vsel %vm122, %v7781, 0
  %8047 = vmatprep.subr.mxu0 0.0
  %8048 = vmatpush1.msra.mxu0 0.0
  %8049 = vmatprep.subr.mxu0 0.0
  %8050 = vmatpush1.msra.mxu0 0.0
  %8051 = vmatprep.subr.mxu0 0.0
  %8052 = vmatpush1.msra.mxu0 0.0
  %8053 = vmatprep.subr.mxu0 0.0
  %8054 = vmatpush1.msra.mxu0 0.0
  %8055 = vmatprep.subr.mxu0 0.0
  %8056 = vmatpush1.msra.mxu0 0.0
  %8057 = vmatprep.subr.mxu0 0.0
  %8058 = vmatpush1.msra.mxu0 0.0
  %8059 = vmatprep.subr.mxu0 0.0
  %8060 = vmatpush1.msra.mxu0 0.0
  %8061 = vmatprep.subr.mxu0 0.0
  %8062 = vmatpush1.msra.mxu0 0.0
  %8063 = vmatprep.subr.mxu0 0.0
  %8064 = vmatpush1.msra.mxu0 0.0
  %8065 = vmatprep.subr.mxu0 0.0
  %8066 = vmatpush1.msra.mxu0 0.0
  %8067 = vmatprep.subr.mxu0 0.0
  %8068 = vmatpush1.msra.mxu0 0.0
  %8069 = vmatprep.subr.mxu0 0.0
  %8070 = vmatpush1.msra.mxu0 0.0
  %8071 = vmatprep.subr.mxu0 0.0
  %8072 = vmatpush1.msra.mxu0 0.0
  %8073 = vmatprep.subr.mxu0 0.0
  %8074 = vmatpush1.msra.mxu0 0.0
  %8075 = vmatprep.subr.mxu0 0.0
  %8076 = vmatpush1.msra.mxu0 0.0
  %8077 = vmatprep.subr.mxu0 0.0
  %8078 = vmatpush1.msra.mxu0 %v8045
  %8079 = vmatprep.subr.mxu0 0.0
  %8080 = vmatpush2.msra.mxu0 0.0
  %8081 = vmatprep.subr.mxu0 0.0
  %8082 = vmatpush2.msra.mxu0 0.0
  %8083 = vmatprep.subr.mxu0 0.0
  %8084 = vmatpush2.msra.mxu0 0.0
  %8085 = vmatprep.subr.mxu0 0.0
  %8086 = vmatpush2.msra.mxu0 0.0
  %8087 = vmatprep.subr.mxu0 0.0
  %8088 = vmatpush2.msra.mxu0 0.0
  %8089 = vmatprep.subr.mxu0 0.0
  %8090 = vmatpush2.msra.mxu0 0.0
  %8091 = vmatprep.subr.mxu0 0.0
  %8092 = vmatpush2.msra.mxu0 0.0
  %8093 = vmatprep.subr.mxu0 0.0
  %8094 = vmatpush2.msra.mxu0 0.0
  %8095 = vmatprep.subr.mxu0 0.0
  %8096 = vmatpush2.msra.mxu0 0.0
  %8097 = vmatprep.subr.mxu0 0.0
  %8098 = vmatpush2.msra.mxu0 0.0
  %8099 = vmatprep.subr.mxu0 0.0
  %8100 = vmatpush2.msra.mxu0 0.0
  %8101 = vmatprep.subr.mxu0 0.0
  %8102 = vmatpush2.msra.mxu0 0.0
  %8103 = vmatprep.subr.mxu0 0.0
  %8104 = vmatpush2.msra.mxu0 0.0
  %8105 = vmatprep.subr.mxu0 0.0
  %8106 = vmatpush2.msra.mxu0 0.0
  %8107 = vmatprep.subr.mxu0 0.0
  %8108 = vmatpush2.msra.mxu0 0.0
  %8109 = vmatprep.subr.mxu0 0.0
  %8110 = vmatpush2.msra.mxu0 0.0
  %8111 = vmatprep.mubr.f32.mxu0 0.0
  %8112 = vmatmul.mubr.f32.gmra.mxu0 %v7997
  %v8113 = vpop.f32.mrf.mxu0
  %v8114 = vadd.f32 %v7918, %v8113
  %v8115 = vpop.f32.mrf.mxu0
  %8116 = vmatprep.mubr.f32.mxu0 0.0
  %8117 = vmatmul.mubr.f32.gmra.mxu0 %v8000
  %v8118 = vpop.f32.mrf.mxu0
  %v8119 = vadd.f32 %v7923, %v8118
  %v8120 = vpop.f32.mrf.mxu0
  %8121 = vmatprep.mubr.f32.mxu0 0.0
  %8122 = vmatmul.mubr.f32.gmra.mxu0 %v8003
  %v8123 = vpop.f32.mrf.mxu0
  %v8124 = vadd.f32 %v7928, %v8123
  %v8125 = vpop.f32.mrf.mxu0
  %8126 = vmatprep.mubr.f32.mxu0 0.0
  %8127 = vmatmul.mubr.f32.gmra.mxu0 %v8006
  %v8128 = vpop.f32.mrf.mxu0
  %v8129 = vadd.f32 %v7933, %v8128
  %v8130 = vpop.f32.mrf.mxu0
  %8131 = vmatprep.mubr.f32.mxu0 0.0
  %8132 = vmatmul.mubr.f32.gmra.mxu0 %v8009
  %v8133 = vpop.f32.mrf.mxu0
  %v8134 = vadd.f32 %v7938, %v8133
  %v8135 = vpop.f32.mrf.mxu0
  %8136 = vmatprep.mubr.f32.mxu0 0.0
  %8137 = vmatmul.mubr.f32.gmra.mxu0 %v8012
  %v8138 = vpop.f32.mrf.mxu0
  %v8139 = vadd.f32 %v7943, %v8138
  %v8140 = vpop.f32.mrf.mxu0
  %8141 = vmatprep.mubr.f32.mxu0 0.0
  %8142 = vmatmul.mubr.f32.gmra.mxu0 %v8015
  %v8143 = vpop.f32.mrf.mxu0
  %v8144 = vadd.f32 %v7948, %v8143
  %v8145 = vpop.f32.mrf.mxu0
  %8146 = vmatprep.mubr.f32.mxu0 0.0
  %8147 = vmatmul.mubr.f32.gmra.mxu0 %v8018
  %v8148 = vpop.f32.mrf.mxu0
  %v8149 = vadd.f32 %v7953, %v8148
  %v8150 = vpop.f32.mrf.mxu0
  %8151 = vmatprep.mubr.f32.mxu0 0.0
  %8152 = vmatmul.mubr.f32.gmra.mxu0 %v8021
  %v8153 = vpop.f32.mrf.mxu0
  %v8154 = vadd.f32 %v7958, %v8153
  %v8155 = vpop.f32.mrf.mxu0
  %8156 = vmatprep.mubr.f32.mxu0 0.0
  %8157 = vmatmul.mubr.f32.gmra.mxu0 %v8024
  %v8158 = vpop.f32.mrf.mxu0
  %v8159 = vadd.f32 %v7963, %v8158
  %v8160 = vpop.f32.mrf.mxu0
  %8161 = vmatprep.mubr.f32.mxu0 0.0
  %8162 = vmatmul.mubr.f32.gmra.mxu0 %v8027
  %v8163 = vpop.f32.mrf.mxu0
  %v8164 = vadd.f32 %v7968, %v8163
  %v8165 = vpop.f32.mrf.mxu0
  %8166 = vmatprep.mubr.f32.mxu0 0.0
  %8167 = vmatmul.mubr.f32.gmra.mxu0 %v8030
  %v8168 = vpop.f32.mrf.mxu0
  %v8169 = vadd.f32 %v7973, %v8168
  %v8170 = vpop.f32.mrf.mxu0
  %8171 = vmatprep.mubr.f32.mxu0 0.0
  %8172 = vmatmul.mubr.f32.gmra.mxu0 %v8033
  %v8173 = vpop.f32.mrf.mxu0
  %v8174 = vadd.f32 %v7978, %v8173
  %v8175 = vpop.f32.mrf.mxu0
  %8176 = vmatprep.mubr.f32.mxu0 0.0
  %8177 = vmatmul.mubr.f32.gmra.mxu0 %v8036
  %v8178 = vpop.f32.mrf.mxu0
  %v8179 = vadd.f32 %v7983, %v8178
  %v8180 = vpop.f32.mrf.mxu0
  %8181 = vmatprep.mubr.f32.mxu0 0.0
  %8182 = vmatmul.mubr.f32.gmra.mxu0 %v8039
  %v8183 = vpop.f32.mrf.mxu0
  %v8184 = vadd.f32 %v7988, %v8183
  %v8185 = vpop.f32.mrf.mxu0
  %8186 = vmatprep.mubr.f32.mxu0 0.0
  %8187 = vmatmul.mubr.f32.gmra.mxu0 %v8042
  %v8188 = vpop.f32.mrf.mxu0
  %v8189 = vadd.f32 %v7993, %v8188
  %v8190 = vpop.f32.mrf.mxu0
  %8191 = vdwg.mxu0
  %v8192 = vld [vmem:[#allocation2 + $0x1] sm:$0xff]
  %v8193 = vld [vmem:[#allocation2 + $0x11] sm:$0xff]
  %v8194 = vld [vmem:[#allocation2 + $0x21] sm:$0xff]
  %v8195 = vld [vmem:[#allocation2 + $0x31] sm:$0xff]
  %v8196 = vld [vmem:[#allocation2 + $0x41] sm:$0xff]
  %v8197 = vld [vmem:[#allocation2 + $0x51] sm:$0xff]
  %v8198 = vld [vmem:[#allocation2 + $0x61] sm:$0xff]
  %v8199 = vld [vmem:[#allocation2 + $0x71] sm:$0xff]
  %v8200 = vld [vmem:[#allocation2 + $0x91] sm:$0xff]
  %v8201 = vld [vmem:[#allocation2 + $0xa1] sm:$0xff]
  %v8202 = vld [vmem:[#allocation2 + $0xb1] sm:$0xff]
  %v8203 = vld [vmem:[#allocation2 + $0xc1] sm:$0xff]
  %v8204 = vld [vmem:[#allocation2 + $0xd1] sm:$0xff]
  %v8205 = vld [vmem:[#allocation2 + $0xe1] sm:$0xff]
  %v8206 = vld [vmem:[#allocation2 + $0xf1] sm:$0xff]
  %v8207 = vld [vmem:[#allocation2 + $0x101] sm:$0xff]
  %s8208 = scalar_lea.vmem %s7, 8
  %v8209 = vld [vmem:[%s8208] sm:$0xf]
  %v8211 = vsel %vm73, %v8192, 0
  %v8214 = vsel %vm73, %v8193, 0
  %v8217 = vsel %vm73, %v8194, 0
  %v8220 = vsel %vm73, %v8195, 0
  %v8223 = vsel %vm73, %v8196, 0
  %v8226 = vsel %vm73, %v8197, 0
  %v8229 = vsel %vm73, %v8198, 0
  %v8232 = vsel %vm73, %v8199, 0
  %v8235 = vsel %vm73, %v8200, 0
  %v8238 = vsel %vm73, %v8201, 0
  %v8241 = vsel %vm73, %v8202, 0
  %v8244 = vsel %vm73, %v8203, 0
  %v8247 = vsel %vm73, %v8204, 0
  %v8250 = vsel %vm73, %v8205, 0
  %v8253 = vsel %vm73, %v8206, 0
  %v8256 = vsel %vm73, %v8207, 0
  %v8259 = vsel %vm122, %v8209, 0
  %8261 = vmatprep.subr.mxu0 0.0
  %8262 = vmatpush1.msra.mxu0 0.0
  %8263 = vmatprep.subr.mxu0 0.0
  %8264 = vmatpush1.msra.mxu0 0.0
  %8265 = vmatprep.subr.mxu0 0.0
  %8266 = vmatpush1.msra.mxu0 0.0
  %8267 = vmatprep.subr.mxu0 0.0
  %8268 = vmatpush1.msra.mxu0 0.0
  %8269 = vmatprep.subr.mxu0 0.0
  %8270 = vmatpush1.msra.mxu0 0.0
  %8271 = vmatprep.subr.mxu0 0.0
  %8272 = vmatpush1.msra.mxu0 0.0
  %8273 = vmatprep.subr.mxu0 0.0
  %8274 = vmatpush1.msra.mxu0 0.0
  %8275 = vmatprep.subr.mxu0 0.0
  %8276 = vmatpush1.msra.mxu0 0.0
  %8277 = vmatprep.subr.mxu0 0.0
  %8278 = vmatpush1.msra.mxu0 0.0
  %8279 = vmatprep.subr.mxu0 0.0
  %8280 = vmatpush1.msra.mxu0 0.0
  %8281 = vmatprep.subr.mxu0 0.0
  %8282 = vmatpush1.msra.mxu0 0.0
  %8283 = vmatprep.subr.mxu0 0.0
  %8284 = vmatpush1.msra.mxu0 0.0
  %8285 = vmatprep.subr.mxu0 0.0
  %8286 = vmatpush1.msra.mxu0 0.0
  %8287 = vmatprep.subr.mxu0 0.0
  %8288 = vmatpush1.msra.mxu0 0.0
  %8289 = vmatprep.subr.mxu0 0.0
  %8290 = vmatpush1.msra.mxu0 0.0
  %8291 = vmatprep.subr.mxu0 0.0
  %8292 = vmatpush1.msra.mxu0 %v8259
  %8293 = vmatprep.subr.mxu0 0.0
  %8294 = vmatpush2.msra.mxu0 0.0
  %8295 = vmatprep.subr.mxu0 0.0
  %8296 = vmatpush2.msra.mxu0 0.0
  %8297 = vmatprep.subr.mxu0 0.0
  %8298 = vmatpush2.msra.mxu0 0.0
  %8299 = vmatprep.subr.mxu0 0.0
  %8300 = vmatpush2.msra.mxu0 0.0
  %8301 = vmatprep.subr.mxu0 0.0
  %8302 = vmatpush2.msra.mxu0 0.0
  %8303 = vmatprep.subr.mxu0 0.0
  %8304 = vmatpush2.msra.mxu0 0.0
  %8305 = vmatprep.subr.mxu0 0.0
  %8306 = vmatpush2.msra.mxu0 0.0
  %8307 = vmatprep.subr.mxu0 0.0
  %8308 = vmatpush2.msra.mxu0 0.0
  %8309 = vmatprep.subr.mxu0 0.0
  %8310 = vmatpush2.msra.mxu0 0.0
  %8311 = vmatprep.subr.mxu0 0.0
  %8312 = vmatpush2.msra.mxu0 0.0
  %8313 = vmatprep.subr.mxu0 0.0
  %8314 = vmatpush2.msra.mxu0 0.0
  %8315 = vmatprep.subr.mxu0 0.0
  %8316 = vmatpush2.msra.mxu0 0.0
  %8317 = vmatprep.subr.mxu0 0.0
  %8318 = vmatpush2.msra.mxu0 0.0
  %8319 = vmatprep.subr.mxu0 0.0
  %8320 = vmatpush2.msra.mxu0 0.0
  %8321 = vmatprep.subr.mxu0 0.0
  %8322 = vmatpush2.msra.mxu0 0.0
  %8323 = vmatprep.subr.mxu0 0.0
  %8324 = vmatpush2.msra.mxu0 0.0
  %8325 = vmatprep.mubr.f32.mxu0 0.0
  %8326 = vmatmul.mubr.f32.gmra.mxu0 %v8211
  %v8327 = vpop.f32.mrf.mxu0
  %v8328 = vadd.f32 0.0, %v8327
  %v8329 = vpop.f32.mrf.mxu0
  %8330 = vmatprep.mubr.f32.mxu0 0.0
  %8331 = vmatmul.mubr.f32.gmra.mxu0 %v8214
  %v8332 = vpop.f32.mrf.mxu0
  %v8333 = vadd.f32 0.0, %v8332
  %v8334 = vpop.f32.mrf.mxu0
  %8335 = vmatprep.mubr.f32.mxu0 0.0
  %8336 = vmatmul.mubr.f32.gmra.mxu0 %v8217
  %v8337 = vpop.f32.mrf.mxu0
  %v8338 = vadd.f32 0.0, %v8337
  %v8339 = vpop.f32.mrf.mxu0
  %8340 = vmatprep.mubr.f32.mxu0 0.0
  %8341 = vmatmul.mubr.f32.gmra.mxu0 %v8220
  %v8342 = vpop.f32.mrf.mxu0
  %v8343 = vadd.f32 0.0, %v8342
  %v8344 = vpop.f32.mrf.mxu0
  %8345 = vmatprep.mubr.f32.mxu0 0.0
  %8346 = vmatmul.mubr.f32.gmra.mxu0 %v8223
  %v8347 = vpop.f32.mrf.mxu0
  %v8348 = vadd.f32 0.0, %v8347
  %v8349 = vpop.f32.mrf.mxu0
  %8350 = vmatprep.mubr.f32.mxu0 0.0
  %8351 = vmatmul.mubr.f32.gmra.mxu0 %v8226
  %v8352 = vpop.f32.mrf.mxu0
  %v8353 = vadd.f32 0.0, %v8352
  %v8354 = vpop.f32.mrf.mxu0
  %8355 = vmatprep.mubr.f32.mxu0 0.0
  %8356 = vmatmul.mubr.f32.gmra.mxu0 %v8229
  %v8357 = vpop.f32.mrf.mxu0
  %v8358 = vadd.f32 0.0, %v8357
  %v8359 = vpop.f32.mrf.mxu0
  %8360 = vmatprep.mubr.f32.mxu0 0.0
  %8361 = vmatmul.mubr.f32.gmra.mxu0 %v8232
  %v8362 = vpop.f32.mrf.mxu0
  %v8363 = vadd.f32 0.0, %v8362
  %v8364 = vpop.f32.mrf.mxu0
  %8365 = vmatprep.mubr.f32.mxu0 0.0
  %8366 = vmatmul.mubr.f32.gmra.mxu0 %v8235
  %v8367 = vpop.f32.mrf.mxu0
  %v8368 = vadd.f32 0.0, %v8367
  %v8369 = vpop.f32.mrf.mxu0
  %8370 = vmatprep.mubr.f32.mxu0 0.0
  %8371 = vmatmul.mubr.f32.gmra.mxu0 %v8238
  %v8372 = vpop.f32.mrf.mxu0
  %v8373 = vadd.f32 0.0, %v8372
  %v8374 = vpop.f32.mrf.mxu0
  %8375 = vmatprep.mubr.f32.mxu0 0.0
  %8376 = vmatmul.mubr.f32.gmra.mxu0 %v8241
  %v8377 = vpop.f32.mrf.mxu0
  %v8378 = vadd.f32 0.0, %v8377
  %v8379 = vpop.f32.mrf.mxu0
  %8380 = vmatprep.mubr.f32.mxu0 0.0
  %8381 = vmatmul.mubr.f32.gmra.mxu0 %v8244
  %v8382 = vpop.f32.mrf.mxu0
  %v8383 = vadd.f32 0.0, %v8382
  %v8384 = vpop.f32.mrf.mxu0
  %8385 = vmatprep.mubr.f32.mxu0 0.0
  %8386 = vmatmul.mubr.f32.gmra.mxu0 %v8247
  %v8387 = vpop.f32.mrf.mxu0
  %v8388 = vadd.f32 0.0, %v8387
  %v8389 = vpop.f32.mrf.mxu0
  %8390 = vmatprep.mubr.f32.mxu0 0.0
  %8391 = vmatmul.mubr.f32.gmra.mxu0 %v8250
  %v8392 = vpop.f32.mrf.mxu0
  %v8393 = vadd.f32 0.0, %v8392
  %v8394 = vpop.f32.mrf.mxu0
  %8395 = vmatprep.mubr.f32.mxu0 0.0
  %8396 = vmatmul.mubr.f32.gmra.mxu0 %v8253
  %v8397 = vpop.f32.mrf.mxu0
  %v8398 = vadd.f32 0.0, %v8397
  %v8399 = vpop.f32.mrf.mxu0
  %8400 = vmatprep.mubr.f32.mxu0 0.0
  %8401 = vmatmul.mubr.f32.gmra.mxu0 %v8256
  %v8402 = vpop.f32.mrf.mxu0
  %v8403 = vadd.f32 0.0, %v8402
  %v8404 = vpop.f32.mrf.mxu0
  %8405 = vdwg.mxu0
  %v8406 = vadd.f32 %v8114, %v8328
  %v8407 = vadd.f32 %v8119, %v8333
  %v8408 = vadd.f32 %v8124, %v8338
  %v8409 = vadd.f32 %v8129, %v8343
  %v8410 = vadd.f32 %v8134, %v8348
  %v8411 = vadd.f32 %v8139, %v8353
  %v8412 = vadd.f32 %v8144, %v8358
  %v8413 = vadd.f32 %v8149, %v8363
  %v8414 = vadd.f32 %v8154, %v8368
  %v8415 = vadd.f32 %v8159, %v8373
  %v8416 = vadd.f32 %v8164, %v8378
  %v8417 = vadd.f32 %v8169, %v8383
  %v8418 = vadd.f32 %v8174, %v8388
  %v8419 = vadd.f32 %v8179, %v8393
  %v8420 = vadd.f32 %v8184, %v8398
  %v8421 = vadd.f32 %v8189, %v8403
  %v8422 = vld [vmem:[#allocation4] sm:$0xff]
  %v8423 = vld [vmem:[#allocation4 + $0x10] sm:$0xff]
  %v8424 = vld [vmem:[#allocation4 + $0x20] sm:$0xff]
  %v8425 = vld [vmem:[#allocation4 + $0x30] sm:$0xff]
  %v8426 = vld [vmem:[#allocation4 + $0x40] sm:$0xff]
  %v8427 = vld [vmem:[#allocation4 + $0x50] sm:$0xff]
  %v8428 = vld [vmem:[#allocation4 + $0x60] sm:$0xff]
  %v8429 = vld [vmem:[#allocation4 + $0x70] sm:$0xff]
  %v8430 = vld [vmem:[#allocation4 + $0x90] sm:$0xff]
  %v8431 = vld [vmem:[#allocation4 + $0xa0] sm:$0xff]
  %v8432 = vld [vmem:[#allocation4 + $0xb0] sm:$0xff]
  %v8433 = vld [vmem:[#allocation4 + $0xc0] sm:$0xff]
  %v8434 = vld [vmem:[#allocation4 + $0xd0] sm:$0xff]
  %v8435 = vld [vmem:[#allocation4 + $0xe0] sm:$0xff]
  %v8436 = vld [vmem:[#allocation4 + $0xf0] sm:$0xff]
  %v8437 = vld [vmem:[#allocation4 + $0x100] sm:$0xff]
  %s8438 = scalar_lea.vmem %s7, 12
  %v8439 = vld [vmem:[%s8438] sm:$0xf]
  %v8441 = vsel %vm73, %v8422, 0
  %v8444 = vsel %vm73, %v8423, 0
  %v8447 = vsel %vm73, %v8424, 0
  %v8450 = vsel %vm73, %v8425, 0
  %v8453 = vsel %vm73, %v8426, 0
  %v8456 = vsel %vm73, %v8427, 0
  %v8459 = vsel %vm73, %v8428, 0
  %v8462 = vsel %vm73, %v8429, 0
  %v8465 = vsel %vm73, %v8430, 0
  %v8468 = vsel %vm73, %v8431, 0
  %v8471 = vsel %vm73, %v8432, 0
  %v8474 = vsel %vm73, %v8433, 0
  %v8477 = vsel %vm73, %v8434, 0
  %v8480 = vsel %vm73, %v8435, 0
  %v8483 = vsel %vm73, %v8436, 0
  %v8486 = vsel %vm73, %v8437, 0
  %v8489 = vsel %vm122, %v8439, 0
  %8491 = vmatprep.subr.mxu0 0.0
  %8492 = vmatpush1.msra.mxu0 0.0
  %8493 = vmatprep.subr.mxu0 0.0
  %8494 = vmatpush1.msra.mxu0 0.0
  %8495 = vmatprep.subr.mxu0 0.0
  %8496 = vmatpush1.msra.mxu0 0.0
  %8497 = vmatprep.subr.mxu0 0.0
  %8498 = vmatpush1.msra.mxu0 0.0
  %8499 = vmatprep.subr.mxu0 0.0
  %8500 = vmatpush1.msra.mxu0 0.0
  %8501 = vmatprep.subr.mxu0 0.0
  %8502 = vmatpush1.msra.mxu0 0.0
  %8503 = vmatprep.subr.mxu0 0.0
  %8504 = vmatpush1.msra.mxu0 0.0
  %8505 = vmatprep.subr.mxu0 0.0
  %8506 = vmatpush1.msra.mxu0 0.0
  %8507 = vmatprep.subr.mxu0 0.0
  %8508 = vmatpush1.msra.mxu0 0.0
  %8509 = vmatprep.subr.mxu0 0.0
  %8510 = vmatpush1.msra.mxu0 0.0
  %8511 = vmatprep.subr.mxu0 0.0
  %8512 = vmatpush1.msra.mxu0 0.0
  %8513 = vmatprep.subr.mxu0 0.0
  %8514 = vmatpush1.msra.mxu0 0.0
  %8515 = vmatprep.subr.mxu0 0.0
  %8516 = vmatpush1.msra.mxu0 0.0
  %8517 = vmatprep.subr.mxu0 0.0
  %8518 = vmatpush1.msra.mxu0 0.0
  %8519 = vmatprep.subr.mxu0 0.0
  %8520 = vmatpush1.msra.mxu0 0.0
  %8521 = vmatprep.subr.mxu0 0.0
  %8522 = vmatpush1.msra.mxu0 %v8489
  %8523 = vmatprep.subr.mxu0 0.0
  %8524 = vmatpush2.msra.mxu0 0.0
  %8525 = vmatprep.subr.mxu0 0.0
  %8526 = vmatpush2.msra.mxu0 0.0
  %8527 = vmatprep.subr.mxu0 0.0
  %8528 = vmatpush2.msra.mxu0 0.0
  %8529 = vmatprep.subr.mxu0 0.0
  %8530 = vmatpush2.msra.mxu0 0.0
  %8531 = vmatprep.subr.mxu0 0.0
  %8532 = vmatpush2.msra.mxu0 0.0
  %8533 = vmatprep.subr.mxu0 0.0
  %8534 = vmatpush2.msra.mxu0 0.0
  %8535 = vmatprep.subr.mxu0 0.0
  %8536 = vmatpush2.msra.mxu0 0.0
  %8537 = vmatprep.subr.mxu0 0.0
  %8538 = vmatpush2.msra.mxu0 0.0
  %8539 = vmatprep.subr.mxu0 0.0
  %8540 = vmatpush2.msra.mxu0 0.0
  %8541 = vmatprep.subr.mxu0 0.0
  %8542 = vmatpush2.msra.mxu0 0.0
  %8543 = vmatprep.subr.mxu0 0.0
  %8544 = vmatpush2.msra.mxu0 0.0
  %8545 = vmatprep.subr.mxu0 0.0
  %8546 = vmatpush2.msra.mxu0 0.0
  %8547 = vmatprep.subr.mxu0 0.0
  %8548 = vmatpush2.msra.mxu0 0.0
  %8549 = vmatprep.subr.mxu0 0.0
  %8550 = vmatpush2.msra.mxu0 0.0
  %8551 = vmatprep.subr.mxu0 0.0
  %8552 = vmatpush2.msra.mxu0 0.0
  %8553 = vmatprep.subr.mxu0 0.0
  %8554 = vmatpush2.msra.mxu0 0.0
  %8555 = vmatprep.mubr.f32.mxu0 0.0
  %8556 = vmatmul.mubr.f32.gmra.mxu0 %v8441
  %v8557 = vpop.f32.mrf.mxu0
  %v8558 = vadd.f32 0.0, %v8557
  %v8559 = vpop.f32.mrf.mxu0
  %8560 = vmatprep.mubr.f32.mxu0 0.0
  %8561 = vmatmul.mubr.f32.gmra.mxu0 %v8444
  %v8562 = vpop.f32.mrf.mxu0
  %v8563 = vadd.f32 0.0, %v8562
  %v8564 = vpop.f32.mrf.mxu0
  %8565 = vmatprep.mubr.f32.mxu0 0.0
  %8566 = vmatmul.mubr.f32.gmra.mxu0 %v8447
  %v8567 = vpop.f32.mrf.mxu0
  %v8568 = vadd.f32 0.0, %v8567
  %v8569 = vpop.f32.mrf.mxu0
  %8570 = vmatprep.mubr.f32.mxu0 0.0
  %8571 = vmatmul.mubr.f32.gmra.mxu0 %v8450
  %v8572 = vpop.f32.mrf.mxu0
  %v8573 = vadd.f32 0.0, %v8572
  %v8574 = vpop.f32.mrf.mxu0
  %8575 = vmatprep.mubr.f32.mxu0 0.0
  %8576 = vmatmul.mubr.f32.gmra.mxu0 %v8453
  %v8577 = vpop.f32.mrf.mxu0
  %v8578 = vadd.f32 0.0, %v8577
  %v8579 = vpop.f32.mrf.mxu0
  %8580 = vmatprep.mubr.f32.mxu0 0.0
  %8581 = vmatmul.mubr.f32.gmra.mxu0 %v8456
  %v8582 = vpop.f32.mrf.mxu0
  %v8583 = vadd.f32 0.0, %v8582
  %v8584 = vpop.f32.mrf.mxu0
  %8585 = vmatprep.mubr.f32.mxu0 0.0
  %8586 = vmatmul.mubr.f32.gmra.mxu0 %v8459
  %v8587 = vpop.f32.mrf.mxu0
  %v8588 = vadd.f32 0.0, %v8587
  %v8589 = vpop.f32.mrf.mxu0
  %8590 = vmatprep.mubr.f32.mxu0 0.0
  %8591 = vmatmul.mubr.f32.gmra.mxu0 %v8462
  %v8592 = vpop.f32.mrf.mxu0
  %v8593 = vadd.f32 0.0, %v8592
  %v8594 = vpop.f32.mrf.mxu0
  %8595 = vmatprep.mubr.f32.mxu0 0.0
  %8596 = vmatmul.mubr.f32.gmra.mxu0 %v8465
  %v8597 = vpop.f32.mrf.mxu0
  %v8598 = vadd.f32 0.0, %v8597
  %v8599 = vpop.f32.mrf.mxu0
  %8600 = vmatprep.mubr.f32.mxu0 0.0
  %8601 = vmatmul.mubr.f32.gmra.mxu0 %v8468
  %v8602 = vpop.f32.mrf.mxu0
  %v8603 = vadd.f32 0.0, %v8602
  %v8604 = vpop.f32.mrf.mxu0
  %8605 = vmatprep.mubr.f32.mxu0 0.0
  %8606 = vmatmul.mubr.f32.gmra.mxu0 %v8471
  %v8607 = vpop.f32.mrf.mxu0
  %v8608 = vadd.f32 0.0, %v8607
  %v8609 = vpop.f32.mrf.mxu0
  %8610 = vmatprep.mubr.f32.mxu0 0.0
  %8611 = vmatmul.mubr.f32.gmra.mxu0 %v8474
  %v8612 = vpop.f32.mrf.mxu0
  %v8613 = vadd.f32 0.0, %v8612
  %v8614 = vpop.f32.mrf.mxu0
  %8615 = vmatprep.mubr.f32.mxu0 0.0
  %8616 = vmatmul.mubr.f32.gmra.mxu0 %v8477
  %v8617 = vpop.f32.mrf.mxu0
  %v8618 = vadd.f32 0.0, %v8617
  %v8619 = vpop.f32.mrf.mxu0
  %8620 = vmatprep.mubr.f32.mxu0 0.0
  %8621 = vmatmul.mubr.f32.gmra.mxu0 %v8480
  %v8622 = vpop.f32.mrf.mxu0
  %v8623 = vadd.f32 0.0, %v8622
  %v8624 = vpop.f32.mrf.mxu0
  %8625 = vmatprep.mubr.f32.mxu0 0.0
  %8626 = vmatmul.mubr.f32.gmra.mxu0 %v8483
  %v8627 = vpop.f32.mrf.mxu0
  %v8628 = vadd.f32 0.0, %v8627
  %v8629 = vpop.f32.mrf.mxu0
  %8630 = vmatprep.mubr.f32.mxu0 0.0
  %8631 = vmatmul.mubr.f32.gmra.mxu0 %v8486
  %v8632 = vpop.f32.mrf.mxu0
  %v8633 = vadd.f32 0.0, %v8632
  %v8634 = vpop.f32.mrf.mxu0
  %8635 = vdwg.mxu0
  %v8636 = vadd.f32 %v8406, %v8558
  %v8637 = vadd.f32 %v8407, %v8563
  %v8638 = vadd.f32 %v8408, %v8568
  %v8639 = vadd.f32 %v8409, %v8573
  %v8640 = vadd.f32 %v8410, %v8578
  %v8641 = vadd.f32 %v8411, %v8583
  %v8642 = vadd.f32 %v8412, %v8588
  %v8643 = vadd.f32 %v8413, %v8593
  %v8644 = vadd.f32 %v8414, %v8598
  %v8645 = vadd.f32 %v8415, %v8603
  %v8646 = vadd.f32 %v8416, %v8608
  %v8647 = vadd.f32 %v8417, %v8613
  %v8648 = vadd.f32 %v8418, %v8618
  %v8649 = vadd.f32 %v8419, %v8623
  %v8650 = vadd.f32 %v8420, %v8628
  %v8651 = vadd.f32 %v8421, %v8633
  %v8652 = vld [vmem:[#allocation5] sm:$0xff]
  %v8653 = vld [vmem:[#allocation5 + $0x10] sm:$0xff]
  %v8654 = vld [vmem:[#allocation5 + $0x20] sm:$0xff]
  %v8655 = vld [vmem:[#allocation5 + $0x30] sm:$0xff]
  %v8656 = vld [vmem:[#allocation5 + $0x40] sm:$0xff]
  %v8657 = vld [vmem:[#allocation5 + $0x50] sm:$0xff]
  %v8658 = vld [vmem:[#allocation5 + $0x60] sm:$0xff]
  %v8659 = vld [vmem:[#allocation5 + $0x70] sm:$0xff]
  %v8660 = vld [vmem:[#allocation5 + $0x90] sm:$0xff]
  %v8661 = vld [vmem:[#allocation5 + $0xa0] sm:$0xff]
  %v8662 = vld [vmem:[#allocation5 + $0xb0] sm:$0xff]
  %v8663 = vld [vmem:[#allocation5 + $0xc0] sm:$0xff]
  %v8664 = vld [vmem:[#allocation5 + $0xd0] sm:$0xff]
  %v8665 = vld [vmem:[#allocation5 + $0xe0] sm:$0xff]
  %v8666 = vld [vmem:[#allocation5 + $0xf0] sm:$0xff]
  %v8667 = vld [vmem:[#allocation5 + $0x100] sm:$0xff]
  %s8668 = scalar_lea.vmem %s7, 16
  %v8669 = vld [vmem:[%s8668] sm:$0xf]
  %v8671 = vsel %vm73, %v8652, 0
  %v8674 = vsel %vm73, %v8653, 0
  %v8677 = vsel %vm73, %v8654, 0
  %v8680 = vsel %vm73, %v8655, 0
  %v8683 = vsel %vm73, %v8656, 0
  %v8686 = vsel %vm73, %v8657, 0
  %v8689 = vsel %vm73, %v8658, 0
  %v8692 = vsel %vm73, %v8659, 0
  %v8695 = vsel %vm73, %v8660, 0
  %v8698 = vsel %vm73, %v8661, 0
  %v8701 = vsel %vm73, %v8662, 0
  %v8704 = vsel %vm73, %v8663, 0
  %v8707 = vsel %vm73, %v8664, 0
  %v8710 = vsel %vm73, %v8665, 0
  %v8713 = vsel %vm73, %v8666, 0
  %v8716 = vsel %vm73, %v8667, 0
  %v8719 = vsel %vm122, %v8669, 0
  %8721 = vmatprep.subr.mxu0 0.0
  %8722 = vmatpush1.msra.mxu0 0.0
  %8723 = vmatprep.subr.mxu0 0.0
  %8724 = vmatpush1.msra.mxu0 0.0
  %8725 = vmatprep.subr.mxu0 0.0
  %8726 = vmatpush1.msra.mxu0 0.0
  %8727 = vmatprep.subr.mxu0 0.0
  %8728 = vmatpush1.msra.mxu0 0.0
  %8729 = vmatprep.subr.mxu0 0.0
  %8730 = vmatpush1.msra.mxu0 0.0
  %8731 = vmatprep.subr.mxu0 0.0
  %8732 = vmatpush1.msra.mxu0 0.0
  %8733 = vmatprep.subr.mxu0 0.0
  %8734 = vmatpush1.msra.mxu0 0.0
  %8735 = vmatprep.subr.mxu0 0.0
  %8736 = vmatpush1.msra.mxu0 0.0
  %8737 = vmatprep.subr.mxu0 0.0
  %8738 = vmatpush1.msra.mxu0 0.0
  %8739 = vmatprep.subr.mxu0 0.0
  %8740 = vmatpush1.msra.mxu0 0.0
  %8741 = vmatprep.subr.mxu0 0.0
  %8742 = vmatpush1.msra.mxu0 0.0
  %8743 = vmatprep.subr.mxu0 0.0
  %8744 = vmatpush1.msra.mxu0 0.0
  %8745 = vmatprep.subr.mxu0 0.0
  %8746 = vmatpush1.msra.mxu0 0.0
  %8747 = vmatprep.subr.mxu0 0.0
  %8748 = vmatpush1.msra.mxu0 0.0
  %8749 = vmatprep.subr.mxu0 0.0
  %8750 = vmatpush1.msra.mxu0 0.0
  %8751 = vmatprep.subr.mxu0 0.0
  %8752 = vmatpush1.msra.mxu0 %v8719
  %8753 = vmatprep.subr.mxu0 0.0
  %8754 = vmatpush2.msra.mxu0 0.0
  %8755 = vmatprep.subr.mxu0 0.0
  %8756 = vmatpush2.msra.mxu0 0.0
  %8757 = vmatprep.subr.mxu0 0.0
  %8758 = vmatpush2.msra.mxu0 0.0
  %8759 = vmatprep.subr.mxu0 0.0
  %8760 = vmatpush2.msra.mxu0 0.0
  %8761 = vmatprep.subr.mxu0 0.0
  %8762 = vmatpush2.msra.mxu0 0.0
  %8763 = vmatprep.subr.mxu0 0.0
  %8764 = vmatpush2.msra.mxu0 0.0
  %8765 = vmatprep.subr.mxu0 0.0
  %8766 = vmatpush2.msra.mxu0 0.0
  %8767 = vmatprep.subr.mxu0 0.0
  %8768 = vmatpush2.msra.mxu0 0.0
  %8769 = vmatprep.subr.mxu0 0.0
  %8770 = vmatpush2.msra.mxu0 0.0
  %8771 = vmatprep.subr.mxu0 0.0
  %8772 = vmatpush2.msra.mxu0 0.0
  %8773 = vmatprep.subr.mxu0 0.0
  %8774 = vmatpush2.msra.mxu0 0.0
  %8775 = vmatprep.subr.mxu0 0.0
  %8776 = vmatpush2.msra.mxu0 0.0
  %8777 = vmatprep.subr.mxu0 0.0
  %8778 = vmatpush2.msra.mxu0 0.0
  %8779 = vmatprep.subr.mxu0 0.0
  %8780 = vmatpush2.msra.mxu0 0.0
  %8781 = vmatprep.subr.mxu0 0.0
  %8782 = vmatpush2.msra.mxu0 0.0
  %8783 = vmatprep.subr.mxu0 0.0
  %8784 = vmatpush2.msra.mxu0 0.0
  %8785 = vmatprep.mubr.f32.mxu0 0.0
  %8786 = vmatmul.mubr.f32.gmra.mxu0 %v8671
  %v8787 = vpop.f32.mrf.mxu0
  %v8788 = vadd.f32 0.0, %v8787
  %v8789 = vpop.f32.mrf.mxu0
  %8790 = vmatprep.mubr.f32.mxu0 0.0
  %8791 = vmatmul.mubr.f32.gmra.mxu0 %v8674
  %v8792 = vpop.f32.mrf.mxu0
  %v8793 = vadd.f32 0.0, %v8792
  %v8794 = vpop.f32.mrf.mxu0
  %8795 = vmatprep.mubr.f32.mxu0 0.0
  %8796 = vmatmul.mubr.f32.gmra.mxu0 %v8677
  %v8797 = vpop.f32.mrf.mxu0
  %v8798 = vadd.f32 0.0, %v8797
  %v8799 = vpop.f32.mrf.mxu0
  %8800 = vmatprep.mubr.f32.mxu0 0.0
  %8801 = vmatmul.mubr.f32.gmra.mxu0 %v8680
  %v8802 = vpop.f32.mrf.mxu0
  %v8803 = vadd.f32 0.0, %v8802
  %v8804 = vpop.f32.mrf.mxu0
  %8805 = vmatprep.mubr.f32.mxu0 0.0
  %8806 = vmatmul.mubr.f32.gmra.mxu0 %v8683
  %v8807 = vpop.f32.mrf.mxu0
  %v8808 = vadd.f32 0.0, %v8807
  %v8809 = vpop.f32.mrf.mxu0
  %8810 = vmatprep.mubr.f32.mxu0 0.0
  %8811 = vmatmul.mubr.f32.gmra.mxu0 %v8686
  %v8812 = vpop.f32.mrf.mxu0
  %v8813 = vadd.f32 0.0, %v8812
  %v8814 = vpop.f32.mrf.mxu0
  %8815 = vmatprep.mubr.f32.mxu0 0.0
  %8816 = vmatmul.mubr.f32.gmra.mxu0 %v8689
  %v8817 = vpop.f32.mrf.mxu0
  %v8818 = vadd.f32 0.0, %v8817
  %v8819 = vpop.f32.mrf.mxu0
  %8820 = vmatprep.mubr.f32.mxu0 0.0
  %8821 = vmatmul.mubr.f32.gmra.mxu0 %v8692
  %v8822 = vpop.f32.mrf.mxu0
  %v8823 = vadd.f32 0.0, %v8822
  %v8824 = vpop.f32.mrf.mxu0
  %8825 = vmatprep.mubr.f32.mxu0 0.0
  %8826 = vmatmul.mubr.f32.gmra.mxu0 %v8695
  %v8827 = vpop.f32.mrf.mxu0
  %v8828 = vadd.f32 0.0, %v8827
  %v8829 = vpop.f32.mrf.mxu0
  %8830 = vmatprep.mubr.f32.mxu0 0.0
  %8831 = vmatmul.mubr.f32.gmra.mxu0 %v8698
  %v8832 = vpop.f32.mrf.mxu0
  %v8833 = vadd.f32 0.0, %v8832
  %v8834 = vpop.f32.mrf.mxu0
  %8835 = vmatprep.mubr.f32.mxu0 0.0
  %8836 = vmatmul.mubr.f32.gmra.mxu0 %v8701
  %v8837 = vpop.f32.mrf.mxu0
  %v8838 = vadd.f32 0.0, %v8837
  %v8839 = vpop.f32.mrf.mxu0
  %8840 = vmatprep.mubr.f32.mxu0 0.0
  %8841 = vmatmul.mubr.f32.gmra.mxu0 %v8704
  %v8842 = vpop.f32.mrf.mxu0
  %v8843 = vadd.f32 0.0, %v8842
  %v8844 = vpop.f32.mrf.mxu0
  %8845 = vmatprep.mubr.f32.mxu0 0.0
  %8846 = vmatmul.mubr.f32.gmra.mxu0 %v8707
  %v8847 = vpop.f32.mrf.mxu0
  %v8848 = vadd.f32 0.0, %v8847
  %v8849 = vpop.f32.mrf.mxu0
  %8850 = vmatprep.mubr.f32.mxu0 0.0
  %8851 = vmatmul.mubr.f32.gmra.mxu0 %v8710
  %v8852 = vpop.f32.mrf.mxu0
  %v8853 = vadd.f32 0.0, %v8852
  %v8854 = vpop.f32.mrf.mxu0
  %8855 = vmatprep.mubr.f32.mxu0 0.0
  %8856 = vmatmul.mubr.f32.gmra.mxu0 %v8713
  %v8857 = vpop.f32.mrf.mxu0
  %v8858 = vadd.f32 0.0, %v8857
  %v8859 = vpop.f32.mrf.mxu0
  %8860 = vmatprep.mubr.f32.mxu0 0.0
  %8861 = vmatmul.mubr.f32.gmra.mxu0 %v8716
  %v8862 = vpop.f32.mrf.mxu0
  %v8863 = vadd.f32 0.0, %v8862
  %v8864 = vpop.f32.mrf.mxu0
  %8865 = vdwg.mxu0
  %v8866 = vadd.f32 %v8636, %v8788
  %v8867 = vadd.f32 %v8637, %v8793
  %v8868 = vadd.f32 %v8638, %v8798
  %v8869 = vadd.f32 %v8639, %v8803
  %v8870 = vadd.f32 %v8640, %v8808
  %v8871 = vadd.f32 %v8641, %v8813
  %v8872 = vadd.f32 %v8642, %v8818
  %v8873 = vadd.f32 %v8643, %v8823
  %v8874 = vadd.f32 %v8644, %v8828
  %v8875 = vadd.f32 %v8645, %v8833
  %v8876 = vadd.f32 %v8646, %v8838
  %v8877 = vadd.f32 %v8647, %v8843
  %v8878 = vadd.f32 %v8648, %v8848
  %v8879 = vadd.f32 %v8649, %v8853
  %v8880 = vadd.f32 %v8650, %v8858
  %v8881 = vadd.f32 %v8651, %v8863
  %v8882 = vld [vmem:[#allocation4 + $0x1] sm:$0xff]
  %v8883 = vld [vmem:[#allocation4 + $0x11] sm:$0xff]
  %v8884 = vld [vmem:[#allocation4 + $0x21] sm:$0xff]
  %v8885 = vld [vmem:[#allocation4 + $0x31] sm:$0xff]
  %v8886 = vld [vmem:[#allocation4 + $0x41] sm:$0xff]
  %v8887 = vld [vmem:[#allocation4 + $0x51] sm:$0xff]
  %v8888 = vld [vmem:[#allocation4 + $0x61] sm:$0xff]
  %v8889 = vld [vmem:[#allocation4 + $0x71] sm:$0xff]
  %v8890 = vld [vmem:[#allocation4 + $0x91] sm:$0xff]
  %v8891 = vld [vmem:[#allocation4 + $0xa1] sm:$0xff]
  %v8892 = vld [vmem:[#allocation4 + $0xb1] sm:$0xff]
  %v8893 = vld [vmem:[#allocation4 + $0xc1] sm:$0xff]
  %v8894 = vld [vmem:[#allocation4 + $0xd1] sm:$0xff]
  %v8895 = vld [vmem:[#allocation4 + $0xe1] sm:$0xff]
  %v8896 = vld [vmem:[#allocation4 + $0xf1] sm:$0xff]
  %v8897 = vld [vmem:[#allocation4 + $0x101] sm:$0xff]
  %s8898 = scalar_lea.vmem %s7, 20
  %v8899 = vld [vmem:[%s8898] sm:$0xf]
  %v8901 = vsel %vm73, %v8882, 0
  %v8904 = vsel %vm73, %v8883, 0
  %v8907 = vsel %vm73, %v8884, 0
  %v8910 = vsel %vm73, %v8885, 0
  %v8913 = vsel %vm73, %v8886, 0
  %v8916 = vsel %vm73, %v8887, 0
  %v8919 = vsel %vm73, %v8888, 0
  %v8922 = vsel %vm73, %v8889, 0
  %v8925 = vsel %vm73, %v8890, 0
  %v8928 = vsel %vm73, %v8891, 0
  %v8931 = vsel %vm73, %v8892, 0
  %v8934 = vsel %vm73, %v8893, 0
  %v8937 = vsel %vm73, %v8894, 0
  %v8940 = vsel %vm73, %v8895, 0
  %v8943 = vsel %vm73, %v8896, 0
  %v8946 = vsel %vm73, %v8897, 0
  %v8949 = vsel %vm122, %v8899, 0
  %8951 = vmatprep.subr.mxu0 0.0
  %8952 = vmatpush1.msra.mxu0 0.0
  %8953 = vmatprep.subr.mxu0 0.0
  %8954 = vmatpush1.msra.mxu0 0.0
  %8955 = vmatprep.subr.mxu0 0.0
  %8956 = vmatpush1.msra.mxu0 0.0
  %8957 = vmatprep.subr.mxu0 0.0
  %8958 = vmatpush1.msra.mxu0 0.0
  %8959 = vmatprep.subr.mxu0 0.0
  %8960 = vmatpush1.msra.mxu0 0.0
  %8961 = vmatprep.subr.mxu0 0.0
  %8962 = vmatpush1.msra.mxu0 0.0
  %8963 = vmatprep.subr.mxu0 0.0
  %8964 = vmatpush1.msra.mxu0 0.0
  %8965 = vmatprep.subr.mxu0 0.0
  %8966 = vmatpush1.msra.mxu0 0.0
  %8967 = vmatprep.subr.mxu0 0.0
  %8968 = vmatpush1.msra.mxu0 0.0
  %8969 = vmatprep.subr.mxu0 0.0
  %8970 = vmatpush1.msra.mxu0 0.0
  %8971 = vmatprep.subr.mxu0 0.0
  %8972 = vmatpush1.msra.mxu0 0.0
  %8973 = vmatprep.subr.mxu0 0.0
  %8974 = vmatpush1.msra.mxu0 0.0
  %8975 = vmatprep.subr.mxu0 0.0
  %8976 = vmatpush1.msra.mxu0 0.0
  %8977 = vmatprep.subr.mxu0 0.0
  %8978 = vmatpush1.msra.mxu0 0.0
  %8979 = vmatprep.subr.mxu0 0.0
  %8980 = vmatpush1.msra.mxu0 0.0
  %8981 = vmatprep.subr.mxu0 0.0
  %8982 = vmatpush1.msra.mxu0 %v8949
  %8983 = vmatprep.subr.mxu0 0.0
  %8984 = vmatpush2.msra.mxu0 0.0
  %8985 = vmatprep.subr.mxu0 0.0
  %8986 = vmatpush2.msra.mxu0 0.0
  %8987 = vmatprep.subr.mxu0 0.0
  %8988 = vmatpush2.msra.mxu0 0.0
  %8989 = vmatprep.subr.mxu0 0.0
  %8990 = vmatpush2.msra.mxu0 0.0
  %8991 = vmatprep.subr.mxu0 0.0
  %8992 = vmatpush2.msra.mxu0 0.0
  %8993 = vmatprep.subr.mxu0 0.0
  %8994 = vmatpush2.msra.mxu0 0.0
  %8995 = vmatprep.subr.mxu0 0.0
  %8996 = vmatpush2.msra.mxu0 0.0
  %8997 = vmatprep.subr.mxu0 0.0
  %8998 = vmatpush2.msra.mxu0 0.0
  %8999 = vmatprep.subr.mxu0 0.0
  %9000 = vmatpush2.msra.mxu0 0.0
  %9001 = vmatprep.subr.mxu0 0.0
  %9002 = vmatpush2.msra.mxu0 0.0
  %9003 = vmatprep.subr.mxu0 0.0
  %9004 = vmatpush2.msra.mxu0 0.0
  %9005 = vmatprep.subr.mxu0 0.0
  %9006 = vmatpush2.msra.mxu0 0.0
  %9007 = vmatprep.subr.mxu0 0.0
  %9008 = vmatpush2.msra.mxu0 0.0
  %9009 = vmatprep.subr.mxu0 0.0
  %9010 = vmatpush2.msra.mxu0 0.0
  %9011 = vmatprep.subr.mxu0 0.0
  %9012 = vmatpush2.msra.mxu0 0.0
  %9013 = vmatprep.subr.mxu0 0.0
  %9014 = vmatpush2.msra.mxu0 0.0
  %9015 = vmatprep.mubr.f32.mxu0 0.0
  %9016 = vmatmul.mubr.f32.gmra.mxu0 %v8901
  %v9017 = vpop.f32.mrf.mxu0
  %v9018 = vadd.f32 0.0, %v9017
  %v9019 = vpop.f32.mrf.mxu0
  %9020 = vmatprep.mubr.f32.mxu0 0.0
  %9021 = vmatmul.mubr.f32.gmra.mxu0 %v8904
  %v9022 = vpop.f32.mrf.mxu0
  %v9023 = vadd.f32 0.0, %v9022
  %v9024 = vpop.f32.mrf.mxu0
  %9025 = vmatprep.mubr.f32.mxu0 0.0
  %9026 = vmatmul.mubr.f32.gmra.mxu0 %v8907
  %v9027 = vpop.f32.mrf.mxu0
  %v9028 = vadd.f32 0.0, %v9027
  %v9029 = vpop.f32.mrf.mxu0
  %9030 = vmatprep.mubr.f32.mxu0 0.0
  %9031 = vmatmul.mubr.f32.gmra.mxu0 %v8910
  %v9032 = vpop.f32.mrf.mxu0
  %v9033 = vadd.f32 0.0, %v9032
  %v9034 = vpop.f32.mrf.mxu0
  %9035 = vmatprep.mubr.f32.mxu0 0.0
  %9036 = vmatmul.mubr.f32.gmra.mxu0 %v8913
  %v9037 = vpop.f32.mrf.mxu0
  %v9038 = vadd.f32 0.0, %v9037
  %v9039 = vpop.f32.mrf.mxu0
  %9040 = vmatprep.mubr.f32.mxu0 0.0
  %9041 = vmatmul.mubr.f32.gmra.mxu0 %v8916
  %v9042 = vpop.f32.mrf.mxu0
  %v9043 = vadd.f32 0.0, %v9042
  %v9044 = vpop.f32.mrf.mxu0
  %9045 = vmatprep.mubr.f32.mxu0 0.0
  %9046 = vmatmul.mubr.f32.gmra.mxu0 %v8919
  %v9047 = vpop.f32.mrf.mxu0
  %v9048 = vadd.f32 0.0, %v9047
  %v9049 = vpop.f32.mrf.mxu0
  %9050 = vmatprep.mubr.f32.mxu0 0.0
  %9051 = vmatmul.mubr.f32.gmra.mxu0 %v8922
  %v9052 = vpop.f32.mrf.mxu0
  %v9053 = vadd.f32 0.0, %v9052
  %v9054 = vpop.f32.mrf.mxu0
  %9055 = vmatprep.mubr.f32.mxu0 0.0
  %9056 = vmatmul.mubr.f32.gmra.mxu0 %v8925
  %v9057 = vpop.f32.mrf.mxu0
  %v9058 = vadd.f32 0.0, %v9057
  %v9059 = vpop.f32.mrf.mxu0
  %9060 = vmatprep.mubr.f32.mxu0 0.0
  %9061 = vmatmul.mubr.f32.gmra.mxu0 %v8928
  %v9062 = vpop.f32.mrf.mxu0
  %v9063 = vadd.f32 0.0, %v9062
  %v9064 = vpop.f32.mrf.mxu0
  %9065 = vmatprep.mubr.f32.mxu0 0.0
  %9066 = vmatmul.mubr.f32.gmra.mxu0 %v8931
  %v9067 = vpop.f32.mrf.mxu0
  %v9068 = vadd.f32 0.0, %v9067
  %v9069 = vpop.f32.mrf.mxu0
  %9070 = vmatprep.mubr.f32.mxu0 0.0
  %9071 = vmatmul.mubr.f32.gmra.mxu0 %v8934
  %v9072 = vpop.f32.mrf.mxu0
  %v9073 = vadd.f32 0.0, %v9072
  %v9074 = vpop.f32.mrf.mxu0
  %9075 = vmatprep.mubr.f32.mxu0 0.0
  %9076 = vmatmul.mubr.f32.gmra.mxu0 %v8937
  %v9077 = vpop.f32.mrf.mxu0
  %v9078 = vadd.f32 0.0, %v9077
  %v9079 = vpop.f32.mrf.mxu0
  %9080 = vmatprep.mubr.f32.mxu0 0.0
  %9081 = vmatmul.mubr.f32.gmra.mxu0 %v8940
  %v9082 = vpop.f32.mrf.mxu0
  %v9083 = vadd.f32 0.0, %v9082
  %v9084 = vpop.f32.mrf.mxu0
  %9085 = vmatprep.mubr.f32.mxu0 0.0
  %9086 = vmatmul.mubr.f32.gmra.mxu0 %v8943
  %v9087 = vpop.f32.mrf.mxu0
  %v9088 = vadd.f32 0.0, %v9087
  %v9089 = vpop.f32.mrf.mxu0
  %9090 = vmatprep.mubr.f32.mxu0 0.0
  %9091 = vmatmul.mubr.f32.gmra.mxu0 %v8946
  %v9092 = vpop.f32.mrf.mxu0
  %v9093 = vadd.f32 0.0, %v9092
  %v9094 = vpop.f32.mrf.mxu0
  %9095 = vdwg.mxu0
  %v9096 = vadd.f32 %v8866, %v9018
  %v9097 = vadd.f32 %v8867, %v9023
  %v9098 = vadd.f32 %v8868, %v9028
  %v9099 = vadd.f32 %v8869, %v9033
  %v9100 = vadd.f32 %v8870, %v9038
  %v9101 = vadd.f32 %v8871, %v9043
  %v9102 = vadd.f32 %v8872, %v9048
  %v9103 = vadd.f32 %v8873, %v9053
  %v9104 = vadd.f32 %v8874, %v9058
  %v9105 = vadd.f32 %v8875, %v9063
  %v9106 = vadd.f32 %v8876, %v9068
  %v9107 = vadd.f32 %v8877, %v9073
  %v9108 = vadd.f32 %v8878, %v9078
  %v9109 = vadd.f32 %v8879, %v9083
  %v9110 = vadd.f32 %v8880, %v9088
  %v9111 = vadd.f32 %v8881, %v9093
  %v9112 = vld [vmem:[%s7411] sm:$0xff]
  %v9113 = vld [vmem:[%s7411 + $0x10] sm:$0xff]
  %v9114 = vld [vmem:[%s7411 + $0x20] sm:$0xff]
  %v9115 = vld [vmem:[%s7411 + $0x30] sm:$0xff]
  %v9116 = vld [vmem:[%s7411 + $0x40] sm:$0xff]
  %v9117 = vld [vmem:[%s7411 + $0x50] sm:$0xff]
  %v9118 = vld [vmem:[%s7411 + $0x60] sm:$0xff]
  %v9119 = vld [vmem:[%s7411 + $0x70] sm:$0xff]
  %v9120 = vld [vmem:[%s7411 + $0x90] sm:$0xff]
  %v9121 = vld [vmem:[%s7411 + $0xa0] sm:$0xff]
  %v9122 = vld [vmem:[%s7411 + $0xb0] sm:$0xff]
  %v9123 = vld [vmem:[%s7411 + $0xc0] sm:$0xff]
  %v9124 = vld [vmem:[%s7411 + $0xd0] sm:$0xff]
  %v9125 = vld [vmem:[%s7411 + $0xe0] sm:$0xff]
  %v9126 = vld [vmem:[%s7411 + $0xf0] sm:$0xff]
  %v9127 = vld [vmem:[%s7411 + $0x100] sm:$0xff]
  %s9128 = scalar_lea.vmem %s7, 24
  %v9129 = vld [vmem:[%s9128] sm:$0xf]
  %v9131 = vsel %vm73, %v9112, 0
  %v9134 = vsel %vm73, %v9113, 0
  %v9137 = vsel %vm73, %v9114, 0
  %v9140 = vsel %vm73, %v9115, 0
  %v9143 = vsel %vm73, %v9116, 0
  %v9146 = vsel %vm73, %v9117, 0
  %v9149 = vsel %vm73, %v9118, 0
  %v9152 = vsel %vm73, %v9119, 0
  %v9155 = vsel %vm73, %v9120, 0
  %v9158 = vsel %vm73, %v9121, 0
  %v9161 = vsel %vm73, %v9122, 0
  %v9164 = vsel %vm73, %v9123, 0
  %v9167 = vsel %vm73, %v9124, 0
  %v9170 = vsel %vm73, %v9125, 0
  %v9173 = vsel %vm73, %v9126, 0
  %v9176 = vsel %vm73, %v9127, 0
  %v9179 = vsel %vm122, %v9129, 0
  %9181 = vmatprep.subr.mxu0 0.0
  %9182 = vmatpush1.msra.mxu0 0.0
  %9183 = vmatprep.subr.mxu0 0.0
  %9184 = vmatpush1.msra.mxu0 0.0
  %9185 = vmatprep.subr.mxu0 0.0
  %9186 = vmatpush1.msra.mxu0 0.0
  %9187 = vmatprep.subr.mxu0 0.0
  %9188 = vmatpush1.msra.mxu0 0.0
  %9189 = vmatprep.subr.mxu0 0.0
  %9190 = vmatpush1.msra.mxu0 0.0
  %9191 = vmatprep.subr.mxu0 0.0
  %9192 = vmatpush1.msra.mxu0 0.0
  %9193 = vmatprep.subr.mxu0 0.0
  %9194 = vmatpush1.msra.mxu0 0.0
  %9195 = vmatprep.subr.mxu0 0.0
  %9196 = vmatpush1.msra.mxu0 0.0
  %9197 = vmatprep.subr.mxu0 0.0
  %9198 = vmatpush1.msra.mxu0 0.0
  %9199 = vmatprep.subr.mxu0 0.0
  %9200 = vmatpush1.msra.mxu0 0.0
  %9201 = vmatprep.subr.mxu0 0.0
  %9202 = vmatpush1.msra.mxu0 0.0
  %9203 = vmatprep.subr.mxu0 0.0
  %9204 = vmatpush1.msra.mxu0 0.0
  %9205 = vmatprep.subr.mxu0 0.0
  %9206 = vmatpush1.msra.mxu0 0.0
  %9207 = vmatprep.subr.mxu0 0.0
  %9208 = vmatpush1.msra.mxu0 0.0
  %9209 = vmatprep.subr.mxu0 0.0
  %9210 = vmatpush1.msra.mxu0 0.0
  %9211 = vmatprep.subr.mxu0 0.0
  %9212 = vmatpush1.msra.mxu0 %v9179
  %9213 = vmatprep.subr.mxu0 0.0
  %9214 = vmatpush2.msra.mxu0 0.0
  %9215 = vmatprep.subr.mxu0 0.0
  %9216 = vmatpush2.msra.mxu0 0.0
  %9217 = vmatprep.subr.mxu0 0.0
  %9218 = vmatpush2.msra.mxu0 0.0
  %9219 = vmatprep.subr.mxu0 0.0
  %9220 = vmatpush2.msra.mxu0 0.0
  %9221 = vmatprep.subr.mxu0 0.0
  %9222 = vmatpush2.msra.mxu0 0.0
  %9223 = vmatprep.subr.mxu0 0.0
  %9224 = vmatpush2.msra.mxu0 0.0
  %9225 = vmatprep.subr.mxu0 0.0
  %9226 = vmatpush2.msra.mxu0 0.0
  %9227 = vmatprep.subr.mxu0 0.0
  %9228 = vmatpush2.msra.mxu0 0.0
  %9229 = vmatprep.subr.mxu0 0.0
  %9230 = vmatpush2.msra.mxu0 0.0
  %9231 = vmatprep.subr.mxu0 0.0
  %9232 = vmatpush2.msra.mxu0 0.0
  %9233 = vmatprep.subr.mxu0 0.0
  %9234 = vmatpush2.msra.mxu0 0.0
  %9235 = vmatprep.subr.mxu0 0.0
  %9236 = vmatpush2.msra.mxu0 0.0
  %9237 = vmatprep.subr.mxu0 0.0
  %9238 = vmatpush2.msra.mxu0 0.0
  %9239 = vmatprep.subr.mxu0 0.0
  %9240 = vmatpush2.msra.mxu0 0.0
  %9241 = vmatprep.subr.mxu0 0.0
  %9242 = vmatpush2.msra.mxu0 0.0
  %9243 = vmatprep.subr.mxu0 0.0
  %9244 = vmatpush2.msra.mxu0 0.0
  %9245 = vmatprep.mubr.f32.mxu0 0.0
  %9246 = vmatmul.mubr.f32.gmra.mxu0 %v9131
  %v9247 = vpop.f32.mrf.mxu0
  %v9248 = vadd.f32 0.0, %v9247
  %v9249 = vpop.f32.mrf.mxu0
  %9250 = vmatprep.mubr.f32.mxu0 0.0
  %9251 = vmatmul.mubr.f32.gmra.mxu0 %v9134
  %v9252 = vpop.f32.mrf.mxu0
  %v9253 = vadd.f32 0.0, %v9252
  %v9254 = vpop.f32.mrf.mxu0
  %9255 = vmatprep.mubr.f32.mxu0 0.0
  %9256 = vmatmul.mubr.f32.gmra.mxu0 %v9137
  %v9257 = vpop.f32.mrf.mxu0
  %v9258 = vadd.f32 0.0, %v9257
  %v9259 = vpop.f32.mrf.mxu0
  %9260 = vmatprep.mubr.f32.mxu0 0.0
  %9261 = vmatmul.mubr.f32.gmra.mxu0 %v9140
  %v9262 = vpop.f32.mrf.mxu0
  %v9263 = vadd.f32 0.0, %v9262
  %v9264 = vpop.f32.mrf.mxu0
  %9265 = vmatprep.mubr.f32.mxu0 0.0
  %9266 = vmatmul.mubr.f32.gmra.mxu0 %v9143
  %v9267 = vpop.f32.mrf.mxu0
  %v9268 = vadd.f32 0.0, %v9267
  %v9269 = vpop.f32.mrf.mxu0
  %9270 = vmatprep.mubr.f32.mxu0 0.0
  %9271 = vmatmul.mubr.f32.gmra.mxu0 %v9146
  %v9272 = vpop.f32.mrf.mxu0
  %v9273 = vadd.f32 0.0, %v9272
  %v9274 = vpop.f32.mrf.mxu0
  %9275 = vmatprep.mubr.f32.mxu0 0.0
  %9276 = vmatmul.mubr.f32.gmra.mxu0 %v9149
  %v9277 = vpop.f32.mrf.mxu0
  %v9278 = vadd.f32 0.0, %v9277
  %v9279 = vpop.f32.mrf.mxu0
  %9280 = vmatprep.mubr.f32.mxu0 0.0
  %9281 = vmatmul.mubr.f32.gmra.mxu0 %v9152
  %v9282 = vpop.f32.mrf.mxu0
  %v9283 = vadd.f32 0.0, %v9282
  %v9284 = vpop.f32.mrf.mxu0
  %9285 = vmatprep.mubr.f32.mxu0 0.0
  %9286 = vmatmul.mubr.f32.gmra.mxu0 %v9155
  %v9287 = vpop.f32.mrf.mxu0
  %v9288 = vadd.f32 0.0, %v9287
  %v9289 = vpop.f32.mrf.mxu0
  %9290 = vmatprep.mubr.f32.mxu0 0.0
  %9291 = vmatmul.mubr.f32.gmra.mxu0 %v9158
  %v9292 = vpop.f32.mrf.mxu0
  %v9293 = vadd.f32 0.0, %v9292
  %v9294 = vpop.f32.mrf.mxu0
  %9295 = vmatprep.mubr.f32.mxu0 0.0
  %9296 = vmatmul.mubr.f32.gmra.mxu0 %v9161
  %v9297 = vpop.f32.mrf.mxu0
  %v9298 = vadd.f32 0.0, %v9297
  %v9299 = vpop.f32.mrf.mxu0
  %9300 = vmatprep.mubr.f32.mxu0 0.0
  %9301 = vmatmul.mubr.f32.gmra.mxu0 %v9164
  %v9302 = vpop.f32.mrf.mxu0
  %v9303 = vadd.f32 0.0, %v9302
  %v9304 = vpop.f32.mrf.mxu0
  %9305 = vmatprep.mubr.f32.mxu0 0.0
  %9306 = vmatmul.mubr.f32.gmra.mxu0 %v9167
  %v9307 = vpop.f32.mrf.mxu0
  %v9308 = vadd.f32 0.0, %v9307
  %v9309 = vpop.f32.mrf.mxu0
  %9310 = vmatprep.mubr.f32.mxu0 0.0
  %9311 = vmatmul.mubr.f32.gmra.mxu0 %v9170
  %v9312 = vpop.f32.mrf.mxu0
  %v9313 = vadd.f32 0.0, %v9312
  %v9314 = vpop.f32.mrf.mxu0
  %9315 = vmatprep.mubr.f32.mxu0 0.0
  %9316 = vmatmul.mubr.f32.gmra.mxu0 %v9173
  %v9317 = vpop.f32.mrf.mxu0
  %v9318 = vadd.f32 0.0, %v9317
  %v9319 = vpop.f32.mrf.mxu0
  %9320 = vmatprep.mubr.f32.mxu0 0.0
  %9321 = vmatmul.mubr.f32.gmra.mxu0 %v9176
  %v9322 = vpop.f32.mrf.mxu0
  %v9323 = vadd.f32 0.0, %v9322
  %v9324 = vpop.f32.mrf.mxu0
  %9325 = vdwg.mxu0
  %v9326 = vadd.f32 %v9096, %v9248
  %v9327 = vadd.f32 %v9097, %v9253
  %v9328 = vadd.f32 %v9098, %v9258
  %v9329 = vadd.f32 %v9099, %v9263
  %v9330 = vadd.f32 %v9100, %v9268
  %v9331 = vadd.f32 %v9101, %v9273
  %v9332 = vadd.f32 %v9102, %v9278
  %v9333 = vadd.f32 %v9103, %v9283
  %v9334 = vadd.f32 %v9104, %v9288
  %v9335 = vadd.f32 %v9105, %v9293
  %v9336 = vadd.f32 %v9106, %v9298
  %v9337 = vadd.f32 %v9107, %v9303
  %v9338 = vadd.f32 %v9108, %v9308
  %v9339 = vadd.f32 %v9109, %v9313
  %v9340 = vadd.f32 %v9110, %v9318
  %v9341 = vadd.f32 %v9111, %v9323
  %v9342 = vld [vmem:[%s7524] sm:$0xff]
  %v9343 = vld [vmem:[%s7524 + $0x10] sm:$0xff]
  %v9344 = vld [vmem:[%s7524 + $0x20] sm:$0xff]
  %v9345 = vld [vmem:[%s7524 + $0x30] sm:$0xff]
  %v9346 = vld [vmem:[%s7524 + $0x40] sm:$0xff]
  %v9347 = vld [vmem:[%s7524 + $0x50] sm:$0xff]
  %v9348 = vld [vmem:[%s7524 + $0x60] sm:$0xff]
  %v9349 = vld [vmem:[%s7524 + $0x70] sm:$0xff]
  %v9350 = vld [vmem:[%s7524 + $0x90] sm:$0xff]
  %v9351 = vld [vmem:[%s7524 + $0xa0] sm:$0xff]
  %v9352 = vld [vmem:[%s7524 + $0xb0] sm:$0xff]
  %v9353 = vld [vmem:[%s7524 + $0xc0] sm:$0xff]
  %v9354 = vld [vmem:[%s7524 + $0xd0] sm:$0xff]
  %v9355 = vld [vmem:[%s7524 + $0xe0] sm:$0xff]
  %v9356 = vld [vmem:[%s7524 + $0xf0] sm:$0xff]
  %v9357 = vld [vmem:[%s7524 + $0x100] sm:$0xff]
  %s9358 = scalar_lea.vmem %s7, 28
  %v9359 = vld [vmem:[%s9358] sm:$0xf]
  %v9361 = vsel %vm73, %v9342, 0
  %v9364 = vsel %vm73, %v9343, 0
  %v9367 = vsel %vm73, %v9344, 0
  %v9370 = vsel %vm73, %v9345, 0
  %v9373 = vsel %vm73, %v9346, 0
  %v9376 = vsel %vm73, %v9347, 0
  %v9379 = vsel %vm73, %v9348, 0
  %v9382 = vsel %vm73, %v9349, 0
  %v9385 = vsel %vm73, %v9350, 0
  %v9388 = vsel %vm73, %v9351, 0
  %v9391 = vsel %vm73, %v9352, 0
  %v9394 = vsel %vm73, %v9353, 0
  %v9397 = vsel %vm73, %v9354, 0
  %v9400 = vsel %vm73, %v9355, 0
  %v9403 = vsel %vm73, %v9356, 0
  %v9406 = vsel %vm73, %v9357, 0
  %v9409 = vsel %vm122, %v9359, 0
  %9411 = vmatprep.subr.mxu0 0.0
  %9412 = vmatpush1.msra.mxu0 0.0
  %9413 = vmatprep.subr.mxu0 0.0
  %9414 = vmatpush1.msra.mxu0 0.0
  %9415 = vmatprep.subr.mxu0 0.0
  %9416 = vmatpush1.msra.mxu0 0.0
  %9417 = vmatprep.subr.mxu0 0.0
  %9418 = vmatpush1.msra.mxu0 0.0
  %9419 = vmatprep.subr.mxu0 0.0
  %9420 = vmatpush1.msra.mxu0 0.0
  %9421 = vmatprep.subr.mxu0 0.0
  %9422 = vmatpush1.msra.mxu0 0.0
  %9423 = vmatprep.subr.mxu0 0.0
  %9424 = vmatpush1.msra.mxu0 0.0
  %9425 = vmatprep.subr.mxu0 0.0
  %9426 = vmatpush1.msra.mxu0 0.0
  %9427 = vmatprep.subr.mxu0 0.0
  %9428 = vmatpush1.msra.mxu0 0.0
  %9429 = vmatprep.subr.mxu0 0.0
  %9430 = vmatpush1.msra.mxu0 0.0
  %9431 = vmatprep.subr.mxu0 0.0
  %9432 = vmatpush1.msra.mxu0 0.0
  %9433 = vmatprep.subr.mxu0 0.0
  %9434 = vmatpush1.msra.mxu0 0.0
  %9435 = vmatprep.subr.mxu0 0.0
  %9436 = vmatpush1.msra.mxu0 0.0
  %9437 = vmatprep.subr.mxu0 0.0
  %9438 = vmatpush1.msra.mxu0 0.0
  %9439 = vmatprep.subr.mxu0 0.0
  %9440 = vmatpush1.msra.mxu0 0.0
  %9441 = vmatprep.subr.mxu0 0.0
  %9442 = vmatpush1.msra.mxu0 %v9409
  %9443 = vmatprep.subr.mxu0 0.0
  %9444 = vmatpush2.msra.mxu0 0.0
  %9445 = vmatprep.subr.mxu0 0.0
  %9446 = vmatpush2.msra.mxu0 0.0
  %9447 = vmatprep.subr.mxu0 0.0
  %9448 = vmatpush2.msra.mxu0 0.0
  %9449 = vmatprep.subr.mxu0 0.0
  %9450 = vmatpush2.msra.mxu0 0.0
  %9451 = vmatprep.subr.mxu0 0.0
  %9452 = vmatpush2.msra.mxu0 0.0
  %9453 = vmatprep.subr.mxu0 0.0
  %9454 = vmatpush2.msra.mxu0 0.0
  %9455 = vmatprep.subr.mxu0 0.0
  %9456 = vmatpush2.msra.mxu0 0.0
  %9457 = vmatprep.subr.mxu0 0.0
  %9458 = vmatpush2.msra.mxu0 0.0
  %9459 = vmatprep.subr.mxu0 0.0
  %9460 = vmatpush2.msra.mxu0 0.0
  %9461 = vmatprep.subr.mxu0 0.0
  %9462 = vmatpush2.msra.mxu0 0.0
  %9463 = vmatprep.subr.mxu0 0.0
  %9464 = vmatpush2.msra.mxu0 0.0
  %9465 = vmatprep.subr.mxu0 0.0
  %9466 = vmatpush2.msra.mxu0 0.0
  %9467 = vmatprep.subr.mxu0 0.0
  %9468 = vmatpush2.msra.mxu0 0.0
  %9469 = vmatprep.subr.mxu0 0.0
  %9470 = vmatpush2.msra.mxu0 0.0
  %9471 = vmatprep.subr.mxu0 0.0
  %9472 = vmatpush2.msra.mxu0 0.0
  %9473 = vmatprep.subr.mxu0 0.0
  %9474 = vmatpush2.msra.mxu0 0.0
  %9475 = vmatprep.mubr.f32.mxu0 0.0
  %9476 = vmatmul.mubr.f32.gmra.mxu0 %v9361
  %v9477 = vpop.f32.mrf.mxu0
  %v9478 = vadd.f32 0.0, %v9477
  %v9479 = vpop.f32.mrf.mxu0
  %9480 = vmatprep.mubr.f32.mxu0 0.0
  %9481 = vmatmul.mubr.f32.gmra.mxu0 %v9364
  %v9482 = vpop.f32.mrf.mxu0
  %v9483 = vadd.f32 0.0, %v9482
  %v9484 = vpop.f32.mrf.mxu0
  %9485 = vmatprep.mubr.f32.mxu0 0.0
  %9486 = vmatmul.mubr.f32.gmra.mxu0 %v9367
  %v9487 = vpop.f32.mrf.mxu0
  %v9488 = vadd.f32 0.0, %v9487
  %v9489 = vpop.f32.mrf.mxu0
  %9490 = vmatprep.mubr.f32.mxu0 0.0
  %9491 = vmatmul.mubr.f32.gmra.mxu0 %v9370
  %v9492 = vpop.f32.mrf.mxu0
  %v9493 = vadd.f32 0.0, %v9492
  %v9494 = vpop.f32.mrf.mxu0
  %9495 = vmatprep.mubr.f32.mxu0 0.0
  %9496 = vmatmul.mubr.f32.gmra.mxu0 %v9373
  %v9497 = vpop.f32.mrf.mxu0
  %v9498 = vadd.f32 0.0, %v9497
  %v9499 = vpop.f32.mrf.mxu0
  %9500 = vmatprep.mubr.f32.mxu0 0.0
  %9501 = vmatmul.mubr.f32.gmra.mxu0 %v9376
  %v9502 = vpop.f32.mrf.mxu0
  %v9503 = vadd.f32 0.0, %v9502
  %v9504 = vpop.f32.mrf.mxu0
  %9505 = vmatprep.mubr.f32.mxu0 0.0
  %9506 = vmatmul.mubr.f32.gmra.mxu0 %v9379
  %v9507 = vpop.f32.mrf.mxu0
  %v9508 = vadd.f32 0.0, %v9507
  %v9509 = vpop.f32.mrf.mxu0
  %9510 = vmatprep.mubr.f32.mxu0 0.0
  %9511 = vmatmul.mubr.f32.gmra.mxu0 %v9382
  %v9512 = vpop.f32.mrf.mxu0
  %v9513 = vadd.f32 0.0, %v9512
  %v9514 = vpop.f32.mrf.mxu0
  %9515 = vmatprep.mubr.f32.mxu0 0.0
  %9516 = vmatmul.mubr.f32.gmra.mxu0 %v9385
  %v9517 = vpop.f32.mrf.mxu0
  %v9518 = vadd.f32 0.0, %v9517
  %v9519 = vpop.f32.mrf.mxu0
  %9520 = vmatprep.mubr.f32.mxu0 0.0
  %9521 = vmatmul.mubr.f32.gmra.mxu0 %v9388
  %v9522 = vpop.f32.mrf.mxu0
  %v9523 = vadd.f32 0.0, %v9522
  %v9524 = vpop.f32.mrf.mxu0
  %9525 = vmatprep.mubr.f32.mxu0 0.0
  %9526 = vmatmul.mubr.f32.gmra.mxu0 %v9391
  %v9527 = vpop.f32.mrf.mxu0
  %v9528 = vadd.f32 0.0, %v9527
  %v9529 = vpop.f32.mrf.mxu0
  %9530 = vmatprep.mubr.f32.mxu0 0.0
  %9531 = vmatmul.mubr.f32.gmra.mxu0 %v9394
  %v9532 = vpop.f32.mrf.mxu0
  %v9533 = vadd.f32 0.0, %v9532
  %v9534 = vpop.f32.mrf.mxu0
  %9535 = vmatprep.mubr.f32.mxu0 0.0
  %9536 = vmatmul.mubr.f32.gmra.mxu0 %v9397
  %v9537 = vpop.f32.mrf.mxu0
  %v9538 = vadd.f32 0.0, %v9537
  %v9539 = vpop.f32.mrf.mxu0
  %9540 = vmatprep.mubr.f32.mxu0 0.0
  %9541 = vmatmul.mubr.f32.gmra.mxu0 %v9400
  %v9542 = vpop.f32.mrf.mxu0
  %v9543 = vadd.f32 0.0, %v9542
  %v9544 = vpop.f32.mrf.mxu0
  %9545 = vmatprep.mubr.f32.mxu0 0.0
  %9546 = vmatmul.mubr.f32.gmra.mxu0 %v9403
  %v9547 = vpop.f32.mrf.mxu0
  %v9548 = vadd.f32 0.0, %v9547
  %v9549 = vpop.f32.mrf.mxu0
  %9550 = vmatprep.mubr.f32.mxu0 0.0
  %9551 = vmatmul.mubr.f32.gmra.mxu0 %v9406
  %v9552 = vpop.f32.mrf.mxu0
  %v9553 = vadd.f32 0.0, %v9552
  %v9554 = vpop.f32.mrf.mxu0
  %9555 = vdwg.mxu0
  %v9556 = vadd.f32 %v9326, %v9478
  %v9557 = vadd.f32 %v9327, %v9483
  %v9558 = vadd.f32 %v9328, %v9488
  %v9559 = vadd.f32 %v9329, %v9493
  %v9560 = vadd.f32 %v9330, %v9498
  %v9561 = vadd.f32 %v9331, %v9503
  %v9562 = vadd.f32 %v9332, %v9508
  %v9563 = vadd.f32 %v9333, %v9513
  %v9564 = vadd.f32 %v9334, %v9518
  %v9565 = vadd.f32 %v9335, %v9523
  %v9566 = vadd.f32 %v9336, %v9528
  %v9567 = vadd.f32 %v9337, %v9533
  %v9568 = vadd.f32 %v9338, %v9538
  %v9569 = vadd.f32 %v9339, %v9543
  %v9570 = vadd.f32 %v9340, %v9548
  %v9571 = vadd.f32 %v9341, %v9553
  %v9572 = vld [vmem:[%s7411 + $0x1] sm:$0xff]
  %v9573 = vld [vmem:[%s7411 + $0x11] sm:$0xff]
  %v9574 = vld [vmem:[%s7411 + $0x21] sm:$0xff]
  %v9575 = vld [vmem:[%s7411 + $0x31] sm:$0xff]
  %v9576 = vld [vmem:[%s7411 + $0x41] sm:$0xff]
  %v9577 = vld [vmem:[%s7411 + $0x51] sm:$0xff]
  %v9578 = vld [vmem:[%s7411 + $0x61] sm:$0xff]
  %v9579 = vld [vmem:[%s7411 + $0x71] sm:$0xff]
  %v9580 = vld [vmem:[%s7411 + $0x91] sm:$0xff]
  %v9581 = vld [vmem:[%s7411 + $0xa1] sm:$0xff]
  %v9582 = vld [vmem:[%s7411 + $0xb1] sm:$0xff]
  %v9583 = vld [vmem:[%s7411 + $0xc1] sm:$0xff]
  %v9584 = vld [vmem:[%s7411 + $0xd1] sm:$0xff]
  %v9585 = vld [vmem:[%s7411 + $0xe1] sm:$0xff]
  %v9586 = vld [vmem:[%s7411 + $0xf1] sm:$0xff]
  %v9587 = vld [vmem:[%s7411 + $0x101] sm:$0xff]
  %s9588 = scalar_lea.vmem %s7, 32
  %v9589 = vld [vmem:[%s9588] sm:$0xf]
  %v9591 = vsel %vm73, %v9572, 0
  %v9594 = vsel %vm73, %v9573, 0
  %v9597 = vsel %vm73, %v9574, 0
  %v9600 = vsel %vm73, %v9575, 0
  %v9603 = vsel %vm73, %v9576, 0
  %v9606 = vsel %vm73, %v9577, 0
  %v9609 = vsel %vm73, %v9578, 0
  %v9612 = vsel %vm73, %v9579, 0
  %v9615 = vsel %vm73, %v9580, 0
  %v9618 = vsel %vm73, %v9581, 0
  %v9621 = vsel %vm73, %v9582, 0
  %v9624 = vsel %vm73, %v9583, 0
  %v9627 = vsel %vm73, %v9584, 0
  %v9630 = vsel %vm73, %v9585, 0
  %v9633 = vsel %vm73, %v9586, 0
  %v9636 = vsel %vm73, %v9587, 0
  %v9639 = vsel %vm122, %v9589, 0
  %9641 = vmatprep.subr.mxu0 0.0
  %9642 = vmatpush1.msra.mxu0 0.0
  %9643 = vmatprep.subr.mxu0 0.0
  %9644 = vmatpush1.msra.mxu0 0.0
  %9645 = vmatprep.subr.mxu0 0.0
  %9646 = vmatpush1.msra.mxu0 0.0
  %9647 = vmatprep.subr.mxu0 0.0
  %9648 = vmatpush1.msra.mxu0 0.0
  %9649 = vmatprep.subr.mxu0 0.0
  %9650 = vmatpush1.msra.mxu0 0.0
  %9651 = vmatprep.subr.mxu0 0.0
  %9652 = vmatpush1.msra.mxu0 0.0
  %9653 = vmatprep.subr.mxu0 0.0
  %9654 = vmatpush1.msra.mxu0 0.0
  %9655 = vmatprep.subr.mxu0 0.0
  %9656 = vmatpush1.msra.mxu0 0.0
  %9657 = vmatprep.subr.mxu0 0.0
  %9658 = vmatpush1.msra.mxu0 0.0
  %9659 = vmatprep.subr.mxu0 0.0
  %9660 = vmatpush1.msra.mxu0 0.0
  %9661 = vmatprep.subr.mxu0 0.0
  %9662 = vmatpush1.msra.mxu0 0.0
  %9663 = vmatprep.subr.mxu0 0.0
  %9664 = vmatpush1.msra.mxu0 0.0
  %9665 = vmatprep.subr.mxu0 0.0
  %9666 = vmatpush1.msra.mxu0 0.0
  %9667 = vmatprep.subr.mxu0 0.0
  %9668 = vmatpush1.msra.mxu0 0.0
  %9669 = vmatprep.subr.mxu0 0.0
  %9670 = vmatpush1.msra.mxu0 0.0
  %9671 = vmatprep.subr.mxu0 0.0
  %9672 = vmatpush1.msra.mxu0 %v9639
  %9673 = vmatprep.subr.mxu0 0.0
  %9674 = vmatpush2.msra.mxu0 0.0
  %9675 = vmatprep.subr.mxu0 0.0
  %9676 = vmatpush2.msra.mxu0 0.0
  %9677 = vmatprep.subr.mxu0 0.0
  %9678 = vmatpush2.msra.mxu0 0.0
  %9679 = vmatprep.subr.mxu0 0.0
  %9680 = vmatpush2.msra.mxu0 0.0
  %9681 = vmatprep.subr.mxu0 0.0
  %9682 = vmatpush2.msra.mxu0 0.0
  %9683 = vmatprep.subr.mxu0 0.0
  %9684 = vmatpush2.msra.mxu0 0.0
  %9685 = vmatprep.subr.mxu0 0.0
  %9686 = vmatpush2.msra.mxu0 0.0
  %9687 = vmatprep.subr.mxu0 0.0
  %9688 = vmatpush2.msra.mxu0 0.0
  %9689 = vmatprep.subr.mxu0 0.0
  %9690 = vmatpush2.msra.mxu0 0.0
  %9691 = vmatprep.subr.mxu0 0.0
  %9692 = vmatpush2.msra.mxu0 0.0
  %9693 = vmatprep.subr.mxu0 0.0
  %9694 = vmatpush2.msra.mxu0 0.0
  %9695 = vmatprep.subr.mxu0 0.0
  %9696 = vmatpush2.msra.mxu0 0.0
  %9697 = vmatprep.subr.mxu0 0.0
  %9698 = vmatpush2.msra.mxu0 0.0
  %9699 = vmatprep.subr.mxu0 0.0
  %9700 = vmatpush2.msra.mxu0 0.0
  %9701 = vmatprep.subr.mxu0 0.0
  %9702 = vmatpush2.msra.mxu0 0.0
  %9703 = vmatprep.subr.mxu0 0.0
  %9704 = vmatpush2.msra.mxu0 0.0
  %9705 = vmatprep.mubr.f32.mxu0 0.0
  %9706 = vmatmul.mubr.f32.gmra.mxu0 %v9591
  %v9707 = vpop.f32.mrf.mxu0
  %v9708 = vadd.f32 0.0, %v9707
  %v9709 = vpop.f32.mrf.mxu0
  %9710 = vmatprep.mubr.f32.mxu0 0.0
  %9711 = vmatmul.mubr.f32.gmra.mxu0 %v9594
  %v9712 = vpop.f32.mrf.mxu0
  %v9713 = vadd.f32 0.0, %v9712
  %v9714 = vpop.f32.mrf.mxu0
  %9715 = vmatprep.mubr.f32.mxu0 0.0
  %9716 = vmatmul.mubr.f32.gmra.mxu0 %v9597
  %v9717 = vpop.f32.mrf.mxu0
  %v9718 = vadd.f32 0.0, %v9717
  %v9719 = vpop.f32.mrf.mxu0
  %9720 = vmatprep.mubr.f32.mxu0 0.0
  %9721 = vmatmul.mubr.f32.gmra.mxu0 %v9600
  %v9722 = vpop.f32.mrf.mxu0
  %v9723 = vadd.f32 0.0, %v9722
  %v9724 = vpop.f32.mrf.mxu0
  %9725 = vmatprep.mubr.f32.mxu0 0.0
  %9726 = vmatmul.mubr.f32.gmra.mxu0 %v9603
  %v9727 = vpop.f32.mrf.mxu0
  %v9728 = vadd.f32 0.0, %v9727
  %v9729 = vpop.f32.mrf.mxu0
  %9730 = vmatprep.mubr.f32.mxu0 0.0
  %9731 = vmatmul.mubr.f32.gmra.mxu0 %v9606
  %v9732 = vpop.f32.mrf.mxu0
  %v9733 = vadd.f32 0.0, %v9732
  %v9734 = vpop.f32.mrf.mxu0
  %9735 = vmatprep.mubr.f32.mxu0 0.0
  %9736 = vmatmul.mubr.f32.gmra.mxu0 %v9609
  %v9737 = vpop.f32.mrf.mxu0
  %v9738 = vadd.f32 0.0, %v9737
  %v9739 = vpop.f32.mrf.mxu0
  %9740 = vmatprep.mubr.f32.mxu0 0.0
  %9741 = vmatmul.mubr.f32.gmra.mxu0 %v9612
  %v9742 = vpop.f32.mrf.mxu0
  %v9743 = vadd.f32 0.0, %v9742
  %v9744 = vpop.f32.mrf.mxu0
  %9745 = vmatprep.mubr.f32.mxu0 0.0
  %9746 = vmatmul.mubr.f32.gmra.mxu0 %v9615
  %v9747 = vpop.f32.mrf.mxu0
  %v9748 = vadd.f32 0.0, %v9747
  %v9749 = vpop.f32.mrf.mxu0
  %9750 = vmatprep.mubr.f32.mxu0 0.0
  %9751 = vmatmul.mubr.f32.gmra.mxu0 %v9618
  %v9752 = vpop.f32.mrf.mxu0
  %v9753 = vadd.f32 0.0, %v9752
  %v9754 = vpop.f32.mrf.mxu0
  %9755 = vmatprep.mubr.f32.mxu0 0.0
  %9756 = vmatmul.mubr.f32.gmra.mxu0 %v9621
  %v9757 = vpop.f32.mrf.mxu0
  %v9758 = vadd.f32 0.0, %v9757
  %v9759 = vpop.f32.mrf.mxu0
  %9760 = vmatprep.mubr.f32.mxu0 0.0
  %9761 = vmatmul.mubr.f32.gmra.mxu0 %v9624
  %v9762 = vpop.f32.mrf.mxu0
  %v9763 = vadd.f32 0.0, %v9762
  %v9764 = vpop.f32.mrf.mxu0
  %9765 = vmatprep.mubr.f32.mxu0 0.0
  %9766 = vmatmul.mubr.f32.gmra.mxu0 %v9627
  %v9767 = vpop.f32.mrf.mxu0
  %v9768 = vadd.f32 0.0, %v9767
  %v9769 = vpop.f32.mrf.mxu0
  %9770 = vmatprep.mubr.f32.mxu0 0.0
  %9771 = vmatmul.mubr.f32.gmra.mxu0 %v9630
  %v9772 = vpop.f32.mrf.mxu0
  %v9773 = vadd.f32 0.0, %v9772
  %v9774 = vpop.f32.mrf.mxu0
  %9775 = vmatprep.mubr.f32.mxu0 0.0
  %9776 = vmatmul.mubr.f32.gmra.mxu0 %v9633
  %v9777 = vpop.f32.mrf.mxu0
  %v9778 = vadd.f32 0.0, %v9777
  %v9779 = vpop.f32.mrf.mxu0
  %9780 = vmatprep.mubr.f32.mxu0 0.0
  %9781 = vmatmul.mubr.f32.gmra.mxu0 %v9636
  %v9782 = vpop.f32.mrf.mxu0
  %v9783 = vadd.f32 0.0, %v9782
  %v9784 = vpop.f32.mrf.mxu0
  %9785 = vdwg.mxu0
  %v9786 = vadd.f32 %v9556, %v9708
  %v9787 = vadd.f32 %v9557, %v9713
  %v9788 = vadd.f32 %v9558, %v9718
  %v9789 = vadd.f32 %v9559, %v9723
  %v9790 = vadd.f32 %v9560, %v9728
  %v9791 = vadd.f32 %v9561, %v9733
  %v9792 = vadd.f32 %v9562, %v9738
  %v9793 = vadd.f32 %v9563, %v9743
  %v9794 = vadd.f32 %v9564, %v9748
  %v9795 = vadd.f32 %v9565, %v9753
  %v9796 = vadd.f32 %v9566, %v9758
  %v9797 = vadd.f32 %v9567, %v9763
  %v9798 = vadd.f32 %v9568, %v9768
  %v9799 = vadd.f32 %v9569, %v9773
  %v9800 = vadd.f32 %v9570, %v9778
  %v9801 = vadd.f32 %v9571, %v9783
  %vm9802 = vcmask 64512
  %v9803 = vsel %vm9802, %v9786, 0.0
  %v9804 = vsel %vm9802, %v9787, 0.0
  %v9805 = vadd.f32 %v9803, %v9804
  %v9806 = vsel %vm9802, %v9788, 0.0
  %v9807 = vadd.f32 %v9805, %v9806
  %v9808 = vsel %vm9802, %v9789, 0.0
  %v9809 = vadd.f32 %v9807, %v9808
  %v9810 = vsel %vm9802, %v9790, 0.0
  %v9811 = vadd.f32 %v9809, %v9810
  %v9812 = vsel %vm9802, %v9791, 0.0
  %v9813 = vadd.f32 %v9811, %v9812
  %v9814 = vsel %vm9802, %v9792, 0.0
  %v9815 = vadd.f32 %v9813, %v9814
  %v9816 = vsel %vm9802, %v9793, 0.0
  %v9817 = vadd.f32 %v9815, %v9816
  %v9818 = vsel %vm9802, %v9794, 0.0
  %v9819 = vadd.f32 %v9817, %v9818
  %v9820 = vsel %vm9802, %v9795, 0.0
  %v9821 = vadd.f32 %v9819, %v9820
  %v9822 = vsel %vm9802, %v9796, 0.0
  %v9823 = vadd.f32 %v9821, %v9822
  %v9824 = vsel %vm9802, %v9797, 0.0
  %v9825 = vadd.f32 %v9823, %v9824
  %v9826 = vsel %vm9802, %v9798, 0.0
  %v9827 = vadd.f32 %v9825, %v9826
  %v9828 = vsel %vm9802, %v9799, 0.0
  %v9829 = vadd.f32 %v9827, %v9828
  %v9830 = vsel %vm9802, %v9800, 0.0
  %v9831 = vadd.f32 %v9829, %v9830
  %v9832 = vsel %vm9802, %v9801, 0.0
  %v9833 = vadd.f32 %v9831, %v9832
  %v9834 = vrot.slane %v9833, 4
  %v9835 = vadd.f32 %v9833, %v9834
  %v9836 = vrot.slane %v9835, 2
  %v9837 = vadd.f32 %v9835, %v9836
  %v9838 = vrot.slane %v9837, 1
  %v9839 = vadd.f32 %v9837, %v9838
  %v9840 = vrcp.pop 128.0
  %v9841 = vmul.f32 %v9839, %v9840
  %v9842 = vmul.f32 %v9786, %v9786
  %v9843 = vmul.f32 %v9787, %v9787
  %v9844 = vmul.f32 %v9788, %v9788
  %v9845 = vmul.f32 %v9789, %v9789
  %v9846 = vmul.f32 %v9790, %v9790
  %v9847 = vmul.f32 %v9791, %v9791
  %v9848 = vmul.f32 %v9792, %v9792
  %v9849 = vmul.f32 %v9793, %v9793
  %v9850 = vmul.f32 %v9794, %v9794
  %v9851 = vmul.f32 %v9795, %v9795
  %v9852 = vmul.f32 %v9796, %v9796
  %v9853 = vmul.f32 %v9797, %v9797
  %v9854 = vmul.f32 %v9798, %v9798
  %v9855 = vmul.f32 %v9799, %v9799
  %v9856 = vmul.f32 %v9800, %v9800
  %v9857 = vmul.f32 %v9801, %v9801
  %v9858 = vsel %vm9802, %v9842, 0.0
  %v9859 = vsel %vm9802, %v9843, 0.0
  %v9860 = vadd.f32 %v9858, %v9859
  %v9861 = vsel %vm9802, %v9844, 0.0
  %v9862 = vadd.f32 %v9860, %v9861
  %v9863 = vsel %vm9802, %v9845, 0.0
  %v9864 = vadd.f32 %v9862, %v9863
  %v9865 = vsel %vm9802, %v9846, 0.0
  %v9866 = vadd.f32 %v9864, %v9865
  %v9867 = vsel %vm9802, %v9847, 0.0
  %v9868 = vadd.f32 %v9866, %v9867
  %v9869 = vsel %vm9802, %v9848, 0.0
  %v9870 = vadd.f32 %v9868, %v9869
  %v9871 = vsel %vm9802, %v9849, 0.0
  %v9872 = vadd.f32 %v9870, %v9871
  %v9873 = vsel %vm9802, %v9850, 0.0
  %v9874 = vadd.f32 %v9872, %v9873
  %v9875 = vsel %vm9802, %v9851, 0.0
  %v9876 = vadd.f32 %v9874, %v9875
  %v9877 = vsel %vm9802, %v9852, 0.0
  %v9878 = vadd.f32 %v9876, %v9877
  %v9879 = vsel %vm9802, %v9853, 0.0
  %v9880 = vadd.f32 %v9878, %v9879
  %v9881 = vsel %vm9802, %v9854, 0.0
  %v9882 = vadd.f32 %v9880, %v9881
  %v9883 = vsel %vm9802, %v9855, 0.0
  %v9884 = vadd.f32 %v9882, %v9883
  %v9885 = vsel %vm9802, %v9856, 0.0
  %v9886 = vadd.f32 %v9884, %v9885
  %v9887 = vsel %vm9802, %v9857, 0.0
  %v9888 = vadd.f32 %v9886, %v9887
  %v9889 = vrot.slane %v9888, 4
  %v9890 = vadd.f32 %v9888, %v9889
  %v9891 = vrot.slane %v9890, 2
  %v9892 = vadd.f32 %v9890, %v9891
  %v9893 = vrot.slane %v9892, 1
  %v9894 = vadd.f32 %v9892, %v9893
  %v9895 = vmul.f32 %v9894, %v9840
  %v9896 = vmul.f32 %v9841, %v9841
  %v9897 = vsub.f32 %v9895, %v9896
  %v9898 = vadd.f32 %v9897, 1e-05
  %v9899 = vrsqrt.pop %v9898
  %v9900 = vld [vmem:[%s8] sm:$0x1]
  %v9901 = vmul.f32 %v9899, %v9900
  %v9902 = vld [vmem:[%s9] sm:$0x1]
  %v9903 = vmul.f32 %v9841, %v9901
  %v9904 = vsub.f32 %v9902, %v9903
  %v9905 = vlaneseq
  %v9906 = vshrl.u32 %v9905, 7
  %v9907 = vsub.s32 0, %v9906
  %v9908 = vrot.slane %v9901, %v9907
  %v9909 = vmul.f32 %v9786, %v9908
  %v9910 = vmul.f32 %v9787, %v9908
  %v9911 = vmul.f32 %v9788, %v9908
  %v9912 = vmul.f32 %v9789, %v9908
  %v9913 = vmul.f32 %v9790, %v9908
  %v9914 = vmul.f32 %v9791, %v9908
  %v9915 = vmul.f32 %v9792, %v9908
  %v9916 = vmul.f32 %v9793, %v9908
  %v9917 = vmul.f32 %v9794, %v9908
  %v9918 = vmul.f32 %v9795, %v9908
  %v9919 = vmul.f32 %v9796, %v9908
  %v9920 = vmul.f32 %v9797, %v9908
  %v9921 = vmul.f32 %v9798, %v9908
  %v9922 = vmul.f32 %v9799, %v9908
  %v9923 = vmul.f32 %v9800, %v9908
  %v9924 = vmul.f32 %v9801, %v9908
  %v9926 = vlaneseq
  %v9927 = vshrl.u32 %v9926, 7
  %v9928 = vsub.s32 0, %v9927
  %v9929 = vrot.slane %v9904, %v9928
  %v9931 = vadd.f32 %v9909, %v9929
  %v9932 = vadd.f32 %v9910, %v9929
  %v9933 = vadd.f32 %v9911, %v9929
  %v9934 = vadd.f32 %v9912, %v9929
  %v9935 = vadd.f32 %v9913, %v9929
  %v9936 = vadd.f32 %v9914, %v9929
  %v9937 = vadd.f32 %v9915, %v9929
  %v9938 = vadd.f32 %v9916, %v9929
  %v9939 = vadd.f32 %v9917, %v9929
  %v9940 = vadd.f32 %v9918, %v9929
  %v9941 = vadd.f32 %v9919, %v9929
  %v9942 = vadd.f32 %v9920, %v9929
  %v9943 = vadd.f32 %v9921, %v9929
  %v9944 = vadd.f32 %v9922, %v9929
  %v9945 = vadd.f32 %v9923, %v9929
  %v9946 = vadd.f32 %v9924, %v9929
  %vm9947 = vcmp.ge.f32.partialorder %v9931, 0.0
  %vm9948 = vcmp.ge.f32.partialorder %v9932, 0.0
  %vm9949 = vcmp.ge.f32.partialorder %v9933, 0.0
  %vm9950 = vcmp.ge.f32.partialorder %v9934, 0.0
  %vm9951 = vcmp.ge.f32.partialorder %v9935, 0.0
  %vm9952 = vcmp.ge.f32.partialorder %v9936, 0.0
  %vm9953 = vcmp.ge.f32.partialorder %v9937, 0.0
  %vm9954 = vcmp.ge.f32.partialorder %v9938, 0.0
  %vm9955 = vcmp.ge.f32.partialorder %v9939, 0.0
  %vm9956 = vcmp.ge.f32.partialorder %v9940, 0.0
  %vm9957 = vcmp.ge.f32.partialorder %v9941, 0.0
  %vm9958 = vcmp.ge.f32.partialorder %v9942, 0.0
  %vm9959 = vcmp.ge.f32.partialorder %v9943, 0.0
  %vm9960 = vcmp.ge.f32.partialorder %v9944, 0.0
  %vm9961 = vcmp.ge.f32.partialorder %v9945, 0.0
  %vm9962 = vcmp.ge.f32.partialorder %v9946, 0.0
  %v9963 = vmul.f32 %v9931, 0.2
  %v9964 = vmul.f32 %v9932, 0.2
  %v9965 = vmul.f32 %v9933, 0.2
  %v9966 = vmul.f32 %v9934, 0.2
  %v9967 = vmul.f32 %v9935, 0.2
  %v9968 = vmul.f32 %v9936, 0.2
  %v9969 = vmul.f32 %v9937, 0.2
  %v9970 = vmul.f32 %v9938, 0.2
  %v9971 = vmul.f32 %v9939, 0.2
  %v9972 = vmul.f32 %v9940, 0.2
  %v9973 = vmul.f32 %v9941, 0.2
  %v9974 = vmul.f32 %v9942, 0.2
  %v9975 = vmul.f32 %v9943, 0.2
  %v9976 = vmul.f32 %v9944, 0.2
  %v9977 = vmul.f32 %v9945, 0.2
  %v9978 = vmul.f32 %v9946, 0.2
  %v9979 = vsel %vm9947, %v9931, %v9963
  %v9980 = vsel %vm9948, %v9932, %v9964
  %v9981 = vsel %vm9949, %v9933, %v9965
  %v9982 = vsel %vm9950, %v9934, %v9966
  %v9983 = vsel %vm9951, %v9935, %v9967
  %v9984 = vsel %vm9952, %v9936, %v9968
  %v9985 = vsel %vm9953, %v9937, %v9969
  %v9986 = vsel %vm9954, %v9938, %v9970
  %v9987 = vsel %vm9955, %v9939, %v9971
  %v9988 = vsel %vm9956, %v9940, %v9972
  %v9989 = vsel %vm9957, %v9941, %v9973
  %v9990 = vsel %vm9958, %v9942, %v9974
  %v9991 = vsel %vm9959, %v9943, %v9975
  %v9992 = vsel %vm9960, %v9944, %v9976
  %v9993 = vsel %vm9961, %v9945, %v9977
  %v9994 = vsel %vm9962, %v9946, %v9978
  %v9995 = vmul.f32 %v9979, 1.4142135
  %v9996 = vmul.f32 %v9980, 1.4142135
  %v9997 = vmul.f32 %v9981, 1.4142135
  %v9998 = vmul.f32 %v9982, 1.4142135
  %v9999 = vmul.f32 %v9983, 1.4142135
  %v10000 = vmul.f32 %v9984, 1.4142135
  %v10001 = vmul.f32 %v9985, 1.4142135
  %v10002 = vmul.f32 %v9986, 1.4142135
  %v10003 = vmul.f32 %v9987, 1.4142135
  %v10004 = vmul.f32 %v9988, 1.4142135
  %v10005 = vmul.f32 %v9989, 1.4142135
  %v10006 = vmul.f32 %v9990, 1.4142135
  %v10007 = vmul.f32 %v9991, 1.4142135
  %v10008 = vmul.f32 %v9992, 1.4142135
  %v10009 = vmul.f32 %v9993, 1.4142135
  %v10010 = vmul.f32 %v9994, 1.4142135
  %v10011 = vld [vmem:[%s3] sm:$0xff]
  %v10012 = vld [vmem:[%s3 + $0x10] sm:$0xff]
  %v10013 = vld [vmem:[%s3 + $0x20] sm:$0xff]
  %v10014 = vld [vmem:[%s3 + $0x30] sm:$0xff]
  %v10015 = vld [vmem:[%s3 + $0x40] sm:$0xff]
  %v10016 = vld [vmem:[%s3 + $0x50] sm:$0xff]
  %v10017 = vld [vmem:[%s3 + $0x60] sm:$0xff]
  %v10018 = vld [vmem:[%s3 + $0x70] sm:$0xff]
  %v10019 = vld [vmem:[%s3 + $0x90] sm:$0xff]
  %v10020 = vld [vmem:[%s3 + $0xa0] sm:$0xff]
  %v10021 = vld [vmem:[%s3 + $0xb0] sm:$0xff]
  %v10022 = vld [vmem:[%s3 + $0xc0] sm:$0xff]
  %v10023 = vld [vmem:[%s3 + $0xd0] sm:$0xff]
  %v10024 = vld [vmem:[%s3 + $0xe0] sm:$0xff]
  %v10025 = vld [vmem:[%s3 + $0xf0] sm:$0xff]
  %v10026 = vld [vmem:[%s3 + $0x100] sm:$0xff]
  %v10027 = vld [vmem:[%s10] sm:$0xf]
  %v10029 = vsel %vm73, %v10011, 0
  %v10032 = vsel %vm73, %v10012, 0
  %v10035 = vsel %vm73, %v10013, 0
  %v10038 = vsel %vm73, %v10014, 0
  %v10041 = vsel %vm73, %v10015, 0
  %v10044 = vsel %vm73, %v10016, 0
  %v10047 = vsel %vm73, %v10017, 0
  %v10050 = vsel %vm73, %v10018, 0
  %v10053 = vsel %vm73, %v10019, 0
  %v10056 = vsel %vm73, %v10020, 0
  %v10059 = vsel %vm73, %v10021, 0
  %v10062 = vsel %vm73, %v10022, 0
  %v10065 = vsel %vm73, %v10023, 0
  %v10068 = vsel %vm73, %v10024, 0
  %v10071 = vsel %vm73, %v10025, 0
  %v10074 = vsel %vm73, %v10026, 0
  %v10077 = vsel %vm122, %v10027, 0
  %10079 = vmatprep.subr.mxu0 0.0
  %10080 = vmatpush1.msra.mxu0 0.0
  %10081 = vmatprep.subr.mxu0 0.0
  %10082 = vmatpush1.msra.mxu0 0.0
  %10083 = vmatprep.subr.mxu0 0.0
  %10084 = vmatpush1.msra.mxu0 0.0
  %10085 = vmatprep.subr.mxu0 0.0
  %10086 = vmatpush1.msra.mxu0 0.0
  %10087 = vmatprep.subr.mxu0 0.0
  %10088 = vmatpush1.msra.mxu0 0.0
  %10089 = vmatprep.subr.mxu0 0.0
  %10090 = vmatpush1.msra.mxu0 0.0
  %10091 = vmatprep.subr.mxu0 0.0
  %10092 = vmatpush1.msra.mxu0 0.0
  %10093 = vmatprep.subr.mxu0 0.0
  %10094 = vmatpush1.msra.mxu0 0.0
  %10095 = vmatprep.subr.mxu0 0.0
  %10096 = vmatpush1.msra.mxu0 0.0
  %10097 = vmatprep.subr.mxu0 0.0
  %10098 = vmatpush1.msra.mxu0 0.0
  %10099 = vmatprep.subr.mxu0 0.0
  %10100 = vmatpush1.msra.mxu0 0.0
  %10101 = vmatprep.subr.mxu0 0.0
  %10102 = vmatpush1.msra.mxu0 0.0
  %10103 = vmatprep.subr.mxu0 0.0
  %10104 = vmatpush1.msra.mxu0 0.0
  %10105 = vmatprep.subr.mxu0 0.0
  %10106 = vmatpush1.msra.mxu0 0.0
  %10107 = vmatprep.subr.mxu0 0.0
  %10108 = vmatpush1.msra.mxu0 0.0
  %10109 = vmatprep.subr.mxu0 0.0
  %10110 = vmatpush1.msra.mxu0 %v10077
  %10111 = vmatprep.subr.mxu0 0.0
  %10112 = vmatpush2.msra.mxu0 0.0
  %10113 = vmatprep.subr.mxu0 0.0
  %10114 = vmatpush2.msra.mxu0 0.0
  %10115 = vmatprep.subr.mxu0 0.0
  %10116 = vmatpush2.msra.mxu0 0.0
  %10117 = vmatprep.subr.mxu0 0.0
  %10118 = vmatpush2.msra.mxu0 0.0
  %10119 = vmatprep.subr.mxu0 0.0
  %10120 = vmatpush2.msra.mxu0 0.0
  %10121 = vmatprep.subr.mxu0 0.0
  %10122 = vmatpush2.msra.mxu0 0.0
  %10123 = vmatprep.subr.mxu0 0.0
  %10124 = vmatpush2.msra.mxu0 0.0
  %10125 = vmatprep.subr.mxu0 0.0
  %10126 = vmatpush2.msra.mxu0 0.0
  %10127 = vmatprep.subr.mxu0 0.0
  %10128 = vmatpush2.msra.mxu0 0.0
  %10129 = vmatprep.subr.mxu0 0.0
  %10130 = vmatpush2.msra.mxu0 0.0
  %10131 = vmatprep.subr.mxu0 0.0
  %10132 = vmatpush2.msra.mxu0 0.0
  %10133 = vmatprep.subr.mxu0 0.0
  %10134 = vmatpush2.msra.mxu0 0.0
  %10135 = vmatprep.subr.mxu0 0.0
  %10136 = vmatpush2.msra.mxu0 0.0
  %10137 = vmatprep.subr.mxu0 0.0
  %10138 = vmatpush2.msra.mxu0 0.0
  %10139 = vmatprep.subr.mxu0 0.0
  %10140 = vmatpush2.msra.mxu0 0.0
  %10141 = vmatprep.subr.mxu0 0.0
  %10142 = vmatpush2.msra.mxu0 0.0
  %10143 = vmatprep.mubr.f32.mxu0 0.0
  %10144 = vmatmul.mubr.f32.gmra.mxu0 %v10029
  %v10145 = vpop.f32.mrf.mxu0
  %v10146 = vadd.f32 0.0, %v10145
  %v10147 = vpop.f32.mrf.mxu0
  %10148 = vmatprep.mubr.f32.mxu0 0.0
  %10149 = vmatmul.mubr.f32.gmra.mxu0 %v10032
  %v10150 = vpop.f32.mrf.mxu0
  %v10151 = vadd.f32 0.0, %v10150
  %v10152 = vpop.f32.mrf.mxu0
  %10153 = vmatprep.mubr.f32.mxu0 0.0
  %10154 = vmatmul.mubr.f32.gmra.mxu0 %v10035
  %v10155 = vpop.f32.mrf.mxu0
  %v10156 = vadd.f32 0.0, %v10155
  %v10157 = vpop.f32.mrf.mxu0
  %10158 = vmatprep.mubr.f32.mxu0 0.0
  %10159 = vmatmul.mubr.f32.gmra.mxu0 %v10038
  %v10160 = vpop.f32.mrf.mxu0
  %v10161 = vadd.f32 0.0, %v10160
  %v10162 = vpop.f32.mrf.mxu0
  %10163 = vmatprep.mubr.f32.mxu0 0.0
  %10164 = vmatmul.mubr.f32.gmra.mxu0 %v10041
  %v10165 = vpop.f32.mrf.mxu0
  %v10166 = vadd.f32 0.0, %v10165
  %v10167 = vpop.f32.mrf.mxu0
  %10168 = vmatprep.mubr.f32.mxu0 0.0
  %10169 = vmatmul.mubr.f32.gmra.mxu0 %v10044
  %v10170 = vpop.f32.mrf.mxu0
  %v10171 = vadd.f32 0.0, %v10170
  %v10172 = vpop.f32.mrf.mxu0
  %10173 = vmatprep.mubr.f32.mxu0 0.0
  %10174 = vmatmul.mubr.f32.gmra.mxu0 %v10047
  %v10175 = vpop.f32.mrf.mxu0
  %v10176 = vadd.f32 0.0, %v10175
  %v10177 = vpop.f32.mrf.mxu0
  %10178 = vmatprep.mubr.f32.mxu0 0.0
  %10179 = vmatmul.mubr.f32.gmra.mxu0 %v10050
  %v10180 = vpop.f32.mrf.mxu0
  %v10181 = vadd.f32 0.0, %v10180
  %v10182 = vpop.f32.mrf.mxu0
  %10183 = vmatprep.mubr.f32.mxu0 0.0
  %10184 = vmatmul.mubr.f32.gmra.mxu0 %v10053
  %v10185 = vpop.f32.mrf.mxu0
  %v10186 = vadd.f32 0.0, %v10185
  %v10187 = vpop.f32.mrf.mxu0
  %10188 = vmatprep.mubr.f32.mxu0 0.0
  %10189 = vmatmul.mubr.f32.gmra.mxu0 %v10056
  %v10190 = vpop.f32.mrf.mxu0
  %v10191 = vadd.f32 0.0, %v10190
  %v10192 = vpop.f32.mrf.mxu0
  %10193 = vmatprep.mubr.f32.mxu0 0.0
  %10194 = vmatmul.mubr.f32.gmra.mxu0 %v10059
  %v10195 = vpop.f32.mrf.mxu0
  %v10196 = vadd.f32 0.0, %v10195
  %v10197 = vpop.f32.mrf.mxu0
  %10198 = vmatprep.mubr.f32.mxu0 0.0
  %10199 = vmatmul.mubr.f32.gmra.mxu0 %v10062
  %v10200 = vpop.f32.mrf.mxu0
  %v10201 = vadd.f32 0.0, %v10200
  %v10202 = vpop.f32.mrf.mxu0
  %10203 = vmatprep.mubr.f32.mxu0 0.0
  %10204 = vmatmul.mubr.f32.gmra.mxu0 %v10065
  %v10205 = vpop.f32.mrf.mxu0
  %v10206 = vadd.f32 0.0, %v10205
  %v10207 = vpop.f32.mrf.mxu0
  %10208 = vmatprep.mubr.f32.mxu0 0.0
  %10209 = vmatmul.mubr.f32.gmra.mxu0 %v10068
  %v10210 = vpop.f32.mrf.mxu0
  %v10211 = vadd.f32 0.0, %v10210
  %v10212 = vpop.f32.mrf.mxu0
  %10213 = vmatprep.mubr.f32.mxu0 0.0
  %10214 = vmatmul.mubr.f32.gmra.mxu0 %v10071
  %v10215 = vpop.f32.mrf.mxu0
  %v10216 = vadd.f32 0.0, %v10215
  %v10217 = vpop.f32.mrf.mxu0
  %10218 = vmatprep.mubr.f32.mxu0 0.0
  %10219 = vmatmul.mubr.f32.gmra.mxu0 %v10074
  %v10220 = vpop.f32.mrf.mxu0
  %v10221 = vadd.f32 0.0, %v10220
  %v10222 = vpop.f32.mrf.mxu0
  %10223 = vdwg.mxu0
  %v10224 = vadd.f32 %v9995, %v10146
  %v10225 = vadd.f32 %v9996, %v10151
  %v10226 = vadd.f32 %v9997, %v10156
  %v10227 = vadd.f32 %v9998, %v10161
  %v10228 = vadd.f32 %v9999, %v10166
  %v10229 = vadd.f32 %v10000, %v10171
  %v10230 = vadd.f32 %v10001, %v10176
  %v10231 = vadd.f32 %v10002, %v10181
  %v10232 = vadd.f32 %v10003, %v10186
  %v10233 = vadd.f32 %v10004, %v10191
  %v10234 = vadd.f32 %v10005, %v10196
  %v10235 = vadd.f32 %v10006, %v10201
  %v10236 = vadd.f32 %v10007, %v10206
  %v10237 = vadd.f32 %v10008, %v10211
  %v10238 = vadd.f32 %v10009, %v10216
  %v10239 = vadd.f32 %v10010, %v10221
  %v10240 = vmul.f32 %v10224, 0.70710677
  %v10241 = vmul.f32 %v10225, 0.70710677
  %v10242 = vmul.f32 %v10226, 0.70710677
  %v10243 = vmul.f32 %v10227, 0.70710677
  %v10244 = vmul.f32 %v10228, 0.70710677
  %v10245 = vmul.f32 %v10229, 0.70710677
  %v10246 = vmul.f32 %v10230, 0.70710677
  %v10247 = vmul.f32 %v10231, 0.70710677
  %v10248 = vmul.f32 %v10232, 0.70710677
  %v10249 = vmul.f32 %v10233, 0.70710677
  %v10250 = vmul.f32 %v10234, 0.70710677
  %v10251 = vmul.f32 %v10235, 0.70710677
  %v10252 = vmul.f32 %v10236, 0.70710677
  %v10253 = vmul.f32 %v10237, 0.70710677
  %v10254 = vmul.f32 %v10238, 0.70710677
  %v10255 = vmul.f32 %v10239, 0.70710677
  %10256 = vst.msk [vmem:[%s11] sm:$0xff] %vm9802, %v10240
  %10257 = vst.msk [vmem:[%s11 + $0x8] sm:$0xff] %vm9802, %v10241
  %10258 = vst.msk [vmem:[%s11 + $0x10] sm:$0xff] %vm9802, %v10242
  %10259 = vst.msk [vmem:[%s11 + $0x18] sm:$0xff] %vm9802, %v10243
  %10260 = vst.msk [vmem:[%s11 + $0x20] sm:$0xff] %vm9802, %v10244
  %10261 = vst.msk [vmem:[%s11 + $0x28] sm:$0xff] %vm9802, %v10245
  %10262 = vst.msk [vmem:[%s11 + $0x30] sm:$0xff] %vm9802, %v10246
  %10263 = vst.msk [vmem:[%s11 + $0x38] sm:$0xff] %vm9802, %v10247
  %10264 = vst.msk [vmem:[%s11 + $0x40] sm:$0xff] %vm9802, %v10248
  %10265 = vst.msk [vmem:[%s11 + $0x48] sm:$0xff] %vm9802, %v10249
  %10266 = vst.msk [vmem:[%s11 + $0x50] sm:$0xff] %vm9802, %v10250
  %10267 = vst.msk [vmem:[%s11 + $0x58] sm:$0xff] %vm9802, %v10251
  %10268 = vst.msk [vmem:[%s11 + $0x60] sm:$0xff] %vm9802, %v10252
  %10269 = vst.msk [vmem:[%s11 + $0x68] sm:$0xff] %vm9802, %v10253
  %10270 = vst.msk [vmem:[%s11 + $0x70] sm:$0xff] %vm9802, %v10254
  %10271 = vst.msk [vmem:[%s11 + $0x78] sm:$0xff] %vm9802, %v10255
  // Predicated region
  $region46: #{res_block_bn.1} parent=0 // pred_check
    _
  $region47: #{res_block_bn.1} parent=0 // pred_check_branch
    %10273 = sbr.rel (0) target = $region49
  $region48: #{res_block_bn.1} parent=0 // pred_region
    _
  $region49: #{res_block_bn.1} parent=0 // pred_fallthru
    _
  // Predicated region
  $region50: #{res_block_bn.1} parent=0 // pred_check
    _
  $region51: #{res_block_bn.1} parent=0 // pred_check_branch
    %10275 = sbr.rel (0) target = $region53
  $region52: #{res_block_bn.1} parent=0 // pred_region
    _
  $region53: #{res_block_bn.1} parent=0 // pred_fallthru
    _

</llo_original>
